<compile_context>
chip_gen: v7x
topology: tpu7x:2x2x1
jax: 0.10.0
libtpu: 0.0.40
codegen_flags: <defaults>
</compile_context>

<pallas_src>
import numpy as np
import jax
import jax.numpy as jnp
from jax.experimental import pallas as pl
from jax.experimental.pallas import tpu as pltpu

HIDDEN = 32          # hidden_dim (small synthetic stand-in for 128)
T_DIM = 8            # TimeEncoder dim
VOTE_ATTR_DIM = 4    # [polarity, f0, f1, f2] (timestamp column already stripped)
LN_EPS = 1e-5

NODE_TYPES = ['bill', 'bill_version', 'legislator_term', 'committee',
              'donor', 'lobby_firm', 'legislator']
NUM_NODES = {'bill': 5, 'bill_version': 10, 'legislator_term': 8, 'committee': 4,
             'donor': 6, 'lobby_firm': 5, 'legislator': 7}
IN_DIMS = {'bill': 10, 'bill_version': 12, 'legislator_term': 14, 'committee': 6,
           'donor': 7, 'lobby_firm': 9, 'legislator': 11}
TIME_NODES = ('legislator_term', 'bill_version', 'committee', 'bill')

VOTE_EDGE = ('legislator_term', 'voted_on', 'bill_version')
LE_EDGES = {('donor', 'donated_to', 'legislator_term'),
            ('lobby_firm', 'lobbied', 'legislator_term'),
            ('legislator_term', 'member_of', 'committee')}
EDGE_TYPES = [
    VOTE_EDGE,
    ('donor', 'donated_to', 'legislator_term'),
    ('lobby_firm', 'lobbied', 'legislator_term'),
    ('legislator_term', 'member_of', 'committee'),
    ('bill_version', 'is_version', 'bill'),
    ('bill_version', 'priorVersion', 'bill_version'),
    ('legislator', 'samePerson', 'legislator_term'),
    ('lobby_firm', 'lobbied', 'committee'),
    ('legislator_term', 'wrote', 'bill_version'),
]
NUM_EDGES = dict(zip(EDGE_TYPES, [16, 10, 9, 8, 10, 6, 8, 7, 9]))

NT = len(NODE_TYPES)          # 7 node types
NET = len(EDGE_TYPES)         # 9 edge types
R_PAD = 16                    # node rows per type, padded (multiple of 8, >= max 10)
IN_PAD = 32                   # padded input feature lanes (max real = 22)
H_PAD = 128                   # lane-dense padded output width
NE_PAD = 16                   # vote edges, padded
VRAW_PAD = 8                  # padded vote raw-attr lanes (real = 3)


# -------------------------------------------------------------------- weight-pack layout
def _build_pack_layout():
    # Every block is 8-row aligned so all in-kernel slab loads are sublane-aligned.
    layout = [
        ('sage_wlr', 2 * HIDDEN), ('sage_bl', 8),
        ('le_w1', HIDDEN), ('le_b1', 8),
        ('le_w32', 2 * HIDDEN), ('le_b3', 8),
        ('pol_wm1', VRAW_PAD), ('pol_bm1', 8),
        ('pol_wm2', HIDDEN), ('pol_bm2', 8),
        ('pol_wlin', HIDDEN), ('pol_blin', 8),
        ('pol_wg1', HIDDEN), ('pol_bg1', 8),
        ('pol_lng', 8), ('pol_lnb', 8),
        ('pol_wg2', HIDDEN), ('pol_bg2', 8),
        ('norm_g', 8), ('norm_b', 8),
    ]
    off, total = {}, 0
    for name, n in layout:
        off[name] = total
        total += n
    return off, total


WOFF, WPACK_ROWS = _build_pack_layout()     # 392 rows x 32 lanes f32 = ~49 KiB


# ----------------------------------------------------------------------------- kernel helpers
def _erf(x):
    # Abramowitz & Stegun 7.1.26 (|err| < 1.5e-7 -> exact at f32).
    a1, a2, a3, a4, a5 = 0.254829592, -0.284496736, 1.421413741, -1.453152027, 1.061405429
    pp = 0.3275911
    s = jnp.where(x >= 0.0, 1.0, -1.0)
    ax = jnp.abs(x)
    t = 1.0 / (1.0 + pp * ax)
    poly = ((((a5 * t + a4) * t + a3) * t + a2) * t + a1) * t
    return s * (1.0 - poly * jnp.exp(-ax * ax))


def _masked_ln(x, mask, inv_cnt, gamma, beta):
    # LayerNorm over the first `cnt` lanes of a zero-padded slab (gamma/beta zero in pads).
    mu = jnp.sum(x, axis=-1, keepdims=True) * inv_cnt
    d = (x - mu) * mask
    var = jnp.sum(d * d, axis=-1, keepdims=True) * inv_cnt
    return d * jax.lax.rsqrt(var + LN_EPS) * gamma + beta


def _ln(x, gamma, beta):
    # Plain LayerNorm over a fully-real 32-lane activation.
    mu = jnp.mean(x, axis=-1, keepdims=True)
    d = x - mu
    var = jnp.mean(d * d, axis=-1, keepdims=True)
    return d * jax.lax.rsqrt(var + LN_EPS) * gamma + beta


# ----------------------------------------------------------------------------- the fused kernel
def _fused_forward_kernel(
    x_all_ref, in_mask_ref, in_inv_ref, pg_ref, pb_ref, pw_ref,
    adj_ref, deg_ref, vgath_ref, vscat_ref, vmap_ref, vpol_ref, vraw_ref,
    fw_ref, fb_ref, wpack_hbm_ref,
    out_ref,
    wvm_ref, dma_sem,
):
    f32 = jnp.float32
    relu = lambda v: jnp.maximum(v, 0.0)

    def mm(a, b):
        return jnp.dot(a, b, preferred_element_type=f32)

    # Stage-2/3 weights are not needed yet: start their single DMA now and hide it
    # behind the stage-1 projector compute.
    wdma = pltpu.make_async_copy(wpack_hbm_ref, wvm_ref, dma_sem)
    wdma.start()

    # ---- stage 1: FeatureProjector (masked LayerNorm -> Linear(no bias) -> exact GELU)
    h = {}
    for t, nt in enumerate(NODE_TYPES):
        x = x_all_ref[t]                                            # (R_PAD, IN_PAD)
        y = _masked_ln(x, in_mask_ref[t], in_inv_ref[t], pg_ref[t], pb_ref[t])
        z = mm(y, pw_ref[t])                                        # (R_PAD, HIDDEN)
        h[nt] = 0.5 * z * (1.0 + _erf(z * 0.7071067811865475))

    # conv / norm weights become visible from here on
    wdma.wait()

    def wslab(name, rows):
        off = WOFF[name]
        return wvm_ref[off:off + rows, :]

    # ---- stage 2: process_edges (sequential; later edge types see earlier updates)
    for ei, et in enumerate(EDGE_TYPES):
        src_t, _, dst_t = et
        h_src, h_dst = h[src_t], h[dst_t]
        if et == VOTE_EDGE:
            # PolarityAwareConv: edge MLP -> polarity gate -> GINEConv
            e1 = relu(mm(vraw_ref[...], wslab('pol_wm1', VRAW_PAD)) + wslab('pol_bm1', 1))
            e2 = mm(e1, wslab('pol_wm2', HIDDEN)) + wslab('pol_bm2', 1)
            gated = e2 * (vpol_ref[...] + 0.01)
            x_j = mm(vgath_ref[...], h_src)                         # per-edge gather of x_src
            m = relu(x_j + mm(gated, wslab('pol_wlin', HIDDEN)) + wslab('pol_blin', 1))
            agg = mm(vscat_ref[...], m) + h_src                     # GINE sum-agg + (1+eps)*x
            g = mm(agg, wslab('pol_wg1', HIDDEN)) + wslab('pol_bg1', 1)
            g = relu(_ln(g, wslab('pol_lng', 1), wslab('pol_lnb', 1)))
            msg = mm(g, wslab('pol_wg2', HIDDEN)) + wslab('pol_bg2', 1)
            # reference branch 1: new_dst[unique_dst] += msg (unique->row map baked on host)
            h[dst_t] = h_dst + mm(vmap_ref[...], msg)
        elif et in LE_EDGES:
            # LEConv: sum_j (lin1(x_j) - lin2(x_i)) + lin3(x_i); K-stacked [w3 | w2] matmul
            a = mm(h_src, wslab('le_w1', HIDDEN)) + wslab('le_b1', 1)
            agg = mm(adj_ref[ei], a)                                # host-precomputed adjacency
            d = deg_ref[ei]                                         # (R_PAD, 1) in-degree
            cat = jnp.concatenate([h_dst, -(d * h_dst)], axis=1)    # (R_PAD, 2*HIDDEN)
            msg = agg + mm(cat, wslab('le_w32', 2 * HIDDEN)) + wslab('le_b3', 1)
            h[dst_t] = h_dst + msg
        else:
            # SAGEConv(mean): lin_l(mean_j x_j) + lin_r(x_dst); K-stacked [wl | wr] matmul
            mean = mm(adj_ref[ei], h_src)                           # adjacency pre-scaled 1/deg
            cat = jnp.concatenate([mean, h_dst], axis=1)            # (R_PAD, 2*HIDDEN)
            msg = mm(cat, wslab('sage_wlr', 2 * HIDDEN)) + wslab('sage_bl', 1)
            h[dst_t] = 0.8 * h_dst + 0.2 * msg

    # ---- stage 3: apply_normalization (LayerNorm -> ReLU -> Dropout(eval) -> final_linear)
    ng = wslab('norm_g', 8)
    nb = wslab('norm_b', 8)
    rows = []
    for t, nt in enumerate(NODE_TYPES):
        rows.append(relu(_ln(h[nt], ng[t:t + 1, :], nb[t:t + 1, :])))
    yfull = jnp.concatenate(rows, axis=0)                           # (NT*R_PAD, HIDDEN)
    # single shared final_linear, lane-dense (112, 128) store
    out_ref[...] = mm(yfull, fw_ref[...]) + fb_ref[...]


# ----------------------------------------------------------------------------- pallas plumbing
def _fused_call(args):
    n_in = len(args)
    return pl.pallas_call(
        _fused_forward_kernel,
        out_shape=jax.ShapeDtypeStruct((NT * R_PAD, H_PAD), jnp.float32),
        # no grid: exactly one program, no pipeline scaffolding.
        in_specs=[pl.BlockSpec()] * (n_in - 1) + [pl.BlockSpec(memory_space=pl.ANY)],
        out_specs=pl.BlockSpec(),
        scratch_shapes=[
            pltpu.VMEM((WPACK_ROWS, HIDDEN), jnp.float32),   # weight pack landing buffer
            pltpu.SemaphoreType.DMA,                          # its completion semaphore
        ],
    )(*args)


# ----------------------------------------------------------------------------- JAX glue
def sanitize(x, clamp=10000.0):
    x = jnp.nan_to_num(x.astype(jnp.float32), nan=0.0, posinf=clamp, neginf=-clamp)
    return jnp.clip(x, -clamp, clamp)


def time_encode(t):
    inv = 1.0 / (8.0 ** jnp.linspace(0.0, 4.0, T_DIM // 2))
    t = jnp.nan_to_num(t, nan=0.0, posinf=0.0, neginf=0.0)
    freqs = t[..., None] * inv
    return jnp.concatenate([jnp.sin(freqs), jnp.cos(freqs)], axis=-1)


@jax.jit
def fused_forward(pparams, pedges, feats, timestamps, vote_attr):
    # pack node features into one row/lane padded slab (sanitize + time encode glue)
    x_all = jnp.zeros((NT, R_PAD, IN_PAD), jnp.float32)
    for t, nt in enumerate(NODE_TYPES):
        x = sanitize(feats[nt])
        if nt in TIME_NODES:
            x = jnp.concatenate([x, time_encode(timestamps[nt])], axis=-1)
        x_all = x_all.at[t, :x.shape[0], :x.shape[1]].set(x)

    # vote edge attributes: polarity gate + raw features
    pol = jnp.clip(vote_attr[:, 0:1], 0.0, 1.0)
    raw = vote_attr[:, 1:]
    ne = vote_attr.shape[0]
    vpol = jnp.zeros((NE_PAD, 1), jnp.float32).at[:ne].set(pol)
    vraw = jnp.zeros((NE_PAD, VRAW_PAD), jnp.float32).at[:ne, :raw.shape[1]].set(raw)

    args = (
        x_all, pparams['in_mask'], pparams['in_inv'],
        pparams['proj_g'], pparams['proj_b'], pparams['proj_w'],
        pedges['adj'], pedges['deg'],
        pedges['vgath'], pedges['vscat'], pedges['vmap'],
        vpol, vraw,
        pparams['final_w'], pparams['final_b'],
        pparams['wpack'],
    )
    out = _fused_call(args)
    return {nt: out[t * R_PAD:t * R_PAD + NUM_NODES[nt], :HIDDEN]
            for t, nt in enumerate(NODE_TYPES)}


# ----------------------------------------------------------------------------- param packing
def _pad2(a, rows, cols):
    out = np.zeros((rows, cols), np.float32)
    a = np.asarray(a, np.float32)
    out[:a.shape[0], :a.shape[1]] = a
    return out


def pack_params(params):
    pg = np.zeros((NT, 1, IN_PAD), np.float32)
    pb = np.zeros((NT, 1, IN_PAD), np.float32)
    pw = np.zeros((NT, IN_PAD, HIDDEN), np.float32)
    im = np.zeros((NT, 1, IN_PAD), np.float32)
    iv = np.zeros((NT, 1, 1), np.float32)
    for t, nt in enumerate(NODE_TYPES):
        total_in = IN_DIMS[nt] + (T_DIM if nt in TIME_NODES else 0)
        pp = params['proj'][nt]
        pg[t, 0, :total_in] = np.asarray(pp['gamma'])[0]
        pb[t, 0, :total_in] = np.asarray(pp['beta'])[0]
        pw[t, :total_in, :] = np.asarray(pp['w'])
        im[t, 0, :total_in] = 1.0
        iv[t, 0, 0] = 1.0 / float(total_in)

    # single compact (WPACK_ROWS, HIDDEN) pack for everything needed from stage 2 onward
    wpack = np.zeros((WPACK_ROWS, HIDDEN), np.float32)

    def put(name, arr):
        a = np.asarray(arr, np.float32)
        if a.ndim == 1:
            a = a[None, :]
        wpack[WOFF[name]:WOFF[name] + a.shape[0], :a.shape[1]] = a

    sp, lp, po, fp = params['sage'], params['le'], params['pol'], params['final']
    put('sage_wlr', np.concatenate([np.asarray(sp['wl']), np.asarray(sp['wr'])], axis=0))
    put('sage_bl', sp['bl'])
    put('le_w1', lp['w1'])
    put('le_b1', lp['b1'])
    put('le_w32', np.concatenate([np.asarray(lp['w3']), np.asarray(lp['w2'])], axis=0))
    put('le_b3', lp['b3'])
    put('pol_wm1', po['wm1'])
    put('pol_bm1', po['bm1'])
    put('pol_wm2', po['wm2'])
    put('pol_bm2', po['bm2'])
    put('pol_wlin', po['wlin'])
    put('pol_blin', po['blin'])
    put('pol_wg1', po['wg1'])
    put('pol_bg1', po['bg1'])
    put('pol_lng', po['lng'])
    put('pol_lnb', po['lnb'])
    put('pol_wg2', po['wg2'])
    put('pol_bg2', po['bg2'])
    put('norm_g', np.stack([np.asarray(params['norm'][nt]['gamma'])[0] for nt in NODE_TYPES]))
    put('norm_b', np.stack([np.asarray(params['norm'][nt]['beta'])[0] for nt in NODE_TYPES]))

    return dict(
        in_mask=jnp.asarray(im), in_inv=jnp.asarray(iv),
        proj_g=jnp.asarray(pg), proj_b=jnp.asarray(pb), proj_w=jnp.asarray(pw),
        final_w=jnp.asarray(_pad2(fp['w'], HIDDEN, H_PAD)),
        final_b=jnp.asarray(_pad2(fp['b'], 1, H_PAD)),
        wpack=jnp.asarray(wpack),
    )


def pack_edges(edges):
    # dense adjacency / degrees precomputed on host (static graph)
    adj = np.zeros((NET, R_PAD, R_PAD), np.float32)
    deg = np.zeros((NET, R_PAD, 1), np.float32)
    for ei, et in enumerate(EDGE_TYPES):
        if et == VOTE_EDGE:
            continue
        e = np.asarray(edges[et])
        A = np.zeros((R_PAD, R_PAD), np.float32)
        np.add.at(A, (e[1], e[0]), 1.0)
        d = A.sum(axis=1, keepdims=True)
        deg[ei] = d
        # SAGE uses mean aggregation -> fold 1/deg into the adjacency; LE keeps raw sums
        adj[ei] = A if et in LE_EDGES else A / np.maximum(d, 1.0)

    # vote edge gather / scatter one-hots + torch.unique branch resolved on host
    ev = np.asarray(edges[VOTE_EDGE])
    ne = ev.shape[1]
    vgath = np.zeros((NE_PAD, R_PAD), np.float32)
    vgath[np.arange(ne), ev[0]] = 1.0
    vscat = np.zeros((R_PAD, NE_PAD), np.float32)
    vscat[ev[1], np.arange(ne)] = 1.0
    uniq = np.unique(ev[1])
    assert uniq.shape[0] == NUM_NODES[VOTE_EDGE[0]], \
        "reference branch 1 requires msg rows == unique dst count"
    vmap = np.zeros((R_PAD, R_PAD), np.float32)
    vmap[uniq, np.arange(uniq.shape[0])] = 1.0
    return dict(adj=jnp.asarray(adj), deg=jnp.asarray(deg),
                vgath=jnp.asarray(vgath), vscat=jnp.asarray(vscat),
                vmap=jnp.asarray(vmap))


# ----------------------------------------------------------------------------- pure-JAX reference
def _ln_ref(x, gamma, beta):
    mu = jnp.mean(x, axis=-1, keepdims=True)
    var = jnp.mean((x - mu) ** 2, axis=-1, keepdims=True)
    return (x - mu) * jax.lax.rsqrt(var + LN_EPS) * gamma + beta


def _mm_ref(a, b):
    return jnp.dot(a, b, precision=jax.lax.Precision.HIGHEST)


def reference_forward(params, feats, timestamps, edges, edge_attrs):
    x_dict = {}
    for nt in NODE_TYPES:
        x = sanitize(feats[nt])
        if nt in TIME_NODES:
            x = jnp.concatenate([x, time_encode(timestamps[nt])], axis=-1)
        pp = params['proj'][nt]
        z = _mm_ref(_ln_ref(x, pp['gamma'], pp['beta']), pp['w'])
        x_dict[nt] = 0.5 * z * (1.0 + _erf(z * 0.7071067811865475))
    for et in EDGE_TYPES:
        src_t, _, dst_t = et
        ei = edges[et]
        h_src, h_dst = x_dict[src_t], x_dict[dst_t]
        if et == VOTE_EDGE:
            p = params['pol']
            ea = edge_attrs[et]
            pol = jnp.clip(ea[:, 0:1], 0.0, 1.0)
            raw = ea[:, 1:]
            e = _mm_ref(jnp.maximum(_mm_ref(raw, p['wm1']) + p['bm1'], 0.0), p['wm2']) + p['bm2']
            gated = e * (pol + 0.01)
            m = jnp.maximum(h_src[ei[0]] + _mm_ref(gated, p['wlin']) + p['blin'], 0.0)
            agg = jnp.zeros_like(h_src).at[ei[1]].add(m) + h_src
            g = _mm_ref(agg, p['wg1']) + p['bg1']
            g = jnp.maximum(_ln_ref(g, p['lng'], p['lnb']), 0.0)
            msg = _mm_ref(g, p['wg2']) + p['bg2']
            uniq = jnp.asarray(np.unique(np.asarray(ei[1])))
            x_dict[dst_t] = h_dst.at[uniq].add(msg)
        elif et in LE_EDGES:
            p = params['le']
            a = _mm_ref(h_src, p['w1']) + p['b1']
            b = _mm_ref(h_dst, p['w2'])
            nd = h_dst.shape[0]
            agg = jnp.zeros((nd, HIDDEN), jnp.float32).at[ei[1]].add(a[ei[0]])
            dg = jnp.zeros((nd, 1), jnp.float32).at[ei[1]].add(1.0)
            msg = agg - dg * b + _mm_ref(h_dst, p['w3']) + p['b3']
            x_dict[dst_t] = h_dst + msg
        else:
            p = params['sage']
            nd = h_dst.shape[0]
            agg = jnp.zeros((nd, HIDDEN), jnp.float32).at[ei[1]].add(h_src[ei[0]])
            dg = jnp.zeros((nd, 1), jnp.float32).at[ei[1]].add(1.0)
            mean = agg / jnp.maximum(dg, 1.0)
            msg = _mm_ref(mean, p['wl']) + p['bl'] + _mm_ref(h_dst, p['wr'])
            x_dict[dst_t] = 0.8 * h_dst + 0.2 * msg
    out = {}
    for nt in NODE_TYPES:
        pn = params['norm'][nt]
        y = jnp.maximum(_ln_ref(x_dict[nt], pn['gamma'], pn['beta']), 0.0)
        out[nt] = _mm_ref(y, params['final']['w']) + params['final']['b']
    return out


# ----------------------------------------------------------------------------- params / inputs
def _linear_params(key, fan_in, fan_out, bias=True):
    kw, kb = jax.random.split(key)
    bound = float(np.sqrt(6.0 / fan_in))                    # kaiming-uniform-style bound
    w = jax.random.uniform(kw, (fan_in, fan_out), jnp.float32, -bound, bound)
    if not bias:
        return w
    bb = 1.0 / float(np.sqrt(fan_in))
    b = jax.random.uniform(kb, (1, fan_out), jnp.float32, -bb, bb)
    return w, b


def make_params(key):
    p = {'proj': {}, 'norm': {}}
    for nt in NODE_TYPES:
        total_in = IN_DIMS[nt] + (T_DIM if nt in TIME_NODES else 0)
        key, k = jax.random.split(key)
        p['proj'][nt] = {'gamma': jnp.ones((1, total_in), jnp.float32),
                         'beta': jnp.zeros((1, total_in), jnp.float32),
                         'w': _linear_params(k, total_in, HIDDEN, bias=False)}
        p['norm'][nt] = {'gamma': jnp.ones((1, HIDDEN), jnp.float32),
                         'beta': jnp.zeros((1, HIDDEN), jnp.float32)}
    key, k1, k2 = jax.random.split(key, 3)
    wl, bl = _linear_params(k1, HIDDEN, HIDDEN)
    p['sage'] = {'wl': wl, 'bl': bl, 'wr': _linear_params(k2, HIDDEN, HIDDEN, bias=False)}
    key, k1, k2, k3 = jax.random.split(key, 4)
    w1, b1 = _linear_params(k1, HIDDEN, HIDDEN)
    w3, b3 = _linear_params(k3, HIDDEN, HIDDEN)
    p['le'] = {'w1': w1, 'b1': b1, 'w2': _linear_params(k2, HIDDEN, HIDDEN, bias=False),
               'w3': w3, 'b3': b3}
    fdim = VOTE_ATTR_DIM - 1
    key, k1, k2, k3, k4, k5 = jax.random.split(key, 6)
    wm1, bm1 = _linear_params(k1, fdim, HIDDEN)
    wm2, bm2 = _linear_params(k2, HIDDEN, HIDDEN)
    wlin, blin = _linear_params(k3, HIDDEN, HIDDEN)
    wg1, bg1 = _linear_params(k4, HIDDEN, HIDDEN)
    wg2, bg2 = _linear_params(k5, HIDDEN, HIDDEN)
    p['pol'] = {'wm1': wm1, 'bm1': bm1, 'wm2': wm2, 'bm2': bm2,
                'wlin': wlin, 'blin': blin, 'wg1': wg1, 'bg1': bg1,
                'lng': jnp.ones((1, HIDDEN), jnp.float32),
                'lnb': jnp.zeros((1, HIDDEN), jnp.float32),
                'wg2': wg2, 'bg2': bg2}
    key, kf = jax.random.split(key)
    wf, bf = _linear_params(kf, HIDDEN, HIDDEN)
    p['final'] = {'w': wf, 'b': bf}
    return p, key


def make_inputs(key):
    feats, ts = {}, {}
    for nt in NODE_TYPES:
        key, k = jax.random.split(key)
        feats[nt] = jax.random.normal(k, (NUM_NODES[nt], IN_DIMS[nt]), jnp.float32)
    for nt in TIME_NODES:
        key, k = jax.random.split(key)
        ts[nt] = jax.random.uniform(k, (NUM_NODES[nt],), jnp.float32)
    edges, eattrs = {}, {}
    for et in EDGE_TYPES:
        src_t, _, dst_t = et
        ne = NUM_EDGES[et]
        key, k1, k2 = jax.random.split(key, 3)
        src = jax.random.randint(k1, (ne,), 0, NUM_NODES[src_t])
        if et == VOTE_EDGE:
            # dst hits exactly num_legislator_term distinct bill_versions so the reference
            # code's first update branch (msg rows == unique dst count) fires.
            dst = jnp.tile(jnp.arange(NUM_NODES['legislator_term'], dtype=jnp.int32),
                           ne // NUM_NODES['legislator_term'])
        else:
            dst = jax.random.randint(k2, (ne,), 0, NUM_NODES[dst_t])
        edges[et] = jnp.stack([src.astype(jnp.int32), dst.astype(jnp.int32)])
        if et == VOTE_EDGE:
            key, ka = jax.random.split(key)
            eattrs[et] = jax.random.normal(ka, (ne, VOTE_ATTR_DIM), jnp.float32)
    return feats, ts, edges, eattrs


if __name__ == "__main__":
    key = jax.random.PRNGKey(0)
    params, key = make_params(key)
    feats, ts, edges, eattrs = make_inputs(key)

    pparams = pack_params(params)        # packed once (compact weight pack + projector params)
    pedges = pack_edges(edges)           # static adjacency / gather / scatter packed once

    out = fused_forward(pparams, pedges, feats, ts, eattrs[VOTE_EDGE])
    out = jax.block_until_ready(out)

    ref = reference_forward(params, feats, ts, edges, eattrs)
    for nt in NODE_TYPES:
        assert out[nt].shape == (NUM_NODES[nt], HIDDEN)
        assert bool(jnp.all(jnp.isfinite(out[nt])))
        np.testing.assert_allclose(np.asarray(out[nt]), np.asarray(ref[nt]),
                                   rtol=1e-2, atol=1e-2)
    print("KERNEL_OK")
</pallas_src>

<mosaic_0001>
module attributes {stable_mosaic.version = 11 : i64} {
  func.func @_fused_forward_kernel(%arg0: memref<7x16x32xf32, #tpu.memory_space<vmem>>, %arg1: memref<7x1x32xf32, #tpu.memory_space<vmem>>, %arg2: memref<7x1x1xf32, #tpu.memory_space<vmem>>, %arg3: memref<7x1x32xf32, #tpu.memory_space<vmem>>, %arg4: memref<7x1x32xf32, #tpu.memory_space<vmem>>, %arg5: memref<7x32x32xf32, #tpu.memory_space<vmem>>, %arg6: memref<9x16x16xf32, #tpu.memory_space<vmem>>, %arg7: memref<9x16x1xf32, #tpu.memory_space<vmem>>, %arg8: memref<16x16xf32, #tpu.memory_space<vmem>>, %arg9: memref<16x16xf32, #tpu.memory_space<vmem>>, %arg10: memref<16x16xf32, #tpu.memory_space<vmem>>, %arg11: memref<16x1xf32, #tpu.memory_space<vmem>>, %arg12: memref<16x8xf32, #tpu.memory_space<vmem>>, %arg13: memref<32x128xf32, #tpu.memory_space<vmem>>, %arg14: memref<1x128xf32, #tpu.memory_space<vmem>>, %arg15: memref<392x32xf32, #tpu.memory_space<any>>, %arg16: memref<112x128xf32, #tpu.memory_space<vmem>>, %arg17: memref<392x32xf32, #tpu.memory_space<vmem>>, %arg18: memref<!tpu.dma_semaphore, #tpu.memory_space<semaphore_mem>>) attributes {dimension_semantics = [], scalar_prefetch = 0 : i64, scratch_operands = 2 : i64, tpu.core_type = #tpu.core_type<tc>} {
    tpu.enqueue_dma source(%arg15 : memref<392x32xf32, #tpu.memory_space<any>>) target(%arg17 : memref<392x32xf32, #tpu.memory_space<vmem>>) target_semaphore(%arg18 : memref<!tpu.dma_semaphore, #tpu.memory_space<semaphore_mem>>)
    %c0 = arith.constant 0 : index
    %c0_0 = arith.constant 0 : index
    %c0_1 = arith.constant 0 : index
    %0 = vector.load %arg0[%c0, %c0_0, %c0_1] : memref<7x16x32xf32, #tpu.memory_space<vmem>>, vector<1x16x32xf32>
    %1 = vector.shape_cast %0 : vector<1x16x32xf32> to vector<16x32xf32>
    %c0_2 = arith.constant 0 : index
    %c0_3 = arith.constant 0 : index
    %c0_4 = arith.constant 0 : index
    %2 = vector.load %arg1[%c0_2, %c0_3, %c0_4] : memref<7x1x32xf32, #tpu.memory_space<vmem>>, vector<1x1x32xf32>
    %3 = vector.shape_cast %2 : vector<1x1x32xf32> to vector<1x32xf32>
    %c0_5 = arith.constant 0 : index
    %c0_6 = arith.constant 0 : index
    %c0_7 = arith.constant 0 : index
    %4 = vector.load %arg2[%c0_5, %c0_6, %c0_7] : memref<7x1x1xf32, #tpu.memory_space<vmem>>, vector<1x1x1xf32>
    %5 = vector.shape_cast %4 : vector<1x1x1xf32> to vector<1x1xf32>
    %c0_8 = arith.constant 0 : index
    %c0_9 = arith.constant 0 : index
    %c0_10 = arith.constant 0 : index
    %6 = vector.load %arg3[%c0_8, %c0_9, %c0_10] : memref<7x1x32xf32, #tpu.memory_space<vmem>>, vector<1x1x32xf32>
    %7 = vector.shape_cast %6 : vector<1x1x32xf32> to vector<1x32xf32>
    %c0_11 = arith.constant 0 : index
    %c0_12 = arith.constant 0 : index
    %c0_13 = arith.constant 0 : index
    %8 = vector.load %arg4[%c0_11, %c0_12, %c0_13] : memref<7x1x32xf32, #tpu.memory_space<vmem>>, vector<1x1x32xf32>
    %9 = vector.shape_cast %8 : vector<1x1x32xf32> to vector<1x32xf32>
    %cst = arith.constant dense<0.000000e+00> : vector<16xf32>
    %10 = vector.multi_reduction <add>, %1, %cst [1] : vector<16x32xf32> to vector<16xf32>
    %11 = vector.shape_cast %10 : vector<16xf32> to vector<16x1xf32>
    %12 = vector.broadcast %5 : vector<1x1xf32> to vector<16x1xf32>
    %13 = arith.mulf %11, %12 : vector<16x1xf32>
    %14 = vector.broadcast %13 : vector<16x1xf32> to vector<16x32xf32>
    %15 = arith.subf %1, %14 : vector<16x32xf32>
    %16 = vector.broadcast %3 : vector<1x32xf32> to vector<16x32xf32>
    %17 = arith.mulf %15, %16 : vector<16x32xf32>
    %18 = arith.mulf %17, %17 : vector<16x32xf32>
    %cst_14 = arith.constant dense<0.000000e+00> : vector<16xf32>
    %19 = vector.multi_reduction <add>, %18, %cst_14 [1] : vector<16x32xf32> to vector<16xf32>
    %20 = vector.shape_cast %19 : vector<16xf32> to vector<16x1xf32>
    %21 = vector.broadcast %5 : vector<1x1xf32> to vector<16x1xf32>
    %22 = arith.mulf %20, %21 : vector<16x1xf32>
    %cst_15 = arith.constant 9.99999974E-6 : f32
    %23 = vector.broadcast %cst_15 : f32 to vector<16x1xf32>
    %24 = arith.addf %22, %23 : vector<16x1xf32>
    %25 = math.rsqrt %24 : vector<16x1xf32>
    %26 = vector.broadcast %25 : vector<16x1xf32> to vector<16x32xf32>
    %27 = arith.mulf %17, %26 : vector<16x32xf32>
    %28 = vector.broadcast %7 : vector<1x32xf32> to vector<16x32xf32>
    %29 = arith.mulf %27, %28 : vector<16x32xf32>
    %30 = vector.broadcast %9 : vector<1x32xf32> to vector<16x32xf32>
    %31 = arith.addf %29, %30 : vector<16x32xf32>
    %c0_16 = arith.constant 0 : index
    %c0_17 = arith.constant 0 : index
    %c0_18 = arith.constant 0 : index
    %32 = vector.load %arg5[%c0_16, %c0_17, %c0_18] : memref<7x32x32xf32, #tpu.memory_space<vmem>>, vector<1x32x32xf32>
    %33 = vector.shape_cast %32 : vector<1x32x32xf32> to vector<32x32xf32>
    %cst_19 = arith.constant dense<0.000000e+00> : vector<16x32xf32>
    %34 = tpu.matmul %31, %33, %cst_19 {dimension_numbers = #tpu.dot_dimension_numbers<[1], [0], [0], [1], [0, 0, 1, 1], [], []>} : vector<16x32xf32>, vector<32x32xf32>, vector<16x32xf32> -> vector<16x32xf32>
    %cst_20 = arith.constant 5.000000e-01 : f32
    %35 = vector.broadcast %cst_20 : f32 to vector<16x32xf32>
    %36 = arith.mulf %35, %34 : vector<16x32xf32>
    %cst_21 = arith.constant 0.707106769 : f32
    %37 = vector.broadcast %cst_21 : f32 to vector<16x32xf32>
    %38 = arith.mulf %34, %37 : vector<16x32xf32>
    %cst_22 = arith.constant 0.000000e+00 : f32
    %39 = vector.broadcast %cst_22 : f32 to vector<16x32xf32>
    %40 = arith.cmpf oge, %38, %39 : vector<16x32xf32>
    %cst_23 = arith.constant 1.000000e+00 : f32
    %cst_24 = arith.constant -1.000000e+00 : f32
    %41 = vector.broadcast %cst_23 : f32 to vector<16x32xf32>
    %42 = vector.broadcast %cst_24 : f32 to vector<16x32xf32>
    %43 = arith.select %40, %41, %42 : vector<16x32xi1>, vector<16x32xf32>
    %44 = math.absf %38 : vector<16x32xf32>
    %cst_25 = arith.constant 0.327591091 : f32
    %45 = vector.broadcast %cst_25 : f32 to vector<16x32xf32>
    %46 = arith.mulf %45, %44 : vector<16x32xf32>
    %cst_26 = arith.constant 1.000000e+00 : f32
    %47 = vector.broadcast %cst_26 : f32 to vector<16x32xf32>
    %48 = arith.addf %47, %46 : vector<16x32xf32>
    %cst_27 = arith.constant 1.000000e+00 : f32
    %49 = vector.broadcast %cst_27 : f32 to vector<16x32xf32>
    %50 = arith.divf %49, %48 : vector<16x32xf32>
    %cst_28 = arith.constant 1.06140542 : f32
    %51 = vector.broadcast %cst_28 : f32 to vector<16x32xf32>
    %52 = arith.mulf %51, %50 : vector<16x32xf32>
    %cst_29 = arith.constant -1.45315206 : f32
    %53 = vector.broadcast %cst_29 : f32 to vector<16x32xf32>
    %54 = arith.addf %52, %53 : vector<16x32xf32>
    %55 = arith.mulf %54, %50 : vector<16x32xf32>
    %cst_30 = arith.constant 1.42141378 : f32
    %56 = vector.broadcast %cst_30 : f32 to vector<16x32xf32>
    %57 = arith.addf %55, %56 : vector<16x32xf32>
    %58 = arith.mulf %57, %50 : vector<16x32xf32>
    %cst_31 = arith.constant -0.284496725 : f32
    %59 = vector.broadcast %cst_31 : f32 to vector<16x32xf32>
    %60 = arith.addf %58, %59 : vector<16x32xf32>
    %61 = arith.mulf %60, %50 : vector<16x32xf32>
    %cst_32 = arith.constant 0.254829586 : f32
    %62 = vector.broadcast %cst_32 : f32 to vector<16x32xf32>
    %63 = arith.addf %61, %62 : vector<16x32xf32>
    %64 = arith.mulf %63, %50 : vector<16x32xf32>
    %cst_33 = arith.constant 0.000000e+00 : f32
    %65 = vector.broadcast %cst_33 : f32 to vector<16x32xf32>
    %66 = arith.subf %65, %44 : vector<16x32xf32>
    %67 = arith.mulf %66, %44 : vector<16x32xf32>
    %68 = math.exp %67 : vector<16x32xf32>
    %69 = arith.mulf %64, %68 : vector<16x32xf32>
    %cst_34 = arith.constant 1.000000e+00 : f32
    %70 = vector.broadcast %cst_34 : f32 to vector<16x32xf32>
    %71 = arith.subf %70, %69 : vector<16x32xf32>
    %72 = arith.mulf %43, %71 : vector<16x32xf32>
    %cst_35 = arith.constant 1.000000e+00 : f32
    %73 = vector.broadcast %cst_35 : f32 to vector<16x32xf32>
    %74 = arith.addf %73, %72 : vector<16x32xf32>
    %75 = arith.mulf %36, %74 : vector<16x32xf32>
    %c1 = arith.constant 1 : index
    %c0_36 = arith.constant 0 : index
    %c0_37 = arith.constant 0 : index
    %76 = vector.load %arg0[%c1, %c0_36, %c0_37] : memref<7x16x32xf32, #tpu.memory_space<vmem>>, vector<1x16x32xf32>
    %77 = vector.shape_cast %76 : vector<1x16x32xf32> to vector<16x32xf32>
    %c1_38 = arith.constant 1 : index
    %c0_39 = arith.constant 0 : index
    %c0_40 = arith.constant 0 : index
    %78 = vector.load %arg1[%c1_38, %c0_39, %c0_40] : memref<7x1x32xf32, #tpu.memory_space<vmem>>, vector<1x1x32xf32>
    %79 = vector.shape_cast %78 : vector<1x1x32xf32> to vector<1x32xf32>
    %c1_41 = arith.constant 1 : index
    %c0_42 = arith.constant 0 : index
    %c0_43 = arith.constant 0 : index
    %80 = vector.load %arg2[%c1_41, %c0_42, %c0_43] : memref<7x1x1xf32, #tpu.memory_space<vmem>>, vector<1x1x1xf32>
    %81 = vector.shape_cast %80 : vector<1x1x1xf32> to vector<1x1xf32>
    %c1_44 = arith.constant 1 : index
    %c0_45 = arith.constant 0 : index
    %c0_46 = arith.constant 0 : index
    %82 = vector.load %arg3[%c1_44, %c0_45, %c0_46] : memref<7x1x32xf32, #tpu.memory_space<vmem>>, vector<1x1x32xf32>
    %83 = vector.shape_cast %82 : vector<1x1x32xf32> to vector<1x32xf32>
    %c1_47 = arith.constant 1 : index
    %c0_48 = arith.constant 0 : index
    %c0_49 = arith.constant 0 : index
    %84 = vector.load %arg4[%c1_47, %c0_48, %c0_49] : memref<7x1x32xf32, #tpu.memory_space<vmem>>, vector<1x1x32xf32>
    %85 = vector.shape_cast %84 : vector<1x1x32xf32> to vector<1x32xf32>
    %cst_50 = arith.constant dense<0.000000e+00> : vector<16xf32>
    %86 = vector.multi_reduction <add>, %77, %cst_50 [1] : vector<16x32xf32> to vector<16xf32>
    %87 = vector.shape_cast %86 : vector<16xf32> to vector<16x1xf32>
    %88 = vector.broadcast %81 : vector<1x1xf32> to vector<16x1xf32>
    %89 = arith.mulf %87, %88 : vector<16x1xf32>
    %90 = vector.broadcast %89 : vector<16x1xf32> to vector<16x32xf32>
    %91 = arith.subf %77, %90 : vector<16x32xf32>
    %92 = vector.broadcast %79 : vector<1x32xf32> to vector<16x32xf32>
    %93 = arith.mulf %91, %92 : vector<16x32xf32>
    %94 = arith.mulf %93, %93 : vector<16x32xf32>
    %cst_51 = arith.constant dense<0.000000e+00> : vector<16xf32>
    %95 = vector.multi_reduction <add>, %94, %cst_51 [1] : vector<16x32xf32> to vector<16xf32>
    %96 = vector.shape_cast %95 : vector<16xf32> to vector<16x1xf32>
    %97 = vector.broadcast %81 : vector<1x1xf32> to vector<16x1xf32>
    %98 = arith.mulf %96, %97 : vector<16x1xf32>
    %cst_52 = arith.constant 9.99999974E-6 : f32
    %99 = vector.broadcast %cst_52 : f32 to vector<16x1xf32>
    %100 = arith.addf %98, %99 : vector<16x1xf32>
    %101 = math.rsqrt %100 : vector<16x1xf32>
    %102 = vector.broadcast %101 : vector<16x1xf32> to vector<16x32xf32>
    %103 = arith.mulf %93, %102 : vector<16x32xf32>
    %104 = vector.broadcast %83 : vector<1x32xf32> to vector<16x32xf32>
    %105 = arith.mulf %103, %104 : vector<16x32xf32>
    %106 = vector.broadcast %85 : vector<1x32xf32> to vector<16x32xf32>
    %107 = arith.addf %105, %106 : vector<16x32xf32>
    %c1_53 = arith.constant 1 : index
    %c0_54 = arith.constant 0 : index
    %c0_55 = arith.constant 0 : index
    %108 = vector.load %arg5[%c1_53, %c0_54, %c0_55] : memref<7x32x32xf32, #tpu.memory_space<vmem>>, vector<1x32x32xf32>
    %109 = vector.shape_cast %108 : vector<1x32x32xf32> to vector<32x32xf32>
    %cst_56 = arith.constant dense<0.000000e+00> : vector<16x32xf32>
    %110 = tpu.matmul %107, %109, %cst_56 {dimension_numbers = #tpu.dot_dimension_numbers<[1], [0], [0], [1], [0, 0, 1, 1], [], []>} : vector<16x32xf32>, vector<32x32xf32>, vector<16x32xf32> -> vector<16x32xf32>
    %cst_57 = arith.constant 5.000000e-01 : f32
    %111 = vector.broadcast %cst_57 : f32 to vector<16x32xf32>
    %112 = arith.mulf %111, %110 : vector<16x32xf32>
    %cst_58 = arith.constant 0.707106769 : f32
    %113 = vector.broadcast %cst_58 : f32 to vector<16x32xf32>
    %114 = arith.mulf %110, %113 : vector<16x32xf32>
    %cst_59 = arith.constant 0.000000e+00 : f32
    %115 = vector.broadcast %cst_59 : f32 to vector<16x32xf32>
    %116 = arith.cmpf oge, %114, %115 : vector<16x32xf32>
    %cst_60 = arith.constant 1.000000e+00 : f32
    %cst_61 = arith.constant -1.000000e+00 : f32
    %117 = vector.broadcast %cst_60 : f32 to vector<16x32xf32>
    %118 = vector.broadcast %cst_61 : f32 to vector<16x32xf32>
    %119 = arith.select %116, %117, %118 : vector<16x32xi1>, vector<16x32xf32>
    %120 = math.absf %114 : vector<16x32xf32>
    %cst_62 = arith.constant 0.327591091 : f32
    %121 = vector.broadcast %cst_62 : f32 to vector<16x32xf32>
    %122 = arith.mulf %121, %120 : vector<16x32xf32>
    %cst_63 = arith.constant 1.000000e+00 : f32
    %123 = vector.broadcast %cst_63 : f32 to vector<16x32xf32>
    %124 = arith.addf %123, %122 : vector<16x32xf32>
    %cst_64 = arith.constant 1.000000e+00 : f32
    %125 = vector.broadcast %cst_64 : f32 to vector<16x32xf32>
    %126 = arith.divf %125, %124 : vector<16x32xf32>
    %cst_65 = arith.constant 1.06140542 : f32
    %127 = vector.broadcast %cst_65 : f32 to vector<16x32xf32>
    %128 = arith.mulf %127, %126 : vector<16x32xf32>
    %cst_66 = arith.constant -1.45315206 : f32
    %129 = vector.broadcast %cst_66 : f32 to vector<16x32xf32>
    %130 = arith.addf %128, %129 : vector<16x32xf32>
    %131 = arith.mulf %130, %126 : vector<16x32xf32>
    %cst_67 = arith.constant 1.42141378 : f32
    %132 = vector.broadcast %cst_67 : f32 to vector<16x32xf32>
    %133 = arith.addf %131, %132 : vector<16x32xf32>
    %134 = arith.mulf %133, %126 : vector<16x32xf32>
    %cst_68 = arith.constant -0.284496725 : f32
    %135 = vector.broadcast %cst_68 : f32 to vector<16x32xf32>
    %136 = arith.addf %134, %135 : vector<16x32xf32>
    %137 = arith.mulf %136, %126 : vector<16x32xf32>
    %cst_69 = arith.constant 0.254829586 : f32
    %138 = vector.broadcast %cst_69 : f32 to vector<16x32xf32>
    %139 = arith.addf %137, %138 : vector<16x32xf32>
    %140 = arith.mulf %139, %126 : vector<16x32xf32>
    %cst_70 = arith.constant 0.000000e+00 : f32
    %141 = vector.broadcast %cst_70 : f32 to vector<16x32xf32>
    %142 = arith.subf %141, %120 : vector<16x32xf32>
    %143 = arith.mulf %142, %120 : vector<16x32xf32>
    %144 = math.exp %143 : vector<16x32xf32>
    %145 = arith.mulf %140, %144 : vector<16x32xf32>
    %cst_71 = arith.constant 1.000000e+00 : f32
    %146 = vector.broadcast %cst_71 : f32 to vector<16x32xf32>
    %147 = arith.subf %146, %145 : vector<16x32xf32>
    %148 = arith.mulf %119, %147 : vector<16x32xf32>
    %cst_72 = arith.constant 1.000000e+00 : f32
    %149 = vector.broadcast %cst_72 : f32 to vector<16x32xf32>
    %150 = arith.addf %149, %148 : vector<16x32xf32>
    %151 = arith.mulf %112, %150 : vector<16x32xf32>
    %c2 = arith.constant 2 : index
    %c0_73 = arith.constant 0 : index
    %c0_74 = arith.constant 0 : index
    %152 = vector.load %arg0[%c2, %c0_73, %c0_74] : memref<7x16x32xf32, #tpu.memory_space<vmem>>, vector<1x16x32xf32>
    %153 = vector.shape_cast %152 : vector<1x16x32xf32> to vector<16x32xf32>
    %c2_75 = arith.constant 2 : index
    %c0_76 = arith.constant 0 : index
    %c0_77 = arith.constant 0 : index
    %154 = vector.load %arg1[%c2_75, %c0_76, %c0_77] : memref<7x1x32xf32, #tpu.memory_space<vmem>>, vector<1x1x32xf32>
    %155 = vector.shape_cast %154 : vector<1x1x32xf32> to vector<1x32xf32>
    %c2_78 = arith.constant 2 : index
    %c0_79 = arith.constant 0 : index
    %c0_80 = arith.constant 0 : index
    %156 = vector.load %arg2[%c2_78, %c0_79, %c0_80] : memref<7x1x1xf32, #tpu.memory_space<vmem>>, vector<1x1x1xf32>
    %157 = vector.shape_cast %156 : vector<1x1x1xf32> to vector<1x1xf32>
    %c2_81 = arith.constant 2 : index
    %c0_82 = arith.constant 0 : index
    %c0_83 = arith.constant 0 : index
    %158 = vector.load %arg3[%c2_81, %c0_82, %c0_83] : memref<7x1x32xf32, #tpu.memory_space<vmem>>, vector<1x1x32xf32>
    %159 = vector.shape_cast %158 : vector<1x1x32xf32> to vector<1x32xf32>
    %c2_84 = arith.constant 2 : index
    %c0_85 = arith.constant 0 : index
    %c0_86 = arith.constant 0 : index
    %160 = vector.load %arg4[%c2_84, %c0_85, %c0_86] : memref<7x1x32xf32, #tpu.memory_space<vmem>>, vector<1x1x32xf32>
    %161 = vector.shape_cast %160 : vector<1x1x32xf32> to vector<1x32xf32>
    %cst_87 = arith.constant dense<0.000000e+00> : vector<16xf32>
    %162 = vector.multi_reduction <add>, %153, %cst_87 [1] : vector<16x32xf32> to vector<16xf32>
    %163 = vector.shape_cast %162 : vector<16xf32> to vector<16x1xf32>
    %164 = vector.broadcast %157 : vector<1x1xf32> to vector<16x1xf32>
    %165 = arith.mulf %163, %164 : vector<16x1xf32>
    %166 = vector.broadcast %165 : vector<16x1xf32> to vector<16x32xf32>
    %167 = arith.subf %153, %166 : vector<16x32xf32>
    %168 = vector.broadcast %155 : vector<1x32xf32> to vector<16x32xf32>
    %169 = arith.mulf %167, %168 : vector<16x32xf32>
    %170 = arith.mulf %169, %169 : vector<16x32xf32>
    %cst_88 = arith.constant dense<0.000000e+00> : vector<16xf32>
    %171 = vector.multi_reduction <add>, %170, %cst_88 [1] : vector<16x32xf32> to vector<16xf32>
    %172 = vector.shape_cast %171 : vector<16xf32> to vector<16x1xf32>
    %173 = vector.broadcast %157 : vector<1x1xf32> to vector<16x1xf32>
    %174 = arith.mulf %172, %173 : vector<16x1xf32>
    %cst_89 = arith.constant 9.99999974E-6 : f32
    %175 = vector.broadcast %cst_89 : f32 to vector<16x1xf32>
    %176 = arith.addf %174, %175 : vector<16x1xf32>
    %177 = math.rsqrt %176 : vector<16x1xf32>
    %178 = vector.broadcast %177 : vector<16x1xf32> to vector<16x32xf32>
    %179 = arith.mulf %169, %178 : vector<16x32xf32>
    %180 = vector.broadcast %159 : vector<1x32xf32> to vector<16x32xf32>
    %181 = arith.mulf %179, %180 : vector<16x32xf32>
    %182 = vector.broadcast %161 : vector<1x32xf32> to vector<16x32xf32>
    %183 = arith.addf %181, %182 : vector<16x32xf32>
    %c2_90 = arith.constant 2 : index
    %c0_91 = arith.constant 0 : index
    %c0_92 = arith.constant 0 : index
    %184 = vector.load %arg5[%c2_90, %c0_91, %c0_92] : memref<7x32x32xf32, #tpu.memory_space<vmem>>, vector<1x32x32xf32>
    %185 = vector.shape_cast %184 : vector<1x32x32xf32> to vector<32x32xf32>
    %cst_93 = arith.constant dense<0.000000e+00> : vector<16x32xf32>
    %186 = tpu.matmul %183, %185, %cst_93 {dimension_numbers = #tpu.dot_dimension_numbers<[1], [0], [0], [1], [0, 0, 1, 1], [], []>} : vector<16x32xf32>, vector<32x32xf32>, vector<16x32xf32> -> vector<16x32xf32>
    %cst_94 = arith.constant 5.000000e-01 : f32
    %187 = vector.broadcast %cst_94 : f32 to vector<16x32xf32>
    %188 = arith.mulf %187, %186 : vector<16x32xf32>
    %cst_95 = arith.constant 0.707106769 : f32
    %189 = vector.broadcast %cst_95 : f32 to vector<16x32xf32>
    %190 = arith.mulf %186, %189 : vector<16x32xf32>
    %cst_96 = arith.constant 0.000000e+00 : f32
    %191 = vector.broadcast %cst_96 : f32 to vector<16x32xf32>
    %192 = arith.cmpf oge, %190, %191 : vector<16x32xf32>
    %cst_97 = arith.constant 1.000000e+00 : f32
    %cst_98 = arith.constant -1.000000e+00 : f32
    %193 = vector.broadcast %cst_97 : f32 to vector<16x32xf32>
    %194 = vector.broadcast %cst_98 : f32 to vector<16x32xf32>
    %195 = arith.select %192, %193, %194 : vector<16x32xi1>, vector<16x32xf32>
    %196 = math.absf %190 : vector<16x32xf32>
    %cst_99 = arith.constant 0.327591091 : f32
    %197 = vector.broadcast %cst_99 : f32 to vector<16x32xf32>
    %198 = arith.mulf %197, %196 : vector<16x32xf32>
    %cst_100 = arith.constant 1.000000e+00 : f32
    %199 = vector.broadcast %cst_100 : f32 to vector<16x32xf32>
    %200 = arith.addf %199, %198 : vector<16x32xf32>
    %cst_101 = arith.constant 1.000000e+00 : f32
    %201 = vector.broadcast %cst_101 : f32 to vector<16x32xf32>
    %202 = arith.divf %201, %200 : vector<16x32xf32>
    %cst_102 = arith.constant 1.06140542 : f32
    %203 = vector.broadcast %cst_102 : f32 to vector<16x32xf32>
    %204 = arith.mulf %203, %202 : vector<16x32xf32>
    %cst_103 = arith.constant -1.45315206 : f32
    %205 = vector.broadcast %cst_103 : f32 to vector<16x32xf32>
    %206 = arith.addf %204, %205 : vector<16x32xf32>
    %207 = arith.mulf %206, %202 : vector<16x32xf32>
    %cst_104 = arith.constant 1.42141378 : f32
    %208 = vector.broadcast %cst_104 : f32 to vector<16x32xf32>
    %209 = arith.addf %207, %208 : vector<16x32xf32>
    %210 = arith.mulf %209, %202 : vector<16x32xf32>
    %cst_105 = arith.constant -0.284496725 : f32
    %211 = vector.broadcast %cst_105 : f32 to vector<16x32xf32>
    %212 = arith.addf %210, %211 : vector<16x32xf32>
    %213 = arith.mulf %212, %202 : vector<16x32xf32>
    %cst_106 = arith.constant 0.254829586 : f32
    %214 = vector.broadcast %cst_106 : f32 to vector<16x32xf32>
    %215 = arith.addf %213, %214 : vector<16x32xf32>
    %216 = arith.mulf %215, %202 : vector<16x32xf32>
    %cst_107 = arith.constant 0.000000e+00 : f32
    %217 = vector.broadcast %cst_107 : f32 to vector<16x32xf32>
    %218 = arith.subf %217, %196 : vector<16x32xf32>
    %219 = arith.mulf %218, %196 : vector<16x32xf32>
    %220 = math.exp %219 : vector<16x32xf32>
    %221 = arith.mulf %216, %220 : vector<16x32xf32>
    %cst_108 = arith.constant 1.000000e+00 : f32
    %222 = vector.broadcast %cst_108 : f32 to vector<16x32xf32>
    %223 = arith.subf %222, %221 : vector<16x32xf32>
    %224 = arith.mulf %195, %223 : vector<16x32xf32>
    %cst_109 = arith.constant 1.000000e+00 : f32
    %225 = vector.broadcast %cst_109 : f32 to vector<16x32xf32>
    %226 = arith.addf %225, %224 : vector<16x32xf32>
    %227 = arith.mulf %188, %226 : vector<16x32xf32>
    %c3 = arith.constant 3 : index
    %c0_110 = arith.constant 0 : index
    %c0_111 = arith.constant 0 : index
    %228 = vector.load %arg0[%c3, %c0_110, %c0_111] : memref<7x16x32xf32, #tpu.memory_space<vmem>>, vector<1x16x32xf32>
    %229 = vector.shape_cast %228 : vector<1x16x32xf32> to vector<16x32xf32>
    %c3_112 = arith.constant 3 : index
    %c0_113 = arith.constant 0 : index
    %c0_114 = arith.constant 0 : index
    %230 = vector.load %arg1[%c3_112, %c0_113, %c0_114] : memref<7x1x32xf32, #tpu.memory_space<vmem>>, vector<1x1x32xf32>
    %231 = vector.shape_cast %230 : vector<1x1x32xf32> to vector<1x32xf32>
    %c3_115 = arith.constant 3 : index
    %c0_116 = arith.constant 0 : index
    %c0_117 = arith.constant 0 : index
    %232 = vector.load %arg2[%c3_115, %c0_116, %c0_117] : memref<7x1x1xf32, #tpu.memory_space<vmem>>, vector<1x1x1xf32>
    %233 = vector.shape_cast %232 : vector<1x1x1xf32> to vector<1x1xf32>
    %c3_118 = arith.constant 3 : index
    %c0_119 = arith.constant 0 : index
    %c0_120 = arith.constant 0 : index
    %234 = vector.load %arg3[%c3_118, %c0_119, %c0_120] : memref<7x1x32xf32, #tpu.memory_space<vmem>>, vector<1x1x32xf32>
    %235 = vector.shape_cast %234 : vector<1x1x32xf32> to vector<1x32xf32>
    %c3_121 = arith.constant 3 : index
    %c0_122 = arith.constant 0 : index
    %c0_123 = arith.constant 0 : index
    %236 = vector.load %arg4[%c3_121, %c0_122, %c0_123] : memref<7x1x32xf32, #tpu.memory_space<vmem>>, vector<1x1x32xf32>
    %237 = vector.shape_cast %236 : vector<1x1x32xf32> to vector<1x32xf32>
    %cst_124 = arith.constant dense<0.000000e+00> : vector<16xf32>
    %238 = vector.multi_reduction <add>, %229, %cst_124 [1] : vector<16x32xf32> to vector<16xf32>
    %239 = vector.shape_cast %238 : vector<16xf32> to vector<16x1xf32>
    %240 = vector.broadcast %233 : vector<1x1xf32> to vector<16x1xf32>
    %241 = arith.mulf %239, %240 : vector<16x1xf32>
    %242 = vector.broadcast %241 : vector<16x1xf32> to vector<16x32xf32>
    %243 = arith.subf %229, %242 : vector<16x32xf32>
    %244 = vector.broadcast %231 : vector<1x32xf32> to vector<16x32xf32>
    %245 = arith.mulf %243, %244 : vector<16x32xf32>
    %246 = arith.mulf %245, %245 : vector<16x32xf32>
    %cst_125 = arith.constant dense<0.000000e+00> : vector<16xf32>
    %247 = vector.multi_reduction <add>, %246, %cst_125 [1] : vector<16x32xf32> to vector<16xf32>
    %248 = vector.shape_cast %247 : vector<16xf32> to vector<16x1xf32>
    %249 = vector.broadcast %233 : vector<1x1xf32> to vector<16x1xf32>
    %250 = arith.mulf %248, %249 : vector<16x1xf32>
    %cst_126 = arith.constant 9.99999974E-6 : f32
    %251 = vector.broadcast %cst_126 : f32 to vector<16x1xf32>
    %252 = arith.addf %250, %251 : vector<16x1xf32>
    %253 = math.rsqrt %252 : vector<16x1xf32>
    %254 = vector.broadcast %253 : vector<16x1xf32> to vector<16x32xf32>
    %255 = arith.mulf %245, %254 : vector<16x32xf32>
    %256 = vector.broadcast %235 : vector<1x32xf32> to vector<16x32xf32>
    %257 = arith.mulf %255, %256 : vector<16x32xf32>
    %258 = vector.broadcast %237 : vector<1x32xf32> to vector<16x32xf32>
    %259 = arith.addf %257, %258 : vector<16x32xf32>
    %c3_127 = arith.constant 3 : index
    %c0_128 = arith.constant 0 : index
    %c0_129 = arith.constant 0 : index
    %260 = vector.load %arg5[%c3_127, %c0_128, %c0_129] : memref<7x32x32xf32, #tpu.memory_space<vmem>>, vector<1x32x32xf32>
    %261 = vector.shape_cast %260 : vector<1x32x32xf32> to vector<32x32xf32>
    %cst_130 = arith.constant dense<0.000000e+00> : vector<16x32xf32>
    %262 = tpu.matmul %259, %261, %cst_130 {dimension_numbers = #tpu.dot_dimension_numbers<[1], [0], [0], [1], [0, 0, 1, 1], [], []>} : vector<16x32xf32>, vector<32x32xf32>, vector<16x32xf32> -> vector<16x32xf32>
    %cst_131 = arith.constant 5.000000e-01 : f32
    %263 = vector.broadcast %cst_131 : f32 to vector<16x32xf32>
    %264 = arith.mulf %263, %262 : vector<16x32xf32>
    %cst_132 = arith.constant 0.707106769 : f32
    %265 = vector.broadcast %cst_132 : f32 to vector<16x32xf32>
    %266 = arith.mulf %262, %265 : vector<16x32xf32>
    %cst_133 = arith.constant 0.000000e+00 : f32
    %267 = vector.broadcast %cst_133 : f32 to vector<16x32xf32>
    %268 = arith.cmpf oge, %266, %267 : vector<16x32xf32>
    %cst_134 = arith.constant 1.000000e+00 : f32
    %cst_135 = arith.constant -1.000000e+00 : f32
    %269 = vector.broadcast %cst_134 : f32 to vector<16x32xf32>
    %270 = vector.broadcast %cst_135 : f32 to vector<16x32xf32>
    %271 = arith.select %268, %269, %270 : vector<16x32xi1>, vector<16x32xf32>
    %272 = math.absf %266 : vector<16x32xf32>
    %cst_136 = arith.constant 0.327591091 : f32
    %273 = vector.broadcast %cst_136 : f32 to vector<16x32xf32>
    %274 = arith.mulf %273, %272 : vector<16x32xf32>
    %cst_137 = arith.constant 1.000000e+00 : f32
    %275 = vector.broadcast %cst_137 : f32 to vector<16x32xf32>
    %276 = arith.addf %275, %274 : vector<16x32xf32>
    %cst_138 = arith.constant 1.000000e+00 : f32
    %277 = vector.broadcast %cst_138 : f32 to vector<16x32xf32>
    %278 = arith.divf %277, %276 : vector<16x32xf32>
    %cst_139 = arith.constant 1.06140542 : f32
    %279 = vector.broadcast %cst_139 : f32 to vector<16x32xf32>
    %280 = arith.mulf %279, %278 : vector<16x32xf32>
    %cst_140 = arith.constant -1.45315206 : f32
    %281 = vector.broadcast %cst_140 : f32 to vector<16x32xf32>
    %282 = arith.addf %280, %281 : vector<16x32xf32>
    %283 = arith.mulf %282, %278 : vector<16x32xf32>
    %cst_141 = arith.constant 1.42141378 : f32
    %284 = vector.broadcast %cst_141 : f32 to vector<16x32xf32>
    %285 = arith.addf %283, %284 : vector<16x32xf32>
    %286 = arith.mulf %285, %278 : vector<16x32xf32>
    %cst_142 = arith.constant -0.284496725 : f32
    %287 = vector.broadcast %cst_142 : f32 to vector<16x32xf32>
    %288 = arith.addf %286, %287 : vector<16x32xf32>
    %289 = arith.mulf %288, %278 : vector<16x32xf32>
    %cst_143 = arith.constant 0.254829586 : f32
    %290 = vector.broadcast %cst_143 : f32 to vector<16x32xf32>
    %291 = arith.addf %289, %290 : vector<16x32xf32>
    %292 = arith.mulf %291, %278 : vector<16x32xf32>
    %cst_144 = arith.constant 0.000000e+00 : f32
    %293 = vector.broadcast %cst_144 : f32 to vector<16x32xf32>
    %294 = arith.subf %293, %272 : vector<16x32xf32>
    %295 = arith.mulf %294, %272 : vector<16x32xf32>
    %296 = math.exp %295 : vector<16x32xf32>
    %297 = arith.mulf %292, %296 : vector<16x32xf32>
    %cst_145 = arith.constant 1.000000e+00 : f32
    %298 = vector.broadcast %cst_145 : f32 to vector<16x32xf32>
    %299 = arith.subf %298, %297 : vector<16x32xf32>
    %300 = arith.mulf %271, %299 : vector<16x32xf32>
    %cst_146 = arith.constant 1.000000e+00 : f32
    %301 = vector.broadcast %cst_146 : f32 to vector<16x32xf32>
    %302 = arith.addf %301, %300 : vector<16x32xf32>
    %303 = arith.mulf %264, %302 : vector<16x32xf32>
    %c4 = arith.constant 4 : index
    %c0_147 = arith.constant 0 : index
    %c0_148 = arith.constant 0 : index
    %304 = vector.load %arg0[%c4, %c0_147, %c0_148] : memref<7x16x32xf32, #tpu.memory_space<vmem>>, vector<1x16x32xf32>
    %305 = vector.shape_cast %304 : vector<1x16x32xf32> to vector<16x32xf32>
    %c4_149 = arith.constant 4 : index
    %c0_150 = arith.constant 0 : index
    %c0_151 = arith.constant 0 : index
    %306 = vector.load %arg1[%c4_149, %c0_150, %c0_151] : memref<7x1x32xf32, #tpu.memory_space<vmem>>, vector<1x1x32xf32>
    %307 = vector.shape_cast %306 : vector<1x1x32xf32> to vector<1x32xf32>
    %c4_152 = arith.constant 4 : index
    %c0_153 = arith.constant 0 : index
    %c0_154 = arith.constant 0 : index
    %308 = vector.load %arg2[%c4_152, %c0_153, %c0_154] : memref<7x1x1xf32, #tpu.memory_space<vmem>>, vector<1x1x1xf32>
    %309 = vector.shape_cast %308 : vector<1x1x1xf32> to vector<1x1xf32>
    %c4_155 = arith.constant 4 : index
    %c0_156 = arith.constant 0 : index
    %c0_157 = arith.constant 0 : index
    %310 = vector.load %arg3[%c4_155, %c0_156, %c0_157] : memref<7x1x32xf32, #tpu.memory_space<vmem>>, vector<1x1x32xf32>
    %311 = vector.shape_cast %310 : vector<1x1x32xf32> to vector<1x32xf32>
    %c4_158 = arith.constant 4 : index
    %c0_159 = arith.constant 0 : index
    %c0_160 = arith.constant 0 : index
    %312 = vector.load %arg4[%c4_158, %c0_159, %c0_160] : memref<7x1x32xf32, #tpu.memory_space<vmem>>, vector<1x1x32xf32>
    %313 = vector.shape_cast %312 : vector<1x1x32xf32> to vector<1x32xf32>
    %cst_161 = arith.constant dense<0.000000e+00> : vector<16xf32>
    %314 = vector.multi_reduction <add>, %305, %cst_161 [1] : vector<16x32xf32> to vector<16xf32>
    %315 = vector.shape_cast %314 : vector<16xf32> to vector<16x1xf32>
    %316 = vector.broadcast %309 : vector<1x1xf32> to vector<16x1xf32>
    %317 = arith.mulf %315, %316 : vector<16x1xf32>
    %318 = vector.broadcast %317 : vector<16x1xf32> to vector<16x32xf32>
    %319 = arith.subf %305, %318 : vector<16x32xf32>
    %320 = vector.broadcast %307 : vector<1x32xf32> to vector<16x32xf32>
    %321 = arith.mulf %319, %320 : vector<16x32xf32>
    %322 = arith.mulf %321, %321 : vector<16x32xf32>
    %cst_162 = arith.constant dense<0.000000e+00> : vector<16xf32>
    %323 = vector.multi_reduction <add>, %322, %cst_162 [1] : vector<16x32xf32> to vector<16xf32>
    %324 = vector.shape_cast %323 : vector<16xf32> to vector<16x1xf32>
    %325 = vector.broadcast %309 : vector<1x1xf32> to vector<16x1xf32>
    %326 = arith.mulf %324, %325 : vector<16x1xf32>
    %cst_163 = arith.constant 9.99999974E-6 : f32
    %327 = vector.broadcast %cst_163 : f32 to vector<16x1xf32>
    %328 = arith.addf %326, %327 : vector<16x1xf32>
    %329 = math.rsqrt %328 : vector<16x1xf32>
    %330 = vector.broadcast %329 : vector<16x1xf32> to vector<16x32xf32>
    %331 = arith.mulf %321, %330 : vector<16x32xf32>
    %332 = vector.broadcast %311 : vector<1x32xf32> to vector<16x32xf32>
    %333 = arith.mulf %331, %332 : vector<16x32xf32>
    %334 = vector.broadcast %313 : vector<1x32xf32> to vector<16x32xf32>
    %335 = arith.addf %333, %334 : vector<16x32xf32>
    %c4_164 = arith.constant 4 : index
    %c0_165 = arith.constant 0 : index
    %c0_166 = arith.constant 0 : index
    %336 = vector.load %arg5[%c4_164, %c0_165, %c0_166] : memref<7x32x32xf32, #tpu.memory_space<vmem>>, vector<1x32x32xf32>
    %337 = vector.shape_cast %336 : vector<1x32x32xf32> to vector<32x32xf32>
    %cst_167 = arith.constant dense<0.000000e+00> : vector<16x32xf32>
    %338 = tpu.matmul %335, %337, %cst_167 {dimension_numbers = #tpu.dot_dimension_numbers<[1], [0], [0], [1], [0, 0, 1, 1], [], []>} : vector<16x32xf32>, vector<32x32xf32>, vector<16x32xf32> -> vector<16x32xf32>
    %cst_168 = arith.constant 5.000000e-01 : f32
    %339 = vector.broadcast %cst_168 : f32 to vector<16x32xf32>
    %340 = arith.mulf %339, %338 : vector<16x32xf32>
    %cst_169 = arith.constant 0.707106769 : f32
    %341 = vector.broadcast %cst_169 : f32 to vector<16x32xf32>
    %342 = arith.mulf %338, %341 : vector<16x32xf32>
    %cst_170 = arith.constant 0.000000e+00 : f32
    %343 = vector.broadcast %cst_170 : f32 to vector<16x32xf32>
    %344 = arith.cmpf oge, %342, %343 : vector<16x32xf32>
    %cst_171 = arith.constant 1.000000e+00 : f32
    %cst_172 = arith.constant -1.000000e+00 : f32
    %345 = vector.broadcast %cst_171 : f32 to vector<16x32xf32>
    %346 = vector.broadcast %cst_172 : f32 to vector<16x32xf32>
    %347 = arith.select %344, %345, %346 : vector<16x32xi1>, vector<16x32xf32>
    %348 = math.absf %342 : vector<16x32xf32>
    %cst_173 = arith.constant 0.327591091 : f32
    %349 = vector.broadcast %cst_173 : f32 to vector<16x32xf32>
    %350 = arith.mulf %349, %348 : vector<16x32xf32>
    %cst_174 = arith.constant 1.000000e+00 : f32
    %351 = vector.broadcast %cst_174 : f32 to vector<16x32xf32>
    %352 = arith.addf %351, %350 : vector<16x32xf32>
    %cst_175 = arith.constant 1.000000e+00 : f32
    %353 = vector.broadcast %cst_175 : f32 to vector<16x32xf32>
    %354 = arith.divf %353, %352 : vector<16x32xf32>
    %cst_176 = arith.constant 1.06140542 : f32
    %355 = vector.broadcast %cst_176 : f32 to vector<16x32xf32>
    %356 = arith.mulf %355, %354 : vector<16x32xf32>
    %cst_177 = arith.constant -1.45315206 : f32
    %357 = vector.broadcast %cst_177 : f32 to vector<16x32xf32>
    %358 = arith.addf %356, %357 : vector<16x32xf32>
    %359 = arith.mulf %358, %354 : vector<16x32xf32>
    %cst_178 = arith.constant 1.42141378 : f32
    %360 = vector.broadcast %cst_178 : f32 to vector<16x32xf32>
    %361 = arith.addf %359, %360 : vector<16x32xf32>
    %362 = arith.mulf %361, %354 : vector<16x32xf32>
    %cst_179 = arith.constant -0.284496725 : f32
    %363 = vector.broadcast %cst_179 : f32 to vector<16x32xf32>
    %364 = arith.addf %362, %363 : vector<16x32xf32>
    %365 = arith.mulf %364, %354 : vector<16x32xf32>
    %cst_180 = arith.constant 0.254829586 : f32
    %366 = vector.broadcast %cst_180 : f32 to vector<16x32xf32>
    %367 = arith.addf %365, %366 : vector<16x32xf32>
    %368 = arith.mulf %367, %354 : vector<16x32xf32>
    %cst_181 = arith.constant 0.000000e+00 : f32
    %369 = vector.broadcast %cst_181 : f32 to vector<16x32xf32>
    %370 = arith.subf %369, %348 : vector<16x32xf32>
    %371 = arith.mulf %370, %348 : vector<16x32xf32>
    %372 = math.exp %371 : vector<16x32xf32>
    %373 = arith.mulf %368, %372 : vector<16x32xf32>
    %cst_182 = arith.constant 1.000000e+00 : f32
    %374 = vector.broadcast %cst_182 : f32 to vector<16x32xf32>
    %375 = arith.subf %374, %373 : vector<16x32xf32>
    %376 = arith.mulf %347, %375 : vector<16x32xf32>
    %cst_183 = arith.constant 1.000000e+00 : f32
    %377 = vector.broadcast %cst_183 : f32 to vector<16x32xf32>
    %378 = arith.addf %377, %376 : vector<16x32xf32>
    %379 = arith.mulf %340, %378 : vector<16x32xf32>
    %c5 = arith.constant 5 : index
    %c0_184 = arith.constant 0 : index
    %c0_185 = arith.constant 0 : index
    %380 = vector.load %arg0[%c5, %c0_184, %c0_185] : memref<7x16x32xf32, #tpu.memory_space<vmem>>, vector<1x16x32xf32>
    %381 = vector.shape_cast %380 : vector<1x16x32xf32> to vector<16x32xf32>
    %c5_186 = arith.constant 5 : index
    %c0_187 = arith.constant 0 : index
    %c0_188 = arith.constant 0 : index
    %382 = vector.load %arg1[%c5_186, %c0_187, %c0_188] : memref<7x1x32xf32, #tpu.memory_space<vmem>>, vector<1x1x32xf32>
    %383 = vector.shape_cast %382 : vector<1x1x32xf32> to vector<1x32xf32>
    %c5_189 = arith.constant 5 : index
    %c0_190 = arith.constant 0 : index
    %c0_191 = arith.constant 0 : index
    %384 = vector.load %arg2[%c5_189, %c0_190, %c0_191] : memref<7x1x1xf32, #tpu.memory_space<vmem>>, vector<1x1x1xf32>
    %385 = vector.shape_cast %384 : vector<1x1x1xf32> to vector<1x1xf32>
    %c5_192 = arith.constant 5 : index
    %c0_193 = arith.constant 0 : index
    %c0_194 = arith.constant 0 : index
    %386 = vector.load %arg3[%c5_192, %c0_193, %c0_194] : memref<7x1x32xf32, #tpu.memory_space<vmem>>, vector<1x1x32xf32>
    %387 = vector.shape_cast %386 : vector<1x1x32xf32> to vector<1x32xf32>
    %c5_195 = arith.constant 5 : index
    %c0_196 = arith.constant 0 : index
    %c0_197 = arith.constant 0 : index
    %388 = vector.load %arg4[%c5_195, %c0_196, %c0_197] : memref<7x1x32xf32, #tpu.memory_space<vmem>>, vector<1x1x32xf32>
    %389 = vector.shape_cast %388 : vector<1x1x32xf32> to vector<1x32xf32>
    %cst_198 = arith.constant dense<0.000000e+00> : vector<16xf32>
    %390 = vector.multi_reduction <add>, %381, %cst_198 [1] : vector<16x32xf32> to vector<16xf32>
    %391 = vector.shape_cast %390 : vector<16xf32> to vector<16x1xf32>
    %392 = vector.broadcast %385 : vector<1x1xf32> to vector<16x1xf32>
    %393 = arith.mulf %391, %392 : vector<16x1xf32>
    %394 = vector.broadcast %393 : vector<16x1xf32> to vector<16x32xf32>
    %395 = arith.subf %381, %394 : vector<16x32xf32>
    %396 = vector.broadcast %383 : vector<1x32xf32> to vector<16x32xf32>
    %397 = arith.mulf %395, %396 : vector<16x32xf32>
    %398 = arith.mulf %397, %397 : vector<16x32xf32>
    %cst_199 = arith.constant dense<0.000000e+00> : vector<16xf32>
    %399 = vector.multi_reduction <add>, %398, %cst_199 [1] : vector<16x32xf32> to vector<16xf32>
    %400 = vector.shape_cast %399 : vector<16xf32> to vector<16x1xf32>
    %401 = vector.broadcast %385 : vector<1x1xf32> to vector<16x1xf32>
    %402 = arith.mulf %400, %401 : vector<16x1xf32>
    %cst_200 = arith.constant 9.99999974E-6 : f32
    %403 = vector.broadcast %cst_200 : f32 to vector<16x1xf32>
    %404 = arith.addf %402, %403 : vector<16x1xf32>
    %405 = math.rsqrt %404 : vector<16x1xf32>
    %406 = vector.broadcast %405 : vector<16x1xf32> to vector<16x32xf32>
    %407 = arith.mulf %397, %406 : vector<16x32xf32>
    %408 = vector.broadcast %387 : vector<1x32xf32> to vector<16x32xf32>
    %409 = arith.mulf %407, %408 : vector<16x32xf32>
    %410 = vector.broadcast %389 : vector<1x32xf32> to vector<16x32xf32>
    %411 = arith.addf %409, %410 : vector<16x32xf32>
    %c5_201 = arith.constant 5 : index
    %c0_202 = arith.constant 0 : index
    %c0_203 = arith.constant 0 : index
    %412 = vector.load %arg5[%c5_201, %c0_202, %c0_203] : memref<7x32x32xf32, #tpu.memory_space<vmem>>, vector<1x32x32xf32>
    %413 = vector.shape_cast %412 : vector<1x32x32xf32> to vector<32x32xf32>
    %cst_204 = arith.constant dense<0.000000e+00> : vector<16x32xf32>
    %414 = tpu.matmul %411, %413, %cst_204 {dimension_numbers = #tpu.dot_dimension_numbers<[1], [0], [0], [1], [0, 0, 1, 1], [], []>} : vector<16x32xf32>, vector<32x32xf32>, vector<16x32xf32> -> vector<16x32xf32>
    %cst_205 = arith.constant 5.000000e-01 : f32
    %415 = vector.broadcast %cst_205 : f32 to vector<16x32xf32>
    %416 = arith.mulf %415, %414 : vector<16x32xf32>
    %cst_206 = arith.constant 0.707106769 : f32
    %417 = vector.broadcast %cst_206 : f32 to vector<16x32xf32>
    %418 = arith.mulf %414, %417 : vector<16x32xf32>
    %cst_207 = arith.constant 0.000000e+00 : f32
    %419 = vector.broadcast %cst_207 : f32 to vector<16x32xf32>
    %420 = arith.cmpf oge, %418, %419 : vector<16x32xf32>
    %cst_208 = arith.constant 1.000000e+00 : f32
    %cst_209 = arith.constant -1.000000e+00 : f32
    %421 = vector.broadcast %cst_208 : f32 to vector<16x32xf32>
    %422 = vector.broadcast %cst_209 : f32 to vector<16x32xf32>
    %423 = arith.select %420, %421, %422 : vector<16x32xi1>, vector<16x32xf32>
    %424 = math.absf %418 : vector<16x32xf32>
    %cst_210 = arith.constant 0.327591091 : f32
    %425 = vector.broadcast %cst_210 : f32 to vector<16x32xf32>
    %426 = arith.mulf %425, %424 : vector<16x32xf32>
    %cst_211 = arith.constant 1.000000e+00 : f32
    %427 = vector.broadcast %cst_211 : f32 to vector<16x32xf32>
    %428 = arith.addf %427, %426 : vector<16x32xf32>
    %cst_212 = arith.constant 1.000000e+00 : f32
    %429 = vector.broadcast %cst_212 : f32 to vector<16x32xf32>
    %430 = arith.divf %429, %428 : vector<16x32xf32>
    %cst_213 = arith.constant 1.06140542 : f32
    %431 = vector.broadcast %cst_213 : f32 to vector<16x32xf32>
    %432 = arith.mulf %431, %430 : vector<16x32xf32>
    %cst_214 = arith.constant -1.45315206 : f32
    %433 = vector.broadcast %cst_214 : f32 to vector<16x32xf32>
    %434 = arith.addf %432, %433 : vector<16x32xf32>
    %435 = arith.mulf %434, %430 : vector<16x32xf32>
    %cst_215 = arith.constant 1.42141378 : f32
    %436 = vector.broadcast %cst_215 : f32 to vector<16x32xf32>
    %437 = arith.addf %435, %436 : vector<16x32xf32>
    %438 = arith.mulf %437, %430 : vector<16x32xf32>
    %cst_216 = arith.constant -0.284496725 : f32
    %439 = vector.broadcast %cst_216 : f32 to vector<16x32xf32>
    %440 = arith.addf %438, %439 : vector<16x32xf32>
    %441 = arith.mulf %440, %430 : vector<16x32xf32>
    %cst_217 = arith.constant 0.254829586 : f32
    %442 = vector.broadcast %cst_217 : f32 to vector<16x32xf32>
    %443 = arith.addf %441, %442 : vector<16x32xf32>
    %444 = arith.mulf %443, %430 : vector<16x32xf32>
    %cst_218 = arith.constant 0.000000e+00 : f32
    %445 = vector.broadcast %cst_218 : f32 to vector<16x32xf32>
    %446 = arith.subf %445, %424 : vector<16x32xf32>
    %447 = arith.mulf %446, %424 : vector<16x32xf32>
    %448 = math.exp %447 : vector<16x32xf32>
    %449 = arith.mulf %444, %448 : vector<16x32xf32>
    %cst_219 = arith.constant 1.000000e+00 : f32
    %450 = vector.broadcast %cst_219 : f32 to vector<16x32xf32>
    %451 = arith.subf %450, %449 : vector<16x32xf32>
    %452 = arith.mulf %423, %451 : vector<16x32xf32>
    %cst_220 = arith.constant 1.000000e+00 : f32
    %453 = vector.broadcast %cst_220 : f32 to vector<16x32xf32>
    %454 = arith.addf %453, %452 : vector<16x32xf32>
    %455 = arith.mulf %416, %454 : vector<16x32xf32>
    %c6 = arith.constant 6 : index
    %c0_221 = arith.constant 0 : index
    %c0_222 = arith.constant 0 : index
    %456 = vector.load %arg0[%c6, %c0_221, %c0_222] : memref<7x16x32xf32, #tpu.memory_space<vmem>>, vector<1x16x32xf32>
    %457 = vector.shape_cast %456 : vector<1x16x32xf32> to vector<16x32xf32>
    %c6_223 = arith.constant 6 : index
    %c0_224 = arith.constant 0 : index
    %c0_225 = arith.constant 0 : index
    %458 = vector.load %arg1[%c6_223, %c0_224, %c0_225] : memref<7x1x32xf32, #tpu.memory_space<vmem>>, vector<1x1x32xf32>
    %459 = vector.shape_cast %458 : vector<1x1x32xf32> to vector<1x32xf32>
    %c6_226 = arith.constant 6 : index
    %c0_227 = arith.constant 0 : index
    %c0_228 = arith.constant 0 : index
    %460 = vector.load %arg2[%c6_226, %c0_227, %c0_228] : memref<7x1x1xf32, #tpu.memory_space<vmem>>, vector<1x1x1xf32>
    %461 = vector.shape_cast %460 : vector<1x1x1xf32> to vector<1x1xf32>
    %c6_229 = arith.constant 6 : index
    %c0_230 = arith.constant 0 : index
    %c0_231 = arith.constant 0 : index
    %462 = vector.load %arg3[%c6_229, %c0_230, %c0_231] : memref<7x1x32xf32, #tpu.memory_space<vmem>>, vector<1x1x32xf32>
    %463 = vector.shape_cast %462 : vector<1x1x32xf32> to vector<1x32xf32>
    %c6_232 = arith.constant 6 : index
    %c0_233 = arith.constant 0 : index
    %c0_234 = arith.constant 0 : index
    %464 = vector.load %arg4[%c6_232, %c0_233, %c0_234] : memref<7x1x32xf32, #tpu.memory_space<vmem>>, vector<1x1x32xf32>
    %465 = vector.shape_cast %464 : vector<1x1x32xf32> to vector<1x32xf32>
    %cst_235 = arith.constant dense<0.000000e+00> : vector<16xf32>
    %466 = vector.multi_reduction <add>, %457, %cst_235 [1] : vector<16x32xf32> to vector<16xf32>
    %467 = vector.shape_cast %466 : vector<16xf32> to vector<16x1xf32>
    %468 = vector.broadcast %461 : vector<1x1xf32> to vector<16x1xf32>
    %469 = arith.mulf %467, %468 : vector<16x1xf32>
    %470 = vector.broadcast %469 : vector<16x1xf32> to vector<16x32xf32>
    %471 = arith.subf %457, %470 : vector<16x32xf32>
    %472 = vector.broadcast %459 : vector<1x32xf32> to vector<16x32xf32>
    %473 = arith.mulf %471, %472 : vector<16x32xf32>
    %474 = arith.mulf %473, %473 : vector<16x32xf32>
    %cst_236 = arith.constant dense<0.000000e+00> : vector<16xf32>
    %475 = vector.multi_reduction <add>, %474, %cst_236 [1] : vector<16x32xf32> to vector<16xf32>
    %476 = vector.shape_cast %475 : vector<16xf32> to vector<16x1xf32>
    %477 = vector.broadcast %461 : vector<1x1xf32> to vector<16x1xf32>
    %478 = arith.mulf %476, %477 : vector<16x1xf32>
    %cst_237 = arith.constant 9.99999974E-6 : f32
    %479 = vector.broadcast %cst_237 : f32 to vector<16x1xf32>
    %480 = arith.addf %478, %479 : vector<16x1xf32>
    %481 = math.rsqrt %480 : vector<16x1xf32>
    %482 = vector.broadcast %481 : vector<16x1xf32> to vector<16x32xf32>
    %483 = arith.mulf %473, %482 : vector<16x32xf32>
    %484 = vector.broadcast %463 : vector<1x32xf32> to vector<16x32xf32>
    %485 = arith.mulf %483, %484 : vector<16x32xf32>
    %486 = vector.broadcast %465 : vector<1x32xf32> to vector<16x32xf32>
    %487 = arith.addf %485, %486 : vector<16x32xf32>
    %c6_238 = arith.constant 6 : index
    %c0_239 = arith.constant 0 : index
    %c0_240 = arith.constant 0 : index
    %488 = vector.load %arg5[%c6_238, %c0_239, %c0_240] : memref<7x32x32xf32, #tpu.memory_space<vmem>>, vector<1x32x32xf32>
    %489 = vector.shape_cast %488 : vector<1x32x32xf32> to vector<32x32xf32>
    %cst_241 = arith.constant dense<0.000000e+00> : vector<16x32xf32>
    %490 = tpu.matmul %487, %489, %cst_241 {dimension_numbers = #tpu.dot_dimension_numbers<[1], [0], [0], [1], [0, 0, 1, 1], [], []>} : vector<16x32xf32>, vector<32x32xf32>, vector<16x32xf32> -> vector<16x32xf32>
    %cst_242 = arith.constant 5.000000e-01 : f32
    %491 = vector.broadcast %cst_242 : f32 to vector<16x32xf32>
    %492 = arith.mulf %491, %490 : vector<16x32xf32>
    %cst_243 = arith.constant 0.707106769 : f32
    %493 = vector.broadcast %cst_243 : f32 to vector<16x32xf32>
    %494 = arith.mulf %490, %493 : vector<16x32xf32>
    %cst_244 = arith.constant 0.000000e+00 : f32
    %495 = vector.broadcast %cst_244 : f32 to vector<16x32xf32>
    %496 = arith.cmpf oge, %494, %495 : vector<16x32xf32>
    %cst_245 = arith.constant 1.000000e+00 : f32
    %cst_246 = arith.constant -1.000000e+00 : f32
    %497 = vector.broadcast %cst_245 : f32 to vector<16x32xf32>
    %498 = vector.broadcast %cst_246 : f32 to vector<16x32xf32>
    %499 = arith.select %496, %497, %498 : vector<16x32xi1>, vector<16x32xf32>
    %500 = math.absf %494 : vector<16x32xf32>
    %cst_247 = arith.constant 0.327591091 : f32
    %501 = vector.broadcast %cst_247 : f32 to vector<16x32xf32>
    %502 = arith.mulf %501, %500 : vector<16x32xf32>
    %cst_248 = arith.constant 1.000000e+00 : f32
    %503 = vector.broadcast %cst_248 : f32 to vector<16x32xf32>
    %504 = arith.addf %503, %502 : vector<16x32xf32>
    %cst_249 = arith.constant 1.000000e+00 : f32
    %505 = vector.broadcast %cst_249 : f32 to vector<16x32xf32>
    %506 = arith.divf %505, %504 : vector<16x32xf32>
    %cst_250 = arith.constant 1.06140542 : f32
    %507 = vector.broadcast %cst_250 : f32 to vector<16x32xf32>
    %508 = arith.mulf %507, %506 : vector<16x32xf32>
    %cst_251 = arith.constant -1.45315206 : f32
    %509 = vector.broadcast %cst_251 : f32 to vector<16x32xf32>
    %510 = arith.addf %508, %509 : vector<16x32xf32>
    %511 = arith.mulf %510, %506 : vector<16x32xf32>
    %cst_252 = arith.constant 1.42141378 : f32
    %512 = vector.broadcast %cst_252 : f32 to vector<16x32xf32>
    %513 = arith.addf %511, %512 : vector<16x32xf32>
    %514 = arith.mulf %513, %506 : vector<16x32xf32>
    %cst_253 = arith.constant -0.284496725 : f32
    %515 = vector.broadcast %cst_253 : f32 to vector<16x32xf32>
    %516 = arith.addf %514, %515 : vector<16x32xf32>
    %517 = arith.mulf %516, %506 : vector<16x32xf32>
    %cst_254 = arith.constant 0.254829586 : f32
    %518 = vector.broadcast %cst_254 : f32 to vector<16x32xf32>
    %519 = arith.addf %517, %518 : vector<16x32xf32>
    %520 = arith.mulf %519, %506 : vector<16x32xf32>
    %cst_255 = arith.constant 0.000000e+00 : f32
    %521 = vector.broadcast %cst_255 : f32 to vector<16x32xf32>
    %522 = arith.subf %521, %500 : vector<16x32xf32>
    %523 = arith.mulf %522, %500 : vector<16x32xf32>
    %524 = math.exp %523 : vector<16x32xf32>
    %525 = arith.mulf %520, %524 : vector<16x32xf32>
    %cst_256 = arith.constant 1.000000e+00 : f32
    %526 = vector.broadcast %cst_256 : f32 to vector<16x32xf32>
    %527 = arith.subf %526, %525 : vector<16x32xf32>
    %528 = arith.mulf %499, %527 : vector<16x32xf32>
    %cst_257 = arith.constant 1.000000e+00 : f32
    %529 = vector.broadcast %cst_257 : f32 to vector<16x32xf32>
    %530 = arith.addf %529, %528 : vector<16x32xf32>
    %531 = arith.mulf %492, %530 : vector<16x32xf32>
    tpu.wait_dma2 semaphore(%arg18 : memref<!tpu.dma_semaphore, #tpu.memory_space<semaphore_mem>>) src(%arg15 : memref<392x32xf32, #tpu.memory_space<any>>) dst(%arg17 : memref<392x32xf32, #tpu.memory_space<vmem>>)
    %c0_258 = arith.constant 0 : index
    %c0_259 = arith.constant 0 : index
    %532 = vector.load %arg12[%c0_258, %c0_259] : memref<16x8xf32, #tpu.memory_space<vmem>>, vector<16x8xf32>
    %c184 = arith.constant 184 : index
    %c0_260 = arith.constant 0 : index
    %533 = vector.load %arg17[%c184, %c0_260] : memref<392x32xf32, #tpu.memory_space<vmem>>, vector<8x32xf32>
    %cst_261 = arith.constant dense<0.000000e+00> : vector<16x32xf32>
    %534 = tpu.matmul %532, %533, %cst_261 {dimension_numbers = #tpu.dot_dimension_numbers<[1], [0], [0], [1], [0, 0, 1, 1], [], []>} : vector<16x8xf32>, vector<8x32xf32>, vector<16x32xf32> -> vector<16x32xf32>
    %c192 = arith.constant 192 : index
    %c0_262 = arith.constant 0 : index
    %535 = vector.load %arg17[%c192, %c0_262] : memref<392x32xf32, #tpu.memory_space<vmem>>, vector<1x32xf32>
    %536 = vector.broadcast %535 : vector<1x32xf32> to vector<16x32xf32>
    %537 = arith.addf %534, %536 : vector<16x32xf32>
    %cst_263 = arith.constant 0.000000e+00 : f32
    %538 = vector.broadcast %cst_263 : f32 to vector<16x32xf32>
    %539 = arith.maximumf %537, %538 : vector<16x32xf32>
    %c200 = arith.constant 200 : index
    %c0_264 = arith.constant 0 : index
    %540 = vector.load %arg17[%c200, %c0_264] : memref<392x32xf32, #tpu.memory_space<vmem>>, vector<32x32xf32>
    %cst_265 = arith.constant dense<0.000000e+00> : vector<16x32xf32>
    %541 = tpu.matmul %539, %540, %cst_265 {dimension_numbers = #tpu.dot_dimension_numbers<[1], [0], [0], [1], [0, 0, 1, 1], [], []>} : vector<16x32xf32>, vector<32x32xf32>, vector<16x32xf32> -> vector<16x32xf32>
    %c232 = arith.constant 232 : index
    %c0_266 = arith.constant 0 : index
    %542 = vector.load %arg17[%c232, %c0_266] : memref<392x32xf32, #tpu.memory_space<vmem>>, vector<1x32xf32>
    %543 = vector.broadcast %542 : vector<1x32xf32> to vector<16x32xf32>
    %544 = arith.addf %541, %543 : vector<16x32xf32>
    %c0_267 = arith.constant 0 : index
    %c0_268 = arith.constant 0 : index
    %545 = vector.load %arg11[%c0_267, %c0_268] : memref<16x1xf32, #tpu.memory_space<vmem>>, vector<16x1xf32>
    %cst_269 = arith.constant 0.00999999977 : f32
    %546 = vector.broadcast %cst_269 : f32 to vector<16x1xf32>
    %547 = arith.addf %545, %546 : vector<16x1xf32>
    %548 = vector.broadcast %547 : vector<16x1xf32> to vector<16x32xf32>
    %549 = arith.mulf %544, %548 : vector<16x32xf32>
    %c0_270 = arith.constant 0 : index
    %c0_271 = arith.constant 0 : index
    %550 = vector.load %arg8[%c0_270, %c0_271] : memref<16x16xf32, #tpu.memory_space<vmem>>, vector<16x16xf32>
    %cst_272 = arith.constant dense<0.000000e+00> : vector<16x32xf32>
    %551 = tpu.matmul %550, %227, %cst_272 {dimension_numbers = #tpu.dot_dimension_numbers<[1], [0], [0], [1], [0, 0, 1, 1], [], []>} : vector<16x16xf32>, vector<16x32xf32>, vector<16x32xf32> -> vector<16x32xf32>
    %c240 = arith.constant 240 : index
    %c0_273 = arith.constant 0 : index
    %552 = vector.load %arg17[%c240, %c0_273] : memref<392x32xf32, #tpu.memory_space<vmem>>, vector<32x32xf32>
    %cst_274 = arith.constant dense<0.000000e+00> : vector<16x32xf32>
    %553 = tpu.matmul %549, %552, %cst_274 {dimension_numbers = #tpu.dot_dimension_numbers<[1], [0], [0], [1], [0, 0, 1, 1], [], []>} : vector<16x32xf32>, vector<32x32xf32>, vector<16x32xf32> -> vector<16x32xf32>
    %554 = arith.addf %551, %553 : vector<16x32xf32>
    %c272 = arith.constant 272 : index
    %c0_275 = arith.constant 0 : index
    %555 = vector.load %arg17[%c272, %c0_275] : memref<392x32xf32, #tpu.memory_space<vmem>>, vector<1x32xf32>
    %556 = vector.broadcast %555 : vector<1x32xf32> to vector<16x32xf32>
    %557 = arith.addf %554, %556 : vector<16x32xf32>
    %cst_276 = arith.constant 0.000000e+00 : f32
    %558 = vector.broadcast %cst_276 : f32 to vector<16x32xf32>
    %559 = arith.maximumf %557, %558 : vector<16x32xf32>
    %c0_277 = arith.constant 0 : index
    %c0_278 = arith.constant 0 : index
    %560 = vector.load %arg9[%c0_277, %c0_278] : memref<16x16xf32, #tpu.memory_space<vmem>>, vector<16x16xf32>
    %cst_279 = arith.constant dense<0.000000e+00> : vector<16x32xf32>
    %561 = tpu.matmul %560, %559, %cst_279 {dimension_numbers = #tpu.dot_dimension_numbers<[1], [0], [0], [1], [0, 0, 1, 1], [], []>} : vector<16x16xf32>, vector<16x32xf32>, vector<16x32xf32> -> vector<16x32xf32>
    %562 = arith.addf %561, %227 : vector<16x32xf32>
    %c280 = arith.constant 280 : index
    %c0_280 = arith.constant 0 : index
    %563 = vector.load %arg17[%c280, %c0_280] : memref<392x32xf32, #tpu.memory_space<vmem>>, vector<32x32xf32>
    %cst_281 = arith.constant dense<0.000000e+00> : vector<16x32xf32>
    %564 = tpu.matmul %562, %563, %cst_281 {dimension_numbers = #tpu.dot_dimension_numbers<[1], [0], [0], [1], [0, 0, 1, 1], [], []>} : vector<16x32xf32>, vector<32x32xf32>, vector<16x32xf32> -> vector<16x32xf32>
    %c312 = arith.constant 312 : index
    %c0_282 = arith.constant 0 : index
    %565 = vector.load %arg17[%c312, %c0_282] : memref<392x32xf32, #tpu.memory_space<vmem>>, vector<1x32xf32>
    %566 = vector.broadcast %565 : vector<1x32xf32> to vector<16x32xf32>
    %567 = arith.addf %564, %566 : vector<16x32xf32>
    %c320 = arith.constant 320 : index
    %c0_283 = arith.constant 0 : index
    %568 = vector.load %arg17[%c320, %c0_283] : memref<392x32xf32, #tpu.memory_space<vmem>>, vector<1x32xf32>
    %c328 = arith.constant 328 : index
    %c0_284 = arith.constant 0 : index
    %569 = vector.load %arg17[%c328, %c0_284] : memref<392x32xf32, #tpu.memory_space<vmem>>, vector<1x32xf32>
    %cst_285 = arith.constant dense<0.000000e+00> : vector<16xf32>
    %570 = vector.multi_reduction <add>, %567, %cst_285 [1] : vector<16x32xf32> to vector<16xf32>
    %571 = vector.shape_cast %570 : vector<16xf32> to vector<16x1xf32>
    %cst_286 = arith.constant 3.200000e+01 : f32
    %572 = vector.broadcast %cst_286 : f32 to vector<16x1xf32>
    %573 = arith.divf %571, %572 : vector<16x1xf32>
    %574 = vector.broadcast %573 : vector<16x1xf32> to vector<16x32xf32>
    %575 = arith.subf %567, %574 : vector<16x32xf32>
    %576 = arith.mulf %575, %575 : vector<16x32xf32>
    %cst_287 = arith.constant dense<0.000000e+00> : vector<16xf32>
    %577 = vector.multi_reduction <add>, %576, %cst_287 [1] : vector<16x32xf32> to vector<16xf32>
    %578 = vector.shape_cast %577 : vector<16xf32> to vector<16x1xf32>
    %cst_288 = arith.constant 3.200000e+01 : f32
    %579 = vector.broadcast %cst_288 : f32 to vector<16x1xf32>
    %580 = arith.divf %578, %579 : vector<16x1xf32>
    %cst_289 = arith.constant 9.99999974E-6 : f32
    %581 = vector.broadcast %cst_289 : f32 to vector<16x1xf32>
    %582 = arith.addf %580, %581 : vector<16x1xf32>
    %583 = math.rsqrt %582 : vector<16x1xf32>
    %584 = vector.broadcast %583 : vector<16x1xf32> to vector<16x32xf32>
    %585 = arith.mulf %575, %584 : vector<16x32xf32>
    %586 = vector.broadcast %568 : vector<1x32xf32> to vector<16x32xf32>
    %587 = arith.mulf %585, %586 : vector<16x32xf32>
    %588 = vector.broadcast %569 : vector<1x32xf32> to vector<16x32xf32>
    %589 = arith.addf %587, %588 : vector<16x32xf32>
    %cst_290 = arith.constant 0.000000e+00 : f32
    %590 = vector.broadcast %cst_290 : f32 to vector<16x32xf32>
    %591 = arith.maximumf %589, %590 : vector<16x32xf32>
    %c336 = arith.constant 336 : index
    %c0_291 = arith.constant 0 : index
    %592 = vector.load %arg17[%c336, %c0_291] : memref<392x32xf32, #tpu.memory_space<vmem>>, vector<32x32xf32>
    %cst_292 = arith.constant dense<0.000000e+00> : vector<16x32xf32>
    %593 = tpu.matmul %591, %592, %cst_292 {dimension_numbers = #tpu.dot_dimension_numbers<[1], [0], [0], [1], [0, 0, 1, 1], [], []>} : vector<16x32xf32>, vector<32x32xf32>, vector<16x32xf32> -> vector<16x32xf32>
    %c368 = arith.constant 368 : index
    %c0_293 = arith.constant 0 : index
    %594 = vector.load %arg17[%c368, %c0_293] : memref<392x32xf32, #tpu.memory_space<vmem>>, vector<1x32xf32>
    %595 = vector.broadcast %594 : vector<1x32xf32> to vector<16x32xf32>
    %596 = arith.addf %593, %595 : vector<16x32xf32>
    %c0_294 = arith.constant 0 : index
    %c0_295 = arith.constant 0 : index
    %597 = vector.load %arg10[%c0_294, %c0_295] : memref<16x16xf32, #tpu.memory_space<vmem>>, vector<16x16xf32>
    %cst_296 = arith.constant dense<0.000000e+00> : vector<16x32xf32>
    %598 = tpu.matmul %597, %596, %cst_296 {dimension_numbers = #tpu.dot_dimension_numbers<[1], [0], [0], [1], [0, 0, 1, 1], [], []>} : vector<16x16xf32>, vector<16x32xf32>, vector<16x32xf32> -> vector<16x32xf32>
    %599 = arith.addf %151, %598 : vector<16x32xf32>
    %c72 = arith.constant 72 : index
    %c0_297 = arith.constant 0 : index
    %600 = vector.load %arg17[%c72, %c0_297] : memref<392x32xf32, #tpu.memory_space<vmem>>, vector<32x32xf32>
    %cst_298 = arith.constant dense<0.000000e+00> : vector<16x32xf32>
    %601 = tpu.matmul %379, %600, %cst_298 {dimension_numbers = #tpu.dot_dimension_numbers<[1], [0], [0], [1], [0, 0, 1, 1], [], []>} : vector<16x32xf32>, vector<32x32xf32>, vector<16x32xf32> -> vector<16x32xf32>
    %c104 = arith.constant 104 : index
    %c0_299 = arith.constant 0 : index
    %602 = vector.load %arg17[%c104, %c0_299] : memref<392x32xf32, #tpu.memory_space<vmem>>, vector<1x32xf32>
    %603 = vector.broadcast %602 : vector<1x32xf32> to vector<16x32xf32>
    %604 = arith.addf %601, %603 : vector<16x32xf32>
    %c1_300 = arith.constant 1 : index
    %c0_301 = arith.constant 0 : index
    %c0_302 = arith.constant 0 : index
    %605 = vector.load %arg6[%c1_300, %c0_301, %c0_302] : memref<9x16x16xf32, #tpu.memory_space<vmem>>, vector<1x16x16xf32>
    %606 = vector.shape_cast %605 : vector<1x16x16xf32> to vector<16x16xf32>
    %cst_303 = arith.constant dense<0.000000e+00> : vector<16x32xf32>
    %607 = tpu.matmul %606, %604, %cst_303 {dimension_numbers = #tpu.dot_dimension_numbers<[1], [0], [0], [1], [0, 0, 1, 1], [], []>} : vector<16x16xf32>, vector<16x32xf32>, vector<16x32xf32> -> vector<16x32xf32>
    %c1_304 = arith.constant 1 : index
    %c0_305 = arith.constant 0 : index
    %c0_306 = arith.constant 0 : index
    %608 = vector.load %arg7[%c1_304, %c0_305, %c0_306] : memref<9x16x1xf32, #tpu.memory_space<vmem>>, vector<1x16x1xf32>
    %609 = vector.shape_cast %608 : vector<1x16x1xf32> to vector<16x1xf32>
    %610 = vector.broadcast %609 : vector<16x1xf32> to vector<16x32xf32>
    %611 = arith.mulf %610, %227 : vector<16x32xf32>
    %cst_307 = arith.constant 0.000000e+00 : f32
    %612 = vector.broadcast %cst_307 : f32 to vector<16x32xf32>
    %613 = arith.subf %612, %611 : vector<16x32xf32>
    %614 = tpu.concatenate %227, %613 in 1 : vector<16x32xf32>, vector<16x32xf32> -> vector<16x64xf32>
    %c112 = arith.constant 112 : index
    %c0_308 = arith.constant 0 : index
    %615 = vector.load %arg17[%c112, %c0_308] : memref<392x32xf32, #tpu.memory_space<vmem>>, vector<64x32xf32>
    %cst_309 = arith.constant dense<0.000000e+00> : vector<16x32xf32>
    %616 = tpu.matmul %614, %615, %cst_309 {dimension_numbers = #tpu.dot_dimension_numbers<[1], [0], [0], [1], [0, 0, 1, 1], [], []>} : vector<16x64xf32>, vector<64x32xf32>, vector<16x32xf32> -> vector<16x32xf32>
    %617 = arith.addf %607, %616 : vector<16x32xf32>
    %c176 = arith.constant 176 : index
    %c0_310 = arith.constant 0 : index
    %618 = vector.load %arg17[%c176, %c0_310] : memref<392x32xf32, #tpu.memory_space<vmem>>, vector<1x32xf32>
    %619 = vector.broadcast %618 : vector<1x32xf32> to vector<16x32xf32>
    %620 = arith.addf %617, %619 : vector<16x32xf32>
    %621 = arith.addf %227, %620 : vector<16x32xf32>
    %c72_311 = arith.constant 72 : index
    %c0_312 = arith.constant 0 : index
    %622 = vector.load %arg17[%c72_311, %c0_312] : memref<392x32xf32, #tpu.memory_space<vmem>>, vector<32x32xf32>
    %cst_313 = arith.constant dense<0.000000e+00> : vector<16x32xf32>
    %623 = tpu.matmul %455, %622, %cst_313 {dimension_numbers = #tpu.dot_dimension_numbers<[1], [0], [0], [1], [0, 0, 1, 1], [], []>} : vector<16x32xf32>, vector<32x32xf32>, vector<16x32xf32> -> vector<16x32xf32>
    %c104_314 = arith.constant 104 : index
    %c0_315 = arith.constant 0 : index
    %624 = vector.load %arg17[%c104_314, %c0_315] : memref<392x32xf32, #tpu.memory_space<vmem>>, vector<1x32xf32>
    %625 = vector.broadcast %624 : vector<1x32xf32> to vector<16x32xf32>
    %626 = arith.addf %623, %625 : vector<16x32xf32>
    %c2_316 = arith.constant 2 : index
    %c0_317 = arith.constant 0 : index
    %c0_318 = arith.constant 0 : index
    %627 = vector.load %arg6[%c2_316, %c0_317, %c0_318] : memref<9x16x16xf32, #tpu.memory_space<vmem>>, vector<1x16x16xf32>
    %628 = vector.shape_cast %627 : vector<1x16x16xf32> to vector<16x16xf32>
    %cst_319 = arith.constant dense<0.000000e+00> : vector<16x32xf32>
    %629 = tpu.matmul %628, %626, %cst_319 {dimension_numbers = #tpu.dot_dimension_numbers<[1], [0], [0], [1], [0, 0, 1, 1], [], []>} : vector<16x16xf32>, vector<16x32xf32>, vector<16x32xf32> -> vector<16x32xf32>
    %c2_320 = arith.constant 2 : index
    %c0_321 = arith.constant 0 : index
    %c0_322 = arith.constant 0 : index
    %630 = vector.load %arg7[%c2_320, %c0_321, %c0_322] : memref<9x16x1xf32, #tpu.memory_space<vmem>>, vector<1x16x1xf32>
    %631 = vector.shape_cast %630 : vector<1x16x1xf32> to vector<16x1xf32>
    %632 = vector.broadcast %631 : vector<16x1xf32> to vector<16x32xf32>
    %633 = arith.mulf %632, %621 : vector<16x32xf32>
    %cst_323 = arith.constant 0.000000e+00 : f32
    %634 = vector.broadcast %cst_323 : f32 to vector<16x32xf32>
    %635 = arith.subf %634, %633 : vector<16x32xf32>
    %636 = tpu.concatenate %621, %635 in 1 : vector<16x32xf32>, vector<16x32xf32> -> vector<16x64xf32>
    %c112_324 = arith.constant 112 : index
    %c0_325 = arith.constant 0 : index
    %637 = vector.load %arg17[%c112_324, %c0_325] : memref<392x32xf32, #tpu.memory_space<vmem>>, vector<64x32xf32>
    %cst_326 = arith.constant dense<0.000000e+00> : vector<16x32xf32>
    %638 = tpu.matmul %636, %637, %cst_326 {dimension_numbers = #tpu.dot_dimension_numbers<[1], [0], [0], [1], [0, 0, 1, 1], [], []>} : vector<16x64xf32>, vector<64x32xf32>, vector<16x32xf32> -> vector<16x32xf32>
    %639 = arith.addf %629, %638 : vector<16x32xf32>
    %c176_327 = arith.constant 176 : index
    %c0_328 = arith.constant 0 : index
    %640 = vector.load %arg17[%c176_327, %c0_328] : memref<392x32xf32, #tpu.memory_space<vmem>>, vector<1x32xf32>
    %641 = vector.broadcast %640 : vector<1x32xf32> to vector<16x32xf32>
    %642 = arith.addf %639, %641 : vector<16x32xf32>
    %643 = arith.addf %621, %642 : vector<16x32xf32>
    %c72_329 = arith.constant 72 : index
    %c0_330 = arith.constant 0 : index
    %644 = vector.load %arg17[%c72_329, %c0_330] : memref<392x32xf32, #tpu.memory_space<vmem>>, vector<32x32xf32>
    %cst_331 = arith.constant dense<0.000000e+00> : vector<16x32xf32>
    %645 = tpu.matmul %643, %644, %cst_331 {dimension_numbers = #tpu.dot_dimension_numbers<[1], [0], [0], [1], [0, 0, 1, 1], [], []>} : vector<16x32xf32>, vector<32x32xf32>, vector<16x32xf32> -> vector<16x32xf32>
    %c104_332 = arith.constant 104 : index
    %c0_333 = arith.constant 0 : index
    %646 = vector.load %arg17[%c104_332, %c0_333] : memref<392x32xf32, #tpu.memory_space<vmem>>, vector<1x32xf32>
    %647 = vector.broadcast %646 : vector<1x32xf32> to vector<16x32xf32>
    %648 = arith.addf %645, %647 : vector<16x32xf32>
    %c3_334 = arith.constant 3 : index
    %c0_335 = arith.constant 0 : index
    %c0_336 = arith.constant 0 : index
    %649 = vector.load %arg6[%c3_334, %c0_335, %c0_336] : memref<9x16x16xf32, #tpu.memory_space<vmem>>, vector<1x16x16xf32>
    %650 = vector.shape_cast %649 : vector<1x16x16xf32> to vector<16x16xf32>
    %cst_337 = arith.constant dense<0.000000e+00> : vector<16x32xf32>
    %651 = tpu.matmul %650, %648, %cst_337 {dimension_numbers = #tpu.dot_dimension_numbers<[1], [0], [0], [1], [0, 0, 1, 1], [], []>} : vector<16x16xf32>, vector<16x32xf32>, vector<16x32xf32> -> vector<16x32xf32>
    %c3_338 = arith.constant 3 : index
    %c0_339 = arith.constant 0 : index
    %c0_340 = arith.constant 0 : index
    %652 = vector.load %arg7[%c3_338, %c0_339, %c0_340] : memref<9x16x1xf32, #tpu.memory_space<vmem>>, vector<1x16x1xf32>
    %653 = vector.shape_cast %652 : vector<1x16x1xf32> to vector<16x1xf32>
    %654 = vector.broadcast %653 : vector<16x1xf32> to vector<16x32xf32>
    %655 = arith.mulf %654, %303 : vector<16x32xf32>
    %cst_341 = arith.constant 0.000000e+00 : f32
    %656 = vector.broadcast %cst_341 : f32 to vector<16x32xf32>
    %657 = arith.subf %656, %655 : vector<16x32xf32>
    %658 = tpu.concatenate %303, %657 in 1 : vector<16x32xf32>, vector<16x32xf32> -> vector<16x64xf32>
    %c112_342 = arith.constant 112 : index
    %c0_343 = arith.constant 0 : index
    %659 = vector.load %arg17[%c112_342, %c0_343] : memref<392x32xf32, #tpu.memory_space<vmem>>, vector<64x32xf32>
    %cst_344 = arith.constant dense<0.000000e+00> : vector<16x32xf32>
    %660 = tpu.matmul %658, %659, %cst_344 {dimension_numbers = #tpu.dot_dimension_numbers<[1], [0], [0], [1], [0, 0, 1, 1], [], []>} : vector<16x64xf32>, vector<64x32xf32>, vector<16x32xf32> -> vector<16x32xf32>
    %661 = arith.addf %651, %660 : vector<16x32xf32>
    %c176_345 = arith.constant 176 : index
    %c0_346 = arith.constant 0 : index
    %662 = vector.load %arg17[%c176_345, %c0_346] : memref<392x32xf32, #tpu.memory_space<vmem>>, vector<1x32xf32>
    %663 = vector.broadcast %662 : vector<1x32xf32> to vector<16x32xf32>
    %664 = arith.addf %661, %663 : vector<16x32xf32>
    %665 = arith.addf %303, %664 : vector<16x32xf32>
    %c4_347 = arith.constant 4 : index
    %c0_348 = arith.constant 0 : index
    %c0_349 = arith.constant 0 : index
    %666 = vector.load %arg6[%c4_347, %c0_348, %c0_349] : memref<9x16x16xf32, #tpu.memory_space<vmem>>, vector<1x16x16xf32>
    %667 = vector.shape_cast %666 : vector<1x16x16xf32> to vector<16x16xf32>
    %cst_350 = arith.constant dense<0.000000e+00> : vector<16x32xf32>
    %668 = tpu.matmul %667, %599, %cst_350 {dimension_numbers = #tpu.dot_dimension_numbers<[1], [0], [0], [1], [0, 0, 1, 1], [], []>} : vector<16x16xf32>, vector<16x32xf32>, vector<16x32xf32> -> vector<16x32xf32>
    %669 = tpu.concatenate %668, %75 in 1 : vector<16x32xf32>, vector<16x32xf32> -> vector<16x64xf32>
    %c0_351 = arith.constant 0 : index
    %c0_352 = arith.constant 0 : index
    %670 = vector.load %arg17[%c0_351, %c0_352] : memref<392x32xf32, #tpu.memory_space<vmem>>, vector<64x32xf32>
    %cst_353 = arith.constant dense<0.000000e+00> : vector<16x32xf32>
    %671 = tpu.matmul %669, %670, %cst_353 {dimension_numbers = #tpu.dot_dimension_numbers<[1], [0], [0], [1], [0, 0, 1, 1], [], []>} : vector<16x64xf32>, vector<64x32xf32>, vector<16x32xf32> -> vector<16x32xf32>
    %c64 = arith.constant 64 : index
    %c0_354 = arith.constant 0 : index
    %672 = vector.load %arg17[%c64, %c0_354] : memref<392x32xf32, #tpu.memory_space<vmem>>, vector<1x32xf32>
    %673 = vector.broadcast %672 : vector<1x32xf32> to vector<16x32xf32>
    %674 = arith.addf %671, %673 : vector<16x32xf32>
    %cst_355 = arith.constant 8.000000e-01 : f32
    %675 = vector.broadcast %cst_355 : f32 to vector<16x32xf32>
    %676 = arith.mulf %675, %75 : vector<16x32xf32>
    %cst_356 = arith.constant 2.000000e-01 : f32
    %677 = vector.broadcast %cst_356 : f32 to vector<16x32xf32>
    %678 = arith.mulf %677, %674 : vector<16x32xf32>
    %679 = arith.addf %676, %678 : vector<16x32xf32>
    %c5_357 = arith.constant 5 : index
    %c0_358 = arith.constant 0 : index
    %c0_359 = arith.constant 0 : index
    %680 = vector.load %arg6[%c5_357, %c0_358, %c0_359] : memref<9x16x16xf32, #tpu.memory_space<vmem>>, vector<1x16x16xf32>
    %681 = vector.shape_cast %680 : vector<1x16x16xf32> to vector<16x16xf32>
    %cst_360 = arith.constant dense<0.000000e+00> : vector<16x32xf32>
    %682 = tpu.matmul %681, %599, %cst_360 {dimension_numbers = #tpu.dot_dimension_numbers<[1], [0], [0], [1], [0, 0, 1, 1], [], []>} : vector<16x16xf32>, vector<16x32xf32>, vector<16x32xf32> -> vector<16x32xf32>
    %683 = tpu.concatenate %682, %599 in 1 : vector<16x32xf32>, vector<16x32xf32> -> vector<16x64xf32>
    %c0_361 = arith.constant 0 : index
    %c0_362 = arith.constant 0 : index
    %684 = vector.load %arg17[%c0_361, %c0_362] : memref<392x32xf32, #tpu.memory_space<vmem>>, vector<64x32xf32>
    %cst_363 = arith.constant dense<0.000000e+00> : vector<16x32xf32>
    %685 = tpu.matmul %683, %684, %cst_363 {dimension_numbers = #tpu.dot_dimension_numbers<[1], [0], [0], [1], [0, 0, 1, 1], [], []>} : vector<16x64xf32>, vector<64x32xf32>, vector<16x32xf32> -> vector<16x32xf32>
    %c64_364 = arith.constant 64 : index
    %c0_365 = arith.constant 0 : index
    %686 = vector.load %arg17[%c64_364, %c0_365] : memref<392x32xf32, #tpu.memory_space<vmem>>, vector<1x32xf32>
    %687 = vector.broadcast %686 : vector<1x32xf32> to vector<16x32xf32>
    %688 = arith.addf %685, %687 : vector<16x32xf32>
    %cst_366 = arith.constant 8.000000e-01 : f32
    %689 = vector.broadcast %cst_366 : f32 to vector<16x32xf32>
    %690 = arith.mulf %689, %599 : vector<16x32xf32>
    %cst_367 = arith.constant 2.000000e-01 : f32
    %691 = vector.broadcast %cst_367 : f32 to vector<16x32xf32>
    %692 = arith.mulf %691, %688 : vector<16x32xf32>
    %693 = arith.addf %690, %692 : vector<16x32xf32>
    %c6_368 = arith.constant 6 : index
    %c0_369 = arith.constant 0 : index
    %c0_370 = arith.constant 0 : index
    %694 = vector.load %arg6[%c6_368, %c0_369, %c0_370] : memref<9x16x16xf32, #tpu.memory_space<vmem>>, vector<1x16x16xf32>
    %695 = vector.shape_cast %694 : vector<1x16x16xf32> to vector<16x16xf32>
    %cst_371 = arith.constant dense<0.000000e+00> : vector<16x32xf32>
    %696 = tpu.matmul %695, %531, %cst_371 {dimension_numbers = #tpu.dot_dimension_numbers<[1], [0], [0], [1], [0, 0, 1, 1], [], []>} : vector<16x16xf32>, vector<16x32xf32>, vector<16x32xf32> -> vector<16x32xf32>
    %697 = tpu.concatenate %696, %643 in 1 : vector<16x32xf32>, vector<16x32xf32> -> vector<16x64xf32>
    %c0_372 = arith.constant 0 : index
    %c0_373 = arith.constant 0 : index
    %698 = vector.load %arg17[%c0_372, %c0_373] : memref<392x32xf32, #tpu.memory_space<vmem>>, vector<64x32xf32>
    %cst_374 = arith.constant dense<0.000000e+00> : vector<16x32xf32>
    %699 = tpu.matmul %697, %698, %cst_374 {dimension_numbers = #tpu.dot_dimension_numbers<[1], [0], [0], [1], [0, 0, 1, 1], [], []>} : vector<16x64xf32>, vector<64x32xf32>, vector<16x32xf32> -> vector<16x32xf32>
    %c64_375 = arith.constant 64 : index
    %c0_376 = arith.constant 0 : index
    %700 = vector.load %arg17[%c64_375, %c0_376] : memref<392x32xf32, #tpu.memory_space<vmem>>, vector<1x32xf32>
    %701 = vector.broadcast %700 : vector<1x32xf32> to vector<16x32xf32>
    %702 = arith.addf %699, %701 : vector<16x32xf32>
    %cst_377 = arith.constant 8.000000e-01 : f32
    %703 = vector.broadcast %cst_377 : f32 to vector<16x32xf32>
    %704 = arith.mulf %703, %643 : vector<16x32xf32>
    %cst_378 = arith.constant 2.000000e-01 : f32
    %705 = vector.broadcast %cst_378 : f32 to vector<16x32xf32>
    %706 = arith.mulf %705, %702 : vector<16x32xf32>
    %707 = arith.addf %704, %706 : vector<16x32xf32>
    %c7 = arith.constant 7 : index
    %c0_379 = arith.constant 0 : index
    %c0_380 = arith.constant 0 : index
    %708 = vector.load %arg6[%c7, %c0_379, %c0_380] : memref<9x16x16xf32, #tpu.memory_space<vmem>>, vector<1x16x16xf32>
    %709 = vector.shape_cast %708 : vector<1x16x16xf32> to vector<16x16xf32>
    %cst_381 = arith.constant dense<0.000000e+00> : vector<16x32xf32>
    %710 = tpu.matmul %709, %455, %cst_381 {dimension_numbers = #tpu.dot_dimension_numbers<[1], [0], [0], [1], [0, 0, 1, 1], [], []>} : vector<16x16xf32>, vector<16x32xf32>, vector<16x32xf32> -> vector<16x32xf32>
    %711 = tpu.concatenate %710, %665 in 1 : vector<16x32xf32>, vector<16x32xf32> -> vector<16x64xf32>
    %c0_382 = arith.constant 0 : index
    %c0_383 = arith.constant 0 : index
    %712 = vector.load %arg17[%c0_382, %c0_383] : memref<392x32xf32, #tpu.memory_space<vmem>>, vector<64x32xf32>
    %cst_384 = arith.constant dense<0.000000e+00> : vector<16x32xf32>
    %713 = tpu.matmul %711, %712, %cst_384 {dimension_numbers = #tpu.dot_dimension_numbers<[1], [0], [0], [1], [0, 0, 1, 1], [], []>} : vector<16x64xf32>, vector<64x32xf32>, vector<16x32xf32> -> vector<16x32xf32>
    %c64_385 = arith.constant 64 : index
    %c0_386 = arith.constant 0 : index
    %714 = vector.load %arg17[%c64_385, %c0_386] : memref<392x32xf32, #tpu.memory_space<vmem>>, vector<1x32xf32>
    %715 = vector.broadcast %714 : vector<1x32xf32> to vector<16x32xf32>
    %716 = arith.addf %713, %715 : vector<16x32xf32>
    %cst_387 = arith.constant 8.000000e-01 : f32
    %717 = vector.broadcast %cst_387 : f32 to vector<16x32xf32>
    %718 = arith.mulf %717, %665 : vector<16x32xf32>
    %cst_388 = arith.constant 2.000000e-01 : f32
    %719 = vector.broadcast %cst_388 : f32 to vector<16x32xf32>
    %720 = arith.mulf %719, %716 : vector<16x32xf32>
    %721 = arith.addf %718, %720 : vector<16x32xf32>
    %c8 = arith.constant 8 : index
    %c0_389 = arith.constant 0 : index
    %c0_390 = arith.constant 0 : index
    %722 = vector.load %arg6[%c8, %c0_389, %c0_390] : memref<9x16x16xf32, #tpu.memory_space<vmem>>, vector<1x16x16xf32>
    %723 = vector.shape_cast %722 : vector<1x16x16xf32> to vector<16x16xf32>
    %cst_391 = arith.constant dense<0.000000e+00> : vector<16x32xf32>
    %724 = tpu.matmul %723, %707, %cst_391 {dimension_numbers = #tpu.dot_dimension_numbers<[1], [0], [0], [1], [0, 0, 1, 1], [], []>} : vector<16x16xf32>, vector<16x32xf32>, vector<16x32xf32> -> vector<16x32xf32>
    %725 = tpu.concatenate %724, %693 in 1 : vector<16x32xf32>, vector<16x32xf32> -> vector<16x64xf32>
    %c0_392 = arith.constant 0 : index
    %c0_393 = arith.constant 0 : index
    %726 = vector.load %arg17[%c0_392, %c0_393] : memref<392x32xf32, #tpu.memory_space<vmem>>, vector<64x32xf32>
    %cst_394 = arith.constant dense<0.000000e+00> : vector<16x32xf32>
    %727 = tpu.matmul %725, %726, %cst_394 {dimension_numbers = #tpu.dot_dimension_numbers<[1], [0], [0], [1], [0, 0, 1, 1], [], []>} : vector<16x64xf32>, vector<64x32xf32>, vector<16x32xf32> -> vector<16x32xf32>
    %c64_395 = arith.constant 64 : index
    %c0_396 = arith.constant 0 : index
    %728 = vector.load %arg17[%c64_395, %c0_396] : memref<392x32xf32, #tpu.memory_space<vmem>>, vector<1x32xf32>
    %729 = vector.broadcast %728 : vector<1x32xf32> to vector<16x32xf32>
    %730 = arith.addf %727, %729 : vector<16x32xf32>
    %cst_397 = arith.constant 8.000000e-01 : f32
    %731 = vector.broadcast %cst_397 : f32 to vector<16x32xf32>
    %732 = arith.mulf %731, %693 : vector<16x32xf32>
    %cst_398 = arith.constant 2.000000e-01 : f32
    %733 = vector.broadcast %cst_398 : f32 to vector<16x32xf32>
    %734 = arith.mulf %733, %730 : vector<16x32xf32>
    %735 = arith.addf %732, %734 : vector<16x32xf32>
    %c376 = arith.constant 376 : index
    %c0_399 = arith.constant 0 : index
    %736 = vector.load %arg17[%c376, %c0_399] : memref<392x32xf32, #tpu.memory_space<vmem>>, vector<8x32xf32>
    %c384 = arith.constant 384 : index
    %c0_400 = arith.constant 0 : index
    %737 = vector.load %arg17[%c384, %c0_400] : memref<392x32xf32, #tpu.memory_space<vmem>>, vector<8x32xf32>
    %738 = vector.extract_strided_slice %736 {offsets = [0, 0], sizes = [1, 32], strides = [1, 1]} : vector<8x32xf32> to vector<1x32xf32>
    %739 = vector.extract_strided_slice %737 {offsets = [0, 0], sizes = [1, 32], strides = [1, 1]} : vector<8x32xf32> to vector<1x32xf32>
    %cst_401 = arith.constant dense<0.000000e+00> : vector<16xf32>
    %740 = vector.multi_reduction <add>, %679, %cst_401 [1] : vector<16x32xf32> to vector<16xf32>
    %741 = vector.shape_cast %740 : vector<16xf32> to vector<16x1xf32>
    %cst_402 = arith.constant 3.200000e+01 : f32
    %742 = vector.broadcast %cst_402 : f32 to vector<16x1xf32>
    %743 = arith.divf %741, %742 : vector<16x1xf32>
    %744 = vector.broadcast %743 : vector<16x1xf32> to vector<16x32xf32>
    %745 = arith.subf %679, %744 : vector<16x32xf32>
    %746 = arith.mulf %745, %745 : vector<16x32xf32>
    %cst_403 = arith.constant dense<0.000000e+00> : vector<16xf32>
    %747 = vector.multi_reduction <add>, %746, %cst_403 [1] : vector<16x32xf32> to vector<16xf32>
    %748 = vector.shape_cast %747 : vector<16xf32> to vector<16x1xf32>
    %cst_404 = arith.constant 3.200000e+01 : f32
    %749 = vector.broadcast %cst_404 : f32 to vector<16x1xf32>
    %750 = arith.divf %748, %749 : vector<16x1xf32>
    %cst_405 = arith.constant 9.99999974E-6 : f32
    %751 = vector.broadcast %cst_405 : f32 to vector<16x1xf32>
    %752 = arith.addf %750, %751 : vector<16x1xf32>
    %753 = math.rsqrt %752 : vector<16x1xf32>
    %754 = vector.broadcast %753 : vector<16x1xf32> to vector<16x32xf32>
    %755 = arith.mulf %745, %754 : vector<16x32xf32>
    %756 = vector.broadcast %738 : vector<1x32xf32> to vector<16x32xf32>
    %757 = arith.mulf %755, %756 : vector<16x32xf32>
    %758 = vector.broadcast %739 : vector<1x32xf32> to vector<16x32xf32>
    %759 = arith.addf %757, %758 : vector<16x32xf32>
    %cst_406 = arith.constant 0.000000e+00 : f32
    %760 = vector.broadcast %cst_406 : f32 to vector<16x32xf32>
    %761 = arith.maximumf %759, %760 : vector<16x32xf32>
    %762 = vector.extract_strided_slice %736 {offsets = [1, 0], sizes = [1, 32], strides = [1, 1]} : vector<8x32xf32> to vector<1x32xf32>
    %763 = vector.extract_strided_slice %737 {offsets = [1, 0], sizes = [1, 32], strides = [1, 1]} : vector<8x32xf32> to vector<1x32xf32>
    %cst_407 = arith.constant dense<0.000000e+00> : vector<16xf32>
    %764 = vector.multi_reduction <add>, %735, %cst_407 [1] : vector<16x32xf32> to vector<16xf32>
    %765 = vector.shape_cast %764 : vector<16xf32> to vector<16x1xf32>
    %cst_408 = arith.constant 3.200000e+01 : f32
    %766 = vector.broadcast %cst_408 : f32 to vector<16x1xf32>
    %767 = arith.divf %765, %766 : vector<16x1xf32>
    %768 = vector.broadcast %767 : vector<16x1xf32> to vector<16x32xf32>
    %769 = arith.subf %735, %768 : vector<16x32xf32>
    %770 = arith.mulf %769, %769 : vector<16x32xf32>
    %cst_409 = arith.constant dense<0.000000e+00> : vector<16xf32>
    %771 = vector.multi_reduction <add>, %770, %cst_409 [1] : vector<16x32xf32> to vector<16xf32>
    %772 = vector.shape_cast %771 : vector<16xf32> to vector<16x1xf32>
    %cst_410 = arith.constant 3.200000e+01 : f32
    %773 = vector.broadcast %cst_410 : f32 to vector<16x1xf32>
    %774 = arith.divf %772, %773 : vector<16x1xf32>
    %cst_411 = arith.constant 9.99999974E-6 : f32
    %775 = vector.broadcast %cst_411 : f32 to vector<16x1xf32>
    %776 = arith.addf %774, %775 : vector<16x1xf32>
    %777 = math.rsqrt %776 : vector<16x1xf32>
    %778 = vector.broadcast %777 : vector<16x1xf32> to vector<16x32xf32>
    %779 = arith.mulf %769, %778 : vector<16x32xf32>
    %780 = vector.broadcast %762 : vector<1x32xf32> to vector<16x32xf32>
    %781 = arith.mulf %779, %780 : vector<16x32xf32>
    %782 = vector.broadcast %763 : vector<1x32xf32> to vector<16x32xf32>
    %783 = arith.addf %781, %782 : vector<16x32xf32>
    %cst_412 = arith.constant 0.000000e+00 : f32
    %784 = vector.broadcast %cst_412 : f32 to vector<16x32xf32>
    %785 = arith.maximumf %783, %784 : vector<16x32xf32>
    %786 = vector.extract_strided_slice %736 {offsets = [2, 0], sizes = [1, 32], strides = [1, 1]} : vector<8x32xf32> to vector<1x32xf32>
    %787 = vector.extract_strided_slice %737 {offsets = [2, 0], sizes = [1, 32], strides = [1, 1]} : vector<8x32xf32> to vector<1x32xf32>
    %cst_413 = arith.constant dense<0.000000e+00> : vector<16xf32>
    %788 = vector.multi_reduction <add>, %707, %cst_413 [1] : vector<16x32xf32> to vector<16xf32>
    %789 = vector.shape_cast %788 : vector<16xf32> to vector<16x1xf32>
    %cst_414 = arith.constant 3.200000e+01 : f32
    %790 = vector.broadcast %cst_414 : f32 to vector<16x1xf32>
    %791 = arith.divf %789, %790 : vector<16x1xf32>
    %792 = vector.broadcast %791 : vector<16x1xf32> to vector<16x32xf32>
    %793 = arith.subf %707, %792 : vector<16x32xf32>
    %794 = arith.mulf %793, %793 : vector<16x32xf32>
    %cst_415 = arith.constant dense<0.000000e+00> : vector<16xf32>
    %795 = vector.multi_reduction <add>, %794, %cst_415 [1] : vector<16x32xf32> to vector<16xf32>
    %796 = vector.shape_cast %795 : vector<16xf32> to vector<16x1xf32>
    %cst_416 = arith.constant 3.200000e+01 : f32
    %797 = vector.broadcast %cst_416 : f32 to vector<16x1xf32>
    %798 = arith.divf %796, %797 : vector<16x1xf32>
    %cst_417 = arith.constant 9.99999974E-6 : f32
    %799 = vector.broadcast %cst_417 : f32 to vector<16x1xf32>
    %800 = arith.addf %798, %799 : vector<16x1xf32>
    %801 = math.rsqrt %800 : vector<16x1xf32>
    %802 = vector.broadcast %801 : vector<16x1xf32> to vector<16x32xf32>
    %803 = arith.mulf %793, %802 : vector<16x32xf32>
    %804 = vector.broadcast %786 : vector<1x32xf32> to vector<16x32xf32>
    %805 = arith.mulf %803, %804 : vector<16x32xf32>
    %806 = vector.broadcast %787 : vector<1x32xf32> to vector<16x32xf32>
    %807 = arith.addf %805, %806 : vector<16x32xf32>
    %cst_418 = arith.constant 0.000000e+00 : f32
    %808 = vector.broadcast %cst_418 : f32 to vector<16x32xf32>
    %809 = arith.maximumf %807, %808 : vector<16x32xf32>
    %810 = vector.extract_strided_slice %736 {offsets = [3, 0], sizes = [1, 32], strides = [1, 1]} : vector<8x32xf32> to vector<1x32xf32>
    %811 = vector.extract_strided_slice %737 {offsets = [3, 0], sizes = [1, 32], strides = [1, 1]} : vector<8x32xf32> to vector<1x32xf32>
    %cst_419 = arith.constant dense<0.000000e+00> : vector<16xf32>
    %812 = vector.multi_reduction <add>, %721, %cst_419 [1] : vector<16x32xf32> to vector<16xf32>
    %813 = vector.shape_cast %812 : vector<16xf32> to vector<16x1xf32>
    %cst_420 = arith.constant 3.200000e+01 : f32
    %814 = vector.broadcast %cst_420 : f32 to vector<16x1xf32>
    %815 = arith.divf %813, %814 : vector<16x1xf32>
    %816 = vector.broadcast %815 : vector<16x1xf32> to vector<16x32xf32>
    %817 = arith.subf %721, %816 : vector<16x32xf32>
    %818 = arith.mulf %817, %817 : vector<16x32xf32>
    %cst_421 = arith.constant dense<0.000000e+00> : vector<16xf32>
    %819 = vector.multi_reduction <add>, %818, %cst_421 [1] : vector<16x32xf32> to vector<16xf32>
    %820 = vector.shape_cast %819 : vector<16xf32> to vector<16x1xf32>
    %cst_422 = arith.constant 3.200000e+01 : f32
    %821 = vector.broadcast %cst_422 : f32 to vector<16x1xf32>
    %822 = arith.divf %820, %821 : vector<16x1xf32>
    %cst_423 = arith.constant 9.99999974E-6 : f32
    %823 = vector.broadcast %cst_423 : f32 to vector<16x1xf32>
    %824 = arith.addf %822, %823 : vector<16x1xf32>
    %825 = math.rsqrt %824 : vector<16x1xf32>
    %826 = vector.broadcast %825 : vector<16x1xf32> to vector<16x32xf32>
    %827 = arith.mulf %817, %826 : vector<16x32xf32>
    %828 = vector.broadcast %810 : vector<1x32xf32> to vector<16x32xf32>
    %829 = arith.mulf %827, %828 : vector<16x32xf32>
    %830 = vector.broadcast %811 : vector<1x32xf32> to vector<16x32xf32>
    %831 = arith.addf %829, %830 : vector<16x32xf32>
    %cst_424 = arith.constant 0.000000e+00 : f32
    %832 = vector.broadcast %cst_424 : f32 to vector<16x32xf32>
    %833 = arith.maximumf %831, %832 : vector<16x32xf32>
    %834 = vector.extract_strided_slice %736 {offsets = [4, 0], sizes = [1, 32], strides = [1, 1]} : vector<8x32xf32> to vector<1x32xf32>
    %835 = vector.extract_strided_slice %737 {offsets = [4, 0], sizes = [1, 32], strides = [1, 1]} : vector<8x32xf32> to vector<1x32xf32>
    %cst_425 = arith.constant dense<0.000000e+00> : vector<16xf32>
    %836 = vector.multi_reduction <add>, %379, %cst_425 [1] : vector<16x32xf32> to vector<16xf32>
    %837 = vector.shape_cast %836 : vector<16xf32> to vector<16x1xf32>
    %cst_426 = arith.constant 3.200000e+01 : f32
    %838 = vector.broadcast %cst_426 : f32 to vector<16x1xf32>
    %839 = arith.divf %837, %838 : vector<16x1xf32>
    %840 = vector.broadcast %839 : vector<16x1xf32> to vector<16x32xf32>
    %841 = arith.subf %379, %840 : vector<16x32xf32>
    %842 = arith.mulf %841, %841 : vector<16x32xf32>
    %cst_427 = arith.constant dense<0.000000e+00> : vector<16xf32>
    %843 = vector.multi_reduction <add>, %842, %cst_427 [1] : vector<16x32xf32> to vector<16xf32>
    %844 = vector.shape_cast %843 : vector<16xf32> to vector<16x1xf32>
    %cst_428 = arith.constant 3.200000e+01 : f32
    %845 = vector.broadcast %cst_428 : f32 to vector<16x1xf32>
    %846 = arith.divf %844, %845 : vector<16x1xf32>
    %cst_429 = arith.constant 9.99999974E-6 : f32
    %847 = vector.broadcast %cst_429 : f32 to vector<16x1xf32>
    %848 = arith.addf %846, %847 : vector<16x1xf32>
    %849 = math.rsqrt %848 : vector<16x1xf32>
    %850 = vector.broadcast %849 : vector<16x1xf32> to vector<16x32xf32>
    %851 = arith.mulf %841, %850 : vector<16x32xf32>
    %852 = vector.broadcast %834 : vector<1x32xf32> to vector<16x32xf32>
    %853 = arith.mulf %851, %852 : vector<16x32xf32>
    %854 = vector.broadcast %835 : vector<1x32xf32> to vector<16x32xf32>
    %855 = arith.addf %853, %854 : vector<16x32xf32>
    %cst_430 = arith.constant 0.000000e+00 : f32
    %856 = vector.broadcast %cst_430 : f32 to vector<16x32xf32>
    %857 = arith.maximumf %855, %856 : vector<16x32xf32>
    %858 = vector.extract_strided_slice %736 {offsets = [5, 0], sizes = [1, 32], strides = [1, 1]} : vector<8x32xf32> to vector<1x32xf32>
    %859 = vector.extract_strided_slice %737 {offsets = [5, 0], sizes = [1, 32], strides = [1, 1]} : vector<8x32xf32> to vector<1x32xf32>
    %cst_431 = arith.constant dense<0.000000e+00> : vector<16xf32>
    %860 = vector.multi_reduction <add>, %455, %cst_431 [1] : vector<16x32xf32> to vector<16xf32>
    %861 = vector.shape_cast %860 : vector<16xf32> to vector<16x1xf32>
    %cst_432 = arith.constant 3.200000e+01 : f32
    %862 = vector.broadcast %cst_432 : f32 to vector<16x1xf32>
    %863 = arith.divf %861, %862 : vector<16x1xf32>
    %864 = vector.broadcast %863 : vector<16x1xf32> to vector<16x32xf32>
    %865 = arith.subf %455, %864 : vector<16x32xf32>
    %866 = arith.mulf %865, %865 : vector<16x32xf32>
    %cst_433 = arith.constant dense<0.000000e+00> : vector<16xf32>
    %867 = vector.multi_reduction <add>, %866, %cst_433 [1] : vector<16x32xf32> to vector<16xf32>
    %868 = vector.shape_cast %867 : vector<16xf32> to vector<16x1xf32>
    %cst_434 = arith.constant 3.200000e+01 : f32
    %869 = vector.broadcast %cst_434 : f32 to vector<16x1xf32>
    %870 = arith.divf %868, %869 : vector<16x1xf32>
    %cst_435 = arith.constant 9.99999974E-6 : f32
    %871 = vector.broadcast %cst_435 : f32 to vector<16x1xf32>
    %872 = arith.addf %870, %871 : vector<16x1xf32>
    %873 = math.rsqrt %872 : vector<16x1xf32>
    %874 = vector.broadcast %873 : vector<16x1xf32> to vector<16x32xf32>
    %875 = arith.mulf %865, %874 : vector<16x32xf32>
    %876 = vector.broadcast %858 : vector<1x32xf32> to vector<16x32xf32>
    %877 = arith.mulf %875, %876 : vector<16x32xf32>
    %878 = vector.broadcast %859 : vector<1x32xf32> to vector<16x32xf32>
    %879 = arith.addf %877, %878 : vector<16x32xf32>
    %cst_436 = arith.constant 0.000000e+00 : f32
    %880 = vector.broadcast %cst_436 : f32 to vector<16x32xf32>
    %881 = arith.maximumf %879, %880 : vector<16x32xf32>
    %882 = vector.extract_strided_slice %736 {offsets = [6, 0], sizes = [1, 32], strides = [1, 1]} : vector<8x32xf32> to vector<1x32xf32>
    %883 = vector.extract_strided_slice %737 {offsets = [6, 0], sizes = [1, 32], strides = [1, 1]} : vector<8x32xf32> to vector<1x32xf32>
    %cst_437 = arith.constant dense<0.000000e+00> : vector<16xf32>
    %884 = vector.multi_reduction <add>, %531, %cst_437 [1] : vector<16x32xf32> to vector<16xf32>
    %885 = vector.shape_cast %884 : vector<16xf32> to vector<16x1xf32>
    %cst_438 = arith.constant 3.200000e+01 : f32
    %886 = vector.broadcast %cst_438 : f32 to vector<16x1xf32>
    %887 = arith.divf %885, %886 : vector<16x1xf32>
    %888 = vector.broadcast %887 : vector<16x1xf32> to vector<16x32xf32>
    %889 = arith.subf %531, %888 : vector<16x32xf32>
    %890 = arith.mulf %889, %889 : vector<16x32xf32>
    %cst_439 = arith.constant dense<0.000000e+00> : vector<16xf32>
    %891 = vector.multi_reduction <add>, %890, %cst_439 [1] : vector<16x32xf32> to vector<16xf32>
    %892 = vector.shape_cast %891 : vector<16xf32> to vector<16x1xf32>
    %cst_440 = arith.constant 3.200000e+01 : f32
    %893 = vector.broadcast %cst_440 : f32 to vector<16x1xf32>
    %894 = arith.divf %892, %893 : vector<16x1xf32>
    %cst_441 = arith.constant 9.99999974E-6 : f32
    %895 = vector.broadcast %cst_441 : f32 to vector<16x1xf32>
    %896 = arith.addf %894, %895 : vector<16x1xf32>
    %897 = math.rsqrt %896 : vector<16x1xf32>
    %898 = vector.broadcast %897 : vector<16x1xf32> to vector<16x32xf32>
    %899 = arith.mulf %889, %898 : vector<16x32xf32>
    %900 = vector.broadcast %882 : vector<1x32xf32> to vector<16x32xf32>
    %901 = arith.mulf %899, %900 : vector<16x32xf32>
    %902 = vector.broadcast %883 : vector<1x32xf32> to vector<16x32xf32>
    %903 = arith.addf %901, %902 : vector<16x32xf32>
    %cst_442 = arith.constant 0.000000e+00 : f32
    %904 = vector.broadcast %cst_442 : f32 to vector<16x32xf32>
    %905 = arith.maximumf %903, %904 : vector<16x32xf32>
    %906 = tpu.concatenate %761, %785, %809, %833, %857, %881, %905 in 0 : vector<16x32xf32>, vector<16x32xf32>, vector<16x32xf32>, vector<16x32xf32>, vector<16x32xf32>, vector<16x32xf32>, vector<16x32xf32> -> vector<112x32xf32>
    %c0_443 = arith.constant 0 : index
    %c0_444 = arith.constant 0 : index
    %907 = vector.load %arg13[%c0_443, %c0_444] : memref<32x128xf32, #tpu.memory_space<vmem>>, vector<32x128xf32>
    %cst_445 = arith.constant dense<0.000000e+00> : vector<112x128xf32>
    %908 = tpu.matmul %906, %907, %cst_445 {dimension_numbers = #tpu.dot_dimension_numbers<[1], [0], [0], [1], [0, 0, 1, 1], [], []>} : vector<112x32xf32>, vector<32x128xf32>, vector<112x128xf32> -> vector<112x128xf32>
    %c0_446 = arith.constant 0 : index
    %c0_447 = arith.constant 0 : index
    %909 = vector.load %arg14[%c0_446, %c0_447] : memref<1x128xf32, #tpu.memory_space<vmem>>, vector<1x128xf32>
    %910 = vector.broadcast %909 : vector<1x128xf32> to vector<112x128xf32>
    %911 = arith.addf %908, %910 : vector<112x128xf32>
    %c0_448 = arith.constant 0 : index
    %c0_449 = arith.constant 0 : index
    %912 = vector.load %arg16[%c0_448, %c0_449] : memref<112x128xf32, #tpu.memory_space<vmem>>, vector<112x128xf32>
    tpu.vector_store %arg16[%c0_448, %c0_449], %911 {strides = array<i32>} : memref<112x128xf32, #tpu.memory_space<vmem>>, vector<112x128xf32>,
    return
  }
}

</mosaic_0001>

<llo_original>
// kernel: fused_forward.1
$region0: #{fused_forward.1}
  #allocation0 [shape = 'u32[]', space=smem, size = 0x4, offset = 0x4, fixed_abs, tag = 'smem constant byte address 0x4 - core index']
  #allocation1 [shape = 'u32[144,128]{1,0:T(1,128)}', space=vmem, size = 0x12000, scoped, tag = 'internal scratch']
  #allocation2 [shape = 'f32[392,32]{1,0:T(8,128)}', space=vmem, size = 0x31000, scoped, tag = 'scratch operand']
  #allocation3 [shape = 's32[1]{0}', space=sflag, size = 0x4, scoped, tag = 'scratch operand']
  #allocation4 [shape = 's32[]', space=sflag, size = 0x4, offset = 0, fixed_abs, tag = 'sflag constant byte address 0x0 - dummy sync flag']
  %s0 = inlined_call_operand.vmem [shape: f32[7,16,32], index: 0, kind: input, shape index: {}]
  %s1 = inlined_call_operand.vmem [shape: f32[7,1,32], index: 1, kind: input, shape index: {}]
  %s2 = inlined_call_operand.vmem [shape: f32[7,1,1], index: 2, kind: input, shape index: {}]
  %s3 = inlined_call_operand.vmem [shape: f32[7,1,32], index: 3, kind: input, shape index: {}]
  %s4 = inlined_call_operand.vmem [shape: f32[7,1,32], index: 4, kind: input, shape index: {}]
  %s5 = inlined_call_operand.vmem [shape: f32[7,32,32], index: 5, kind: input, shape index: {}]
  %s6 = inlined_call_operand.vmem [shape: f32[9,16,16], index: 6, kind: input, shape index: {}]
  %s7 = inlined_call_operand.vmem [shape: f32[9,16,1], index: 7, kind: input, shape index: {}]
  %s8 = inlined_call_operand.vmem [shape: f32[16,16], index: 8, kind: input, shape index: {}]
  %s9 = inlined_call_operand.vmem [shape: f32[16,16], index: 9, kind: input, shape index: {}]
  %s10 = inlined_call_operand.vmem [shape: f32[16,16], index: 10, kind: input, shape index: {}]
  %s11 = inlined_call_operand.vmem [shape: f32[16,1], index: 11, kind: input, shape index: {}]
  %s12 = inlined_call_operand.vmem [shape: f32[16,8], index: 12, kind: input, shape index: {}]
  %s13 = inlined_call_operand.vmem [shape: f32[32,128], index: 13, kind: input, shape index: {}]
  %s14 = inlined_call_operand.vmem [shape: f32[1,128], index: 14, kind: input, shape index: {}]
  %s15 = inlined_call_operand.vmem [shape: f32[392,32], index: 15, kind: input, shape index: {}]
  %s16 = inlined_call_operand.vmem [shape: f32[112,128], index: 16, kind: output, shape index: {}]
  %s17 = sld [smem:[#allocation0]]
  $region104: #{fused_forward.1} parent=0
    _
  %s19 = ssub.s32 1, %s17
  %s20 = scalar_select 0, %s19, %s17
  // Predicated region
  $region2: #{fused_forward.1} parent=0 // pred_check
    _
  $region3: #{fused_forward.1} parent=0 // pred_check_branch
    %22 = sbr.rel (0) target = $region5
  $region4: #{fused_forward.1} parent=0 // pred_region
    _
  $region5: #{fused_forward.1} parent=0 // pred_fallthru
    _
  // Predicated region
  $region6: #{fused_forward.1} parent=0 // pred_check
    _
  $region7: #{fused_forward.1} parent=0 // pred_check_branch
    %24 = sbr.rel (0) target = $region9
  $region8: #{fused_forward.1} parent=0 // pred_region
    _
  $region9: #{fused_forward.1} parent=0 // pred_fallthru
    _
  // Predicated region
  $region10: #{fused_forward.1} parent=0 // pred_check
    _
  $region11: #{fused_forward.1} parent=0 // pred_check_branch
    %26 = sbr.rel (0) target = $region13
  $region12: #{fused_forward.1} parent=0 // pred_region
    _
  $region13: #{fused_forward.1} parent=0 // pred_fallthru
    _
  // Predicated region
  $region14: #{fused_forward.1} parent=0 // pred_check
    _
  $region15: #{fused_forward.1} parent=0 // pred_check_branch
    %28 = sbr.rel (0) target = $region17
  $region16: #{fused_forward.1} parent=0 // pred_region
    _
  $region17: #{fused_forward.1} parent=0 // pred_fallthru
    _
  // Predicated region
  $region18: #{fused_forward.1} parent=0 // pred_check
    _
  $region19: #{fused_forward.1} parent=0 // pred_check_branch
    %30 = sbr.rel (0) target = $region21
  $region20: #{fused_forward.1} parent=0 // pred_region
    _
  $region21: #{fused_forward.1} parent=0 // pred_fallthru
    _
  // Predicated region
  $region22: #{fused_forward.1} parent=0 // pred_check
    _
  $region23: #{fused_forward.1} parent=0 // pred_check_branch
    %32 = sbr.rel (0) target = $region25
  $region24: #{fused_forward.1} parent=0 // pred_region
    _
  $region25: #{fused_forward.1} parent=0 // pred_fallthru
    _
  // Predicated region
  $region26: #{fused_forward.1} parent=0 // pred_check
    _
  $region27: #{fused_forward.1} parent=0 // pred_check_branch
    %34 = sbr.rel (0) target = $region29
  $region28: #{fused_forward.1} parent=0 // pred_region
    _
  $region29: #{fused_forward.1} parent=0 // pred_fallthru
    _
  // Predicated region
  $region30: #{fused_forward.1} parent=0 // pred_check
    _
  $region31: #{fused_forward.1} parent=0 // pred_check_branch
    %36 = sbr.rel (0) target = $region33
  $region32: #{fused_forward.1} parent=0 // pred_region
    _
  $region33: #{fused_forward.1} parent=0 // pred_fallthru
    _
  // Predicated region
  $region34: #{fused_forward.1} parent=0 // pred_check
    _
  $region35: #{fused_forward.1} parent=0 // pred_check_branch
    %38 = sbr.rel (0) target = $region37
  $region36: #{fused_forward.1} parent=0 // pred_region
    _
  $region37: #{fused_forward.1} parent=0 // pred_fallthru
    _
  // Predicated region
  $region38: #{fused_forward.1} parent=0 // pred_check
    _
  $region39: #{fused_forward.1} parent=0 // pred_check_branch
    %40 = sbr.rel (0) target = $region41
  $region40: #{fused_forward.1} parent=0 // pred_region
    _
  $region41: #{fused_forward.1} parent=0 // pred_fallthru
    _
  // Predicated region
  $region42: #{fused_forward.1} parent=0 // pred_check
    _
  $region43: #{fused_forward.1} parent=0 // pred_check_branch
    %42 = sbr.rel (0) target = $region45
  $region44: #{fused_forward.1} parent=0 // pred_region
    _
  $region45: #{fused_forward.1} parent=0 // pred_fallthru
    _
  // Predicated region
  $region46: #{fused_forward.1} parent=0 // pred_check
    _
  $region47: #{fused_forward.1} parent=0 // pred_check_branch
    %44 = sbr.rel (0) target = $region49
  $region48: #{fused_forward.1} parent=0 // pred_region
    _
  $region49: #{fused_forward.1} parent=0 // pred_fallthru
    _
  // Predicated region
  $region50: #{fused_forward.1} parent=0 // pred_check
    _
  $region51: #{fused_forward.1} parent=0 // pred_check_branch
    %46 = sbr.rel (0) target = $region53
  $region52: #{fused_forward.1} parent=0 // pred_region
    _
  $region53: #{fused_forward.1} parent=0 // pred_fallthru
    _
  // Predicated region
  $region54: #{fused_forward.1} parent=0 // pred_check
    _
  $region55: #{fused_forward.1} parent=0 // pred_check_branch
    %48 = sbr.rel (0) target = $region57
  $region56: #{fused_forward.1} parent=0 // pred_region
    _
  $region57: #{fused_forward.1} parent=0 // pred_fallthru
    _
  // Predicated region
  $region58: #{fused_forward.1} parent=0 // pred_check
    _
  $region59: #{fused_forward.1} parent=0 // pred_check_branch
    %50 = sbr.rel (0) target = $region61
  $region60: #{fused_forward.1} parent=0 // pred_region
    _
  $region61: #{fused_forward.1} parent=0 // pred_fallthru
    _
  %p52 = scmp.lt.u32.totalorder 392, 8
  %p53 = pneg %p52
  // Predicated region
  $region62: #{fused_forward.1} parent=0 // pred_check
    _
  $region63: #{fused_forward.1} parent=0 // pred_check_branch
    %55 = sbr.rel (%p52) target = $region65
  $region64: #{fused_forward.1} parent=0 // pred_region
    %s70 = sand.u32 392, 7
    %p71 = scmp.eq.s32.totalorder %s70, 0
    // Predicated region
    $region77: #{fused_forward.1} parent=64 // pred_check
      %p72 = pneg %p71
    $region78: #{fused_forward.1} parent=64 // pred_check_branch
      %74 = sbr.rel (%p72) target = $region80
    $region79: #{fused_forward.1} parent=64 // pred_region
      loop: start=0, step=1, limit=1
      $region81: #{fused_forward.1} parent=79 // loop_pre_header
        _
      $region82: #{fused_forward.1} parent=79 // loop_header
        %s76 = sphi 0, %s80
        %p77 = scmp.ge.s32.totalorder %s76, 1
        %s81 = sphi %s15, %s15
        %s82 = sphi [#allocation2], [#allocation2]
      $region83: #{fused_forward.1} parent=79 // loop_header_branch
        %79 = sbr.rel (%p77) target = $region87
      $region84: #{fused_forward.1} parent=79 // loop_body
        %v83 = vld [vmem:[%s81] sm:$0xff]
        %84 = vst [vmem:[%s82] sm:$0xff] %v83
        %v85 = vld [vmem:[%s81 + $0x8] sm:$0xff]
        %86 = vst [vmem:[%s82 + $0x8] sm:$0xff] %v85
        %v87 = vld [vmem:[%s81 + $0x10] sm:$0xff]
        %88 = vst [vmem:[%s82 + $0x10] sm:$0xff] %v87
        %v89 = vld [vmem:[%s81 + $0x18] sm:$0xff]
        %90 = vst [vmem:[%s82 + $0x18] sm:$0xff] %v89
        %v91 = vld [vmem:[%s81 + $0x20] sm:$0xff]
        %92 = vst [vmem:[%s82 + $0x20] sm:$0xff] %v91
        %v93 = vld [vmem:[%s81 + $0x28] sm:$0xff]
        %94 = vst [vmem:[%s82 + $0x28] sm:$0xff] %v93
        %v95 = vld [vmem:[%s81 + $0x30] sm:$0xff]
        %96 = vst [vmem:[%s82 + $0x30] sm:$0xff] %v95
        %v97 = vld [vmem:[%s81 + $0x38] sm:$0xff]
        %98 = vst [vmem:[%s82 + $0x38] sm:$0xff] %v97
        %v99 = vld [vmem:[%s81 + $0x40] sm:$0xff]
        %100 = vst [vmem:[%s82 + $0x40] sm:$0xff] %v99
        %v101 = vld [vmem:[%s81 + $0x48] sm:$0xff]
        %102 = vst [vmem:[%s82 + $0x48] sm:$0xff] %v101
        %v103 = vld [vmem:[%s81 + $0x50] sm:$0xff]
        %104 = vst [vmem:[%s82 + $0x50] sm:$0xff] %v103
        %v105 = vld [vmem:[%s81 + $0x58] sm:$0xff]
        %106 = vst [vmem:[%s82 + $0x58] sm:$0xff] %v105
        %v107 = vld [vmem:[%s81 + $0x60] sm:$0xff]
        %108 = vst [vmem:[%s82 + $0x60] sm:$0xff] %v107
        %v109 = vld [vmem:[%s81 + $0x68] sm:$0xff]
        %110 = vst [vmem:[%s82 + $0x68] sm:$0xff] %v109
        %v111 = vld [vmem:[%s81 + $0x70] sm:$0xff]
        %112 = vst [vmem:[%s82 + $0x70] sm:$0xff] %v111
        %v113 = vld [vmem:[%s81 + $0x78] sm:$0xff]
        %114 = vst [vmem:[%s82 + $0x78] sm:$0xff] %v113
        %v115 = vld [vmem:[%s81 + $0x80] sm:$0xff]
        %116 = vst [vmem:[%s82 + $0x80] sm:$0xff] %v115
        %v117 = vld [vmem:[%s81 + $0x88] sm:$0xff]
        %118 = vst [vmem:[%s82 + $0x88] sm:$0xff] %v117
        %v119 = vld [vmem:[%s81 + $0x90] sm:$0xff]
        %120 = vst [vmem:[%s82 + $0x90] sm:$0xff] %v119
        %v121 = vld [vmem:[%s81 + $0x98] sm:$0xff]
        %122 = vst [vmem:[%s82 + $0x98] sm:$0xff] %v121
        %v123 = vld [vmem:[%s81 + $0xa0] sm:$0xff]
        %124 = vst [vmem:[%s82 + $0xa0] sm:$0xff] %v123
        %v125 = vld [vmem:[%s81 + $0xa8] sm:$0xff]
        %126 = vst [vmem:[%s82 + $0xa8] sm:$0xff] %v125
        %v127 = vld [vmem:[%s81 + $0xb0] sm:$0xff]
        %128 = vst [vmem:[%s82 + $0xb0] sm:$0xff] %v127
        %v129 = vld [vmem:[%s81 + $0xb8] sm:$0xff]
        %130 = vst [vmem:[%s82 + $0xb8] sm:$0xff] %v129
        %v131 = vld [vmem:[%s81 + $0xc0] sm:$0xff]
        %132 = vst [vmem:[%s82 + $0xc0] sm:$0xff] %v131
        %v133 = vld [vmem:[%s81 + $0xc8] sm:$0xff]
        %134 = vst [vmem:[%s82 + $0xc8] sm:$0xff] %v133
        %v135 = vld [vmem:[%s81 + $0xd0] sm:$0xff]
        %136 = vst [vmem:[%s82 + $0xd0] sm:$0xff] %v135
        %v137 = vld [vmem:[%s81 + $0xd8] sm:$0xff]
        %138 = vst [vmem:[%s82 + $0xd8] sm:$0xff] %v137
        %v139 = vld [vmem:[%s81 + $0xe0] sm:$0xff]
        %140 = vst [vmem:[%s82 + $0xe0] sm:$0xff] %v139
        %v141 = vld [vmem:[%s81 + $0xe8] sm:$0xff]
        %142 = vst [vmem:[%s82 + $0xe8] sm:$0xff] %v141
        %v143 = vld [vmem:[%s81 + $0xf0] sm:$0xff]
        %144 = vst [vmem:[%s82 + $0xf0] sm:$0xff] %v143
        %v145 = vld [vmem:[%s81 + $0xf8] sm:$0xff]
        %146 = vst [vmem:[%s82 + $0xf8] sm:$0xff] %v145
        %v147 = vld [vmem:[%s81 + $0x100] sm:$0xff]
        %148 = vst [vmem:[%s82 + $0x100] sm:$0xff] %v147
        %v149 = vld [vmem:[%s81 + $0x108] sm:$0xff]
        %150 = vst [vmem:[%s82 + $0x108] sm:$0xff] %v149
        %v151 = vld [vmem:[%s81 + $0x110] sm:$0xff]
        %152 = vst [vmem:[%s82 + $0x110] sm:$0xff] %v151
        %v153 = vld [vmem:[%s81 + $0x118] sm:$0xff]
        %154 = vst [vmem:[%s82 + $0x118] sm:$0xff] %v153
        %v155 = vld [vmem:[%s81 + $0x120] sm:$0xff]
        %156 = vst [vmem:[%s82 + $0x120] sm:$0xff] %v155
        %v157 = vld [vmem:[%s81 + $0x128] sm:$0xff]
        %158 = vst [vmem:[%s82 + $0x128] sm:$0xff] %v157
        %v159 = vld [vmem:[%s81 + $0x130] sm:$0xff]
        %160 = vst [vmem:[%s82 + $0x130] sm:$0xff] %v159
        %v161 = vld [vmem:[%s81 + $0x138] sm:$0xff]
        %162 = vst [vmem:[%s82 + $0x138] sm:$0xff] %v161
        %v163 = vld [vmem:[%s81 + $0x140] sm:$0xff]
        %164 = vst [vmem:[%s82 + $0x140] sm:$0xff] %v163
        %v165 = vld [vmem:[%s81 + $0x148] sm:$0xff]
        %166 = vst [vmem:[%s82 + $0x148] sm:$0xff] %v165
        %v167 = vld [vmem:[%s81 + $0x150] sm:$0xff]
        %168 = vst [vmem:[%s82 + $0x150] sm:$0xff] %v167
        %v169 = vld [vmem:[%s81 + $0x158] sm:$0xff]
        %170 = vst [vmem:[%s82 + $0x158] sm:$0xff] %v169
        %v171 = vld [vmem:[%s81 + $0x160] sm:$0xff]
        %172 = vst [vmem:[%s82 + $0x160] sm:$0xff] %v171
        %v173 = vld [vmem:[%s81 + $0x168] sm:$0xff]
        %174 = vst [vmem:[%s82 + $0x168] sm:$0xff] %v173
        %v175 = vld [vmem:[%s81 + $0x170] sm:$0xff]
        %176 = vst [vmem:[%s82 + $0x170] sm:$0xff] %v175
        %v177 = vld [vmem:[%s81 + $0x178] sm:$0xff]
        %178 = vst [vmem:[%s82 + $0x178] sm:$0xff] %v177
        %v179 = vld [vmem:[%s81 + $0x180] sm:$0xff]
        %180 = vst [vmem:[%s82 + $0x180] sm:$0xff] %v179
      $region85: #{fused_forward.1} parent=79 // loop_footer
        %s80 = sadd.s32 1, %s76
      $region86: #{fused_forward.1} parent=79 // loop_footer_branch
        %75 = sbr.rel target = $region82
      $region87: #{fused_forward.1} parent=79 // loop_exit
        _
    $region80: #{fused_forward.1} parent=64 // pred_fallthru
      _
    %p181 = pneg %p71
    // Predicated region
    $region88: #{fused_forward.1} parent=64 // pred_check
      _
    $region89: #{fused_forward.1} parent=64 // pred_check_branch
      %183 = sbr.rel (%p71) target = $region91
    $region90: #{fused_forward.1} parent=64 // pred_region
      %s184 = sand.u32 392, 7
    $region91: #{fused_forward.1} parent=64 // pred_fallthru
      _
  $region65: #{fused_forward.1} parent=0 // pred_fallthru
    _
  // Predicated region
  $region66: #{fused_forward.1} parent=0 // pred_check
    %p56 = pneg %p52
  $region67: #{fused_forward.1} parent=0 // pred_check_branch
    %58 = sbr.rel (%p56) target = $region69
  $region68: #{fused_forward.1} parent=0 // pred_region
    %s59 = sshllo.u32 0, 392
    loop: start=0, step=1, limit=1
    $region70: #{fused_forward.1} parent=68 // loop_pre_header
      _
    $region71: #{fused_forward.1} parent=68 // loop_header
      %s61 = sphi 0, %s65
      %p62 = scmp.ge.s32.totalorder %s61, 1
      %s66 = sphi %s15, %s15
      %s67 = sphi [#allocation2], [#allocation2]
    $region72: #{fused_forward.1} parent=68 // loop_header_branch
      %64 = sbr.rel (%p62) target = $region76
    $region73: #{fused_forward.1} parent=68 // loop_body
      %v68 = vld [vmem:[%s66] sm:%s59]
      %69 = vst [vmem:[%s67] sm:%s59] %v68
    $region74: #{fused_forward.1} parent=68 // loop_footer
      %s65 = sadd.s32 1, %s61
    $region75: #{fused_forward.1} parent=68 // loop_footer_branch
      %60 = sbr.rel target = $region71
    $region76: #{fused_forward.1} parent=68 // loop_exit
      _
  $region69: #{fused_forward.1} parent=0 // pred_fallthru
    _
  // Predicated region
  $region92: #{fused_forward.1} parent=0 // pred_check
    _
  $region93: #{fused_forward.1} parent=0 // pred_check_branch
    %187 = sbr.rel (0) target = $region95
  $region94: #{fused_forward.1} parent=0 // pred_region
    %188 = vsyncadd [#allocation3], 6272
  $region95: #{fused_forward.1} parent=0 // pred_fallthru
    _
  %v189 = vld [vmem:[%s0] sm:$0xff]
  %v190 = vld [vmem:[%s0 + $0x8] sm:$0xff]
  %v191 = vld [vmem:[%s1] sm:$0x1]
  %v192 = vld [vmem:[%s2] sm:$0x1]
  %v193 = vld [vmem:[%s3] sm:$0x1]
  %v194 = vld [vmem:[%s4] sm:$0x1]
  %vm195 = vcmask 261120
  %v196 = vsel %vm195, %v189, 0.0
  %197 = vadd.xlane.f32.xlu0 %v196
  %v198 = vpop.xlane.xlu0 %197
  %v199 = vsel %vm195, %v190, 0.0
  %200 = vadd.xlane.f32.xlu0 %v199
  %v201 = vpop.xlane.xlu0 %200
  %v203 = vlaneseq
  %v204 = vshrl.u32 %v203, 7
  %v205 = vsub.s32 0, %v204
  %v206 = vrot.slane %v192, %v205
  %v208 = vmul.f32 %v198, %v206
  %v209 = vmul.f32 %v201, %v206
  %211 = vset.pattern.permute.xlu0 0
  %212 = vperm.xlu0 %211, %v208
  %v213 = vpop.permute.xlu0 %212
  %216 = vset.pattern.permute.xlu0 0
  %217 = vperm.xlu0 %216, %v209
  %v218 = vpop.permute.xlu0 %217
  %v220 = vsub.f32 %v189, %v213
  %v221 = vsub.f32 %v190, %v218
  %v223 = vlaneseq
  %v224 = vshrl.u32 %v223, 7
  %v225 = vsub.s32 0, %v224
  %v226 = vrot.slane %v191, %v225
  %v228 = vmul.f32 %v220, %v226
  %v229 = vmul.f32 %v221, %v226
  %v230 = vmul.f32 %v228, %v228
  %v231 = vmul.f32 %v229, %v229
  %v232 = vsel %vm195, %v230, 0.0
  %233 = vadd.xlane.f32.xlu0 %v232
  %v234 = vpop.xlane.xlu0 %233
  %v235 = vsel %vm195, %v231, 0.0
  %236 = vadd.xlane.f32.xlu0 %v235
  %v237 = vpop.xlane.xlu0 %236
  %v238 = vmul.f32 %v234, %v206
  %v239 = vmul.f32 %v237, %v206
  %v240 = vadd.f32 %v238, 1e-05
  %v241 = vadd.f32 %v239, 1e-05
  %v242 = vrsqrt.pop %v240
  %v243 = vrsqrt.pop %v241
  %245 = vset.pattern.permute.xlu0 0
  %246 = vperm.xlu0 %245, %v242
  %v247 = vpop.permute.xlu0 %246
  %250 = vset.pattern.permute.xlu0 0
  %251 = vperm.xlu0 %250, %v243
  %v252 = vpop.permute.xlu0 %251
  %v254 = vmul.f32 %v228, %v247
  %v255 = vmul.f32 %v229, %v252
  %v257 = vlaneseq
  %v258 = vshrl.u32 %v257, 7
  %v259 = vsub.s32 0, %v258
  %v260 = vrot.slane %v193, %v259
  %v262 = vmul.f32 %v254, %v260
  %v263 = vmul.f32 %v255, %v260
  %v265 = vlaneseq
  %v266 = vshrl.u32 %v265, 7
  %v267 = vsub.s32 0, %v266
  %v268 = vrot.slane %v194, %v267
  %v270 = vadd.f32 %v262, %v268
  %v271 = vadd.f32 %v263, %v268
  %v272 = vld [vmem:[%s5] sm:$0xff]
  %v273 = vld [vmem:[%s5 + $0x8] sm:$0xff]
  %v274 = vld [vmem:[%s5 + $0x10] sm:$0xff]
  %v275 = vld [vmem:[%s5 + $0x18] sm:$0xff]
  %v277 = vsel %vm195, %v270, 0
  %v280 = vsel %vm195, %v271, 0
  %282 = vmatprep.subr.mxu0 0.0
  %283 = vmatpush1.msra.mxu0 %v272
  %284 = vmatprep.subr.mxu0 0.0
  %285 = vmatpush1.msra.mxu0 %v273
  %286 = vmatprep.subr.mxu0 0.0
  %287 = vmatpush1.msra.mxu0 %v274
  %288 = vmatprep.subr.mxu0 0.0
  %289 = vmatpush1.msra.mxu0 %v275
  %290 = vmatprep.subr.mxu0 0.0
  %291 = vmatpush1.msra.mxu0 0.0
  %292 = vmatprep.subr.mxu0 0.0
  %293 = vmatpush1.msra.mxu0 0.0
  %294 = vmatprep.subr.mxu0 0.0
  %295 = vmatpush1.msra.mxu0 0.0
  %296 = vmatprep.subr.mxu0 0.0
  %297 = vmatpush1.msra.mxu0 0.0
  %298 = vmatprep.subr.mxu0 0.0
  %299 = vmatpush1.msra.mxu0 0.0
  %300 = vmatprep.subr.mxu0 0.0
  %301 = vmatpush1.msra.mxu0 0.0
  %302 = vmatprep.subr.mxu0 0.0
  %303 = vmatpush1.msra.mxu0 0.0
  %304 = vmatprep.subr.mxu0 0.0
  %305 = vmatpush1.msra.mxu0 0.0
  %306 = vmatprep.subr.mxu0 0.0
  %307 = vmatpush1.msra.mxu0 0.0
  %308 = vmatprep.subr.mxu0 0.0
  %309 = vmatpush1.msra.mxu0 0.0
  %310 = vmatprep.subr.mxu0 0.0
  %311 = vmatpush1.msra.mxu0 0.0
  %312 = vmatprep.subr.mxu0 0.0
  %313 = vmatpush1.msra.mxu0 0.0
  %314 = vmatprep.subr.mxu0 0.0
  %315 = vmatpush1.msra.mxu0 0.0
  %316 = vmatprep.subr.mxu0 0.0
  %317 = vmatpush1.msra.mxu0 0.0
  %318 = vmatprep.subr.mxu0 0.0
  %319 = vmatpush1.msra.mxu0 0.0
  %320 = vmatprep.subr.mxu0 0.0
  %321 = vmatpush1.msra.mxu0 0.0
  %322 = vmatprep.subr.mxu0 0.0
  %323 = vmatpush1.msra.mxu0 0.0
  %324 = vmatprep.subr.mxu0 0.0
  %325 = vmatpush1.msra.mxu0 0.0
  %326 = vmatprep.subr.mxu0 0.0
  %327 = vmatpush1.msra.mxu0 0.0
  %328 = vmatprep.subr.mxu0 0.0
  %329 = vmatpush1.msra.mxu0 0.0
  %330 = vmatprep.subr.mxu0 0.0
  %331 = vmatpush1.msra.mxu0 0.0
  %332 = vmatprep.subr.mxu0 0.0
  %333 = vmatpush1.msra.mxu0 0.0
  %334 = vmatprep.subr.mxu0 0.0
  %335 = vmatpush1.msra.mxu0 0.0
  %336 = vmatprep.subr.mxu0 0.0
  %337 = vmatpush1.msra.mxu0 0.0
  %338 = vmatprep.subr.mxu0 0.0
  %339 = vmatpush1.msra.mxu0 0.0
  %340 = vmatprep.subr.mxu0 0.0
  %341 = vmatpush1.msra.mxu0 0.0
  %342 = vmatprep.subr.mxu0 0.0
  %343 = vmatpush1.msra.mxu0 0.0
  %344 = vmatprep.subr.mxu0 0.0
  %345 = vmatpush1.msra.mxu0 0.0
  %346 = vmatprep.mubr.f32.mxu0 0.0
  %347 = vmatmul.mubr.f32.gmra.mrb[0].mxu0 %v277
  %v348 = vpop.f32.mrb[0].mxu0
  %v349 = vadd.f32 0.0, %v348
  %v350 = vpop.f32.mrb[0].mxu0
  %351 = vmatprep.mubr.f32.mxu0 0.0
  %352 = vmatmul.mubr.f32.gmra.mrb[0].mxu0 %v280
  %v353 = vpop.f32.mrb[0].mxu0
  %v354 = vadd.f32 0.0, %v353
  %v355 = vpop.f32.mrb[0].mxu0
  %356 = vdwg.mxu0
  %v357 = vmul.f32 %v349, 0.5
  %v358 = vmul.f32 %v354, 0.5
  %v359 = vmul.f32 %v349, 0.70710677
  %v360 = vmul.f32 %v354, 0.70710677
  %vm361 = vcmp.ge.f32.partialorder %v359, 0.0
  %vm362 = vcmp.ge.f32.partialorder %v360, 0.0
  %v363 = vsel %vm361, 1.0, -1.0
  %v364 = vsel %vm362, 1.0, -1.0
  %v365 = vand.u32 2147483647, %v359
  %v366 = vand.u32 2147483647, %v360
  %v367 = vmul.f32 %v365, 0.3275911
  %v368 = vmul.f32 %v366, 0.3275911
  %v369 = vadd.f32 %v367, 1.0
  %v370 = vadd.f32 %v368, 1.0
  %v371 = vrcp.pop %v369
  %v372 = vmul.f32 1.0, %v371
  %v373 = vrcp.pop %v370
  %v374 = vmul.f32 1.0, %v373
  %v375 = vmul.f32 %v372, 1.0614054
  %v376 = vmul.f32 %v374, 1.0614054
  %v377 = vadd.f32 %v375, -1.4531521
  %v378 = vadd.f32 %v376, -1.4531521
  %v379 = vmul.f32 %v377, %v372
  %v380 = vmul.f32 %v378, %v374
  %v381 = vadd.f32 %v379, 1.4214138
  %v382 = vadd.f32 %v380, 1.4214138
  %v383 = vmul.f32 %v381, %v372
  %v384 = vmul.f32 %v382, %v374
  %v385 = vadd.f32 %v383, -0.28449672
  %v386 = vadd.f32 %v384, -0.28449672
  %v387 = vmul.f32 %v385, %v372
  %v388 = vmul.f32 %v386, %v374
  %v389 = vadd.f32 %v387, 0.2548296
  %v390 = vadd.f32 %v388, 0.2548296
  %v391 = vmul.f32 %v389, %v372
  %v392 = vmul.f32 %v390, %v374
  %v393 = vsub.f32 0.0, %v365
  %v394 = vsub.f32 0.0, %v366
  %v395 = vmul.f32 %v393, %v365
  %v396 = vmul.f32 %v394, %v366
  %v397 = vmul.f32 %v395, 1.442695
  %v398 = vpow.pop %v397
  %v399 = vmul.f32 %v396, 1.442695
  %v400 = vpow.pop %v399
  %v401 = vmul.f32 %v391, %v398
  %v402 = vmul.f32 %v392, %v400
  %v403 = vsub.f32 1.0, %v401
  %v404 = vsub.f32 1.0, %v402
  %v405 = vmul.f32 %v363, %v403
  %v406 = vmul.f32 %v364, %v404
  %v407 = vadd.f32 %v405, 1.0
  %v408 = vadd.f32 %v406, 1.0
  %v409 = vmul.f32 %v357, %v407
  %v410 = vmul.f32 %v358, %v408
  %s411 = scalar_lea.vmem %s0, 16
  %v412 = vld [vmem:[%s411] sm:$0xff]
  %v413 = vld [vmem:[%s411 + $0x8] sm:$0xff]
  %s414 = scalar_lea.vmem %s1, 1
  %v415 = vld [vmem:[%s414] sm:$0x1]
  %s416 = scalar_lea.vmem %s2, 1
  %v417 = vld [vmem:[%s416] sm:$0x1]
  %s418 = scalar_lea.vmem %s3, 1
  %v419 = vld [vmem:[%s418] sm:$0x1]
  %s420 = scalar_lea.vmem %s4, 1
  %v421 = vld [vmem:[%s420] sm:$0x1]
  %v422 = vsel %vm195, %v412, 0.0
  %423 = vadd.xlane.f32.xlu0 %v422
  %v424 = vpop.xlane.xlu0 %423
  %v425 = vsel %vm195, %v413, 0.0
  %426 = vadd.xlane.f32.xlu0 %v425
  %v427 = vpop.xlane.xlu0 %426
  %v429 = vlaneseq
  %v430 = vshrl.u32 %v429, 7
  %v431 = vsub.s32 0, %v430
  %v432 = vrot.slane %v417, %v431
  %v434 = vmul.f32 %v424, %v432
  %v435 = vmul.f32 %v427, %v432
  %437 = vset.pattern.permute.xlu0 0
  %438 = vperm.xlu0 %437, %v434
  %v439 = vpop.permute.xlu0 %438
  %442 = vset.pattern.permute.xlu0 0
  %443 = vperm.xlu0 %442, %v435
  %v444 = vpop.permute.xlu0 %443
  %v446 = vsub.f32 %v412, %v439
  %v447 = vsub.f32 %v413, %v444
  %v449 = vlaneseq
  %v450 = vshrl.u32 %v449, 7
  %v451 = vsub.s32 0, %v450
  %v452 = vrot.slane %v415, %v451
  %v454 = vmul.f32 %v446, %v452
  %v455 = vmul.f32 %v447, %v452
  %v456 = vmul.f32 %v454, %v454
  %v457 = vmul.f32 %v455, %v455
  %v458 = vsel %vm195, %v456, 0.0
  %459 = vadd.xlane.f32.xlu0 %v458
  %v460 = vpop.xlane.xlu0 %459
  %v461 = vsel %vm195, %v457, 0.0
  %462 = vadd.xlane.f32.xlu0 %v461
  %v463 = vpop.xlane.xlu0 %462
  %v464 = vmul.f32 %v460, %v432
  %v465 = vmul.f32 %v463, %v432
  %v466 = vadd.f32 %v464, 1e-05
  %v467 = vadd.f32 %v465, 1e-05
  %v468 = vrsqrt.pop %v466
  %v469 = vrsqrt.pop %v467
  %471 = vset.pattern.permute.xlu0 0
  %472 = vperm.xlu0 %471, %v468
  %v473 = vpop.permute.xlu0 %472
  %476 = vset.pattern.permute.xlu0 0
  %477 = vperm.xlu0 %476, %v469
  %v478 = vpop.permute.xlu0 %477
  %v480 = vmul.f32 %v454, %v473
  %v481 = vmul.f32 %v455, %v478
  %v483 = vlaneseq
  %v484 = vshrl.u32 %v483, 7
  %v485 = vsub.s32 0, %v484
  %v486 = vrot.slane %v419, %v485
  %v488 = vmul.f32 %v480, %v486
  %v489 = vmul.f32 %v481, %v486
  %v491 = vlaneseq
  %v492 = vshrl.u32 %v491, 7
  %v493 = vsub.s32 0, %v492
  %v494 = vrot.slane %v421, %v493
  %v496 = vadd.f32 %v488, %v494
  %v497 = vadd.f32 %v489, %v494
  %s498 = scalar_lea.vmem %s5, 32
  %v499 = vld [vmem:[%s498] sm:$0xff]
  %v500 = vld [vmem:[%s498 + $0x8] sm:$0xff]
  %v501 = vld [vmem:[%s498 + $0x10] sm:$0xff]
  %v502 = vld [vmem:[%s498 + $0x18] sm:$0xff]
  %v504 = vsel %vm195, %v496, 0
  %v507 = vsel %vm195, %v497, 0
  %509 = vmatprep.subr.mxu0 0.0
  %510 = vmatpush1.msra.mxu0 %v499
  %511 = vmatprep.subr.mxu0 0.0
  %512 = vmatpush1.msra.mxu0 %v500
  %513 = vmatprep.subr.mxu0 0.0
  %514 = vmatpush1.msra.mxu0 %v501
  %515 = vmatprep.subr.mxu0 0.0
  %516 = vmatpush1.msra.mxu0 %v502
  %517 = vmatprep.subr.mxu0 0.0
  %518 = vmatpush1.msra.mxu0 0.0
  %519 = vmatprep.subr.mxu0 0.0
  %520 = vmatpush1.msra.mxu0 0.0
  %521 = vmatprep.subr.mxu0 0.0
  %522 = vmatpush1.msra.mxu0 0.0
  %523 = vmatprep.subr.mxu0 0.0
  %524 = vmatpush1.msra.mxu0 0.0
  %525 = vmatprep.subr.mxu0 0.0
  %526 = vmatpush1.msra.mxu0 0.0
  %527 = vmatprep.subr.mxu0 0.0
  %528 = vmatpush1.msra.mxu0 0.0
  %529 = vmatprep.subr.mxu0 0.0
  %530 = vmatpush1.msra.mxu0 0.0
  %531 = vmatprep.subr.mxu0 0.0
  %532 = vmatpush1.msra.mxu0 0.0
  %533 = vmatprep.subr.mxu0 0.0
  %534 = vmatpush1.msra.mxu0 0.0
  %535 = vmatprep.subr.mxu0 0.0
  %536 = vmatpush1.msra.mxu0 0.0
  %537 = vmatprep.subr.mxu0 0.0
  %538 = vmatpush1.msra.mxu0 0.0
  %539 = vmatprep.subr.mxu0 0.0
  %540 = vmatpush1.msra.mxu0 0.0
  %541 = vmatprep.subr.mxu0 0.0
  %542 = vmatpush1.msra.mxu0 0.0
  %543 = vmatprep.subr.mxu0 0.0
  %544 = vmatpush1.msra.mxu0 0.0
  %545 = vmatprep.subr.mxu0 0.0
  %546 = vmatpush1.msra.mxu0 0.0
  %547 = vmatprep.subr.mxu0 0.0
  %548 = vmatpush1.msra.mxu0 0.0
  %549 = vmatprep.subr.mxu0 0.0
  %550 = vmatpush1.msra.mxu0 0.0
  %551 = vmatprep.subr.mxu0 0.0
  %552 = vmatpush1.msra.mxu0 0.0
  %553 = vmatprep.subr.mxu0 0.0
  %554 = vmatpush1.msra.mxu0 0.0
  %555 = vmatprep.subr.mxu0 0.0
  %556 = vmatpush1.msra.mxu0 0.0
  %557 = vmatprep.subr.mxu0 0.0
  %558 = vmatpush1.msra.mxu0 0.0
  %559 = vmatprep.subr.mxu0 0.0
  %560 = vmatpush1.msra.mxu0 0.0
  %561 = vmatprep.subr.mxu0 0.0
  %562 = vmatpush1.msra.mxu0 0.0
  %563 = vmatprep.subr.mxu0 0.0
  %564 = vmatpush1.msra.mxu0 0.0
  %565 = vmatprep.subr.mxu0 0.0
  %566 = vmatpush1.msra.mxu0 0.0
  %567 = vmatprep.subr.mxu0 0.0
  %568 = vmatpush1.msra.mxu0 0.0
  %569 = vmatprep.subr.mxu0 0.0
  %570 = vmatpush1.msra.mxu0 0.0
  %571 = vmatprep.subr.mxu0 0.0
  %572 = vmatpush1.msra.mxu0 0.0
  %573 = vmatprep.mubr.f32.mxu0 0.0
  %574 = vmatmul.mubr.f32.gmra.mrb[0].mxu0 %v504
  %v575 = vpop.f32.mrb[0].mxu0
  %v576 = vadd.f32 0.0, %v575
  %v577 = vpop.f32.mrb[0].mxu0
  %578 = vmatprep.mubr.f32.mxu0 0.0
  %579 = vmatmul.mubr.f32.gmra.mrb[0].mxu0 %v507
  %v580 = vpop.f32.mrb[0].mxu0
  %v581 = vadd.f32 0.0, %v580
  %v582 = vpop.f32.mrb[0].mxu0
  %583 = vdwg.mxu0
  %v584 = vmul.f32 %v576, 0.5
  %v585 = vmul.f32 %v581, 0.5
  %v586 = vmul.f32 %v576, 0.70710677
  %v587 = vmul.f32 %v581, 0.70710677
  %vm588 = vcmp.ge.f32.partialorder %v586, 0.0
  %vm589 = vcmp.ge.f32.partialorder %v587, 0.0
  %v590 = vsel %vm588, 1.0, -1.0
  %v591 = vsel %vm589, 1.0, -1.0
  %v592 = vand.u32 2147483647, %v586
  %v593 = vand.u32 2147483647, %v587
  %v594 = vmul.f32 %v592, 0.3275911
  %v595 = vmul.f32 %v593, 0.3275911
  %v596 = vadd.f32 %v594, 1.0
  %v597 = vadd.f32 %v595, 1.0
  %v598 = vrcp.pop %v596
  %v599 = vmul.f32 1.0, %v598
  %v600 = vrcp.pop %v597
  %v601 = vmul.f32 1.0, %v600
  %v602 = vmul.f32 %v599, 1.0614054
  %v603 = vmul.f32 %v601, 1.0614054
  %v604 = vadd.f32 %v602, -1.4531521
  %v605 = vadd.f32 %v603, -1.4531521
  %v606 = vmul.f32 %v604, %v599
  %v607 = vmul.f32 %v605, %v601
  %v608 = vadd.f32 %v606, 1.4214138
  %v609 = vadd.f32 %v607, 1.4214138
  %v610 = vmul.f32 %v608, %v599
  %v611 = vmul.f32 %v609, %v601
  %v612 = vadd.f32 %v610, -0.28449672
  %v613 = vadd.f32 %v611, -0.28449672
  %v614 = vmul.f32 %v612, %v599
  %v615 = vmul.f32 %v613, %v601
  %v616 = vadd.f32 %v614, 0.2548296
  %v617 = vadd.f32 %v615, 0.2548296
  %v618 = vmul.f32 %v616, %v599
  %v619 = vmul.f32 %v617, %v601
  %v620 = vsub.f32 0.0, %v592
  %v621 = vsub.f32 0.0, %v593
  %v622 = vmul.f32 %v620, %v592
  %v623 = vmul.f32 %v621, %v593
  %v624 = vmul.f32 %v622, 1.442695
  %v625 = vpow.pop %v624
  %v626 = vmul.f32 %v623, 1.442695
  %v627 = vpow.pop %v626
  %v628 = vmul.f32 %v618, %v625
  %v629 = vmul.f32 %v619, %v627
  %v630 = vsub.f32 1.0, %v628
  %v631 = vsub.f32 1.0, %v629
  %v632 = vmul.f32 %v590, %v630
  %v633 = vmul.f32 %v591, %v631
  %v634 = vadd.f32 %v632, 1.0
  %v635 = vadd.f32 %v633, 1.0
  %v636 = vmul.f32 %v584, %v634
  %v637 = vmul.f32 %v585, %v635
  %s638 = scalar_lea.vmem %s0, 32
  %v639 = vld [vmem:[%s638] sm:$0xff]
  %v640 = vld [vmem:[%s638 + $0x8] sm:$0xff]
  %s641 = scalar_lea.vmem %s1, 2
  %v642 = vld [vmem:[%s641] sm:$0x1]
  %s643 = scalar_lea.vmem %s2, 2
  %v644 = vld [vmem:[%s643] sm:$0x1]
  %s645 = scalar_lea.vmem %s3, 2
  %v646 = vld [vmem:[%s645] sm:$0x1]
  %s647 = scalar_lea.vmem %s4, 2
  %v648 = vld [vmem:[%s647] sm:$0x1]
  %v649 = vsel %vm195, %v639, 0.0
  %650 = vadd.xlane.f32.xlu0 %v649
  %v651 = vpop.xlane.xlu0 %650
  %v652 = vsel %vm195, %v640, 0.0
  %653 = vadd.xlane.f32.xlu0 %v652
  %v654 = vpop.xlane.xlu0 %653
  %v656 = vlaneseq
  %v657 = vshrl.u32 %v656, 7
  %v658 = vsub.s32 0, %v657
  %v659 = vrot.slane %v644, %v658
  %v661 = vmul.f32 %v651, %v659
  %v662 = vmul.f32 %v654, %v659
  %664 = vset.pattern.permute.xlu0 0
  %665 = vperm.xlu0 %664, %v661
  %v666 = vpop.permute.xlu0 %665
  %669 = vset.pattern.permute.xlu0 0
  %670 = vperm.xlu0 %669, %v662
  %v671 = vpop.permute.xlu0 %670
  %v673 = vsub.f32 %v639, %v666
  %v674 = vsub.f32 %v640, %v671
  %v676 = vlaneseq
  %v677 = vshrl.u32 %v676, 7
  %v678 = vsub.s32 0, %v677
  %v679 = vrot.slane %v642, %v678
  %v681 = vmul.f32 %v673, %v679
  %v682 = vmul.f32 %v674, %v679
  %v683 = vmul.f32 %v681, %v681
  %v684 = vmul.f32 %v682, %v682
  %v685 = vsel %vm195, %v683, 0.0
  %686 = vadd.xlane.f32.xlu0 %v685
  %v687 = vpop.xlane.xlu0 %686
  %v688 = vsel %vm195, %v684, 0.0
  %689 = vadd.xlane.f32.xlu0 %v688
  %v690 = vpop.xlane.xlu0 %689
  %v691 = vmul.f32 %v687, %v659
  %v692 = vmul.f32 %v690, %v659
  %v693 = vadd.f32 %v691, 1e-05
  %v694 = vadd.f32 %v692, 1e-05
  %v695 = vrsqrt.pop %v693
  %v696 = vrsqrt.pop %v694
  %698 = vset.pattern.permute.xlu0 0
  %699 = vperm.xlu0 %698, %v695
  %v700 = vpop.permute.xlu0 %699
  %703 = vset.pattern.permute.xlu0 0
  %704 = vperm.xlu0 %703, %v696
  %v705 = vpop.permute.xlu0 %704
  %v707 = vmul.f32 %v681, %v700
  %v708 = vmul.f32 %v682, %v705
  %v710 = vlaneseq
  %v711 = vshrl.u32 %v710, 7
  %v712 = vsub.s32 0, %v711
  %v713 = vrot.slane %v646, %v712
  %v715 = vmul.f32 %v707, %v713
  %v716 = vmul.f32 %v708, %v713
  %v718 = vlaneseq
  %v719 = vshrl.u32 %v718, 7
  %v720 = vsub.s32 0, %v719
  %v721 = vrot.slane %v648, %v720
  %v723 = vadd.f32 %v715, %v721
  %v724 = vadd.f32 %v716, %v721
  %s725 = scalar_lea.vmem %s5, 64
  %v726 = vld [vmem:[%s725] sm:$0xff]
  %v727 = vld [vmem:[%s725 + $0x8] sm:$0xff]
  %v728 = vld [vmem:[%s725 + $0x10] sm:$0xff]
  %v729 = vld [vmem:[%s725 + $0x18] sm:$0xff]
  %v731 = vsel %vm195, %v723, 0
  %v734 = vsel %vm195, %v724, 0
  %736 = vmatprep.subr.mxu0 0.0
  %737 = vmatpush1.msra.mxu0 %v726
  %738 = vmatprep.subr.mxu0 0.0
  %739 = vmatpush1.msra.mxu0 %v727
  %740 = vmatprep.subr.mxu0 0.0
  %741 = vmatpush1.msra.mxu0 %v728
  %742 = vmatprep.subr.mxu0 0.0
  %743 = vmatpush1.msra.mxu0 %v729
  %744 = vmatprep.subr.mxu0 0.0
  %745 = vmatpush1.msra.mxu0 0.0
  %746 = vmatprep.subr.mxu0 0.0
  %747 = vmatpush1.msra.mxu0 0.0
  %748 = vmatprep.subr.mxu0 0.0
  %749 = vmatpush1.msra.mxu0 0.0
  %750 = vmatprep.subr.mxu0 0.0
  %751 = vmatpush1.msra.mxu0 0.0
  %752 = vmatprep.subr.mxu0 0.0
  %753 = vmatpush1.msra.mxu0 0.0
  %754 = vmatprep.subr.mxu0 0.0
  %755 = vmatpush1.msra.mxu0 0.0
  %756 = vmatprep.subr.mxu0 0.0
  %757 = vmatpush1.msra.mxu0 0.0
  %758 = vmatprep.subr.mxu0 0.0
  %759 = vmatpush1.msra.mxu0 0.0
  %760 = vmatprep.subr.mxu0 0.0
  %761 = vmatpush1.msra.mxu0 0.0
  %762 = vmatprep.subr.mxu0 0.0
  %763 = vmatpush1.msra.mxu0 0.0
  %764 = vmatprep.subr.mxu0 0.0
  %765 = vmatpush1.msra.mxu0 0.0
  %766 = vmatprep.subr.mxu0 0.0
  %767 = vmatpush1.msra.mxu0 0.0
  %768 = vmatprep.subr.mxu0 0.0
  %769 = vmatpush1.msra.mxu0 0.0
  %770 = vmatprep.subr.mxu0 0.0
  %771 = vmatpush1.msra.mxu0 0.0
  %772 = vmatprep.subr.mxu0 0.0
  %773 = vmatpush1.msra.mxu0 0.0
  %774 = vmatprep.subr.mxu0 0.0
  %775 = vmatpush1.msra.mxu0 0.0
  %776 = vmatprep.subr.mxu0 0.0
  %777 = vmatpush1.msra.mxu0 0.0
  %778 = vmatprep.subr.mxu0 0.0
  %779 = vmatpush1.msra.mxu0 0.0
  %780 = vmatprep.subr.mxu0 0.0
  %781 = vmatpush1.msra.mxu0 0.0
  %782 = vmatprep.subr.mxu0 0.0
  %783 = vmatpush1.msra.mxu0 0.0
  %784 = vmatprep.subr.mxu0 0.0
  %785 = vmatpush1.msra.mxu0 0.0
  %786 = vmatprep.subr.mxu0 0.0
  %787 = vmatpush1.msra.mxu0 0.0
  %788 = vmatprep.subr.mxu0 0.0
  %789 = vmatpush1.msra.mxu0 0.0
  %790 = vmatprep.subr.mxu0 0.0
  %791 = vmatpush1.msra.mxu0 0.0
  %792 = vmatprep.subr.mxu0 0.0
  %793 = vmatpush1.msra.mxu0 0.0
  %794 = vmatprep.subr.mxu0 0.0
  %795 = vmatpush1.msra.mxu0 0.0
  %796 = vmatprep.subr.mxu0 0.0
  %797 = vmatpush1.msra.mxu0 0.0
  %798 = vmatprep.subr.mxu0 0.0
  %799 = vmatpush1.msra.mxu0 0.0
  %800 = vmatprep.mubr.f32.mxu0 0.0
  %801 = vmatmul.mubr.f32.gmra.mrb[0].mxu0 %v731
  %v802 = vpop.f32.mrb[0].mxu0
  %v803 = vadd.f32 0.0, %v802
  %v804 = vpop.f32.mrb[0].mxu0
  %805 = vmatprep.mubr.f32.mxu0 0.0
  %806 = vmatmul.mubr.f32.gmra.mrb[0].mxu0 %v734
  %v807 = vpop.f32.mrb[0].mxu0
  %v808 = vadd.f32 0.0, %v807
  %v809 = vpop.f32.mrb[0].mxu0
  %810 = vdwg.mxu0
  %v811 = vmul.f32 %v803, 0.5
  %v812 = vmul.f32 %v808, 0.5
  %v813 = vmul.f32 %v803, 0.70710677
  %v814 = vmul.f32 %v808, 0.70710677
  %vm815 = vcmp.ge.f32.partialorder %v813, 0.0
  %vm816 = vcmp.ge.f32.partialorder %v814, 0.0
  %v817 = vsel %vm815, 1.0, -1.0
  %v818 = vsel %vm816, 1.0, -1.0
  %v819 = vand.u32 2147483647, %v813
  %v820 = vand.u32 2147483647, %v814
  %v821 = vmul.f32 %v819, 0.3275911
  %v822 = vmul.f32 %v820, 0.3275911
  %v823 = vadd.f32 %v821, 1.0
  %v824 = vadd.f32 %v822, 1.0
  %v825 = vrcp.pop %v823
  %v826 = vmul.f32 1.0, %v825
  %v827 = vrcp.pop %v824
  %v828 = vmul.f32 1.0, %v827
  %v829 = vmul.f32 %v826, 1.0614054
  %v830 = vmul.f32 %v828, 1.0614054
  %v831 = vadd.f32 %v829, -1.4531521
  %v832 = vadd.f32 %v830, -1.4531521
  %v833 = vmul.f32 %v831, %v826
  %v834 = vmul.f32 %v832, %v828
  %v835 = vadd.f32 %v833, 1.4214138
  %v836 = vadd.f32 %v834, 1.4214138
  %v837 = vmul.f32 %v835, %v826
  %v838 = vmul.f32 %v836, %v828
  %v839 = vadd.f32 %v837, -0.28449672
  %v840 = vadd.f32 %v838, -0.28449672
  %v841 = vmul.f32 %v839, %v826
  %v842 = vmul.f32 %v840, %v828
  %v843 = vadd.f32 %v841, 0.2548296
  %v844 = vadd.f32 %v842, 0.2548296
  %v845 = vmul.f32 %v843, %v826
  %v846 = vmul.f32 %v844, %v828
  %v847 = vsub.f32 0.0, %v819
  %v848 = vsub.f32 0.0, %v820
  %v849 = vmul.f32 %v847, %v819
  %v850 = vmul.f32 %v848, %v820
  %v851 = vmul.f32 %v849, 1.442695
  %v852 = vpow.pop %v851
  %v853 = vmul.f32 %v850, 1.442695
  %v854 = vpow.pop %v853
  %v855 = vmul.f32 %v845, %v852
  %v856 = vmul.f32 %v846, %v854
  %v857 = vsub.f32 1.0, %v855
  %v858 = vsub.f32 1.0, %v856
  %v859 = vmul.f32 %v817, %v857
  %v860 = vmul.f32 %v818, %v858
  %v861 = vadd.f32 %v859, 1.0
  %v862 = vadd.f32 %v860, 1.0
  %v863 = vmul.f32 %v811, %v861
  %v864 = vmul.f32 %v812, %v862
  %s865 = scalar_lea.vmem %s0, 48
  %v866 = vld [vmem:[%s865] sm:$0xff]
  %v867 = vld [vmem:[%s865 + $0x8] sm:$0xff]
  %s868 = scalar_lea.vmem %s1, 3
  %v869 = vld [vmem:[%s868] sm:$0x1]
  %s870 = scalar_lea.vmem %s2, 3
  %v871 = vld [vmem:[%s870] sm:$0x1]
  %s872 = scalar_lea.vmem %s3, 3
  %v873 = vld [vmem:[%s872] sm:$0x1]
  %s874 = scalar_lea.vmem %s4, 3
  %v875 = vld [vmem:[%s874] sm:$0x1]
  %v876 = vsel %vm195, %v866, 0.0
  %877 = vadd.xlane.f32.xlu0 %v876
  %v878 = vpop.xlane.xlu0 %877
  %v879 = vsel %vm195, %v867, 0.0
  %880 = vadd.xlane.f32.xlu0 %v879
  %v881 = vpop.xlane.xlu0 %880
  %v883 = vlaneseq
  %v884 = vshrl.u32 %v883, 7
  %v885 = vsub.s32 0, %v884
  %v886 = vrot.slane %v871, %v885
  %v888 = vmul.f32 %v878, %v886
  %v889 = vmul.f32 %v881, %v886
  %891 = vset.pattern.permute.xlu0 0
  %892 = vperm.xlu0 %891, %v888
  %v893 = vpop.permute.xlu0 %892
  %896 = vset.pattern.permute.xlu0 0
  %897 = vperm.xlu0 %896, %v889
  %v898 = vpop.permute.xlu0 %897
  %v900 = vsub.f32 %v866, %v893
  %v901 = vsub.f32 %v867, %v898
  %v903 = vlaneseq
  %v904 = vshrl.u32 %v903, 7
  %v905 = vsub.s32 0, %v904
  %v906 = vrot.slane %v869, %v905
  %v908 = vmul.f32 %v900, %v906
  %v909 = vmul.f32 %v901, %v906
  %v910 = vmul.f32 %v908, %v908
  %v911 = vmul.f32 %v909, %v909
  %v912 = vsel %vm195, %v910, 0.0
  %913 = vadd.xlane.f32.xlu0 %v912
  %v914 = vpop.xlane.xlu0 %913
  %v915 = vsel %vm195, %v911, 0.0
  %916 = vadd.xlane.f32.xlu0 %v915
  %v917 = vpop.xlane.xlu0 %916
  %v918 = vmul.f32 %v914, %v886
  %v919 = vmul.f32 %v917, %v886
  %v920 = vadd.f32 %v918, 1e-05
  %v921 = vadd.f32 %v919, 1e-05
  %v922 = vrsqrt.pop %v920
  %v923 = vrsqrt.pop %v921
  %925 = vset.pattern.permute.xlu0 0
  %926 = vperm.xlu0 %925, %v922
  %v927 = vpop.permute.xlu0 %926
  %930 = vset.pattern.permute.xlu0 0
  %931 = vperm.xlu0 %930, %v923
  %v932 = vpop.permute.xlu0 %931
  %v934 = vmul.f32 %v908, %v927
  %v935 = vmul.f32 %v909, %v932
  %v937 = vlaneseq
  %v938 = vshrl.u32 %v937, 7
  %v939 = vsub.s32 0, %v938
  %v940 = vrot.slane %v873, %v939
  %v942 = vmul.f32 %v934, %v940
  %v943 = vmul.f32 %v935, %v940
  %v945 = vlaneseq
  %v946 = vshrl.u32 %v945, 7
  %v947 = vsub.s32 0, %v946
  %v948 = vrot.slane %v875, %v947
  %v950 = vadd.f32 %v942, %v948
  %v951 = vadd.f32 %v943, %v948
  %s952 = scalar_lea.vmem %s5, 96
  %v953 = vld [vmem:[%s952] sm:$0xff]
  %v954 = vld [vmem:[%s952 + $0x8] sm:$0xff]
  %v955 = vld [vmem:[%s952 + $0x10] sm:$0xff]
  %v956 = vld [vmem:[%s952 + $0x18] sm:$0xff]
  %v958 = vsel %vm195, %v950, 0
  %v961 = vsel %vm195, %v951, 0
  %963 = vmatprep.subr.mxu0 0.0
  %964 = vmatpush1.msra.mxu0 %v953
  %965 = vmatprep.subr.mxu0 0.0
  %966 = vmatpush1.msra.mxu0 %v954
  %967 = vmatprep.subr.mxu0 0.0
  %968 = vmatpush1.msra.mxu0 %v955
  %969 = vmatprep.subr.mxu0 0.0
  %970 = vmatpush1.msra.mxu0 %v956
  %971 = vmatprep.subr.mxu0 0.0
  %972 = vmatpush1.msra.mxu0 0.0
  %973 = vmatprep.subr.mxu0 0.0
  %974 = vmatpush1.msra.mxu0 0.0
  %975 = vmatprep.subr.mxu0 0.0
  %976 = vmatpush1.msra.mxu0 0.0
  %977 = vmatprep.subr.mxu0 0.0
  %978 = vmatpush1.msra.mxu0 0.0
  %979 = vmatprep.subr.mxu0 0.0
  %980 = vmatpush1.msra.mxu0 0.0
  %981 = vmatprep.subr.mxu0 0.0
  %982 = vmatpush1.msra.mxu0 0.0
  %983 = vmatprep.subr.mxu0 0.0
  %984 = vmatpush1.msra.mxu0 0.0
  %985 = vmatprep.subr.mxu0 0.0
  %986 = vmatpush1.msra.mxu0 0.0
  %987 = vmatprep.subr.mxu0 0.0
  %988 = vmatpush1.msra.mxu0 0.0
  %989 = vmatprep.subr.mxu0 0.0
  %990 = vmatpush1.msra.mxu0 0.0
  %991 = vmatprep.subr.mxu0 0.0
  %992 = vmatpush1.msra.mxu0 0.0
  %993 = vmatprep.subr.mxu0 0.0
  %994 = vmatpush1.msra.mxu0 0.0
  %995 = vmatprep.subr.mxu0 0.0
  %996 = vmatpush1.msra.mxu0 0.0
  %997 = vmatprep.subr.mxu0 0.0
  %998 = vmatpush1.msra.mxu0 0.0
  %999 = vmatprep.subr.mxu0 0.0
  %1000 = vmatpush1.msra.mxu0 0.0
  %1001 = vmatprep.subr.mxu0 0.0
  %1002 = vmatpush1.msra.mxu0 0.0
  %1003 = vmatprep.subr.mxu0 0.0
  %1004 = vmatpush1.msra.mxu0 0.0
  %1005 = vmatprep.subr.mxu0 0.0
  %1006 = vmatpush1.msra.mxu0 0.0
  %1007 = vmatprep.subr.mxu0 0.0
  %1008 = vmatpush1.msra.mxu0 0.0
  %1009 = vmatprep.subr.mxu0 0.0
  %1010 = vmatpush1.msra.mxu0 0.0
  %1011 = vmatprep.subr.mxu0 0.0
  %1012 = vmatpush1.msra.mxu0 0.0
  %1013 = vmatprep.subr.mxu0 0.0
  %1014 = vmatpush1.msra.mxu0 0.0
  %1015 = vmatprep.subr.mxu0 0.0
  %1016 = vmatpush1.msra.mxu0 0.0
  %1017 = vmatprep.subr.mxu0 0.0
  %1018 = vmatpush1.msra.mxu0 0.0
  %1019 = vmatprep.subr.mxu0 0.0
  %1020 = vmatpush1.msra.mxu0 0.0
  %1021 = vmatprep.subr.mxu0 0.0
  %1022 = vmatpush1.msra.mxu0 0.0
  %1023 = vmatprep.subr.mxu0 0.0
  %1024 = vmatpush1.msra.mxu0 0.0
  %1025 = vmatprep.subr.mxu0 0.0
  %1026 = vmatpush1.msra.mxu0 0.0
  %1027 = vmatprep.mubr.f32.mxu0 0.0
  %1028 = vmatmul.mubr.f32.gmra.mrb[0].mxu0 %v958
  %v1029 = vpop.f32.mrb[0].mxu0
  %v1030 = vadd.f32 0.0, %v1029
  %v1031 = vpop.f32.mrb[0].mxu0
  %1032 = vmatprep.mubr.f32.mxu0 0.0
  %1033 = vmatmul.mubr.f32.gmra.mrb[0].mxu0 %v961
  %v1034 = vpop.f32.mrb[0].mxu0
  %v1035 = vadd.f32 0.0, %v1034
  %v1036 = vpop.f32.mrb[0].mxu0
  %1037 = vdwg.mxu0
  %v1038 = vmul.f32 %v1030, 0.5
  %v1039 = vmul.f32 %v1035, 0.5
  %v1040 = vmul.f32 %v1030, 0.70710677
  %v1041 = vmul.f32 %v1035, 0.70710677
  %vm1042 = vcmp.ge.f32.partialorder %v1040, 0.0
  %vm1043 = vcmp.ge.f32.partialorder %v1041, 0.0
  %v1044 = vsel %vm1042, 1.0, -1.0
  %v1045 = vsel %vm1043, 1.0, -1.0
  %v1046 = vand.u32 2147483647, %v1040
  %v1047 = vand.u32 2147483647, %v1041
  %v1048 = vmul.f32 %v1046, 0.3275911
  %v1049 = vmul.f32 %v1047, 0.3275911
  %v1050 = vadd.f32 %v1048, 1.0
  %v1051 = vadd.f32 %v1049, 1.0
  %v1052 = vrcp.pop %v1050
  %v1053 = vmul.f32 1.0, %v1052
  %v1054 = vrcp.pop %v1051
  %v1055 = vmul.f32 1.0, %v1054
  %v1056 = vmul.f32 %v1053, 1.0614054
  %v1057 = vmul.f32 %v1055, 1.0614054
  %v1058 = vadd.f32 %v1056, -1.4531521
  %v1059 = vadd.f32 %v1057, -1.4531521
  %v1060 = vmul.f32 %v1058, %v1053
  %v1061 = vmul.f32 %v1059, %v1055
  %v1062 = vadd.f32 %v1060, 1.4214138
  %v1063 = vadd.f32 %v1061, 1.4214138
  %v1064 = vmul.f32 %v1062, %v1053
  %v1065 = vmul.f32 %v1063, %v1055
  %v1066 = vadd.f32 %v1064, -0.28449672
  %v1067 = vadd.f32 %v1065, -0.28449672
  %v1068 = vmul.f32 %v1066, %v1053
  %v1069 = vmul.f32 %v1067, %v1055
  %v1070 = vadd.f32 %v1068, 0.2548296
  %v1071 = vadd.f32 %v1069, 0.2548296
  %v1072 = vmul.f32 %v1070, %v1053
  %v1073 = vmul.f32 %v1071, %v1055
  %v1074 = vsub.f32 0.0, %v1046
  %v1075 = vsub.f32 0.0, %v1047
  %v1076 = vmul.f32 %v1074, %v1046
  %v1077 = vmul.f32 %v1075, %v1047
  %v1078 = vmul.f32 %v1076, 1.442695
  %v1079 = vpow.pop %v1078
  %v1080 = vmul.f32 %v1077, 1.442695
  %v1081 = vpow.pop %v1080
  %v1082 = vmul.f32 %v1072, %v1079
  %v1083 = vmul.f32 %v1073, %v1081
  %v1084 = vsub.f32 1.0, %v1082
  %v1085 = vsub.f32 1.0, %v1083
  %v1086 = vmul.f32 %v1044, %v1084
  %v1087 = vmul.f32 %v1045, %v1085
  %v1088 = vadd.f32 %v1086, 1.0
  %v1089 = vadd.f32 %v1087, 1.0
  %v1090 = vmul.f32 %v1038, %v1088
  %v1091 = vmul.f32 %v1039, %v1089
  %s1092 = scalar_lea.vmem %s0, 64
  %v1093 = vld [vmem:[%s1092] sm:$0xff]
  %v1094 = vld [vmem:[%s1092 + $0x8] sm:$0xff]
  %s1095 = scalar_lea.vmem %s1, 4
  %v1096 = vld [vmem:[%s1095] sm:$0x1]
  %s1097 = scalar_lea.vmem %s2, 4
  %v1098 = vld [vmem:[%s1097] sm:$0x1]
  %s1099 = scalar_lea.vmem %s3, 4
  %v1100 = vld [vmem:[%s1099] sm:$0x1]
  %s1101 = scalar_lea.vmem %s4, 4
  %v1102 = vld [vmem:[%s1101] sm:$0x1]
  %v1103 = vsel %vm195, %v1093, 0.0
  %1104 = vadd.xlane.f32.xlu0 %v1103
  %v1105 = vpop.xlane.xlu0 %1104
  %v1106 = vsel %vm195, %v1094, 0.0
  %1107 = vadd.xlane.f32.xlu0 %v1106
  %v1108 = vpop.xlane.xlu0 %1107
  %v1110 = vlaneseq
  %v1111 = vshrl.u32 %v1110, 7
  %v1112 = vsub.s32 0, %v1111
  %v1113 = vrot.slane %v1098, %v1112
  %v1115 = vmul.f32 %v1105, %v1113
  %v1116 = vmul.f32 %v1108, %v1113
  %1118 = vset.pattern.permute.xlu0 0
  %1119 = vperm.xlu0 %1118, %v1115
  %v1120 = vpop.permute.xlu0 %1119
  %1123 = vset.pattern.permute.xlu0 0
  %1124 = vperm.xlu0 %1123, %v1116
  %v1125 = vpop.permute.xlu0 %1124
  %v1127 = vsub.f32 %v1093, %v1120
  %v1128 = vsub.f32 %v1094, %v1125
  %v1130 = vlaneseq
  %v1131 = vshrl.u32 %v1130, 7
  %v1132 = vsub.s32 0, %v1131
  %v1133 = vrot.slane %v1096, %v1132
  %v1135 = vmul.f32 %v1127, %v1133
  %v1136 = vmul.f32 %v1128, %v1133
  %v1137 = vmul.f32 %v1135, %v1135
  %v1138 = vmul.f32 %v1136, %v1136
  %v1139 = vsel %vm195, %v1137, 0.0
  %1140 = vadd.xlane.f32.xlu0 %v1139
  %v1141 = vpop.xlane.xlu0 %1140
  %v1142 = vsel %vm195, %v1138, 0.0
  %1143 = vadd.xlane.f32.xlu0 %v1142
  %v1144 = vpop.xlane.xlu0 %1143
  %v1145 = vmul.f32 %v1141, %v1113
  %v1146 = vmul.f32 %v1144, %v1113
  %v1147 = vadd.f32 %v1145, 1e-05
  %v1148 = vadd.f32 %v1146, 1e-05
  %v1149 = vrsqrt.pop %v1147
  %v1150 = vrsqrt.pop %v1148
  %1152 = vset.pattern.permute.xlu0 0
  %1153 = vperm.xlu0 %1152, %v1149
  %v1154 = vpop.permute.xlu0 %1153
  %1157 = vset.pattern.permute.xlu0 0
  %1158 = vperm.xlu0 %1157, %v1150
  %v1159 = vpop.permute.xlu0 %1158
  %v1161 = vmul.f32 %v1135, %v1154
  %v1162 = vmul.f32 %v1136, %v1159
  %v1164 = vlaneseq
  %v1165 = vshrl.u32 %v1164, 7
  %v1166 = vsub.s32 0, %v1165
  %v1167 = vrot.slane %v1100, %v1166
  %v1169 = vmul.f32 %v1161, %v1167
  %v1170 = vmul.f32 %v1162, %v1167
  %v1172 = vlaneseq
  %v1173 = vshrl.u32 %v1172, 7
  %v1174 = vsub.s32 0, %v1173
  %v1175 = vrot.slane %v1102, %v1174
  %v1177 = vadd.f32 %v1169, %v1175
  %v1178 = vadd.f32 %v1170, %v1175
  %s1179 = scalar_lea.vmem %s5, 128
  %v1180 = vld [vmem:[%s1179] sm:$0xff]
  %v1181 = vld [vmem:[%s1179 + $0x8] sm:$0xff]
  %v1182 = vld [vmem:[%s1179 + $0x10] sm:$0xff]
  %v1183 = vld [vmem:[%s1179 + $0x18] sm:$0xff]
  %v1185 = vsel %vm195, %v1177, 0
  %v1188 = vsel %vm195, %v1178, 0
  %1190 = vmatprep.subr.mxu0 0.0
  %1191 = vmatpush1.msra.mxu0 %v1180
  %1192 = vmatprep.subr.mxu0 0.0
  %1193 = vmatpush1.msra.mxu0 %v1181
  %1194 = vmatprep.subr.mxu0 0.0
  %1195 = vmatpush1.msra.mxu0 %v1182
  %1196 = vmatprep.subr.mxu0 0.0
  %1197 = vmatpush1.msra.mxu0 %v1183
  %1198 = vmatprep.subr.mxu0 0.0
  %1199 = vmatpush1.msra.mxu0 0.0
  %1200 = vmatprep.subr.mxu0 0.0
  %1201 = vmatpush1.msra.mxu0 0.0
  %1202 = vmatprep.subr.mxu0 0.0
  %1203 = vmatpush1.msra.mxu0 0.0
  %1204 = vmatprep.subr.mxu0 0.0
  %1205 = vmatpush1.msra.mxu0 0.0
  %1206 = vmatprep.subr.mxu0 0.0
  %1207 = vmatpush1.msra.mxu0 0.0
  %1208 = vmatprep.subr.mxu0 0.0
  %1209 = vmatpush1.msra.mxu0 0.0
  %1210 = vmatprep.subr.mxu0 0.0
  %1211 = vmatpush1.msra.mxu0 0.0
  %1212 = vmatprep.subr.mxu0 0.0
  %1213 = vmatpush1.msra.mxu0 0.0
  %1214 = vmatprep.subr.mxu0 0.0
  %1215 = vmatpush1.msra.mxu0 0.0
  %1216 = vmatprep.subr.mxu0 0.0
  %1217 = vmatpush1.msra.mxu0 0.0
  %1218 = vmatprep.subr.mxu0 0.0
  %1219 = vmatpush1.msra.mxu0 0.0
  %1220 = vmatprep.subr.mxu0 0.0
  %1221 = vmatpush1.msra.mxu0 0.0
  %1222 = vmatprep.subr.mxu0 0.0
  %1223 = vmatpush1.msra.mxu0 0.0
  %1224 = vmatprep.subr.mxu0 0.0
  %1225 = vmatpush1.msra.mxu0 0.0
  %1226 = vmatprep.subr.mxu0 0.0
  %1227 = vmatpush1.msra.mxu0 0.0
  %1228 = vmatprep.subr.mxu0 0.0
  %1229 = vmatpush1.msra.mxu0 0.0
  %1230 = vmatprep.subr.mxu0 0.0
  %1231 = vmatpush1.msra.mxu0 0.0
  %1232 = vmatprep.subr.mxu0 0.0
  %1233 = vmatpush1.msra.mxu0 0.0
  %1234 = vmatprep.subr.mxu0 0.0
  %1235 = vmatpush1.msra.mxu0 0.0
  %1236 = vmatprep.subr.mxu0 0.0
  %1237 = vmatpush1.msra.mxu0 0.0
  %1238 = vmatprep.subr.mxu0 0.0
  %1239 = vmatpush1.msra.mxu0 0.0
  %1240 = vmatprep.subr.mxu0 0.0
  %1241 = vmatpush1.msra.mxu0 0.0
  %1242 = vmatprep.subr.mxu0 0.0
  %1243 = vmatpush1.msra.mxu0 0.0
  %1244 = vmatprep.subr.mxu0 0.0
  %1245 = vmatpush1.msra.mxu0 0.0
  %1246 = vmatprep.subr.mxu0 0.0
  %1247 = vmatpush1.msra.mxu0 0.0
  %1248 = vmatprep.subr.mxu0 0.0
  %1249 = vmatpush1.msra.mxu0 0.0
  %1250 = vmatprep.subr.mxu0 0.0
  %1251 = vmatpush1.msra.mxu0 0.0
  %1252 = vmatprep.subr.mxu0 0.0
  %1253 = vmatpush1.msra.mxu0 0.0
  %1254 = vmatprep.mubr.f32.mxu0 0.0
  %1255 = vmatmul.mubr.f32.gmra.mrb[0].mxu0 %v1185
  %v1256 = vpop.f32.mrb[0].mxu0
  %v1257 = vadd.f32 0.0, %v1256
  %v1258 = vpop.f32.mrb[0].mxu0
  %1259 = vmatprep.mubr.f32.mxu0 0.0
  %1260 = vmatmul.mubr.f32.gmra.mrb[0].mxu0 %v1188
  %v1261 = vpop.f32.mrb[0].mxu0
  %v1262 = vadd.f32 0.0, %v1261
  %v1263 = vpop.f32.mrb[0].mxu0
  %1264 = vdwg.mxu0
  %v1265 = vmul.f32 %v1257, 0.5
  %v1266 = vmul.f32 %v1262, 0.5
  %v1267 = vmul.f32 %v1257, 0.70710677
  %v1268 = vmul.f32 %v1262, 0.70710677
  %vm1269 = vcmp.ge.f32.partialorder %v1267, 0.0
  %vm1270 = vcmp.ge.f32.partialorder %v1268, 0.0
  %v1271 = vsel %vm1269, 1.0, -1.0
  %v1272 = vsel %vm1270, 1.0, -1.0
  %v1273 = vand.u32 2147483647, %v1267
  %v1274 = vand.u32 2147483647, %v1268
  %v1275 = vmul.f32 %v1273, 0.3275911
  %v1276 = vmul.f32 %v1274, 0.3275911
  %v1277 = vadd.f32 %v1275, 1.0
  %v1278 = vadd.f32 %v1276, 1.0
  %v1279 = vrcp.pop %v1277
  %v1280 = vmul.f32 1.0, %v1279
  %v1281 = vrcp.pop %v1278
  %v1282 = vmul.f32 1.0, %v1281
  %v1283 = vmul.f32 %v1280, 1.0614054
  %v1284 = vmul.f32 %v1282, 1.0614054
  %v1285 = vadd.f32 %v1283, -1.4531521
  %v1286 = vadd.f32 %v1284, -1.4531521
  %v1287 = vmul.f32 %v1285, %v1280
  %v1288 = vmul.f32 %v1286, %v1282
  %v1289 = vadd.f32 %v1287, 1.4214138
  %v1290 = vadd.f32 %v1288, 1.4214138
  %v1291 = vmul.f32 %v1289, %v1280
  %v1292 = vmul.f32 %v1290, %v1282
  %v1293 = vadd.f32 %v1291, -0.28449672
  %v1294 = vadd.f32 %v1292, -0.28449672
  %v1295 = vmul.f32 %v1293, %v1280
  %v1296 = vmul.f32 %v1294, %v1282
  %v1297 = vadd.f32 %v1295, 0.2548296
  %v1298 = vadd.f32 %v1296, 0.2548296
  %v1299 = vmul.f32 %v1297, %v1280
  %v1300 = vmul.f32 %v1298, %v1282
  %v1301 = vsub.f32 0.0, %v1273
  %v1302 = vsub.f32 0.0, %v1274
  %v1303 = vmul.f32 %v1301, %v1273
  %v1304 = vmul.f32 %v1302, %v1274
  %v1305 = vmul.f32 %v1303, 1.442695
  %v1306 = vpow.pop %v1305
  %v1307 = vmul.f32 %v1304, 1.442695
  %v1308 = vpow.pop %v1307
  %v1309 = vmul.f32 %v1299, %v1306
  %v1310 = vmul.f32 %v1300, %v1308
  %v1311 = vsub.f32 1.0, %v1309
  %v1312 = vsub.f32 1.0, %v1310
  %v1313 = vmul.f32 %v1271, %v1311
  %v1314 = vmul.f32 %v1272, %v1312
  %v1315 = vadd.f32 %v1313, 1.0
  %v1316 = vadd.f32 %v1314, 1.0
  %v1317 = vmul.f32 %v1265, %v1315
  %v1318 = vmul.f32 %v1266, %v1316
  %s1319 = scalar_lea.vmem %s0, 80
  %v1320 = vld [vmem:[%s1319] sm:$0xff]
  %v1321 = vld [vmem:[%s1319 + $0x8] sm:$0xff]
  %s1322 = scalar_lea.vmem %s1, 5
  %v1323 = vld [vmem:[%s1322] sm:$0x1]
  %s1324 = scalar_lea.vmem %s2, 5
  %v1325 = vld [vmem:[%s1324] sm:$0x1]
  %s1326 = scalar_lea.vmem %s3, 5
  %v1327 = vld [vmem:[%s1326] sm:$0x1]
  %s1328 = scalar_lea.vmem %s4, 5
  %v1329 = vld [vmem:[%s1328] sm:$0x1]
  %v1330 = vsel %vm195, %v1320, 0.0
  %1331 = vadd.xlane.f32.xlu0 %v1330
  %v1332 = vpop.xlane.xlu0 %1331
  %v1333 = vsel %vm195, %v1321, 0.0
  %1334 = vadd.xlane.f32.xlu0 %v1333
  %v1335 = vpop.xlane.xlu0 %1334
  %v1337 = vlaneseq
  %v1338 = vshrl.u32 %v1337, 7
  %v1339 = vsub.s32 0, %v1338
  %v1340 = vrot.slane %v1325, %v1339
  %v1342 = vmul.f32 %v1332, %v1340
  %v1343 = vmul.f32 %v1335, %v1340
  %1345 = vset.pattern.permute.xlu0 0
  %1346 = vperm.xlu0 %1345, %v1342
  %v1347 = vpop.permute.xlu0 %1346
  %1350 = vset.pattern.permute.xlu0 0
  %1351 = vperm.xlu0 %1350, %v1343
  %v1352 = vpop.permute.xlu0 %1351
  %v1354 = vsub.f32 %v1320, %v1347
  %v1355 = vsub.f32 %v1321, %v1352
  %v1357 = vlaneseq
  %v1358 = vshrl.u32 %v1357, 7
  %v1359 = vsub.s32 0, %v1358
  %v1360 = vrot.slane %v1323, %v1359
  %v1362 = vmul.f32 %v1354, %v1360
  %v1363 = vmul.f32 %v1355, %v1360
  %v1364 = vmul.f32 %v1362, %v1362
  %v1365 = vmul.f32 %v1363, %v1363
  %v1366 = vsel %vm195, %v1364, 0.0
  %1367 = vadd.xlane.f32.xlu0 %v1366
  %v1368 = vpop.xlane.xlu0 %1367
  %v1369 = vsel %vm195, %v1365, 0.0
  %1370 = vadd.xlane.f32.xlu0 %v1369
  %v1371 = vpop.xlane.xlu0 %1370
  %v1372 = vmul.f32 %v1368, %v1340
  %v1373 = vmul.f32 %v1371, %v1340
  %v1374 = vadd.f32 %v1372, 1e-05
  %v1375 = vadd.f32 %v1373, 1e-05
  %v1376 = vrsqrt.pop %v1374
  %v1377 = vrsqrt.pop %v1375
  %1379 = vset.pattern.permute.xlu0 0
  %1380 = vperm.xlu0 %1379, %v1376
  %v1381 = vpop.permute.xlu0 %1380
  %1384 = vset.pattern.permute.xlu0 0
  %1385 = vperm.xlu0 %1384, %v1377
  %v1386 = vpop.permute.xlu0 %1385
  %v1388 = vmul.f32 %v1362, %v1381
  %v1389 = vmul.f32 %v1363, %v1386
  %v1391 = vlaneseq
  %v1392 = vshrl.u32 %v1391, 7
  %v1393 = vsub.s32 0, %v1392
  %v1394 = vrot.slane %v1327, %v1393
  %v1396 = vmul.f32 %v1388, %v1394
  %v1397 = vmul.f32 %v1389, %v1394
  %v1399 = vlaneseq
  %v1400 = vshrl.u32 %v1399, 7
  %v1401 = vsub.s32 0, %v1400
  %v1402 = vrot.slane %v1329, %v1401
  %v1404 = vadd.f32 %v1396, %v1402
  %v1405 = vadd.f32 %v1397, %v1402
  %s1406 = scalar_lea.vmem %s5, 160
  %v1407 = vld [vmem:[%s1406] sm:$0xff]
  %v1408 = vld [vmem:[%s1406 + $0x8] sm:$0xff]
  %v1409 = vld [vmem:[%s1406 + $0x10] sm:$0xff]
  %v1410 = vld [vmem:[%s1406 + $0x18] sm:$0xff]
  %v1412 = vsel %vm195, %v1404, 0
  %v1415 = vsel %vm195, %v1405, 0
  %1417 = vmatprep.subr.mxu0 0.0
  %1418 = vmatpush1.msra.mxu0 %v1407
  %1419 = vmatprep.subr.mxu0 0.0
  %1420 = vmatpush1.msra.mxu0 %v1408
  %1421 = vmatprep.subr.mxu0 0.0
  %1422 = vmatpush1.msra.mxu0 %v1409
  %1423 = vmatprep.subr.mxu0 0.0
  %1424 = vmatpush1.msra.mxu0 %v1410
  %1425 = vmatprep.subr.mxu0 0.0
  %1426 = vmatpush1.msra.mxu0 0.0
  %1427 = vmatprep.subr.mxu0 0.0
  %1428 = vmatpush1.msra.mxu0 0.0
  %1429 = vmatprep.subr.mxu0 0.0
  %1430 = vmatpush1.msra.mxu0 0.0
  %1431 = vmatprep.subr.mxu0 0.0
  %1432 = vmatpush1.msra.mxu0 0.0
  %1433 = vmatprep.subr.mxu0 0.0
  %1434 = vmatpush1.msra.mxu0 0.0
  %1435 = vmatprep.subr.mxu0 0.0
  %1436 = vmatpush1.msra.mxu0 0.0
  %1437 = vmatprep.subr.mxu0 0.0
  %1438 = vmatpush1.msra.mxu0 0.0
  %1439 = vmatprep.subr.mxu0 0.0
  %1440 = vmatpush1.msra.mxu0 0.0
  %1441 = vmatprep.subr.mxu0 0.0
  %1442 = vmatpush1.msra.mxu0 0.0
  %1443 = vmatprep.subr.mxu0 0.0
  %1444 = vmatpush1.msra.mxu0 0.0
  %1445 = vmatprep.subr.mxu0 0.0
  %1446 = vmatpush1.msra.mxu0 0.0
  %1447 = vmatprep.subr.mxu0 0.0
  %1448 = vmatpush1.msra.mxu0 0.0
  %1449 = vmatprep.subr.mxu0 0.0
  %1450 = vmatpush1.msra.mxu0 0.0
  %1451 = vmatprep.subr.mxu0 0.0
  %1452 = vmatpush1.msra.mxu0 0.0
  %1453 = vmatprep.subr.mxu0 0.0
  %1454 = vmatpush1.msra.mxu0 0.0
  %1455 = vmatprep.subr.mxu0 0.0
  %1456 = vmatpush1.msra.mxu0 0.0
  %1457 = vmatprep.subr.mxu0 0.0
  %1458 = vmatpush1.msra.mxu0 0.0
  %1459 = vmatprep.subr.mxu0 0.0
  %1460 = vmatpush1.msra.mxu0 0.0
  %1461 = vmatprep.subr.mxu0 0.0
  %1462 = vmatpush1.msra.mxu0 0.0
  %1463 = vmatprep.subr.mxu0 0.0
  %1464 = vmatpush1.msra.mxu0 0.0
  %1465 = vmatprep.subr.mxu0 0.0
  %1466 = vmatpush1.msra.mxu0 0.0
  %1467 = vmatprep.subr.mxu0 0.0
  %1468 = vmatpush1.msra.mxu0 0.0
  %1469 = vmatprep.subr.mxu0 0.0
  %1470 = vmatpush1.msra.mxu0 0.0
  %1471 = vmatprep.subr.mxu0 0.0
  %1472 = vmatpush1.msra.mxu0 0.0
  %1473 = vmatprep.subr.mxu0 0.0
  %1474 = vmatpush1.msra.mxu0 0.0
  %1475 = vmatprep.subr.mxu0 0.0
  %1476 = vmatpush1.msra.mxu0 0.0
  %1477 = vmatprep.subr.mxu0 0.0
  %1478 = vmatpush1.msra.mxu0 0.0
  %1479 = vmatprep.subr.mxu0 0.0
  %1480 = vmatpush1.msra.mxu0 0.0
  %1481 = vmatprep.mubr.f32.mxu0 0.0
  %1482 = vmatmul.mubr.f32.gmra.mrb[0].mxu0 %v1412
  %v1483 = vpop.f32.mrb[0].mxu0
  %v1484 = vadd.f32 0.0, %v1483
  %v1485 = vpop.f32.mrb[0].mxu0
  %1486 = vmatprep.mubr.f32.mxu0 0.0
  %1487 = vmatmul.mubr.f32.gmra.mrb[0].mxu0 %v1415
  %v1488 = vpop.f32.mrb[0].mxu0
  %v1489 = vadd.f32 0.0, %v1488
  %v1490 = vpop.f32.mrb[0].mxu0
  %1491 = vdwg.mxu0
  %v1492 = vmul.f32 %v1484, 0.5
  %v1493 = vmul.f32 %v1489, 0.5
  %v1494 = vmul.f32 %v1484, 0.70710677
  %v1495 = vmul.f32 %v1489, 0.70710677
  %vm1496 = vcmp.ge.f32.partialorder %v1494, 0.0
  %vm1497 = vcmp.ge.f32.partialorder %v1495, 0.0
  %v1498 = vsel %vm1496, 1.0, -1.0
  %v1499 = vsel %vm1497, 1.0, -1.0
  %v1500 = vand.u32 2147483647, %v1494
  %v1501 = vand.u32 2147483647, %v1495
  %v1502 = vmul.f32 %v1500, 0.3275911
  %v1503 = vmul.f32 %v1501, 0.3275911
  %v1504 = vadd.f32 %v1502, 1.0
  %v1505 = vadd.f32 %v1503, 1.0
  %v1506 = vrcp.pop %v1504
  %v1507 = vmul.f32 1.0, %v1506
  %v1508 = vrcp.pop %v1505
  %v1509 = vmul.f32 1.0, %v1508
  %v1510 = vmul.f32 %v1507, 1.0614054
  %v1511 = vmul.f32 %v1509, 1.0614054
  %v1512 = vadd.f32 %v1510, -1.4531521
  %v1513 = vadd.f32 %v1511, -1.4531521
  %v1514 = vmul.f32 %v1512, %v1507
  %v1515 = vmul.f32 %v1513, %v1509
  %v1516 = vadd.f32 %v1514, 1.4214138
  %v1517 = vadd.f32 %v1515, 1.4214138
  %v1518 = vmul.f32 %v1516, %v1507
  %v1519 = vmul.f32 %v1517, %v1509
  %v1520 = vadd.f32 %v1518, -0.28449672
  %v1521 = vadd.f32 %v1519, -0.28449672
  %v1522 = vmul.f32 %v1520, %v1507
  %v1523 = vmul.f32 %v1521, %v1509
  %v1524 = vadd.f32 %v1522, 0.2548296
  %v1525 = vadd.f32 %v1523, 0.2548296
  %v1526 = vmul.f32 %v1524, %v1507
  %v1527 = vmul.f32 %v1525, %v1509
  %v1528 = vsub.f32 0.0, %v1500
  %v1529 = vsub.f32 0.0, %v1501
  %v1530 = vmul.f32 %v1528, %v1500
  %v1531 = vmul.f32 %v1529, %v1501
  %v1532 = vmul.f32 %v1530, 1.442695
  %v1533 = vpow.pop %v1532
  %v1534 = vmul.f32 %v1531, 1.442695
  %v1535 = vpow.pop %v1534
  %v1536 = vmul.f32 %v1526, %v1533
  %v1537 = vmul.f32 %v1527, %v1535
  %v1538 = vsub.f32 1.0, %v1536
  %v1539 = vsub.f32 1.0, %v1537
  %v1540 = vmul.f32 %v1498, %v1538
  %v1541 = vmul.f32 %v1499, %v1539
  %v1542 = vadd.f32 %v1540, 1.0
  %v1543 = vadd.f32 %v1541, 1.0
  %v1544 = vmul.f32 %v1492, %v1542
  %v1545 = vmul.f32 %v1493, %v1543
  %s1546 = scalar_lea.vmem %s0, 96
  %v1547 = vld [vmem:[%s1546] sm:$0xff]
  %v1548 = vld [vmem:[%s1546 + $0x8] sm:$0xff]
  %s1549 = scalar_lea.vmem %s1, 6
  %v1550 = vld [vmem:[%s1549] sm:$0x1]
  %s1551 = scalar_lea.vmem %s2, 6
  %v1552 = vld [vmem:[%s1551] sm:$0x1]
  %s1553 = scalar_lea.vmem %s3, 6
  %v1554 = vld [vmem:[%s1553] sm:$0x1]
  %s1555 = scalar_lea.vmem %s4, 6
  %v1556 = vld [vmem:[%s1555] sm:$0x1]
  %v1557 = vsel %vm195, %v1547, 0.0
  %1558 = vadd.xlane.f32.xlu0 %v1557
  %v1559 = vpop.xlane.xlu0 %1558
  %v1560 = vsel %vm195, %v1548, 0.0
  %1561 = vadd.xlane.f32.xlu0 %v1560
  %v1562 = vpop.xlane.xlu0 %1561
  %v1564 = vlaneseq
  %v1565 = vshrl.u32 %v1564, 7
  %v1566 = vsub.s32 0, %v1565
  %v1567 = vrot.slane %v1552, %v1566
  %v1569 = vmul.f32 %v1559, %v1567
  %v1570 = vmul.f32 %v1562, %v1567
  %1572 = vset.pattern.permute.xlu0 0
  %1573 = vperm.xlu0 %1572, %v1569
  %v1574 = vpop.permute.xlu0 %1573
  %1577 = vset.pattern.permute.xlu0 0
  %1578 = vperm.xlu0 %1577, %v1570
  %v1579 = vpop.permute.xlu0 %1578
  %v1581 = vsub.f32 %v1547, %v1574
  %v1582 = vsub.f32 %v1548, %v1579
  %v1584 = vlaneseq
  %v1585 = vshrl.u32 %v1584, 7
  %v1586 = vsub.s32 0, %v1585
  %v1587 = vrot.slane %v1550, %v1586
  %v1589 = vmul.f32 %v1581, %v1587
  %v1590 = vmul.f32 %v1582, %v1587
  %v1591 = vmul.f32 %v1589, %v1589
  %v1592 = vmul.f32 %v1590, %v1590
  %v1593 = vsel %vm195, %v1591, 0.0
  %1594 = vadd.xlane.f32.xlu0 %v1593
  %v1595 = vpop.xlane.xlu0 %1594
  %v1596 = vsel %vm195, %v1592, 0.0
  %1597 = vadd.xlane.f32.xlu0 %v1596
  %v1598 = vpop.xlane.xlu0 %1597
  %v1599 = vmul.f32 %v1595, %v1567
  %v1600 = vmul.f32 %v1598, %v1567
  %v1601 = vadd.f32 %v1599, 1e-05
  %v1602 = vadd.f32 %v1600, 1e-05
  %v1603 = vrsqrt.pop %v1601
  %v1604 = vrsqrt.pop %v1602
  %1606 = vset.pattern.permute.xlu0 0
  %1607 = vperm.xlu0 %1606, %v1603
  %v1608 = vpop.permute.xlu0 %1607
  %1611 = vset.pattern.permute.xlu0 0
  %1612 = vperm.xlu0 %1611, %v1604
  %v1613 = vpop.permute.xlu0 %1612
  %v1615 = vmul.f32 %v1589, %v1608
  %v1616 = vmul.f32 %v1590, %v1613
  %v1618 = vlaneseq
  %v1619 = vshrl.u32 %v1618, 7
  %v1620 = vsub.s32 0, %v1619
  %v1621 = vrot.slane %v1554, %v1620
  %v1623 = vmul.f32 %v1615, %v1621
  %v1624 = vmul.f32 %v1616, %v1621
  %v1626 = vlaneseq
  %v1627 = vshrl.u32 %v1626, 7
  %v1628 = vsub.s32 0, %v1627
  %v1629 = vrot.slane %v1556, %v1628
  %v1631 = vadd.f32 %v1623, %v1629
  %v1632 = vadd.f32 %v1624, %v1629
  %s1633 = scalar_lea.vmem %s5, 192
  %v1634 = vld [vmem:[%s1633] sm:$0xff]
  %v1635 = vld [vmem:[%s1633 + $0x8] sm:$0xff]
  %v1636 = vld [vmem:[%s1633 + $0x10] sm:$0xff]
  %v1637 = vld [vmem:[%s1633 + $0x18] sm:$0xff]
  %v1639 = vsel %vm195, %v1631, 0
  %v1642 = vsel %vm195, %v1632, 0
  %1644 = vmatprep.subr.mxu0 0.0
  %1645 = vmatpush1.msra.mxu0 %v1634
  %1646 = vmatprep.subr.mxu0 0.0
  %1647 = vmatpush1.msra.mxu0 %v1635
  %1648 = vmatprep.subr.mxu0 0.0
  %1649 = vmatpush1.msra.mxu0 %v1636
  %1650 = vmatprep.subr.mxu0 0.0
  %1651 = vmatpush1.msra.mxu0 %v1637
  %1652 = vmatprep.subr.mxu0 0.0
  %1653 = vmatpush1.msra.mxu0 0.0
  %1654 = vmatprep.subr.mxu0 0.0
  %1655 = vmatpush1.msra.mxu0 0.0
  %1656 = vmatprep.subr.mxu0 0.0
  %1657 = vmatpush1.msra.mxu0 0.0
  %1658 = vmatprep.subr.mxu0 0.0
  %1659 = vmatpush1.msra.mxu0 0.0
  %1660 = vmatprep.subr.mxu0 0.0
  %1661 = vmatpush1.msra.mxu0 0.0
  %1662 = vmatprep.subr.mxu0 0.0
  %1663 = vmatpush1.msra.mxu0 0.0
  %1664 = vmatprep.subr.mxu0 0.0
  %1665 = vmatpush1.msra.mxu0 0.0
  %1666 = vmatprep.subr.mxu0 0.0
  %1667 = vmatpush1.msra.mxu0 0.0
  %1668 = vmatprep.subr.mxu0 0.0
  %1669 = vmatpush1.msra.mxu0 0.0
  %1670 = vmatprep.subr.mxu0 0.0
  %1671 = vmatpush1.msra.mxu0 0.0
  %1672 = vmatprep.subr.mxu0 0.0
  %1673 = vmatpush1.msra.mxu0 0.0
  %1674 = vmatprep.subr.mxu0 0.0
  %1675 = vmatpush1.msra.mxu0 0.0
  %1676 = vmatprep.subr.mxu0 0.0
  %1677 = vmatpush1.msra.mxu0 0.0
  %1678 = vmatprep.subr.mxu0 0.0
  %1679 = vmatpush1.msra.mxu0 0.0
  %1680 = vmatprep.subr.mxu0 0.0
  %1681 = vmatpush1.msra.mxu0 0.0
  %1682 = vmatprep.subr.mxu0 0.0
  %1683 = vmatpush1.msra.mxu0 0.0
  %1684 = vmatprep.subr.mxu0 0.0
  %1685 = vmatpush1.msra.mxu0 0.0
  %1686 = vmatprep.subr.mxu0 0.0
  %1687 = vmatpush1.msra.mxu0 0.0
  %1688 = vmatprep.subr.mxu0 0.0
  %1689 = vmatpush1.msra.mxu0 0.0
  %1690 = vmatprep.subr.mxu0 0.0
  %1691 = vmatpush1.msra.mxu0 0.0
  %1692 = vmatprep.subr.mxu0 0.0
  %1693 = vmatpush1.msra.mxu0 0.0
  %1694 = vmatprep.subr.mxu0 0.0
  %1695 = vmatpush1.msra.mxu0 0.0
  %1696 = vmatprep.subr.mxu0 0.0
  %1697 = vmatpush1.msra.mxu0 0.0
  %1698 = vmatprep.subr.mxu0 0.0
  %1699 = vmatpush1.msra.mxu0 0.0
  %1700 = vmatprep.subr.mxu0 0.0
  %1701 = vmatpush1.msra.mxu0 0.0
  %1702 = vmatprep.subr.mxu0 0.0
  %1703 = vmatpush1.msra.mxu0 0.0
  %1704 = vmatprep.subr.mxu0 0.0
  %1705 = vmatpush1.msra.mxu0 0.0
  %1706 = vmatprep.subr.mxu0 0.0
  %1707 = vmatpush1.msra.mxu0 0.0
  %1708 = vmatprep.mubr.f32.mxu0 0.0
  %1709 = vmatmul.mubr.f32.gmra.mrb[0].mxu0 %v1639
  %v1710 = vpop.f32.mrb[0].mxu0
  %v1711 = vadd.f32 0.0, %v1710
  %v1712 = vpop.f32.mrb[0].mxu0
  %1713 = vmatprep.mubr.f32.mxu0 0.0
  %1714 = vmatmul.mubr.f32.gmra.mrb[0].mxu0 %v1642
  %v1715 = vpop.f32.mrb[0].mxu0
  %v1716 = vadd.f32 0.0, %v1715
  %v1717 = vpop.f32.mrb[0].mxu0
  %1718 = vdwg.mxu0
  %v1719 = vmul.f32 %v1711, 0.5
  %v1720 = vmul.f32 %v1716, 0.5
  %v1721 = vmul.f32 %v1711, 0.70710677
  %v1722 = vmul.f32 %v1716, 0.70710677
  %vm1723 = vcmp.ge.f32.partialorder %v1721, 0.0
  %vm1724 = vcmp.ge.f32.partialorder %v1722, 0.0
  %v1725 = vsel %vm1723, 1.0, -1.0
  %v1726 = vsel %vm1724, 1.0, -1.0
  %v1727 = vand.u32 2147483647, %v1721
  %v1728 = vand.u32 2147483647, %v1722
  %v1729 = vmul.f32 %v1727, 0.3275911
  %v1730 = vmul.f32 %v1728, 0.3275911
  %v1731 = vadd.f32 %v1729, 1.0
  %v1732 = vadd.f32 %v1730, 1.0
  %v1733 = vrcp.pop %v1731
  %v1734 = vmul.f32 1.0, %v1733
  %v1735 = vrcp.pop %v1732
  %v1736 = vmul.f32 1.0, %v1735
  %v1737 = vmul.f32 %v1734, 1.0614054
  %v1738 = vmul.f32 %v1736, 1.0614054
  %v1739 = vadd.f32 %v1737, -1.4531521
  %v1740 = vadd.f32 %v1738, -1.4531521
  %v1741 = vmul.f32 %v1739, %v1734
  %v1742 = vmul.f32 %v1740, %v1736
  %v1743 = vadd.f32 %v1741, 1.4214138
  %v1744 = vadd.f32 %v1742, 1.4214138
  %v1745 = vmul.f32 %v1743, %v1734
  %v1746 = vmul.f32 %v1744, %v1736
  %v1747 = vadd.f32 %v1745, -0.28449672
  %v1748 = vadd.f32 %v1746, -0.28449672
  %v1749 = vmul.f32 %v1747, %v1734
  %v1750 = vmul.f32 %v1748, %v1736
  %v1751 = vadd.f32 %v1749, 0.2548296
  %v1752 = vadd.f32 %v1750, 0.2548296
  %v1753 = vmul.f32 %v1751, %v1734
  %v1754 = vmul.f32 %v1752, %v1736
  %v1755 = vsub.f32 0.0, %v1727
  %v1756 = vsub.f32 0.0, %v1728
  %v1757 = vmul.f32 %v1755, %v1727
  %v1758 = vmul.f32 %v1756, %v1728
  %v1759 = vmul.f32 %v1757, 1.442695
  %v1760 = vpow.pop %v1759
  %v1761 = vmul.f32 %v1758, 1.442695
  %v1762 = vpow.pop %v1761
  %v1763 = vmul.f32 %v1753, %v1760
  %v1764 = vmul.f32 %v1754, %v1762
  %v1765 = vsub.f32 1.0, %v1763
  %v1766 = vsub.f32 1.0, %v1764
  %v1767 = vmul.f32 %v1725, %v1765
  %v1768 = vmul.f32 %v1726, %v1766
  %v1769 = vadd.f32 %v1767, 1.0
  %v1770 = vadd.f32 %v1768, 1.0
  %v1771 = vmul.f32 %v1719, %v1769
  %v1772 = vmul.f32 %v1720, %v1770
  %s1773 = smul.u32 392, 1
  %s1774 = sshll.u32 %s1773, 4
  %1775 = dma.done [#allocation3], %s1774
  %v1776 = vld [vmem:[%s12] sm:$0xff]
  %v1777 = vld [vmem:[%s12 + $0x8] sm:$0xff]
  %v1778 = vld [vmem:[#allocation2 + $0xb8] sm:$0xff]
  %v1779 = vld [vmem:[#allocation2 + $0xc0] sm:$0x1]
  %v1780 = vlaneseq
  %v1781 = vshrl.u32 %v1780, 7
  %v1782 = vsub.s32 0, %v1781
  %v1783 = vrot.slane %v1779, %v1782
  %vm1784 = vcmask 64512
  %v1786 = vsel %vm1784, %v1776, 0
  %v1789 = vsel %vm1784, %v1777, 0
  %1791 = vmatprep.subr.mxu0 0.0
  %1792 = vmatpush1.msra.mxu0 %v1778
  %1793 = vmatprep.subr.mxu0 0.0
  %1794 = vmatpush1.msra.mxu0 0.0
  %1795 = vmatprep.subr.mxu0 0.0
  %1796 = vmatpush1.msra.mxu0 0.0
  %1797 = vmatprep.subr.mxu0 0.0
  %1798 = vmatpush1.msra.mxu0 0.0
  %1799 = vmatprep.subr.mxu0 0.0
  %1800 = vmatpush1.msra.mxu0 0.0
  %1801 = vmatprep.subr.mxu0 0.0
  %1802 = vmatpush1.msra.mxu0 0.0
  %1803 = vmatprep.subr.mxu0 0.0
  %1804 = vmatpush1.msra.mxu0 0.0
  %1805 = vmatprep.subr.mxu0 0.0
  %1806 = vmatpush1.msra.mxu0 0.0
  %1807 = vmatprep.subr.mxu0 0.0
  %1808 = vmatpush1.msra.mxu0 0.0
  %1809 = vmatprep.subr.mxu0 0.0
  %1810 = vmatpush1.msra.mxu0 0.0
  %1811 = vmatprep.subr.mxu0 0.0
  %1812 = vmatpush1.msra.mxu0 0.0
  %1813 = vmatprep.subr.mxu0 0.0
  %1814 = vmatpush1.msra.mxu0 0.0
  %1815 = vmatprep.subr.mxu0 0.0
  %1816 = vmatpush1.msra.mxu0 0.0
  %1817 = vmatprep.subr.mxu0 0.0
  %1818 = vmatpush1.msra.mxu0 0.0
  %1819 = vmatprep.subr.mxu0 0.0
  %1820 = vmatpush1.msra.mxu0 0.0
  %1821 = vmatprep.subr.mxu0 0.0
  %1822 = vmatpush1.msra.mxu0 0.0
  %1823 = vmatprep.subr.mxu0 0.0
  %1824 = vmatpush1.msra.mxu0 0.0
  %1825 = vmatprep.subr.mxu0 0.0
  %1826 = vmatpush1.msra.mxu0 0.0
  %1827 = vmatprep.subr.mxu0 0.0
  %1828 = vmatpush1.msra.mxu0 0.0
  %1829 = vmatprep.subr.mxu0 0.0
  %1830 = vmatpush1.msra.mxu0 0.0
  %1831 = vmatprep.subr.mxu0 0.0
  %1832 = vmatpush1.msra.mxu0 0.0
  %1833 = vmatprep.subr.mxu0 0.0
  %1834 = vmatpush1.msra.mxu0 0.0
  %1835 = vmatprep.subr.mxu0 0.0
  %1836 = vmatpush1.msra.mxu0 0.0
  %1837 = vmatprep.subr.mxu0 0.0
  %1838 = vmatpush1.msra.mxu0 0.0
  %1839 = vmatprep.subr.mxu0 0.0
  %1840 = vmatpush1.msra.mxu0 0.0
  %1841 = vmatprep.subr.mxu0 0.0
  %1842 = vmatpush1.msra.mxu0 0.0
  %1843 = vmatprep.subr.mxu0 0.0
  %1844 = vmatpush1.msra.mxu0 0.0
  %1845 = vmatprep.subr.mxu0 0.0
  %1846 = vmatpush1.msra.mxu0 0.0
  %1847 = vmatprep.subr.mxu0 0.0
  %1848 = vmatpush1.msra.mxu0 0.0
  %1849 = vmatprep.subr.mxu0 0.0
  %1850 = vmatpush1.msra.mxu0 0.0
  %1851 = vmatprep.subr.mxu0 0.0
  %1852 = vmatpush1.msra.mxu0 0.0
  %1853 = vmatprep.subr.mxu0 0.0
  %1854 = vmatpush1.msra.mxu0 0.0
  %1855 = vmatprep.mubr.f32.mxu0 0.0
  %1856 = vmatmul.mubr.f32.gmra.mrb[0].mxu0 %v1786
  %v1857 = vpop.f32.mrb[0].mxu0
  %v1858 = vadd.f32 %v1783, %v1857
  %v1859 = vpop.f32.mrb[0].mxu0
  %1860 = vmatprep.mubr.f32.mxu0 0.0
  %1861 = vmatmul.mubr.f32.gmra.mrb[0].mxu0 %v1789
  %v1862 = vpop.f32.mrb[0].mxu0
  %v1863 = vadd.f32 %v1783, %v1862
  %v1864 = vpop.f32.mrb[0].mxu0
  %1865 = vdwg.mxu0
  %v1866 = vmax.f32 %v1858, 0.0
  %v1867 = vmax.f32 %v1863, 0.0
  %v1868 = vld [vmem:[#allocation2 + $0xc8] sm:$0xff]
  %v1869 = vld [vmem:[#allocation2 + $0xd0] sm:$0xff]
  %v1870 = vld [vmem:[#allocation2 + $0xd8] sm:$0xff]
  %v1871 = vld [vmem:[#allocation2 + $0xe0] sm:$0xff]
  %v1872 = vld [vmem:[#allocation2 + $0xe8] sm:$0x1]
  %v1873 = vlaneseq
  %v1874 = vshrl.u32 %v1873, 7
  %v1875 = vsub.s32 0, %v1874
  %v1876 = vrot.slane %v1872, %v1875
  %v1878 = vsel %vm195, %v1866, 0
  %v1881 = vsel %vm195, %v1867, 0
  %1883 = vmatprep.subr.mxu0 0.0
  %1884 = vmatpush1.msra.mxu0 %v1868
  %1885 = vmatprep.subr.mxu0 0.0
  %1886 = vmatpush1.msra.mxu0 %v1869
  %1887 = vmatprep.subr.mxu0 0.0
  %1888 = vmatpush1.msra.mxu0 %v1870
  %1889 = vmatprep.subr.mxu0 0.0
  %1890 = vmatpush1.msra.mxu0 %v1871
  %1891 = vmatprep.subr.mxu0 0.0
  %1892 = vmatpush1.msra.mxu0 0.0
  %1893 = vmatprep.subr.mxu0 0.0
  %1894 = vmatpush1.msra.mxu0 0.0
  %1895 = vmatprep.subr.mxu0 0.0
  %1896 = vmatpush1.msra.mxu0 0.0
  %1897 = vmatprep.subr.mxu0 0.0
  %1898 = vmatpush1.msra.mxu0 0.0
  %1899 = vmatprep.subr.mxu0 0.0
  %1900 = vmatpush1.msra.mxu0 0.0
  %1901 = vmatprep.subr.mxu0 0.0
  %1902 = vmatpush1.msra.mxu0 0.0
  %1903 = vmatprep.subr.mxu0 0.0
  %1904 = vmatpush1.msra.mxu0 0.0
  %1905 = vmatprep.subr.mxu0 0.0
  %1906 = vmatpush1.msra.mxu0 0.0
  %1907 = vmatprep.subr.mxu0 0.0
  %1908 = vmatpush1.msra.mxu0 0.0
  %1909 = vmatprep.subr.mxu0 0.0
  %1910 = vmatpush1.msra.mxu0 0.0
  %1911 = vmatprep.subr.mxu0 0.0
  %1912 = vmatpush1.msra.mxu0 0.0
  %1913 = vmatprep.subr.mxu0 0.0
  %1914 = vmatpush1.msra.mxu0 0.0
  %1915 = vmatprep.subr.mxu0 0.0
  %1916 = vmatpush1.msra.mxu0 0.0
  %1917 = vmatprep.subr.mxu0 0.0
  %1918 = vmatpush1.msra.mxu0 0.0
  %1919 = vmatprep.subr.mxu0 0.0
  %1920 = vmatpush1.msra.mxu0 0.0
  %1921 = vmatprep.subr.mxu0 0.0
  %1922 = vmatpush1.msra.mxu0 0.0
  %1923 = vmatprep.subr.mxu0 0.0
  %1924 = vmatpush1.msra.mxu0 0.0
  %1925 = vmatprep.subr.mxu0 0.0
  %1926 = vmatpush1.msra.mxu0 0.0
  %1927 = vmatprep.subr.mxu0 0.0
  %1928 = vmatpush1.msra.mxu0 0.0
  %1929 = vmatprep.subr.mxu0 0.0
  %1930 = vmatpush1.msra.mxu0 0.0
  %1931 = vmatprep.subr.mxu0 0.0
  %1932 = vmatpush1.msra.mxu0 0.0
  %1933 = vmatprep.subr.mxu0 0.0
  %1934 = vmatpush1.msra.mxu0 0.0
  %1935 = vmatprep.subr.mxu0 0.0
  %1936 = vmatpush1.msra.mxu0 0.0
  %1937 = vmatprep.subr.mxu0 0.0
  %1938 = vmatpush1.msra.mxu0 0.0
  %1939 = vmatprep.subr.mxu0 0.0
  %1940 = vmatpush1.msra.mxu0 0.0
  %1941 = vmatprep.subr.mxu0 0.0
  %1942 = vmatpush1.msra.mxu0 0.0
  %1943 = vmatprep.subr.mxu0 0.0
  %1944 = vmatpush1.msra.mxu0 0.0
  %1945 = vmatprep.subr.mxu0 0.0
  %1946 = vmatpush1.msra.mxu0 0.0
  %1947 = vmatprep.mubr.f32.mxu0 0.0
  %1948 = vmatmul.mubr.f32.gmra.mrb[0].mxu0 %v1878
  %v1949 = vpop.f32.mrb[0].mxu0
  %v1950 = vadd.f32 %v1876, %v1949
  %v1951 = vpop.f32.mrb[0].mxu0
  %1952 = vmatprep.mubr.f32.mxu0 0.0
  %1953 = vmatmul.mubr.f32.gmra.mrb[0].mxu0 %v1881
  %v1954 = vpop.f32.mrb[0].mxu0
  %v1955 = vadd.f32 %v1876, %v1954
  %v1956 = vpop.f32.mrb[0].mxu0
  %1957 = vdwg.mxu0
  %v1958 = vld [vmem:[%s11] sm:$0xff]
  %v1959 = vld [vmem:[%s11 + $0x8] sm:$0xff]
  %v1960 = vadd.f32 %v1958, 0.01
  %v1961 = vadd.f32 %v1959, 0.01
  %1963 = vset.pattern.permute.xlu0 0
  %1964 = vperm.xlu0 %1963, %v1960
  %v1965 = vpop.permute.xlu0 %1964
  %1968 = vset.pattern.permute.xlu0 0
  %1969 = vperm.xlu0 %1968, %v1961
  %v1970 = vpop.permute.xlu0 %1969
  %v1972 = vmul.f32 %v1950, %v1965
  %v1973 = vmul.f32 %v1955, %v1970
  %v1974 = vld [vmem:[%s8] sm:$0xff]
  %v1975 = vld [vmem:[%s8 + $0x8] sm:$0xff]
  %v1976 = vld [vmem:[#allocation2 + $0xf0] sm:$0xff]
  %v1977 = vld [vmem:[#allocation2 + $0xf8] sm:$0xff]
  %v1978 = vld [vmem:[#allocation2 + $0x100] sm:$0xff]
  %v1979 = vld [vmem:[#allocation2 + $0x108] sm:$0xff]
  %v1981 = vsel %vm195, %v1972, 0
  %v1984 = vsel %vm195, %v1973, 0
  %1986 = vmatprep.subr.mxu0 0.0
  %1987 = vmatpush1.msra.mxu0 %v1976
  %1988 = vmatprep.subr.mxu0 0.0
  %1989 = vmatpush1.msra.mxu0 %v1977
  %1990 = vmatprep.subr.mxu0 0.0
  %1991 = vmatpush1.msra.mxu0 %v1978
  %1992 = vmatprep.subr.mxu0 0.0
  %1993 = vmatpush1.msra.mxu0 %v1979
  %1994 = vmatprep.subr.mxu0 0.0
  %1995 = vmatpush1.msra.mxu0 0.0
  %1996 = vmatprep.subr.mxu0 0.0
  %1997 = vmatpush1.msra.mxu0 0.0
  %1998 = vmatprep.subr.mxu0 0.0
  %1999 = vmatpush1.msra.mxu0 0.0
  %2000 = vmatprep.subr.mxu0 0.0
  %2001 = vmatpush1.msra.mxu0 0.0
  %2002 = vmatprep.subr.mxu0 0.0
  %2003 = vmatpush1.msra.mxu0 0.0
  %2004 = vmatprep.subr.mxu0 0.0
  %2005 = vmatpush1.msra.mxu0 0.0
  %2006 = vmatprep.subr.mxu0 0.0
  %2007 = vmatpush1.msra.mxu0 0.0
  %2008 = vmatprep.subr.mxu0 0.0
  %2009 = vmatpush1.msra.mxu0 0.0
  %2010 = vmatprep.subr.mxu0 0.0
  %2011 = vmatpush1.msra.mxu0 0.0
  %2012 = vmatprep.subr.mxu0 0.0
  %2013 = vmatpush1.msra.mxu0 0.0
  %2014 = vmatprep.subr.mxu0 0.0
  %2015 = vmatpush1.msra.mxu0 0.0
  %2016 = vmatprep.subr.mxu0 0.0
  %2017 = vmatpush1.msra.mxu0 0.0
  %2018 = vmatprep.subr.mxu0 0.0
  %2019 = vmatpush1.msra.mxu0 0.0
  %2020 = vmatprep.subr.mxu0 0.0
  %2021 = vmatpush1.msra.mxu0 0.0
  %2022 = vmatprep.subr.mxu0 0.0
  %2023 = vmatpush1.msra.mxu0 0.0
  %2024 = vmatprep.subr.mxu0 0.0
  %2025 = vmatpush1.msra.mxu0 0.0
  %2026 = vmatprep.subr.mxu0 0.0
  %2027 = vmatpush1.msra.mxu0 0.0
  %2028 = vmatprep.subr.mxu0 0.0
  %2029 = vmatpush1.msra.mxu0 0.0
  %2030 = vmatprep.subr.mxu0 0.0
  %2031 = vmatpush1.msra.mxu0 0.0
  %2032 = vmatprep.subr.mxu0 0.0
  %2033 = vmatpush1.msra.mxu0 0.0
  %2034 = vmatprep.subr.mxu0 0.0
  %2035 = vmatpush1.msra.mxu0 0.0
  %2036 = vmatprep.subr.mxu0 0.0
  %2037 = vmatpush1.msra.mxu0 0.0
  %2038 = vmatprep.subr.mxu0 0.0
  %2039 = vmatpush1.msra.mxu0 0.0
  %2040 = vmatprep.subr.mxu0 0.0
  %2041 = vmatpush1.msra.mxu0 0.0
  %2042 = vmatprep.subr.mxu0 0.0
  %2043 = vmatpush1.msra.mxu0 0.0
  %2044 = vmatprep.subr.mxu0 0.0
  %2045 = vmatpush1.msra.mxu0 0.0
  %2046 = vmatprep.subr.mxu0 0.0
  %2047 = vmatpush1.msra.mxu0 0.0
  %2048 = vmatprep.subr.mxu0 0.0
  %2049 = vmatpush1.msra.mxu0 0.0
  %2050 = vmatprep.mubr.f32.mxu0 0.0
  %2051 = vmatmul.mubr.f32.gmra.mrb[0].mxu0 %v1981
  %v2052 = vpop.f32.mrb[0].mxu0
  %v2053 = vadd.f32 0.0, %v2052
  %v2054 = vpop.f32.mrb[0].mxu0
  %2055 = vmatprep.mubr.f32.mxu0 0.0
  %2056 = vmatmul.mubr.f32.gmra.mrb[0].mxu0 %v1984
  %v2057 = vpop.f32.mrb[0].mxu0
  %v2058 = vadd.f32 0.0, %v2057
  %v2059 = vpop.f32.mrb[0].mxu0
  %2060 = vdwg.mxu0
  %vm2061 = vcmask 130048
  %v2063 = vsel %vm2061, %v1974, 0
  %v2066 = vsel %vm2061, %v1975, 0
  %2068 = vmatprep.subr.mxu0 0.0
  %2069 = vmatpush1.msra.mxu0 %v863
  %2070 = vmatprep.subr.mxu0 0.0
  %2071 = vmatpush1.msra.mxu0 %v864
  %2072 = vmatprep.subr.mxu0 0.0
  %2073 = vmatpush1.msra.mxu0 0.0
  %2074 = vmatprep.subr.mxu0 0.0
  %2075 = vmatpush1.msra.mxu0 0.0
  %2076 = vmatprep.subr.mxu0 0.0
  %2077 = vmatpush1.msra.mxu0 0.0
  %2078 = vmatprep.subr.mxu0 0.0
  %2079 = vmatpush1.msra.mxu0 0.0
  %2080 = vmatprep.subr.mxu0 0.0
  %2081 = vmatpush1.msra.mxu0 0.0
  %2082 = vmatprep.subr.mxu0 0.0
  %2083 = vmatpush1.msra.mxu0 0.0
  %2084 = vmatprep.subr.mxu0 0.0
  %2085 = vmatpush1.msra.mxu0 0.0
  %2086 = vmatprep.subr.mxu0 0.0
  %2087 = vmatpush1.msra.mxu0 0.0
  %2088 = vmatprep.subr.mxu0 0.0
  %2089 = vmatpush1.msra.mxu0 0.0
  %2090 = vmatprep.subr.mxu0 0.0
  %2091 = vmatpush1.msra.mxu0 0.0
  %2092 = vmatprep.subr.mxu0 0.0
  %2093 = vmatpush1.msra.mxu0 0.0
  %2094 = vmatprep.subr.mxu0 0.0
  %2095 = vmatpush1.msra.mxu0 0.0
  %2096 = vmatprep.subr.mxu0 0.0
  %2097 = vmatpush1.msra.mxu0 0.0
  %2098 = vmatprep.subr.mxu0 0.0
  %2099 = vmatpush1.msra.mxu0 0.0
  %2100 = vmatprep.subr.mxu0 0.0
  %2101 = vmatpush1.msra.mxu0 0.0
  %2102 = vmatprep.subr.mxu0 0.0
  %2103 = vmatpush1.msra.mxu0 0.0
  %2104 = vmatprep.subr.mxu0 0.0
  %2105 = vmatpush1.msra.mxu0 0.0
  %2106 = vmatprep.subr.mxu0 0.0
  %2107 = vmatpush1.msra.mxu0 0.0
  %2108 = vmatprep.subr.mxu0 0.0
  %2109 = vmatpush1.msra.mxu0 0.0
  %2110 = vmatprep.subr.mxu0 0.0
  %2111 = vmatpush1.msra.mxu0 0.0
  %2112 = vmatprep.subr.mxu0 0.0
  %2113 = vmatpush1.msra.mxu0 0.0
  %2114 = vmatprep.subr.mxu0 0.0
  %2115 = vmatpush1.msra.mxu0 0.0
  %2116 = vmatprep.subr.mxu0 0.0
  %2117 = vmatpush1.msra.mxu0 0.0
  %2118 = vmatprep.subr.mxu0 0.0
  %2119 = vmatpush1.msra.mxu0 0.0
  %2120 = vmatprep.subr.mxu0 0.0
  %2121 = vmatpush1.msra.mxu0 0.0
  %2122 = vmatprep.subr.mxu0 0.0
  %2123 = vmatpush1.msra.mxu0 0.0
  %2124 = vmatprep.subr.mxu0 0.0
  %2125 = vmatpush1.msra.mxu0 0.0
  %2126 = vmatprep.subr.mxu0 0.0
  %2127 = vmatpush1.msra.mxu0 0.0
  %2128 = vmatprep.subr.mxu0 0.0
  %2129 = vmatpush1.msra.mxu0 0.0
  %2130 = vmatprep.subr.mxu0 0.0
  %2131 = vmatpush1.msra.mxu0 0.0
  %2132 = vmatprep.mubr.f32.mxu0 0.0
  %2133 = vmatmul.mubr.f32.gmra.mrb[0].mxu0 %v2063
  %v2134 = vpop.f32.mrb[0].mxu0
  %v2135 = vadd.f32 %v2053, %v2134
  %v2136 = vpop.f32.mrb[0].mxu0
  %2137 = vmatprep.mubr.f32.mxu0 0.0
  %2138 = vmatmul.mubr.f32.gmra.mrb[0].mxu0 %v2066
  %v2139 = vpop.f32.mrb[0].mxu0
  %v2140 = vadd.f32 %v2058, %v2139
  %v2141 = vpop.f32.mrb[0].mxu0
  %2142 = vdwg.mxu0
  %v2143 = vld [vmem:[#allocation2 + $0x110] sm:$0x1]
  %v2144 = vlaneseq
  %v2145 = vshrl.u32 %v2144, 7
  %v2146 = vsub.s32 0, %v2145
  %v2147 = vrot.slane %v2143, %v2146
  %v2148 = vadd.f32 %v2135, %v2147
  %v2149 = vadd.f32 %v2140, %v2147
  %v2150 = vmax.f32 %v2148, 0.0
  %v2151 = vmax.f32 %v2149, 0.0
  %v2152 = vld [vmem:[%s9] sm:$0xff]
  %v2153 = vld [vmem:[%s9 + $0x8] sm:$0xff]
  %v2155 = vsel %vm2061, %v2152, 0
  %v2158 = vsel %vm2061, %v2153, 0
  %2160 = vmatprep.subr.mxu0 0.0
  %2161 = vmatpush1.msra.mxu0 %v2150
  %2162 = vmatprep.subr.mxu0 0.0
  %2163 = vmatpush1.msra.mxu0 %v2151
  %2164 = vmatprep.subr.mxu0 0.0
  %2165 = vmatpush1.msra.mxu0 0.0
  %2166 = vmatprep.subr.mxu0 0.0
  %2167 = vmatpush1.msra.mxu0 0.0
  %2168 = vmatprep.subr.mxu0 0.0
  %2169 = vmatpush1.msra.mxu0 0.0
  %2170 = vmatprep.subr.mxu0 0.0
  %2171 = vmatpush1.msra.mxu0 0.0
  %2172 = vmatprep.subr.mxu0 0.0
  %2173 = vmatpush1.msra.mxu0 0.0
  %2174 = vmatprep.subr.mxu0 0.0
  %2175 = vmatpush1.msra.mxu0 0.0
  %2176 = vmatprep.subr.mxu0 0.0
  %2177 = vmatpush1.msra.mxu0 0.0
  %2178 = vmatprep.subr.mxu0 0.0
  %2179 = vmatpush1.msra.mxu0 0.0
  %2180 = vmatprep.subr.mxu0 0.0
  %2181 = vmatpush1.msra.mxu0 0.0
  %2182 = vmatprep.subr.mxu0 0.0
  %2183 = vmatpush1.msra.mxu0 0.0
  %2184 = vmatprep.subr.mxu0 0.0
  %2185 = vmatpush1.msra.mxu0 0.0
  %2186 = vmatprep.subr.mxu0 0.0
  %2187 = vmatpush1.msra.mxu0 0.0
  %2188 = vmatprep.subr.mxu0 0.0
  %2189 = vmatpush1.msra.mxu0 0.0
  %2190 = vmatprep.subr.mxu0 0.0
  %2191 = vmatpush1.msra.mxu0 0.0
  %2192 = vmatprep.subr.mxu0 0.0
  %2193 = vmatpush1.msra.mxu0 0.0
  %2194 = vmatprep.subr.mxu0 0.0
  %2195 = vmatpush1.msra.mxu0 0.0
  %2196 = vmatprep.subr.mxu0 0.0
  %2197 = vmatpush1.msra.mxu0 0.0
  %2198 = vmatprep.subr.mxu0 0.0
  %2199 = vmatpush1.msra.mxu0 0.0
  %2200 = vmatprep.subr.mxu0 0.0
  %2201 = vmatpush1.msra.mxu0 0.0
  %2202 = vmatprep.subr.mxu0 0.0
  %2203 = vmatpush1.msra.mxu0 0.0
  %2204 = vmatprep.subr.mxu0 0.0
  %2205 = vmatpush1.msra.mxu0 0.0
  %2206 = vmatprep.subr.mxu0 0.0
  %2207 = vmatpush1.msra.mxu0 0.0
  %2208 = vmatprep.subr.mxu0 0.0
  %2209 = vmatpush1.msra.mxu0 0.0
  %2210 = vmatprep.subr.mxu0 0.0
  %2211 = vmatpush1.msra.mxu0 0.0
  %2212 = vmatprep.subr.mxu0 0.0
  %2213 = vmatpush1.msra.mxu0 0.0
  %2214 = vmatprep.subr.mxu0 0.0
  %2215 = vmatpush1.msra.mxu0 0.0
  %2216 = vmatprep.subr.mxu0 0.0
  %2217 = vmatpush1.msra.mxu0 0.0
  %2218 = vmatprep.subr.mxu0 0.0
  %2219 = vmatpush1.msra.mxu0 0.0
  %2220 = vmatprep.subr.mxu0 0.0
  %2221 = vmatpush1.msra.mxu0 0.0
  %2222 = vmatprep.subr.mxu0 0.0
  %2223 = vmatpush1.msra.mxu0 0.0
  %2224 = vmatprep.mubr.f32.mxu0 0.0
  %2225 = vmatmul.mubr.f32.gmra.mrb[0].mxu0 %v2155
  %v2226 = vpop.f32.mrb[0].mxu0
  %v2227 = vadd.f32 %v863, %v2226
  %v2228 = vpop.f32.mrb[0].mxu0
  %2229 = vmatprep.mubr.f32.mxu0 0.0
  %2230 = vmatmul.mubr.f32.gmra.mrb[0].mxu0 %v2158
  %v2231 = vpop.f32.mrb[0].mxu0
  %v2232 = vadd.f32 %v864, %v2231
  %v2233 = vpop.f32.mrb[0].mxu0
  %2234 = vdwg.mxu0
  %v2235 = vld [vmem:[#allocation2 + $0x118] sm:$0xff]
  %v2236 = vld [vmem:[#allocation2 + $0x120] sm:$0xff]
  %v2237 = vld [vmem:[#allocation2 + $0x128] sm:$0xff]
  %v2238 = vld [vmem:[#allocation2 + $0x130] sm:$0xff]
  %v2239 = vld [vmem:[#allocation2 + $0x138] sm:$0x1]
  %v2240 = vlaneseq
  %v2241 = vshrl.u32 %v2240, 7
  %v2242 = vsub.s32 0, %v2241
  %v2243 = vrot.slane %v2239, %v2242
  %v2245 = vsel %vm195, %v2227, 0
  %v2248 = vsel %vm195, %v2232, 0
  %2250 = vmatprep.subr.mxu0 0.0
  %2251 = vmatpush1.msra.mxu0 %v2235
  %2252 = vmatprep.subr.mxu0 0.0
  %2253 = vmatpush1.msra.mxu0 %v2236
  %2254 = vmatprep.subr.mxu0 0.0
  %2255 = vmatpush1.msra.mxu0 %v2237
  %2256 = vmatprep.subr.mxu0 0.0
  %2257 = vmatpush1.msra.mxu0 %v2238
  %2258 = vmatprep.subr.mxu0 0.0
  %2259 = vmatpush1.msra.mxu0 0.0
  %2260 = vmatprep.subr.mxu0 0.0
  %2261 = vmatpush1.msra.mxu0 0.0
  %2262 = vmatprep.subr.mxu0 0.0
  %2263 = vmatpush1.msra.mxu0 0.0
  %2264 = vmatprep.subr.mxu0 0.0
  %2265 = vmatpush1.msra.mxu0 0.0
  %2266 = vmatprep.subr.mxu0 0.0
  %2267 = vmatpush1.msra.mxu0 0.0
  %2268 = vmatprep.subr.mxu0 0.0
  %2269 = vmatpush1.msra.mxu0 0.0
  %2270 = vmatprep.subr.mxu0 0.0
  %2271 = vmatpush1.msra.mxu0 0.0
  %2272 = vmatprep.subr.mxu0 0.0
  %2273 = vmatpush1.msra.mxu0 0.0
  %2274 = vmatprep.subr.mxu0 0.0
  %2275 = vmatpush1.msra.mxu0 0.0
  %2276 = vmatprep.subr.mxu0 0.0
  %2277 = vmatpush1.msra.mxu0 0.0
  %2278 = vmatprep.subr.mxu0 0.0
  %2279 = vmatpush1.msra.mxu0 0.0
  %2280 = vmatprep.subr.mxu0 0.0
  %2281 = vmatpush1.msra.mxu0 0.0
  %2282 = vmatprep.subr.mxu0 0.0
  %2283 = vmatpush1.msra.mxu0 0.0
  %2284 = vmatprep.subr.mxu0 0.0
  %2285 = vmatpush1.msra.mxu0 0.0
  %2286 = vmatprep.subr.mxu0 0.0
  %2287 = vmatpush1.msra.mxu0 0.0
  %2288 = vmatprep.subr.mxu0 0.0
  %2289 = vmatpush1.msra.mxu0 0.0
  %2290 = vmatprep.subr.mxu0 0.0
  %2291 = vmatpush1.msra.mxu0 0.0
  %2292 = vmatprep.subr.mxu0 0.0
  %2293 = vmatpush1.msra.mxu0 0.0
  %2294 = vmatprep.subr.mxu0 0.0
  %2295 = vmatpush1.msra.mxu0 0.0
  %2296 = vmatprep.subr.mxu0 0.0
  %2297 = vmatpush1.msra.mxu0 0.0
  %2298 = vmatprep.subr.mxu0 0.0
  %2299 = vmatpush1.msra.mxu0 0.0
  %2300 = vmatprep.subr.mxu0 0.0
  %2301 = vmatpush1.msra.mxu0 0.0
  %2302 = vmatprep.subr.mxu0 0.0
  %2303 = vmatpush1.msra.mxu0 0.0
  %2304 = vmatprep.subr.mxu0 0.0
  %2305 = vmatpush1.msra.mxu0 0.0
  %2306 = vmatprep.subr.mxu0 0.0
  %2307 = vmatpush1.msra.mxu0 0.0
  %2308 = vmatprep.subr.mxu0 0.0
  %2309 = vmatpush1.msra.mxu0 0.0
  %2310 = vmatprep.subr.mxu0 0.0
  %2311 = vmatpush1.msra.mxu0 0.0
  %2312 = vmatprep.subr.mxu0 0.0
  %2313 = vmatpush1.msra.mxu0 0.0
  %2314 = vmatprep.mubr.f32.mxu0 0.0
  %2315 = vmatmul.mubr.f32.gmra.mrb[0].mxu0 %v2245
  %v2316 = vpop.f32.mrb[0].mxu0
  %v2317 = vadd.f32 %v2243, %v2316
  %v2318 = vpop.f32.mrb[0].mxu0
  %2319 = vmatprep.mubr.f32.mxu0 0.0
  %2320 = vmatmul.mubr.f32.gmra.mrb[0].mxu0 %v2248
  %v2321 = vpop.f32.mrb[0].mxu0
  %v2322 = vadd.f32 %v2243, %v2321
  %v2323 = vpop.f32.mrb[0].mxu0
  %2324 = vdwg.mxu0
  %v2325 = vld [vmem:[#allocation2 + $0x140] sm:$0x1]
  %v2326 = vld [vmem:[#allocation2 + $0x148] sm:$0x1]
  %v2327 = vsel %vm195, %v2317, 0.0
  %2328 = vadd.xlane.f32.xlu0 %v2327
  %v2329 = vpop.xlane.xlu0 %2328
  %v2330 = vsel %vm195, %v2322, 0.0
  %2331 = vadd.xlane.f32.xlu0 %v2330
  %v2332 = vpop.xlane.xlu0 %2331
  %v2333 = vrcp.pop 32.0
  %v2334 = vmul.f32 %v2329, %v2333
  %v2335 = vmul.f32 %v2332, %v2333
  %v2336 = vsub.f32 %v2317, %v2334
  %v2337 = vsub.f32 %v2322, %v2335
  %v2338 = vmul.f32 %v2336, %v2336
  %v2339 = vmul.f32 %v2337, %v2337
  %v2340 = vsel %vm195, %v2338, 0.0
  %2341 = vadd.xlane.f32.xlu0 %v2340
  %v2342 = vpop.xlane.xlu0 %2341
  %v2343 = vsel %vm195, %v2339, 0.0
  %2344 = vadd.xlane.f32.xlu0 %v2343
  %v2345 = vpop.xlane.xlu0 %2344
  %v2346 = vmul.f32 %v2342, %v2333
  %v2347 = vmul.f32 %v2345, %v2333
  %v2348 = vadd.f32 %v2346, 1e-05
  %v2349 = vadd.f32 %v2347, 1e-05
  %v2350 = vrsqrt.pop %v2348
  %v2351 = vrsqrt.pop %v2349
  %v2352 = vmul.f32 %v2336, %v2350
  %v2353 = vmul.f32 %v2337, %v2351
  %v2354 = vlaneseq
  %v2355 = vshrl.u32 %v2354, 7
  %v2356 = vsub.s32 0, %v2355
  %v2357 = vrot.slane %v2325, %v2356
  %v2358 = vmul.f32 %v2352, %v2357
  %v2359 = vmul.f32 %v2353, %v2357
  %v2360 = vlaneseq
  %v2361 = vshrl.u32 %v2360, 7
  %v2362 = vsub.s32 0, %v2361
  %v2363 = vrot.slane %v2326, %v2362
  %v2364 = vadd.f32 %v2358, %v2363
  %v2365 = vadd.f32 %v2359, %v2363
  %v2366 = vmax.f32 %v2364, 0.0
  %v2367 = vmax.f32 %v2365, 0.0
  %v2368 = vld [vmem:[#allocation2 + $0x150] sm:$0xff]
  %v2369 = vld [vmem:[#allocation2 + $0x158] sm:$0xff]
  %v2370 = vld [vmem:[#allocation2 + $0x160] sm:$0xff]
  %v2371 = vld [vmem:[#allocation2 + $0x168] sm:$0xff]
  %v2372 = vld [vmem:[#allocation2 + $0x170] sm:$0x1]
  %v2373 = vlaneseq
  %v2374 = vshrl.u32 %v2373, 7
  %v2375 = vsub.s32 0, %v2374
  %v2376 = vrot.slane %v2372, %v2375
  %v2378 = vsel %vm195, %v2366, 0
  %v2381 = vsel %vm195, %v2367, 0
  %2383 = vmatprep.subr.mxu0 0.0
  %2384 = vmatpush1.msra.mxu0 %v2368
  %2385 = vmatprep.subr.mxu0 0.0
  %2386 = vmatpush1.msra.mxu0 %v2369
  %2387 = vmatprep.subr.mxu0 0.0
  %2388 = vmatpush1.msra.mxu0 %v2370
  %2389 = vmatprep.subr.mxu0 0.0
  %2390 = vmatpush1.msra.mxu0 %v2371
  %2391 = vmatprep.subr.mxu0 0.0
  %2392 = vmatpush1.msra.mxu0 0.0
  %2393 = vmatprep.subr.mxu0 0.0
  %2394 = vmatpush1.msra.mxu0 0.0
  %2395 = vmatprep.subr.mxu0 0.0
  %2396 = vmatpush1.msra.mxu0 0.0
  %2397 = vmatprep.subr.mxu0 0.0
  %2398 = vmatpush1.msra.mxu0 0.0
  %2399 = vmatprep.subr.mxu0 0.0
  %2400 = vmatpush1.msra.mxu0 0.0
  %2401 = vmatprep.subr.mxu0 0.0
  %2402 = vmatpush1.msra.mxu0 0.0
  %2403 = vmatprep.subr.mxu0 0.0
  %2404 = vmatpush1.msra.mxu0 0.0
  %2405 = vmatprep.subr.mxu0 0.0
  %2406 = vmatpush1.msra.mxu0 0.0
  %2407 = vmatprep.subr.mxu0 0.0
  %2408 = vmatpush1.msra.mxu0 0.0
  %2409 = vmatprep.subr.mxu0 0.0
  %2410 = vmatpush1.msra.mxu0 0.0
  %2411 = vmatprep.subr.mxu0 0.0
  %2412 = vmatpush1.msra.mxu0 0.0
  %2413 = vmatprep.subr.mxu0 0.0
  %2414 = vmatpush1.msra.mxu0 0.0
  %2415 = vmatprep.subr.mxu0 0.0
  %2416 = vmatpush1.msra.mxu0 0.0
  %2417 = vmatprep.subr.mxu0 0.0
  %2418 = vmatpush1.msra.mxu0 0.0
  %2419 = vmatprep.subr.mxu0 0.0
  %2420 = vmatpush1.msra.mxu0 0.0
  %2421 = vmatprep.subr.mxu0 0.0
  %2422 = vmatpush1.msra.mxu0 0.0
  %2423 = vmatprep.subr.mxu0 0.0
  %2424 = vmatpush1.msra.mxu0 0.0
  %2425 = vmatprep.subr.mxu0 0.0
  %2426 = vmatpush1.msra.mxu0 0.0
  %2427 = vmatprep.subr.mxu0 0.0
  %2428 = vmatpush1.msra.mxu0 0.0
  %2429 = vmatprep.subr.mxu0 0.0
  %2430 = vmatpush1.msra.mxu0 0.0
  %2431 = vmatprep.subr.mxu0 0.0
  %2432 = vmatpush1.msra.mxu0 0.0
  %2433 = vmatprep.subr.mxu0 0.0
  %2434 = vmatpush1.msra.mxu0 0.0
  %2435 = vmatprep.subr.mxu0 0.0
  %2436 = vmatpush1.msra.mxu0 0.0
  %2437 = vmatprep.subr.mxu0 0.0
  %2438 = vmatpush1.msra.mxu0 0.0
  %2439 = vmatprep.subr.mxu0 0.0
  %2440 = vmatpush1.msra.mxu0 0.0
  %2441 = vmatprep.subr.mxu0 0.0
  %2442 = vmatpush1.msra.mxu0 0.0
  %2443 = vmatprep.subr.mxu0 0.0
  %2444 = vmatpush1.msra.mxu0 0.0
  %2445 = vmatprep.subr.mxu0 0.0
  %2446 = vmatpush1.msra.mxu0 0.0
  %2447 = vmatprep.mubr.f32.mxu0 0.0
  %2448 = vmatmul.mubr.f32.gmra.mrb[0].mxu0 %v2378
  %v2449 = vpop.f32.mrb[0].mxu0
  %v2450 = vadd.f32 %v2376, %v2449
  %v2451 = vpop.f32.mrb[0].mxu0
  %2452 = vmatprep.mubr.f32.mxu0 0.0
  %2453 = vmatmul.mubr.f32.gmra.mrb[0].mxu0 %v2381
  %v2454 = vpop.f32.mrb[0].mxu0
  %v2455 = vadd.f32 %v2376, %v2454
  %v2456 = vpop.f32.mrb[0].mxu0
  %2457 = vdwg.mxu0
  %v2458 = vld [vmem:[%s10] sm:$0xff]
  %v2459 = vld [vmem:[%s10 + $0x8] sm:$0xff]
  %v2461 = vsel %vm2061, %v2458, 0
  %v2464 = vsel %vm2061, %v2459, 0
  %2466 = vmatprep.subr.mxu0 0.0
  %2467 = vmatpush1.msra.mxu0 %v2450
  %2468 = vmatprep.subr.mxu0 0.0
  %2469 = vmatpush1.msra.mxu0 %v2455
  %2470 = vmatprep.subr.mxu0 0.0
  %2471 = vmatpush1.msra.mxu0 0.0
  %2472 = vmatprep.subr.mxu0 0.0
  %2473 = vmatpush1.msra.mxu0 0.0
  %2474 = vmatprep.subr.mxu0 0.0
  %2475 = vmatpush1.msra.mxu0 0.0
  %2476 = vmatprep.subr.mxu0 0.0
  %2477 = vmatpush1.msra.mxu0 0.0
  %2478 = vmatprep.subr.mxu0 0.0
  %2479 = vmatpush1.msra.mxu0 0.0
  %2480 = vmatprep.subr.mxu0 0.0
  %2481 = vmatpush1.msra.mxu0 0.0
  %2482 = vmatprep.subr.mxu0 0.0
  %2483 = vmatpush1.msra.mxu0 0.0
  %2484 = vmatprep.subr.mxu0 0.0
  %2485 = vmatpush1.msra.mxu0 0.0
  %2486 = vmatprep.subr.mxu0 0.0
  %2487 = vmatpush1.msra.mxu0 0.0
  %2488 = vmatprep.subr.mxu0 0.0
  %2489 = vmatpush1.msra.mxu0 0.0
  %2490 = vmatprep.subr.mxu0 0.0
  %2491 = vmatpush1.msra.mxu0 0.0
  %2492 = vmatprep.subr.mxu0 0.0
  %2493 = vmatpush1.msra.mxu0 0.0
  %2494 = vmatprep.subr.mxu0 0.0
  %2495 = vmatpush1.msra.mxu0 0.0
  %2496 = vmatprep.subr.mxu0 0.0
  %2497 = vmatpush1.msra.mxu0 0.0
  %2498 = vmatprep.subr.mxu0 0.0
  %2499 = vmatpush1.msra.mxu0 0.0
  %2500 = vmatprep.subr.mxu0 0.0
  %2501 = vmatpush1.msra.mxu0 0.0
  %2502 = vmatprep.subr.mxu0 0.0
  %2503 = vmatpush1.msra.mxu0 0.0
  %2504 = vmatprep.subr.mxu0 0.0
  %2505 = vmatpush1.msra.mxu0 0.0
  %2506 = vmatprep.subr.mxu0 0.0
  %2507 = vmatpush1.msra.mxu0 0.0
  %2508 = vmatprep.subr.mxu0 0.0
  %2509 = vmatpush1.msra.mxu0 0.0
  %2510 = vmatprep.subr.mxu0 0.0
  %2511 = vmatpush1.msra.mxu0 0.0
  %2512 = vmatprep.subr.mxu0 0.0
  %2513 = vmatpush1.msra.mxu0 0.0
  %2514 = vmatprep.subr.mxu0 0.0
  %2515 = vmatpush1.msra.mxu0 0.0
  %2516 = vmatprep.subr.mxu0 0.0
  %2517 = vmatpush1.msra.mxu0 0.0
  %2518 = vmatprep.subr.mxu0 0.0
  %2519 = vmatpush1.msra.mxu0 0.0
  %2520 = vmatprep.subr.mxu0 0.0
  %2521 = vmatpush1.msra.mxu0 0.0
  %2522 = vmatprep.subr.mxu0 0.0
  %2523 = vmatpush1.msra.mxu0 0.0
  %2524 = vmatprep.subr.mxu0 0.0
  %2525 = vmatpush1.msra.mxu0 0.0
  %2526 = vmatprep.subr.mxu0 0.0
  %2527 = vmatpush1.msra.mxu0 0.0
  %2528 = vmatprep.subr.mxu0 0.0
  %2529 = vmatpush1.msra.mxu0 0.0
  %2530 = vmatprep.mubr.f32.mxu0 0.0
  %2531 = vmatmul.mubr.f32.gmra.mrb[0].mxu0 %v2461
  %v2532 = vpop.f32.mrb[0].mxu0
  %v2533 = vadd.f32 0.0, %v2532
  %v2534 = vpop.f32.mrb[0].mxu0
  %2535 = vmatprep.mubr.f32.mxu0 0.0
  %2536 = vmatmul.mubr.f32.gmra.mrb[0].mxu0 %v2464
  %v2537 = vpop.f32.mrb[0].mxu0
  %v2538 = vadd.f32 0.0, %v2537
  %v2539 = vpop.f32.mrb[0].mxu0
  %2540 = vdwg.mxu0
  %v2541 = vadd.f32 %v636, %v2533
  %v2542 = vadd.f32 %v637, %v2538
  %v2543 = vld [vmem:[#allocation2 + $0x48] sm:$0xff]
  %v2544 = vld [vmem:[#allocation2 + $0x50] sm:$0xff]
  %v2545 = vld [vmem:[#allocation2 + $0x58] sm:$0xff]
  %v2546 = vld [vmem:[#allocation2 + $0x60] sm:$0xff]
  %v2547 = vld [vmem:[#allocation2 + $0x68] sm:$0x1]
  %v2548 = vlaneseq
  %v2549 = vshrl.u32 %v2548, 7
  %v2550 = vsub.s32 0, %v2549
  %v2551 = vrot.slane %v2547, %v2550
  %v2553 = vsel %vm195, %v1317, 0
  %v2556 = vsel %vm195, %v1318, 0
  %2558 = vmatprep.subr.mxu0 0.0
  %2559 = vmatpush1.msra.mxu0 %v2543
  %2560 = vmatprep.subr.mxu0 0.0
  %2561 = vmatpush1.msra.mxu0 %v2544
  %2562 = vmatprep.subr.mxu0 0.0
  %2563 = vmatpush1.msra.mxu0 %v2545
  %2564 = vmatprep.subr.mxu0 0.0
  %2565 = vmatpush1.msra.mxu0 %v2546
  %2566 = vmatprep.subr.mxu0 0.0
  %2567 = vmatpush1.msra.mxu0 0.0
  %2568 = vmatprep.subr.mxu0 0.0
  %2569 = vmatpush1.msra.mxu0 0.0
  %2570 = vmatprep.subr.mxu0 0.0
  %2571 = vmatpush1.msra.mxu0 0.0
  %2572 = vmatprep.subr.mxu0 0.0
  %2573 = vmatpush1.msra.mxu0 0.0
  %2574 = vmatprep.subr.mxu0 0.0
  %2575 = vmatpush1.msra.mxu0 0.0
  %2576 = vmatprep.subr.mxu0 0.0
  %2577 = vmatpush1.msra.mxu0 0.0
  %2578 = vmatprep.subr.mxu0 0.0
  %2579 = vmatpush1.msra.mxu0 0.0
  %2580 = vmatprep.subr.mxu0 0.0
  %2581 = vmatpush1.msra.mxu0 0.0
  %2582 = vmatprep.subr.mxu0 0.0
  %2583 = vmatpush1.msra.mxu0 0.0
  %2584 = vmatprep.subr.mxu0 0.0
  %2585 = vmatpush1.msra.mxu0 0.0
  %2586 = vmatprep.subr.mxu0 0.0
  %2587 = vmatpush1.msra.mxu0 0.0
  %2588 = vmatprep.subr.mxu0 0.0
  %2589 = vmatpush1.msra.mxu0 0.0
  %2590 = vmatprep.subr.mxu0 0.0
  %2591 = vmatpush1.msra.mxu0 0.0
  %2592 = vmatprep.subr.mxu0 0.0
  %2593 = vmatpush1.msra.mxu0 0.0
  %2594 = vmatprep.subr.mxu0 0.0
  %2595 = vmatpush1.msra.mxu0 0.0
  %2596 = vmatprep.subr.mxu0 0.0
  %2597 = vmatpush1.msra.mxu0 0.0
  %2598 = vmatprep.subr.mxu0 0.0
  %2599 = vmatpush1.msra.mxu0 0.0
  %2600 = vmatprep.subr.mxu0 0.0
  %2601 = vmatpush1.msra.mxu0 0.0
  %2602 = vmatprep.subr.mxu0 0.0
  %2603 = vmatpush1.msra.mxu0 0.0
  %2604 = vmatprep.subr.mxu0 0.0
  %2605 = vmatpush1.msra.mxu0 0.0
  %2606 = vmatprep.subr.mxu0 0.0
  %2607 = vmatpush1.msra.mxu0 0.0
  %2608 = vmatprep.subr.mxu0 0.0
  %2609 = vmatpush1.msra.mxu0 0.0
  %2610 = vmatprep.subr.mxu0 0.0
  %2611 = vmatpush1.msra.mxu0 0.0
  %2612 = vmatprep.subr.mxu0 0.0
  %2613 = vmatpush1.msra.mxu0 0.0
  %2614 = vmatprep.subr.mxu0 0.0
  %2615 = vmatpush1.msra.mxu0 0.0
  %2616 = vmatprep.subr.mxu0 0.0
  %2617 = vmatpush1.msra.mxu0 0.0
  %2618 = vmatprep.subr.mxu0 0.0
  %2619 = vmatpush1.msra.mxu0 0.0
  %2620 = vmatprep.subr.mxu0 0.0
  %2621 = vmatpush1.msra.mxu0 0.0
  %2622 = vmatprep.mubr.f32.mxu0 0.0
  %2623 = vmatmul.mubr.f32.gmra.mrb[0].mxu0 %v2553
  %v2624 = vpop.f32.mrb[0].mxu0
  %v2625 = vadd.f32 %v2551, %v2624
  %v2626 = vpop.f32.mrb[0].mxu0
  %2627 = vmatprep.mubr.f32.mxu0 0.0
  %2628 = vmatmul.mubr.f32.gmra.mrb[0].mxu0 %v2556
  %v2629 = vpop.f32.mrb[0].mxu0
  %v2630 = vadd.f32 %v2551, %v2629
  %v2631 = vpop.f32.mrb[0].mxu0
  %2632 = vdwg.mxu0
  %s2633 = scalar_lea.vmem %s6, 16
  %v2634 = vld [vmem:[%s2633] sm:$0xff]
  %v2635 = vld [vmem:[%s2633 + $0x8] sm:$0xff]
  %s2636 = scalar_lea.vmem %s7, 16
  %v2637 = vld [vmem:[%s2636] sm:$0xff]
  %v2638 = vld [vmem:[%s2636 + $0x8] sm:$0xff]
  %2640 = vset.pattern.permute.xlu0 0
  %2641 = vperm.xlu0 %2640, %v2637
  %v2642 = vpop.permute.xlu0 %2641
  %2645 = vset.pattern.permute.xlu0 0
  %2646 = vperm.xlu0 %2645, %v2638
  %v2647 = vpop.permute.xlu0 %2646
  %v2649 = vmul.f32 %v2642, %v863
  %v2650 = vmul.f32 %v2647, %v864
  %v2651 = vsub.f32 0.0, %v2649
  %v2652 = vsub.f32 0.0, %v2650
  %2655 = vrot.lane.b32.xlu0 %v2651, 32
  %v2656 = vpop.permute.xlu0 %2655
  %2657 = vrot.lane.b32.xlu0 %v2652, 32
  %v2658 = vpop.permute.xlu0 %2657
  %v2661 = vsel %vm195, %v863, %v2656
  %v2662 = vsel %vm195, %v864, %v2658
  %v2663 = vld [vmem:[#allocation2 + $0x70] sm:$0xff]
  %v2664 = vld [vmem:[#allocation2 + $0x78] sm:$0xff]
  %v2665 = vld [vmem:[#allocation2 + $0x80] sm:$0xff]
  %v2666 = vld [vmem:[#allocation2 + $0x88] sm:$0xff]
  %v2667 = vld [vmem:[#allocation2 + $0x90] sm:$0xff]
  %v2668 = vld [vmem:[#allocation2 + $0x98] sm:$0xff]
  %v2669 = vld [vmem:[#allocation2 + $0xa0] sm:$0xff]
  %v2670 = vld [vmem:[#allocation2 + $0xa8] sm:$0xff]
  %vm2671 = vcmask 523264
  %v2673 = vsel %vm2671, %v2661, 0
  %v2676 = vsel %vm2671, %v2662, 0
  %2678 = vmatprep.subr.mxu0 0.0
  %2679 = vmatpush1.msra.mxu0 %v2663
  %2680 = vmatprep.subr.mxu0 0.0
  %2681 = vmatpush1.msra.mxu0 %v2664
  %2682 = vmatprep.subr.mxu0 0.0
  %2683 = vmatpush1.msra.mxu0 %v2665
  %2684 = vmatprep.subr.mxu0 0.0
  %2685 = vmatpush1.msra.mxu0 %v2666
  %2686 = vmatprep.subr.mxu0 0.0
  %2687 = vmatpush1.msra.mxu0 %v2667
  %2688 = vmatprep.subr.mxu0 0.0
  %2689 = vmatpush1.msra.mxu0 %v2668
  %2690 = vmatprep.subr.mxu0 0.0
  %2691 = vmatpush1.msra.mxu0 %v2669
  %2692 = vmatprep.subr.mxu0 0.0
  %2693 = vmatpush1.msra.mxu0 %v2670
  %2694 = vmatprep.subr.mxu0 0.0
  %2695 = vmatpush1.msra.mxu0 0.0
  %2696 = vmatprep.subr.mxu0 0.0
  %2697 = vmatpush1.msra.mxu0 0.0
  %2698 = vmatprep.subr.mxu0 0.0
  %2699 = vmatpush1.msra.mxu0 0.0
  %2700 = vmatprep.subr.mxu0 0.0
  %2701 = vmatpush1.msra.mxu0 0.0
  %2702 = vmatprep.subr.mxu0 0.0
  %2703 = vmatpush1.msra.mxu0 0.0
  %2704 = vmatprep.subr.mxu0 0.0
  %2705 = vmatpush1.msra.mxu0 0.0
  %2706 = vmatprep.subr.mxu0 0.0
  %2707 = vmatpush1.msra.mxu0 0.0
  %2708 = vmatprep.subr.mxu0 0.0
  %2709 = vmatpush1.msra.mxu0 0.0
  %2710 = vmatprep.subr.mxu0 0.0
  %2711 = vmatpush1.msra.mxu0 0.0
  %2712 = vmatprep.subr.mxu0 0.0
  %2713 = vmatpush1.msra.mxu0 0.0
  %2714 = vmatprep.subr.mxu0 0.0
  %2715 = vmatpush1.msra.mxu0 0.0
  %2716 = vmatprep.subr.mxu0 0.0
  %2717 = vmatpush1.msra.mxu0 0.0
  %2718 = vmatprep.subr.mxu0 0.0
  %2719 = vmatpush1.msra.mxu0 0.0
  %2720 = vmatprep.subr.mxu0 0.0
  %2721 = vmatpush1.msra.mxu0 0.0
  %2722 = vmatprep.subr.mxu0 0.0
  %2723 = vmatpush1.msra.mxu0 0.0
  %2724 = vmatprep.subr.mxu0 0.0
  %2725 = vmatpush1.msra.mxu0 0.0
  %2726 = vmatprep.subr.mxu0 0.0
  %2727 = vmatpush1.msra.mxu0 0.0
  %2728 = vmatprep.subr.mxu0 0.0
  %2729 = vmatpush1.msra.mxu0 0.0
  %2730 = vmatprep.subr.mxu0 0.0
  %2731 = vmatpush1.msra.mxu0 0.0
  %2732 = vmatprep.subr.mxu0 0.0
  %2733 = vmatpush1.msra.mxu0 0.0
  %2734 = vmatprep.subr.mxu0 0.0
  %2735 = vmatpush1.msra.mxu0 0.0
  %2736 = vmatprep.subr.mxu0 0.0
  %2737 = vmatpush1.msra.mxu0 0.0
  %2738 = vmatprep.subr.mxu0 0.0
  %2739 = vmatpush1.msra.mxu0 0.0
  %2740 = vmatprep.subr.mxu0 0.0
  %2741 = vmatpush1.msra.mxu0 0.0
  %2742 = vmatprep.mubr.f32.mxu0 0.0
  %2743 = vmatmul.mubr.f32.gmra.mrb[0].mxu0 %v2673
  %v2744 = vpop.f32.mrb[0].mxu0
  %v2745 = vadd.f32 0.0, %v2744
  %v2746 = vpop.f32.mrb[0].mxu0
  %2747 = vmatprep.mubr.f32.mxu0 0.0
  %2748 = vmatmul.mubr.f32.gmra.mrb[0].mxu0 %v2676
  %v2749 = vpop.f32.mrb[0].mxu0
  %v2750 = vadd.f32 0.0, %v2749
  %v2751 = vpop.f32.mrb[0].mxu0
  %2752 = vdwg.mxu0
  %v2754 = vsel %vm2061, %v2634, 0
  %v2757 = vsel %vm2061, %v2635, 0
  %2759 = vmatprep.subr.mxu0 0.0
  %2760 = vmatpush1.msra.mxu0 %v2625
  %2761 = vmatprep.subr.mxu0 0.0
  %2762 = vmatpush1.msra.mxu0 %v2630
  %2763 = vmatprep.subr.mxu0 0.0
  %2764 = vmatpush1.msra.mxu0 0.0
  %2765 = vmatprep.subr.mxu0 0.0
  %2766 = vmatpush1.msra.mxu0 0.0
  %2767 = vmatprep.subr.mxu0 0.0
  %2768 = vmatpush1.msra.mxu0 0.0
  %2769 = vmatprep.subr.mxu0 0.0
  %2770 = vmatpush1.msra.mxu0 0.0
  %2771 = vmatprep.subr.mxu0 0.0
  %2772 = vmatpush1.msra.mxu0 0.0
  %2773 = vmatprep.subr.mxu0 0.0
  %2774 = vmatpush1.msra.mxu0 0.0
  %2775 = vmatprep.subr.mxu0 0.0
  %2776 = vmatpush1.msra.mxu0 0.0
  %2777 = vmatprep.subr.mxu0 0.0
  %2778 = vmatpush1.msra.mxu0 0.0
  %2779 = vmatprep.subr.mxu0 0.0
  %2780 = vmatpush1.msra.mxu0 0.0
  %2781 = vmatprep.subr.mxu0 0.0
  %2782 = vmatpush1.msra.mxu0 0.0
  %2783 = vmatprep.subr.mxu0 0.0
  %2784 = vmatpush1.msra.mxu0 0.0
  %2785 = vmatprep.subr.mxu0 0.0
  %2786 = vmatpush1.msra.mxu0 0.0
  %2787 = vmatprep.subr.mxu0 0.0
  %2788 = vmatpush1.msra.mxu0 0.0
  %2789 = vmatprep.subr.mxu0 0.0
  %2790 = vmatpush1.msra.mxu0 0.0
  %2791 = vmatprep.subr.mxu0 0.0
  %2792 = vmatpush1.msra.mxu0 0.0
  %2793 = vmatprep.subr.mxu0 0.0
  %2794 = vmatpush1.msra.mxu0 0.0
  %2795 = vmatprep.subr.mxu0 0.0
  %2796 = vmatpush1.msra.mxu0 0.0
  %2797 = vmatprep.subr.mxu0 0.0
  %2798 = vmatpush1.msra.mxu0 0.0
  %2799 = vmatprep.subr.mxu0 0.0
  %2800 = vmatpush1.msra.mxu0 0.0
  %2801 = vmatprep.subr.mxu0 0.0
  %2802 = vmatpush1.msra.mxu0 0.0
  %2803 = vmatprep.subr.mxu0 0.0
  %2804 = vmatpush1.msra.mxu0 0.0
  %2805 = vmatprep.subr.mxu0 0.0
  %2806 = vmatpush1.msra.mxu0 0.0
  %2807 = vmatprep.subr.mxu0 0.0
  %2808 = vmatpush1.msra.mxu0 0.0
  %2809 = vmatprep.subr.mxu0 0.0
  %2810 = vmatpush1.msra.mxu0 0.0
  %2811 = vmatprep.subr.mxu0 0.0
  %2812 = vmatpush1.msra.mxu0 0.0
  %2813 = vmatprep.subr.mxu0 0.0
  %2814 = vmatpush1.msra.mxu0 0.0
  %2815 = vmatprep.subr.mxu0 0.0
  %2816 = vmatpush1.msra.mxu0 0.0
  %2817 = vmatprep.subr.mxu0 0.0
  %2818 = vmatpush1.msra.mxu0 0.0
  %2819 = vmatprep.subr.mxu0 0.0
  %2820 = vmatpush1.msra.mxu0 0.0
  %2821 = vmatprep.subr.mxu0 0.0
  %2822 = vmatpush1.msra.mxu0 0.0
  %2823 = vmatprep.mubr.f32.mxu0 0.0
  %2824 = vmatmul.mubr.f32.gmra.mrb[0].mxu0 %v2754
  %v2825 = vpop.f32.mrb[0].mxu0
  %v2826 = vadd.f32 %v2745, %v2825
  %v2827 = vpop.f32.mrb[0].mxu0
  %2828 = vmatprep.mubr.f32.mxu0 0.0
  %2829 = vmatmul.mubr.f32.gmra.mrb[0].mxu0 %v2757
  %v2830 = vpop.f32.mrb[0].mxu0
  %v2831 = vadd.f32 %v2750, %v2830
  %v2832 = vpop.f32.mrb[0].mxu0
  %2833 = vdwg.mxu0
  %v2834 = vld [vmem:[#allocation2 + $0xb0] sm:$0x1]
  %v2835 = vlaneseq
  %v2836 = vshrl.u32 %v2835, 7
  %v2837 = vsub.s32 0, %v2836
  %v2838 = vrot.slane %v2834, %v2837
  %v2839 = vadd.f32 %v2826, %v2838
  %v2840 = vadd.f32 %v2831, %v2838
  %v2841 = vadd.f32 %v863, %v2839
  %v2842 = vadd.f32 %v864, %v2840
  %v2844 = vsel %vm195, %v1544, 0
  %v2847 = vsel %vm195, %v1545, 0
  %2849 = vmatprep.subr.mxu0 0.0
  %2850 = vmatpush1.msra.mxu0 %v2543
  %2851 = vmatprep.subr.mxu0 0.0
  %2852 = vmatpush1.msra.mxu0 %v2544
  %2853 = vmatprep.subr.mxu0 0.0
  %2854 = vmatpush1.msra.mxu0 %v2545
  %2855 = vmatprep.subr.mxu0 0.0
  %2856 = vmatpush1.msra.mxu0 %v2546
  %2857 = vmatprep.subr.mxu0 0.0
  %2858 = vmatpush1.msra.mxu0 0.0
  %2859 = vmatprep.subr.mxu0 0.0
  %2860 = vmatpush1.msra.mxu0 0.0
  %2861 = vmatprep.subr.mxu0 0.0
  %2862 = vmatpush1.msra.mxu0 0.0
  %2863 = vmatprep.subr.mxu0 0.0
  %2864 = vmatpush1.msra.mxu0 0.0
  %2865 = vmatprep.subr.mxu0 0.0
  %2866 = vmatpush1.msra.mxu0 0.0
  %2867 = vmatprep.subr.mxu0 0.0
  %2868 = vmatpush1.msra.mxu0 0.0
  %2869 = vmatprep.subr.mxu0 0.0
  %2870 = vmatpush1.msra.mxu0 0.0
  %2871 = vmatprep.subr.mxu0 0.0
  %2872 = vmatpush1.msra.mxu0 0.0
  %2873 = vmatprep.subr.mxu0 0.0
  %2874 = vmatpush1.msra.mxu0 0.0
  %2875 = vmatprep.subr.mxu0 0.0
  %2876 = vmatpush1.msra.mxu0 0.0
  %2877 = vmatprep.subr.mxu0 0.0
  %2878 = vmatpush1.msra.mxu0 0.0
  %2879 = vmatprep.subr.mxu0 0.0
  %2880 = vmatpush1.msra.mxu0 0.0
  %2881 = vmatprep.subr.mxu0 0.0
  %2882 = vmatpush1.msra.mxu0 0.0
  %2883 = vmatprep.subr.mxu0 0.0
  %2884 = vmatpush1.msra.mxu0 0.0
  %2885 = vmatprep.subr.mxu0 0.0
  %2886 = vmatpush1.msra.mxu0 0.0
  %2887 = vmatprep.subr.mxu0 0.0
  %2888 = vmatpush1.msra.mxu0 0.0
  %2889 = vmatprep.subr.mxu0 0.0
  %2890 = vmatpush1.msra.mxu0 0.0
  %2891 = vmatprep.subr.mxu0 0.0
  %2892 = vmatpush1.msra.mxu0 0.0
  %2893 = vmatprep.subr.mxu0 0.0
  %2894 = vmatpush1.msra.mxu0 0.0
  %2895 = vmatprep.subr.mxu0 0.0
  %2896 = vmatpush1.msra.mxu0 0.0
  %2897 = vmatprep.subr.mxu0 0.0
  %2898 = vmatpush1.msra.mxu0 0.0
  %2899 = vmatprep.subr.mxu0 0.0
  %2900 = vmatpush1.msra.mxu0 0.0
  %2901 = vmatprep.subr.mxu0 0.0
  %2902 = vmatpush1.msra.mxu0 0.0
  %2903 = vmatprep.subr.mxu0 0.0
  %2904 = vmatpush1.msra.mxu0 0.0
  %2905 = vmatprep.subr.mxu0 0.0
  %2906 = vmatpush1.msra.mxu0 0.0
  %2907 = vmatprep.subr.mxu0 0.0
  %2908 = vmatpush1.msra.mxu0 0.0
  %2909 = vmatprep.subr.mxu0 0.0
  %2910 = vmatpush1.msra.mxu0 0.0
  %2911 = vmatprep.subr.mxu0 0.0
  %2912 = vmatpush1.msra.mxu0 0.0
  %2913 = vmatprep.mubr.f32.mxu0 0.0
  %2914 = vmatmul.mubr.f32.gmra.mrb[0].mxu0 %v2844
  %v2915 = vpop.f32.mrb[0].mxu0
  %v2916 = vadd.f32 %v2551, %v2915
  %v2917 = vpop.f32.mrb[0].mxu0
  %2918 = vmatprep.mubr.f32.mxu0 0.0
  %2919 = vmatmul.mubr.f32.gmra.mrb[0].mxu0 %v2847
  %v2920 = vpop.f32.mrb[0].mxu0
  %v2921 = vadd.f32 %v2551, %v2920
  %v2922 = vpop.f32.mrb[0].mxu0
  %2923 = vdwg.mxu0
  %s2924 = scalar_lea.vmem %s6, 32
  %v2925 = vld [vmem:[%s2924] sm:$0xff]
  %v2926 = vld [vmem:[%s2924 + $0x8] sm:$0xff]
  %s2927 = scalar_lea.vmem %s7, 32
  %v2928 = vld [vmem:[%s2927] sm:$0xff]
  %v2929 = vld [vmem:[%s2927 + $0x8] sm:$0xff]
  %2931 = vset.pattern.permute.xlu0 0
  %2932 = vperm.xlu0 %2931, %v2928
  %v2933 = vpop.permute.xlu0 %2932
  %2936 = vset.pattern.permute.xlu0 0
  %2937 = vperm.xlu0 %2936, %v2929
  %v2938 = vpop.permute.xlu0 %2937
  %v2940 = vmul.f32 %v2933, %v2841
  %v2941 = vmul.f32 %v2938, %v2842
  %v2942 = vsub.f32 0.0, %v2940
  %v2943 = vsub.f32 0.0, %v2941
  %2946 = vrot.lane.b32.xlu0 %v2942, 32
  %v2947 = vpop.permute.xlu0 %2946
  %2948 = vrot.lane.b32.xlu0 %v2943, 32
  %v2949 = vpop.permute.xlu0 %2948
  %v2952 = vsel %vm195, %v2841, %v2947
  %v2953 = vsel %vm195, %v2842, %v2949
  %v2955 = vsel %vm2671, %v2952, 0
  %v2958 = vsel %vm2671, %v2953, 0
  %2960 = vmatprep.subr.mxu0 0.0
  %2961 = vmatpush1.msra.mxu0 %v2663
  %2962 = vmatprep.subr.mxu0 0.0
  %2963 = vmatpush1.msra.mxu0 %v2664
  %2964 = vmatprep.subr.mxu0 0.0
  %2965 = vmatpush1.msra.mxu0 %v2665
  %2966 = vmatprep.subr.mxu0 0.0
  %2967 = vmatpush1.msra.mxu0 %v2666
  %2968 = vmatprep.subr.mxu0 0.0
  %2969 = vmatpush1.msra.mxu0 %v2667
  %2970 = vmatprep.subr.mxu0 0.0
  %2971 = vmatpush1.msra.mxu0 %v2668
  %2972 = vmatprep.subr.mxu0 0.0
  %2973 = vmatpush1.msra.mxu0 %v2669
  %2974 = vmatprep.subr.mxu0 0.0
  %2975 = vmatpush1.msra.mxu0 %v2670
  %2976 = vmatprep.subr.mxu0 0.0
  %2977 = vmatpush1.msra.mxu0 0.0
  %2978 = vmatprep.subr.mxu0 0.0
  %2979 = vmatpush1.msra.mxu0 0.0
  %2980 = vmatprep.subr.mxu0 0.0
  %2981 = vmatpush1.msra.mxu0 0.0
  %2982 = vmatprep.subr.mxu0 0.0
  %2983 = vmatpush1.msra.mxu0 0.0
  %2984 = vmatprep.subr.mxu0 0.0
  %2985 = vmatpush1.msra.mxu0 0.0
  %2986 = vmatprep.subr.mxu0 0.0
  %2987 = vmatpush1.msra.mxu0 0.0
  %2988 = vmatprep.subr.mxu0 0.0
  %2989 = vmatpush1.msra.mxu0 0.0
  %2990 = vmatprep.subr.mxu0 0.0
  %2991 = vmatpush1.msra.mxu0 0.0
  %2992 = vmatprep.subr.mxu0 0.0
  %2993 = vmatpush1.msra.mxu0 0.0
  %2994 = vmatprep.subr.mxu0 0.0
  %2995 = vmatpush1.msra.mxu0 0.0
  %2996 = vmatprep.subr.mxu0 0.0
  %2997 = vmatpush1.msra.mxu0 0.0
  %2998 = vmatprep.subr.mxu0 0.0
  %2999 = vmatpush1.msra.mxu0 0.0
  %3000 = vmatprep.subr.mxu0 0.0
  %3001 = vmatpush1.msra.mxu0 0.0
  %3002 = vmatprep.subr.mxu0 0.0
  %3003 = vmatpush1.msra.mxu0 0.0
  %3004 = vmatprep.subr.mxu0 0.0
  %3005 = vmatpush1.msra.mxu0 0.0
  %3006 = vmatprep.subr.mxu0 0.0
  %3007 = vmatpush1.msra.mxu0 0.0
  %3008 = vmatprep.subr.mxu0 0.0
  %3009 = vmatpush1.msra.mxu0 0.0
  %3010 = vmatprep.subr.mxu0 0.0
  %3011 = vmatpush1.msra.mxu0 0.0
  %3012 = vmatprep.subr.mxu0 0.0
  %3013 = vmatpush1.msra.mxu0 0.0
  %3014 = vmatprep.subr.mxu0 0.0
  %3015 = vmatpush1.msra.mxu0 0.0
  %3016 = vmatprep.subr.mxu0 0.0
  %3017 = vmatpush1.msra.mxu0 0.0
  %3018 = vmatprep.subr.mxu0 0.0
  %3019 = vmatpush1.msra.mxu0 0.0
  %3020 = vmatprep.subr.mxu0 0.0
  %3021 = vmatpush1.msra.mxu0 0.0
  %3022 = vmatprep.subr.mxu0 0.0
  %3023 = vmatpush1.msra.mxu0 0.0
  %3024 = vmatprep.mubr.f32.mxu0 0.0
  %3025 = vmatmul.mubr.f32.gmra.mrb[0].mxu0 %v2955
  %v3026 = vpop.f32.mrb[0].mxu0
  %v3027 = vadd.f32 0.0, %v3026
  %v3028 = vpop.f32.mrb[0].mxu0
  %3029 = vmatprep.mubr.f32.mxu0 0.0
  %3030 = vmatmul.mubr.f32.gmra.mrb[0].mxu0 %v2958
  %v3031 = vpop.f32.mrb[0].mxu0
  %v3032 = vadd.f32 0.0, %v3031
  %v3033 = vpop.f32.mrb[0].mxu0
  %3034 = vdwg.mxu0
  %v3036 = vsel %vm2061, %v2925, 0
  %v3039 = vsel %vm2061, %v2926, 0
  %3041 = vmatprep.subr.mxu0 0.0
  %3042 = vmatpush1.msra.mxu0 %v2916
  %3043 = vmatprep.subr.mxu0 0.0
  %3044 = vmatpush1.msra.mxu0 %v2921
  %3045 = vmatprep.subr.mxu0 0.0
  %3046 = vmatpush1.msra.mxu0 0.0
  %3047 = vmatprep.subr.mxu0 0.0
  %3048 = vmatpush1.msra.mxu0 0.0
  %3049 = vmatprep.subr.mxu0 0.0
  %3050 = vmatpush1.msra.mxu0 0.0
  %3051 = vmatprep.subr.mxu0 0.0
  %3052 = vmatpush1.msra.mxu0 0.0
  %3053 = vmatprep.subr.mxu0 0.0
  %3054 = vmatpush1.msra.mxu0 0.0
  %3055 = vmatprep.subr.mxu0 0.0
  %3056 = vmatpush1.msra.mxu0 0.0
  %3057 = vmatprep.subr.mxu0 0.0
  %3058 = vmatpush1.msra.mxu0 0.0
  %3059 = vmatprep.subr.mxu0 0.0
  %3060 = vmatpush1.msra.mxu0 0.0
  %3061 = vmatprep.subr.mxu0 0.0
  %3062 = vmatpush1.msra.mxu0 0.0
  %3063 = vmatprep.subr.mxu0 0.0
  %3064 = vmatpush1.msra.mxu0 0.0
  %3065 = vmatprep.subr.mxu0 0.0
  %3066 = vmatpush1.msra.mxu0 0.0
  %3067 = vmatprep.subr.mxu0 0.0
  %3068 = vmatpush1.msra.mxu0 0.0
  %3069 = vmatprep.subr.mxu0 0.0
  %3070 = vmatpush1.msra.mxu0 0.0
  %3071 = vmatprep.subr.mxu0 0.0
  %3072 = vmatpush1.msra.mxu0 0.0
  %3073 = vmatprep.subr.mxu0 0.0
  %3074 = vmatpush1.msra.mxu0 0.0
  %3075 = vmatprep.subr.mxu0 0.0
  %3076 = vmatpush1.msra.mxu0 0.0
  %3077 = vmatprep.subr.mxu0 0.0
  %3078 = vmatpush1.msra.mxu0 0.0
  %3079 = vmatprep.subr.mxu0 0.0
  %3080 = vmatpush1.msra.mxu0 0.0
  %3081 = vmatprep.subr.mxu0 0.0
  %3082 = vmatpush1.msra.mxu0 0.0
  %3083 = vmatprep.subr.mxu0 0.0
  %3084 = vmatpush1.msra.mxu0 0.0
  %3085 = vmatprep.subr.mxu0 0.0
  %3086 = vmatpush1.msra.mxu0 0.0
  %3087 = vmatprep.subr.mxu0 0.0
  %3088 = vmatpush1.msra.mxu0 0.0
  %3089 = vmatprep.subr.mxu0 0.0
  %3090 = vmatpush1.msra.mxu0 0.0
  %3091 = vmatprep.subr.mxu0 0.0
  %3092 = vmatpush1.msra.mxu0 0.0
  %3093 = vmatprep.subr.mxu0 0.0
  %3094 = vmatpush1.msra.mxu0 0.0
  %3095 = vmatprep.subr.mxu0 0.0
  %3096 = vmatpush1.msra.mxu0 0.0
  %3097 = vmatprep.subr.mxu0 0.0
  %3098 = vmatpush1.msra.mxu0 0.0
  %3099 = vmatprep.subr.mxu0 0.0
  %3100 = vmatpush1.msra.mxu0 0.0
  %3101 = vmatprep.subr.mxu0 0.0
  %3102 = vmatpush1.msra.mxu0 0.0
  %3103 = vmatprep.subr.mxu0 0.0
  %3104 = vmatpush1.msra.mxu0 0.0
  %3105 = vmatprep.mubr.f32.mxu0 0.0
  %3106 = vmatmul.mubr.f32.gmra.mrb[0].mxu0 %v3036
  %v3107 = vpop.f32.mrb[0].mxu0
  %v3108 = vadd.f32 %v3027, %v3107
  %v3109 = vpop.f32.mrb[0].mxu0
  %3110 = vmatprep.mubr.f32.mxu0 0.0
  %3111 = vmatmul.mubr.f32.gmra.mrb[0].mxu0 %v3039
  %v3112 = vpop.f32.mrb[0].mxu0
  %v3113 = vadd.f32 %v3032, %v3112
  %v3114 = vpop.f32.mrb[0].mxu0
  %3115 = vdwg.mxu0
  %v3116 = vadd.f32 %v3108, %v2838
  %v3117 = vadd.f32 %v3113, %v2838
  %v3118 = vadd.f32 %v2841, %v3116
  %v3119 = vadd.f32 %v2842, %v3117
  %v3121 = vsel %vm195, %v3118, 0
  %v3124 = vsel %vm195, %v3119, 0
  %3126 = vmatprep.subr.mxu0 0.0
  %3127 = vmatpush1.msra.mxu0 %v2543
  %3128 = vmatprep.subr.mxu0 0.0
  %3129 = vmatpush1.msra.mxu0 %v2544
  %3130 = vmatprep.subr.mxu0 0.0
  %3131 = vmatpush1.msra.mxu0 %v2545
  %3132 = vmatprep.subr.mxu0 0.0
  %3133 = vmatpush1.msra.mxu0 %v2546
  %3134 = vmatprep.subr.mxu0 0.0
  %3135 = vmatpush1.msra.mxu0 0.0
  %3136 = vmatprep.subr.mxu0 0.0
  %3137 = vmatpush1.msra.mxu0 0.0
  %3138 = vmatprep.subr.mxu0 0.0
  %3139 = vmatpush1.msra.mxu0 0.0
  %3140 = vmatprep.subr.mxu0 0.0
  %3141 = vmatpush1.msra.mxu0 0.0
  %3142 = vmatprep.subr.mxu0 0.0
  %3143 = vmatpush1.msra.mxu0 0.0
  %3144 = vmatprep.subr.mxu0 0.0
  %3145 = vmatpush1.msra.mxu0 0.0
  %3146 = vmatprep.subr.mxu0 0.0
  %3147 = vmatpush1.msra.mxu0 0.0
  %3148 = vmatprep.subr.mxu0 0.0
  %3149 = vmatpush1.msra.mxu0 0.0
  %3150 = vmatprep.subr.mxu0 0.0
  %3151 = vmatpush1.msra.mxu0 0.0
  %3152 = vmatprep.subr.mxu0 0.0
  %3153 = vmatpush1.msra.mxu0 0.0
  %3154 = vmatprep.subr.mxu0 0.0
  %3155 = vmatpush1.msra.mxu0 0.0
  %3156 = vmatprep.subr.mxu0 0.0
  %3157 = vmatpush1.msra.mxu0 0.0
  %3158 = vmatprep.subr.mxu0 0.0
  %3159 = vmatpush1.msra.mxu0 0.0
  %3160 = vmatprep.subr.mxu0 0.0
  %3161 = vmatpush1.msra.mxu0 0.0
  %3162 = vmatprep.subr.mxu0 0.0
  %3163 = vmatpush1.msra.mxu0 0.0
  %3164 = vmatprep.subr.mxu0 0.0
  %3165 = vmatpush1.msra.mxu0 0.0
  %3166 = vmatprep.subr.mxu0 0.0
  %3167 = vmatpush1.msra.mxu0 0.0
  %3168 = vmatprep.subr.mxu0 0.0
  %3169 = vmatpush1.msra.mxu0 0.0
  %3170 = vmatprep.subr.mxu0 0.0
  %3171 = vmatpush1.msra.mxu0 0.0
  %3172 = vmatprep.subr.mxu0 0.0
  %3173 = vmatpush1.msra.mxu0 0.0
  %3174 = vmatprep.subr.mxu0 0.0
  %3175 = vmatpush1.msra.mxu0 0.0
  %3176 = vmatprep.subr.mxu0 0.0
  %3177 = vmatpush1.msra.mxu0 0.0
  %3178 = vmatprep.subr.mxu0 0.0
  %3179 = vmatpush1.msra.mxu0 0.0
  %3180 = vmatprep.subr.mxu0 0.0
  %3181 = vmatpush1.msra.mxu0 0.0
  %3182 = vmatprep.subr.mxu0 0.0
  %3183 = vmatpush1.msra.mxu0 0.0
  %3184 = vmatprep.subr.mxu0 0.0
  %3185 = vmatpush1.msra.mxu0 0.0
  %3186 = vmatprep.subr.mxu0 0.0
  %3187 = vmatpush1.msra.mxu0 0.0
  %3188 = vmatprep.subr.mxu0 0.0
  %3189 = vmatpush1.msra.mxu0 0.0
  %3190 = vmatprep.mubr.f32.mxu0 0.0
  %3191 = vmatmul.mubr.f32.gmra.mrb[0].mxu0 %v3121
  %v3192 = vpop.f32.mrb[0].mxu0
  %v3193 = vadd.f32 %v2551, %v3192
  %v3194 = vpop.f32.mrb[0].mxu0
  %3195 = vmatprep.mubr.f32.mxu0 0.0
  %3196 = vmatmul.mubr.f32.gmra.mrb[0].mxu0 %v3124
  %v3197 = vpop.f32.mrb[0].mxu0
  %v3198 = vadd.f32 %v2551, %v3197
  %v3199 = vpop.f32.mrb[0].mxu0
  %3200 = vdwg.mxu0
  %s3201 = scalar_lea.vmem %s6, 48
  %v3202 = vld [vmem:[%s3201] sm:$0xff]
  %v3203 = vld [vmem:[%s3201 + $0x8] sm:$0xff]
  %s3204 = scalar_lea.vmem %s7, 48
  %v3205 = vld [vmem:[%s3204] sm:$0xff]
  %v3206 = vld [vmem:[%s3204 + $0x8] sm:$0xff]
  %3208 = vset.pattern.permute.xlu0 0
  %3209 = vperm.xlu0 %3208, %v3205
  %v3210 = vpop.permute.xlu0 %3209
  %3213 = vset.pattern.permute.xlu0 0
  %3214 = vperm.xlu0 %3213, %v3206
  %v3215 = vpop.permute.xlu0 %3214
  %v3217 = vmul.f32 %v3210, %v1090
  %v3218 = vmul.f32 %v3215, %v1091
  %v3219 = vsub.f32 0.0, %v3217
  %v3220 = vsub.f32 0.0, %v3218
  %3223 = vrot.lane.b32.xlu0 %v3219, 32
  %v3224 = vpop.permute.xlu0 %3223
  %3225 = vrot.lane.b32.xlu0 %v3220, 32
  %v3226 = vpop.permute.xlu0 %3225
  %v3229 = vsel %vm195, %v1090, %v3224
  %v3230 = vsel %vm195, %v1091, %v3226
  %v3232 = vsel %vm2671, %v3229, 0
  %v3235 = vsel %vm2671, %v3230, 0
  %3237 = vmatprep.subr.mxu0 0.0
  %3238 = vmatpush1.msra.mxu0 %v2663
  %3239 = vmatprep.subr.mxu0 0.0
  %3240 = vmatpush1.msra.mxu0 %v2664
  %3241 = vmatprep.subr.mxu0 0.0
  %3242 = vmatpush1.msra.mxu0 %v2665
  %3243 = vmatprep.subr.mxu0 0.0
  %3244 = vmatpush1.msra.mxu0 %v2666
  %3245 = vmatprep.subr.mxu0 0.0
  %3246 = vmatpush1.msra.mxu0 %v2667
  %3247 = vmatprep.subr.mxu0 0.0
  %3248 = vmatpush1.msra.mxu0 %v2668
  %3249 = vmatprep.subr.mxu0 0.0
  %3250 = vmatpush1.msra.mxu0 %v2669
  %3251 = vmatprep.subr.mxu0 0.0
  %3252 = vmatpush1.msra.mxu0 %v2670
  %3253 = vmatprep.subr.mxu0 0.0
  %3254 = vmatpush1.msra.mxu0 0.0
  %3255 = vmatprep.subr.mxu0 0.0
  %3256 = vmatpush1.msra.mxu0 0.0
  %3257 = vmatprep.subr.mxu0 0.0
  %3258 = vmatpush1.msra.mxu0 0.0
  %3259 = vmatprep.subr.mxu0 0.0
  %3260 = vmatpush1.msra.mxu0 0.0
  %3261 = vmatprep.subr.mxu0 0.0
  %3262 = vmatpush1.msra.mxu0 0.0
  %3263 = vmatprep.subr.mxu0 0.0
  %3264 = vmatpush1.msra.mxu0 0.0
  %3265 = vmatprep.subr.mxu0 0.0
  %3266 = vmatpush1.msra.mxu0 0.0
  %3267 = vmatprep.subr.mxu0 0.0
  %3268 = vmatpush1.msra.mxu0 0.0
  %3269 = vmatprep.subr.mxu0 0.0
  %3270 = vmatpush1.msra.mxu0 0.0
  %3271 = vmatprep.subr.mxu0 0.0
  %3272 = vmatpush1.msra.mxu0 0.0
  %3273 = vmatprep.subr.mxu0 0.0
  %3274 = vmatpush1.msra.mxu0 0.0
  %3275 = vmatprep.subr.mxu0 0.0
  %3276 = vmatpush1.msra.mxu0 0.0
  %3277 = vmatprep.subr.mxu0 0.0
  %3278 = vmatpush1.msra.mxu0 0.0
  %3279 = vmatprep.subr.mxu0 0.0
  %3280 = vmatpush1.msra.mxu0 0.0
  %3281 = vmatprep.subr.mxu0 0.0
  %3282 = vmatpush1.msra.mxu0 0.0
  %3283 = vmatprep.subr.mxu0 0.0
  %3284 = vmatpush1.msra.mxu0 0.0
  %3285 = vmatprep.subr.mxu0 0.0
  %3286 = vmatpush1.msra.mxu0 0.0
  %3287 = vmatprep.subr.mxu0 0.0
  %3288 = vmatpush1.msra.mxu0 0.0
  %3289 = vmatprep.subr.mxu0 0.0
  %3290 = vmatpush1.msra.mxu0 0.0
  %3291 = vmatprep.subr.mxu0 0.0
  %3292 = vmatpush1.msra.mxu0 0.0
  %3293 = vmatprep.subr.mxu0 0.0
  %3294 = vmatpush1.msra.mxu0 0.0
  %3295 = vmatprep.subr.mxu0 0.0
  %3296 = vmatpush1.msra.mxu0 0.0
  %3297 = vmatprep.subr.mxu0 0.0
  %3298 = vmatpush1.msra.mxu0 0.0
  %3299 = vmatprep.subr.mxu0 0.0
  %3300 = vmatpush1.msra.mxu0 0.0
  %3301 = vmatprep.mubr.f32.mxu0 0.0
  %3302 = vmatmul.mubr.f32.gmra.mrb[0].mxu0 %v3232
  %v3303 = vpop.f32.mrb[0].mxu0
  %v3304 = vadd.f32 0.0, %v3303
  %v3305 = vpop.f32.mrb[0].mxu0
  %3306 = vmatprep.mubr.f32.mxu0 0.0
  %3307 = vmatmul.mubr.f32.gmra.mrb[0].mxu0 %v3235
  %v3308 = vpop.f32.mrb[0].mxu0
  %v3309 = vadd.f32 0.0, %v3308
  %v3310 = vpop.f32.mrb[0].mxu0
  %3311 = vdwg.mxu0
  %v3313 = vsel %vm2061, %v3202, 0
  %v3316 = vsel %vm2061, %v3203, 0
  %3318 = vmatprep.subr.mxu0 0.0
  %3319 = vmatpush1.msra.mxu0 %v3193
  %3320 = vmatprep.subr.mxu0 0.0
  %3321 = vmatpush1.msra.mxu0 %v3198
  %3322 = vmatprep.subr.mxu0 0.0
  %3323 = vmatpush1.msra.mxu0 0.0
  %3324 = vmatprep.subr.mxu0 0.0
  %3325 = vmatpush1.msra.mxu0 0.0
  %3326 = vmatprep.subr.mxu0 0.0
  %3327 = vmatpush1.msra.mxu0 0.0
  %3328 = vmatprep.subr.mxu0 0.0
  %3329 = vmatpush1.msra.mxu0 0.0
  %3330 = vmatprep.subr.mxu0 0.0
  %3331 = vmatpush1.msra.mxu0 0.0
  %3332 = vmatprep.subr.mxu0 0.0
  %3333 = vmatpush1.msra.mxu0 0.0
  %3334 = vmatprep.subr.mxu0 0.0
  %3335 = vmatpush1.msra.mxu0 0.0
  %3336 = vmatprep.subr.mxu0 0.0
  %3337 = vmatpush1.msra.mxu0 0.0
  %3338 = vmatprep.subr.mxu0 0.0
  %3339 = vmatpush1.msra.mxu0 0.0
  %3340 = vmatprep.subr.mxu0 0.0
  %3341 = vmatpush1.msra.mxu0 0.0
  %3342 = vmatprep.subr.mxu0 0.0
  %3343 = vmatpush1.msra.mxu0 0.0
  %3344 = vmatprep.subr.mxu0 0.0
  %3345 = vmatpush1.msra.mxu0 0.0
  %3346 = vmatprep.subr.mxu0 0.0
  %3347 = vmatpush1.msra.mxu0 0.0
  %3348 = vmatprep.subr.mxu0 0.0
  %3349 = vmatpush1.msra.mxu0 0.0
  %3350 = vmatprep.subr.mxu0 0.0
  %3351 = vmatpush1.msra.mxu0 0.0
  %3352 = vmatprep.subr.mxu0 0.0
  %3353 = vmatpush1.msra.mxu0 0.0
  %3354 = vmatprep.subr.mxu0 0.0
  %3355 = vmatpush1.msra.mxu0 0.0
  %3356 = vmatprep.subr.mxu0 0.0
  %3357 = vmatpush1.msra.mxu0 0.0
  %3358 = vmatprep.subr.mxu0 0.0
  %3359 = vmatpush1.msra.mxu0 0.0
  %3360 = vmatprep.subr.mxu0 0.0
  %3361 = vmatpush1.msra.mxu0 0.0
  %3362 = vmatprep.subr.mxu0 0.0
  %3363 = vmatpush1.msra.mxu0 0.0
  %3364 = vmatprep.subr.mxu0 0.0
  %3365 = vmatpush1.msra.mxu0 0.0
  %3366 = vmatprep.subr.mxu0 0.0
  %3367 = vmatpush1.msra.mxu0 0.0
  %3368 = vmatprep.subr.mxu0 0.0
  %3369 = vmatpush1.msra.mxu0 0.0
  %3370 = vmatprep.subr.mxu0 0.0
  %3371 = vmatpush1.msra.mxu0 0.0
  %3372 = vmatprep.subr.mxu0 0.0
  %3373 = vmatpush1.msra.mxu0 0.0
  %3374 = vmatprep.subr.mxu0 0.0
  %3375 = vmatpush1.msra.mxu0 0.0
  %3376 = vmatprep.subr.mxu0 0.0
  %3377 = vmatpush1.msra.mxu0 0.0
  %3378 = vmatprep.subr.mxu0 0.0
  %3379 = vmatpush1.msra.mxu0 0.0
  %3380 = vmatprep.subr.mxu0 0.0
  %3381 = vmatpush1.msra.mxu0 0.0
  %3382 = vmatprep.mubr.f32.mxu0 0.0
  %3383 = vmatmul.mubr.f32.gmra.mrb[0].mxu0 %v3313
  %v3384 = vpop.f32.mrb[0].mxu0
  %v3385 = vadd.f32 %v3304, %v3384
  %v3386 = vpop.f32.mrb[0].mxu0
  %3387 = vmatprep.mubr.f32.mxu0 0.0
  %3388 = vmatmul.mubr.f32.gmra.mrb[0].mxu0 %v3316
  %v3389 = vpop.f32.mrb[0].mxu0
  %v3390 = vadd.f32 %v3309, %v3389
  %v3391 = vpop.f32.mrb[0].mxu0
  %3392 = vdwg.mxu0
  %v3393 = vadd.f32 %v3385, %v2838
  %v3394 = vadd.f32 %v3390, %v2838
  %v3395 = vadd.f32 %v1090, %v3393
  %v3396 = vadd.f32 %v1091, %v3394
  %s3397 = scalar_lea.vmem %s6, 64
  %v3398 = vld [vmem:[%s3397] sm:$0xff]
  %v3399 = vld [vmem:[%s3397 + $0x8] sm:$0xff]
  %v3401 = vsel %vm2061, %v3398, 0
  %v3404 = vsel %vm2061, %v3399, 0
  %3406 = vmatprep.subr.mxu0 0.0
  %3407 = vmatpush1.msra.mxu0 %v2541
  %3408 = vmatprep.subr.mxu0 0.0
  %3409 = vmatpush1.msra.mxu0 %v2542
  %3410 = vmatprep.subr.mxu0 0.0
  %3411 = vmatpush1.msra.mxu0 0.0
  %3412 = vmatprep.subr.mxu0 0.0
  %3413 = vmatpush1.msra.mxu0 0.0
  %3414 = vmatprep.subr.mxu0 0.0
  %3415 = vmatpush1.msra.mxu0 0.0
  %3416 = vmatprep.subr.mxu0 0.0
  %3417 = vmatpush1.msra.mxu0 0.0
  %3418 = vmatprep.subr.mxu0 0.0
  %3419 = vmatpush1.msra.mxu0 0.0
  %3420 = vmatprep.subr.mxu0 0.0
  %3421 = vmatpush1.msra.mxu0 0.0
  %3422 = vmatprep.subr.mxu0 0.0
  %3423 = vmatpush1.msra.mxu0 0.0
  %3424 = vmatprep.subr.mxu0 0.0
  %3425 = vmatpush1.msra.mxu0 0.0
  %3426 = vmatprep.subr.mxu0 0.0
  %3427 = vmatpush1.msra.mxu0 0.0
  %3428 = vmatprep.subr.mxu0 0.0
  %3429 = vmatpush1.msra.mxu0 0.0
  %3430 = vmatprep.subr.mxu0 0.0
  %3431 = vmatpush1.msra.mxu0 0.0
  %3432 = vmatprep.subr.mxu0 0.0
  %3433 = vmatpush1.msra.mxu0 0.0
  %3434 = vmatprep.subr.mxu0 0.0
  %3435 = vmatpush1.msra.mxu0 0.0
  %3436 = vmatprep.subr.mxu0 0.0
  %3437 = vmatpush1.msra.mxu0 0.0
  %3438 = vmatprep.subr.mxu0 0.0
  %3439 = vmatpush1.msra.mxu0 0.0
  %3440 = vmatprep.subr.mxu0 0.0
  %3441 = vmatpush1.msra.mxu0 0.0
  %3442 = vmatprep.subr.mxu0 0.0
  %3443 = vmatpush1.msra.mxu0 0.0
  %3444 = vmatprep.subr.mxu0 0.0
  %3445 = vmatpush1.msra.mxu0 0.0
  %3446 = vmatprep.subr.mxu0 0.0
  %3447 = vmatpush1.msra.mxu0 0.0
  %3448 = vmatprep.subr.mxu0 0.0
  %3449 = vmatpush1.msra.mxu0 0.0
  %3450 = vmatprep.subr.mxu0 0.0
  %3451 = vmatpush1.msra.mxu0 0.0
  %3452 = vmatprep.subr.mxu0 0.0
  %3453 = vmatpush1.msra.mxu0 0.0
  %3454 = vmatprep.subr.mxu0 0.0
  %3455 = vmatpush1.msra.mxu0 0.0
  %3456 = vmatprep.subr.mxu0 0.0
  %3457 = vmatpush1.msra.mxu0 0.0
  %3458 = vmatprep.subr.mxu0 0.0
  %3459 = vmatpush1.msra.mxu0 0.0
  %3460 = vmatprep.subr.mxu0 0.0
  %3461 = vmatpush1.msra.mxu0 0.0
  %3462 = vmatprep.subr.mxu0 0.0
  %3463 = vmatpush1.msra.mxu0 0.0
  %3464 = vmatprep.subr.mxu0 0.0
  %3465 = vmatpush1.msra.mxu0 0.0
  %3466 = vmatprep.subr.mxu0 0.0
  %3467 = vmatpush1.msra.mxu0 0.0
  %3468 = vmatprep.subr.mxu0 0.0
  %3469 = vmatpush1.msra.mxu0 0.0
  %3470 = vmatprep.mubr.f32.mxu0 0.0
  %3471 = vmatmul.mubr.f32.gmra.mrb[0].mxu0 %v3401
  %v3472 = vpop.f32.mrb[0].mxu0
  %v3473 = vadd.f32 0.0, %v3472
  %v3474 = vpop.f32.mrb[0].mxu0
  %3475 = vmatprep.mubr.f32.mxu0 0.0
  %3476 = vmatmul.mubr.f32.gmra.mrb[0].mxu0 %v3404
  %v3477 = vpop.f32.mrb[0].mxu0
  %v3478 = vadd.f32 0.0, %v3477
  %v3479 = vpop.f32.mrb[0].mxu0
  %3480 = vdwg.mxu0
  %3483 = vrot.lane.b32.xlu0 %v409, 32
  %v3484 = vpop.permute.xlu0 %3483
  %3485 = vrot.lane.b32.xlu0 %v410, 32
  %v3486 = vpop.permute.xlu0 %3485
  %v3489 = vsel %vm195, %v3473, %v3484
  %v3490 = vsel %vm195, %v3478, %v3486
  %v3491 = vld [vmem:[#allocation2] sm:$0xff]
  %v3492 = vld [vmem:[#allocation2 + $0x8] sm:$0xff]
  %v3493 = vld [vmem:[#allocation2 + $0x10] sm:$0xff]
  %v3494 = vld [vmem:[#allocation2 + $0x18] sm:$0xff]
  %v3495 = vld [vmem:[#allocation2 + $0x20] sm:$0xff]
  %v3496 = vld [vmem:[#allocation2 + $0x28] sm:$0xff]
  %v3497 = vld [vmem:[#allocation2 + $0x30] sm:$0xff]
  %v3498 = vld [vmem:[#allocation2 + $0x38] sm:$0xff]
  %v3499 = vld [vmem:[#allocation2 + $0x40] sm:$0x1]
  %v3500 = vlaneseq
  %v3501 = vshrl.u32 %v3500, 7
  %v3502 = vsub.s32 0, %v3501
  %v3503 = vrot.slane %v3499, %v3502
  %v3505 = vsel %vm2671, %v3489, 0
  %v3508 = vsel %vm2671, %v3490, 0
  %3510 = vmatprep.subr.mxu0 0.0
  %3511 = vmatpush1.msra.mxu0 %v3491
  %3512 = vmatprep.subr.mxu0 0.0
  %3513 = vmatpush1.msra.mxu0 %v3492
  %3514 = vmatprep.subr.mxu0 0.0
  %3515 = vmatpush1.msra.mxu0 %v3493
  %3516 = vmatprep.subr.mxu0 0.0
  %3517 = vmatpush1.msra.mxu0 %v3494
  %3518 = vmatprep.subr.mxu0 0.0
  %3519 = vmatpush1.msra.mxu0 %v3495
  %3520 = vmatprep.subr.mxu0 0.0
  %3521 = vmatpush1.msra.mxu0 %v3496
  %3522 = vmatprep.subr.mxu0 0.0
  %3523 = vmatpush1.msra.mxu0 %v3497
  %3524 = vmatprep.subr.mxu0 0.0
  %3525 = vmatpush1.msra.mxu0 %v3498
  %3526 = vmatprep.subr.mxu0 0.0
  %3527 = vmatpush1.msra.mxu0 0.0
  %3528 = vmatprep.subr.mxu0 0.0
  %3529 = vmatpush1.msra.mxu0 0.0
  %3530 = vmatprep.subr.mxu0 0.0
  %3531 = vmatpush1.msra.mxu0 0.0
  %3532 = vmatprep.subr.mxu0 0.0
  %3533 = vmatpush1.msra.mxu0 0.0
  %3534 = vmatprep.subr.mxu0 0.0
  %3535 = vmatpush1.msra.mxu0 0.0
  %3536 = vmatprep.subr.mxu0 0.0
  %3537 = vmatpush1.msra.mxu0 0.0
  %3538 = vmatprep.subr.mxu0 0.0
  %3539 = vmatpush1.msra.mxu0 0.0
  %3540 = vmatprep.subr.mxu0 0.0
  %3541 = vmatpush1.msra.mxu0 0.0
  %3542 = vmatprep.subr.mxu0 0.0
  %3543 = vmatpush1.msra.mxu0 0.0
  %3544 = vmatprep.subr.mxu0 0.0
  %3545 = vmatpush1.msra.mxu0 0.0
  %3546 = vmatprep.subr.mxu0 0.0
  %3547 = vmatpush1.msra.mxu0 0.0
  %3548 = vmatprep.subr.mxu0 0.0
  %3549 = vmatpush1.msra.mxu0 0.0
  %3550 = vmatprep.subr.mxu0 0.0
  %3551 = vmatpush1.msra.mxu0 0.0
  %3552 = vmatprep.subr.mxu0 0.0
  %3553 = vmatpush1.msra.mxu0 0.0
  %3554 = vmatprep.subr.mxu0 0.0
  %3555 = vmatpush1.msra.mxu0 0.0
  %3556 = vmatprep.subr.mxu0 0.0
  %3557 = vmatpush1.msra.mxu0 0.0
  %3558 = vmatprep.subr.mxu0 0.0
  %3559 = vmatpush1.msra.mxu0 0.0
  %3560 = vmatprep.subr.mxu0 0.0
  %3561 = vmatpush1.msra.mxu0 0.0
  %3562 = vmatprep.subr.mxu0 0.0
  %3563 = vmatpush1.msra.mxu0 0.0
  %3564 = vmatprep.subr.mxu0 0.0
  %3565 = vmatpush1.msra.mxu0 0.0
  %3566 = vmatprep.subr.mxu0 0.0
  %3567 = vmatpush1.msra.mxu0 0.0
  %3568 = vmatprep.subr.mxu0 0.0
  %3569 = vmatpush1.msra.mxu0 0.0
  %3570 = vmatprep.subr.mxu0 0.0
  %3571 = vmatpush1.msra.mxu0 0.0
  %3572 = vmatprep.subr.mxu0 0.0
  %3573 = vmatpush1.msra.mxu0 0.0
  %3574 = vmatprep.mubr.f32.mxu0 0.0
  %3575 = vmatmul.mubr.f32.gmra.mrb[0].mxu0 %v3505
  %v3576 = vpop.f32.mrb[0].mxu0
  %v3577 = vadd.f32 %v3503, %v3576
  %v3578 = vpop.f32.mrb[0].mxu0
  %3579 = vmatprep.mubr.f32.mxu0 0.0
  %3580 = vmatmul.mubr.f32.gmra.mrb[0].mxu0 %v3508
  %v3581 = vpop.f32.mrb[0].mxu0
  %v3582 = vadd.f32 %v3503, %v3581
  %v3583 = vpop.f32.mrb[0].mxu0
  %3584 = vdwg.mxu0
  %v3585 = vmul.f32 %v409, 0.8
  %v3586 = vmul.f32 %v410, 0.8
  %v3587 = vmul.f32 %v3577, 0.2
  %v3588 = vmul.f32 %v3582, 0.2
  %v3589 = vadd.f32 %v3585, %v3587
  %v3590 = vadd.f32 %v3586, %v3588
  %s3591 = scalar_lea.vmem %s6, 80
  %v3592 = vld [vmem:[%s3591] sm:$0xff]
  %v3593 = vld [vmem:[%s3591 + $0x8] sm:$0xff]
  %v3595 = vsel %vm2061, %v3592, 0
  %v3598 = vsel %vm2061, %v3593, 0
  %3600 = vmatprep.subr.mxu0 0.0
  %3601 = vmatpush1.msra.mxu0 %v2541
  %3602 = vmatprep.subr.mxu0 0.0
  %3603 = vmatpush1.msra.mxu0 %v2542
  %3604 = vmatprep.subr.mxu0 0.0
  %3605 = vmatpush1.msra.mxu0 0.0
  %3606 = vmatprep.subr.mxu0 0.0
  %3607 = vmatpush1.msra.mxu0 0.0
  %3608 = vmatprep.subr.mxu0 0.0
  %3609 = vmatpush1.msra.mxu0 0.0
  %3610 = vmatprep.subr.mxu0 0.0
  %3611 = vmatpush1.msra.mxu0 0.0
  %3612 = vmatprep.subr.mxu0 0.0
  %3613 = vmatpush1.msra.mxu0 0.0
  %3614 = vmatprep.subr.mxu0 0.0
  %3615 = vmatpush1.msra.mxu0 0.0
  %3616 = vmatprep.subr.mxu0 0.0
  %3617 = vmatpush1.msra.mxu0 0.0
  %3618 = vmatprep.subr.mxu0 0.0
  %3619 = vmatpush1.msra.mxu0 0.0
  %3620 = vmatprep.subr.mxu0 0.0
  %3621 = vmatpush1.msra.mxu0 0.0
  %3622 = vmatprep.subr.mxu0 0.0
  %3623 = vmatpush1.msra.mxu0 0.0
  %3624 = vmatprep.subr.mxu0 0.0
  %3625 = vmatpush1.msra.mxu0 0.0
  %3626 = vmatprep.subr.mxu0 0.0
  %3627 = vmatpush1.msra.mxu0 0.0
  %3628 = vmatprep.subr.mxu0 0.0
  %3629 = vmatpush1.msra.mxu0 0.0
  %3630 = vmatprep.subr.mxu0 0.0
  %3631 = vmatpush1.msra.mxu0 0.0
  %3632 = vmatprep.subr.mxu0 0.0
  %3633 = vmatpush1.msra.mxu0 0.0
  %3634 = vmatprep.subr.mxu0 0.0
  %3635 = vmatpush1.msra.mxu0 0.0
  %3636 = vmatprep.subr.mxu0 0.0
  %3637 = vmatpush1.msra.mxu0 0.0
  %3638 = vmatprep.subr.mxu0 0.0
  %3639 = vmatpush1.msra.mxu0 0.0
  %3640 = vmatprep.subr.mxu0 0.0
  %3641 = vmatpush1.msra.mxu0 0.0
  %3642 = vmatprep.subr.mxu0 0.0
  %3643 = vmatpush1.msra.mxu0 0.0
  %3644 = vmatprep.subr.mxu0 0.0
  %3645 = vmatpush1.msra.mxu0 0.0
  %3646 = vmatprep.subr.mxu0 0.0
  %3647 = vmatpush1.msra.mxu0 0.0
  %3648 = vmatprep.subr.mxu0 0.0
  %3649 = vmatpush1.msra.mxu0 0.0
  %3650 = vmatprep.subr.mxu0 0.0
  %3651 = vmatpush1.msra.mxu0 0.0
  %3652 = vmatprep.subr.mxu0 0.0
  %3653 = vmatpush1.msra.mxu0 0.0
  %3654 = vmatprep.subr.mxu0 0.0
  %3655 = vmatpush1.msra.mxu0 0.0
  %3656 = vmatprep.subr.mxu0 0.0
  %3657 = vmatpush1.msra.mxu0 0.0
  %3658 = vmatprep.subr.mxu0 0.0
  %3659 = vmatpush1.msra.mxu0 0.0
  %3660 = vmatprep.subr.mxu0 0.0
  %3661 = vmatpush1.msra.mxu0 0.0
  %3662 = vmatprep.subr.mxu0 0.0
  %3663 = vmatpush1.msra.mxu0 0.0
  %3664 = vmatprep.mubr.f32.mxu0 0.0
  %3665 = vmatmul.mubr.f32.gmra.mrb[0].mxu0 %v3595
  %v3666 = vpop.f32.mrb[0].mxu0
  %v3667 = vadd.f32 0.0, %v3666
  %v3668 = vpop.f32.mrb[0].mxu0
  %3669 = vmatprep.mubr.f32.mxu0 0.0
  %3670 = vmatmul.mubr.f32.gmra.mrb[0].mxu0 %v3598
  %v3671 = vpop.f32.mrb[0].mxu0
  %v3672 = vadd.f32 0.0, %v3671
  %v3673 = vpop.f32.mrb[0].mxu0
  %3674 = vdwg.mxu0
  %3677 = vrot.lane.b32.xlu0 %v2541, 32
  %v3678 = vpop.permute.xlu0 %3677
  %3679 = vrot.lane.b32.xlu0 %v2542, 32
  %v3680 = vpop.permute.xlu0 %3679
  %v3683 = vsel %vm195, %v3667, %v3678
  %v3684 = vsel %vm195, %v3672, %v3680
  %v3686 = vsel %vm2671, %v3683, 0
  %v3689 = vsel %vm2671, %v3684, 0
  %3691 = vmatprep.subr.mxu0 0.0
  %3692 = vmatpush1.msra.mxu0 %v3491
  %3693 = vmatprep.subr.mxu0 0.0
  %3694 = vmatpush1.msra.mxu0 %v3492
  %3695 = vmatprep.subr.mxu0 0.0
  %3696 = vmatpush1.msra.mxu0 %v3493
  %3697 = vmatprep.subr.mxu0 0.0
  %3698 = vmatpush1.msra.mxu0 %v3494
  %3699 = vmatprep.subr.mxu0 0.0
  %3700 = vmatpush1.msra.mxu0 %v3495
  %3701 = vmatprep.subr.mxu0 0.0
  %3702 = vmatpush1.msra.mxu0 %v3496
  %3703 = vmatprep.subr.mxu0 0.0
  %3704 = vmatpush1.msra.mxu0 %v3497
  %3705 = vmatprep.subr.mxu0 0.0
  %3706 = vmatpush1.msra.mxu0 %v3498
  %3707 = vmatprep.subr.mxu0 0.0
  %3708 = vmatpush1.msra.mxu0 0.0
  %3709 = vmatprep.subr.mxu0 0.0
  %3710 = vmatpush1.msra.mxu0 0.0
  %3711 = vmatprep.subr.mxu0 0.0
  %3712 = vmatpush1.msra.mxu0 0.0
  %3713 = vmatprep.subr.mxu0 0.0
  %3714 = vmatpush1.msra.mxu0 0.0
  %3715 = vmatprep.subr.mxu0 0.0
  %3716 = vmatpush1.msra.mxu0 0.0
  %3717 = vmatprep.subr.mxu0 0.0
  %3718 = vmatpush1.msra.mxu0 0.0
  %3719 = vmatprep.subr.mxu0 0.0
  %3720 = vmatpush1.msra.mxu0 0.0
  %3721 = vmatprep.subr.mxu0 0.0
  %3722 = vmatpush1.msra.mxu0 0.0
  %3723 = vmatprep.subr.mxu0 0.0
  %3724 = vmatpush1.msra.mxu0 0.0
  %3725 = vmatprep.subr.mxu0 0.0
  %3726 = vmatpush1.msra.mxu0 0.0
  %3727 = vmatprep.subr.mxu0 0.0
  %3728 = vmatpush1.msra.mxu0 0.0
  %3729 = vmatprep.subr.mxu0 0.0
  %3730 = vmatpush1.msra.mxu0 0.0
  %3731 = vmatprep.subr.mxu0 0.0
  %3732 = vmatpush1.msra.mxu0 0.0
  %3733 = vmatprep.subr.mxu0 0.0
  %3734 = vmatpush1.msra.mxu0 0.0
  %3735 = vmatprep.subr.mxu0 0.0
  %3736 = vmatpush1.msra.mxu0 0.0
  %3737 = vmatprep.subr.mxu0 0.0
  %3738 = vmatpush1.msra.mxu0 0.0
  %3739 = vmatprep.subr.mxu0 0.0
  %3740 = vmatpush1.msra.mxu0 0.0
  %3741 = vmatprep.subr.mxu0 0.0
  %3742 = vmatpush1.msra.mxu0 0.0
  %3743 = vmatprep.subr.mxu0 0.0
  %3744 = vmatpush1.msra.mxu0 0.0
  %3745 = vmatprep.subr.mxu0 0.0
  %3746 = vmatpush1.msra.mxu0 0.0
  %3747 = vmatprep.subr.mxu0 0.0
  %3748 = vmatpush1.msra.mxu0 0.0
  %3749 = vmatprep.subr.mxu0 0.0
  %3750 = vmatpush1.msra.mxu0 0.0
  %3751 = vmatprep.subr.mxu0 0.0
  %3752 = vmatpush1.msra.mxu0 0.0
  %3753 = vmatprep.subr.mxu0 0.0
  %3754 = vmatpush1.msra.mxu0 0.0
  %3755 = vmatprep.mubr.f32.mxu0 0.0
  %3756 = vmatmul.mubr.f32.gmra.mrb[0].mxu0 %v3686
  %v3757 = vpop.f32.mrb[0].mxu0
  %v3758 = vadd.f32 %v3503, %v3757
  %v3759 = vpop.f32.mrb[0].mxu0
  %3760 = vmatprep.mubr.f32.mxu0 0.0
  %3761 = vmatmul.mubr.f32.gmra.mrb[0].mxu0 %v3689
  %v3762 = vpop.f32.mrb[0].mxu0
  %v3763 = vadd.f32 %v3503, %v3762
  %v3764 = vpop.f32.mrb[0].mxu0
  %3765 = vdwg.mxu0
  %v3766 = vmul.f32 %v2541, 0.8
  %v3767 = vmul.f32 %v2542, 0.8
  %v3768 = vmul.f32 %v3758, 0.2
  %v3769 = vmul.f32 %v3763, 0.2
  %v3770 = vadd.f32 %v3766, %v3768
  %v3771 = vadd.f32 %v3767, %v3769
  %s3772 = scalar_lea.vmem %s6, 96
  %v3773 = vld [vmem:[%s3772] sm:$0xff]
  %v3774 = vld [vmem:[%s3772 + $0x8] sm:$0xff]
  %v3776 = vsel %vm2061, %v3773, 0
  %v3779 = vsel %vm2061, %v3774, 0
  %3781 = vmatprep.subr.mxu0 0.0
  %3782 = vmatpush1.msra.mxu0 %v1771
  %3783 = vmatprep.subr.mxu0 0.0
  %3784 = vmatpush1.msra.mxu0 %v1772
  %3785 = vmatprep.subr.mxu0 0.0
  %3786 = vmatpush1.msra.mxu0 0.0
  %3787 = vmatprep.subr.mxu0 0.0
  %3788 = vmatpush1.msra.mxu0 0.0
  %3789 = vmatprep.subr.mxu0 0.0
  %3790 = vmatpush1.msra.mxu0 0.0
  %3791 = vmatprep.subr.mxu0 0.0
  %3792 = vmatpush1.msra.mxu0 0.0
  %3793 = vmatprep.subr.mxu0 0.0
  %3794 = vmatpush1.msra.mxu0 0.0
  %3795 = vmatprep.subr.mxu0 0.0
  %3796 = vmatpush1.msra.mxu0 0.0
  %3797 = vmatprep.subr.mxu0 0.0
  %3798 = vmatpush1.msra.mxu0 0.0
  %3799 = vmatprep.subr.mxu0 0.0
  %3800 = vmatpush1.msra.mxu0 0.0
  %3801 = vmatprep.subr.mxu0 0.0
  %3802 = vmatpush1.msra.mxu0 0.0
  %3803 = vmatprep.subr.mxu0 0.0
  %3804 = vmatpush1.msra.mxu0 0.0
  %3805 = vmatprep.subr.mxu0 0.0
  %3806 = vmatpush1.msra.mxu0 0.0
  %3807 = vmatprep.subr.mxu0 0.0
  %3808 = vmatpush1.msra.mxu0 0.0
  %3809 = vmatprep.subr.mxu0 0.0
  %3810 = vmatpush1.msra.mxu0 0.0
  %3811 = vmatprep.subr.mxu0 0.0
  %3812 = vmatpush1.msra.mxu0 0.0
  %3813 = vmatprep.subr.mxu0 0.0
  %3814 = vmatpush1.msra.mxu0 0.0
  %3815 = vmatprep.subr.mxu0 0.0
  %3816 = vmatpush1.msra.mxu0 0.0
  %3817 = vmatprep.subr.mxu0 0.0
  %3818 = vmatpush1.msra.mxu0 0.0
  %3819 = vmatprep.subr.mxu0 0.0
  %3820 = vmatpush1.msra.mxu0 0.0
  %3821 = vmatprep.subr.mxu0 0.0
  %3822 = vmatpush1.msra.mxu0 0.0
  %3823 = vmatprep.subr.mxu0 0.0
  %3824 = vmatpush1.msra.mxu0 0.0
  %3825 = vmatprep.subr.mxu0 0.0
  %3826 = vmatpush1.msra.mxu0 0.0
  %3827 = vmatprep.subr.mxu0 0.0
  %3828 = vmatpush1.msra.mxu0 0.0
  %3829 = vmatprep.subr.mxu0 0.0
  %3830 = vmatpush1.msra.mxu0 0.0
  %3831 = vmatprep.subr.mxu0 0.0
  %3832 = vmatpush1.msra.mxu0 0.0
  %3833 = vmatprep.subr.mxu0 0.0
  %3834 = vmatpush1.msra.mxu0 0.0
  %3835 = vmatprep.subr.mxu0 0.0
  %3836 = vmatpush1.msra.mxu0 0.0
  %3837 = vmatprep.subr.mxu0 0.0
  %3838 = vmatpush1.msra.mxu0 0.0
  %3839 = vmatprep.subr.mxu0 0.0
  %3840 = vmatpush1.msra.mxu0 0.0
  %3841 = vmatprep.subr.mxu0 0.0
  %3842 = vmatpush1.msra.mxu0 0.0
  %3843 = vmatprep.subr.mxu0 0.0
  %3844 = vmatpush1.msra.mxu0 0.0
  %3845 = vmatprep.mubr.f32.mxu0 0.0
  %3846 = vmatmul.mubr.f32.gmra.mrb[0].mxu0 %v3776
  %v3847 = vpop.f32.mrb[0].mxu0
  %v3848 = vadd.f32 0.0, %v3847
  %v3849 = vpop.f32.mrb[0].mxu0
  %3850 = vmatprep.mubr.f32.mxu0 0.0
  %3851 = vmatmul.mubr.f32.gmra.mrb[0].mxu0 %v3779
  %v3852 = vpop.f32.mrb[0].mxu0
  %v3853 = vadd.f32 0.0, %v3852
  %v3854 = vpop.f32.mrb[0].mxu0
  %3855 = vdwg.mxu0
  %3856 = vrot.lane.b32.xlu0 %v3118, 32
  %v3857 = vpop.permute.xlu0 %3856
  %3858 = vrot.lane.b32.xlu0 %v3119, 32
  %v3859 = vpop.permute.xlu0 %3858
  %v3862 = vsel %vm195, %v3848, %v3857
  %v3863 = vsel %vm195, %v3853, %v3859
  %v3865 = vsel %vm2671, %v3862, 0
  %v3868 = vsel %vm2671, %v3863, 0
  %3870 = vmatprep.subr.mxu0 0.0
  %3871 = vmatpush1.msra.mxu0 %v3491
  %3872 = vmatprep.subr.mxu0 0.0
  %3873 = vmatpush1.msra.mxu0 %v3492
  %3874 = vmatprep.subr.mxu0 0.0
  %3875 = vmatpush1.msra.mxu0 %v3493
  %3876 = vmatprep.subr.mxu0 0.0
  %3877 = vmatpush1.msra.mxu0 %v3494
  %3878 = vmatprep.subr.mxu0 0.0
  %3879 = vmatpush1.msra.mxu0 %v3495
  %3880 = vmatprep.subr.mxu0 0.0
  %3881 = vmatpush1.msra.mxu0 %v3496
  %3882 = vmatprep.subr.mxu0 0.0
  %3883 = vmatpush1.msra.mxu0 %v3497
  %3884 = vmatprep.subr.mxu0 0.0
  %3885 = vmatpush1.msra.mxu0 %v3498
  %3886 = vmatprep.subr.mxu0 0.0
  %3887 = vmatpush1.msra.mxu0 0.0
  %3888 = vmatprep.subr.mxu0 0.0
  %3889 = vmatpush1.msra.mxu0 0.0
  %3890 = vmatprep.subr.mxu0 0.0
  %3891 = vmatpush1.msra.mxu0 0.0
  %3892 = vmatprep.subr.mxu0 0.0
  %3893 = vmatpush1.msra.mxu0 0.0
  %3894 = vmatprep.subr.mxu0 0.0
  %3895 = vmatpush1.msra.mxu0 0.0
  %3896 = vmatprep.subr.mxu0 0.0
  %3897 = vmatpush1.msra.mxu0 0.0
  %3898 = vmatprep.subr.mxu0 0.0
  %3899 = vmatpush1.msra.mxu0 0.0
  %3900 = vmatprep.subr.mxu0 0.0
  %3901 = vmatpush1.msra.mxu0 0.0
  %3902 = vmatprep.subr.mxu0 0.0
  %3903 = vmatpush1.msra.mxu0 0.0
  %3904 = vmatprep.subr.mxu0 0.0
  %3905 = vmatpush1.msra.mxu0 0.0
  %3906 = vmatprep.subr.mxu0 0.0
  %3907 = vmatpush1.msra.mxu0 0.0
  %3908 = vmatprep.subr.mxu0 0.0
  %3909 = vmatpush1.msra.mxu0 0.0
  %3910 = vmatprep.subr.mxu0 0.0
  %3911 = vmatpush1.msra.mxu0 0.0
  %3912 = vmatprep.subr.mxu0 0.0
  %3913 = vmatpush1.msra.mxu0 0.0
  %3914 = vmatprep.subr.mxu0 0.0
  %3915 = vmatpush1.msra.mxu0 0.0
  %3916 = vmatprep.subr.mxu0 0.0
  %3917 = vmatpush1.msra.mxu0 0.0
  %3918 = vmatprep.subr.mxu0 0.0
  %3919 = vmatpush1.msra.mxu0 0.0
  %3920 = vmatprep.subr.mxu0 0.0
  %3921 = vmatpush1.msra.mxu0 0.0
  %3922 = vmatprep.subr.mxu0 0.0
  %3923 = vmatpush1.msra.mxu0 0.0
  %3924 = vmatprep.subr.mxu0 0.0
  %3925 = vmatpush1.msra.mxu0 0.0
  %3926 = vmatprep.subr.mxu0 0.0
  %3927 = vmatpush1.msra.mxu0 0.0
  %3928 = vmatprep.subr.mxu0 0.0
  %3929 = vmatpush1.msra.mxu0 0.0
  %3930 = vmatprep.subr.mxu0 0.0
  %3931 = vmatpush1.msra.mxu0 0.0
  %3932 = vmatprep.subr.mxu0 0.0
  %3933 = vmatpush1.msra.mxu0 0.0
  %3934 = vmatprep.mubr.f32.mxu0 0.0
  %3935 = vmatmul.mubr.f32.gmra.mrb[0].mxu0 %v3865
  %v3936 = vpop.f32.mrb[0].mxu0
  %v3937 = vadd.f32 %v3503, %v3936
  %v3938 = vpop.f32.mrb[0].mxu0
  %3939 = vmatprep.mubr.f32.mxu0 0.0
  %3940 = vmatmul.mubr.f32.gmra.mrb[0].mxu0 %v3868
  %v3941 = vpop.f32.mrb[0].mxu0
  %v3942 = vadd.f32 %v3503, %v3941
  %v3943 = vpop.f32.mrb[0].mxu0
  %3944 = vdwg.mxu0
  %v3945 = vmul.f32 %v3118, 0.8
  %v3946 = vmul.f32 %v3119, 0.8
  %v3947 = vmul.f32 %v3937, 0.2
  %v3948 = vmul.f32 %v3942, 0.2
  %v3949 = vadd.f32 %v3945, %v3947
  %v3950 = vadd.f32 %v3946, %v3948
  %s3951 = scalar_lea.vmem %s6, 112
  %v3952 = vld [vmem:[%s3951] sm:$0xff]
  %v3953 = vld [vmem:[%s3951 + $0x8] sm:$0xff]
  %v3955 = vsel %vm2061, %v3952, 0
  %v3958 = vsel %vm2061, %v3953, 0
  %3960 = vmatprep.subr.mxu0 0.0
  %3961 = vmatpush1.msra.mxu0 %v1544
  %3962 = vmatprep.subr.mxu0 0.0
  %3963 = vmatpush1.msra.mxu0 %v1545
  %3964 = vmatprep.subr.mxu0 0.0
  %3965 = vmatpush1.msra.mxu0 0.0
  %3966 = vmatprep.subr.mxu0 0.0
  %3967 = vmatpush1.msra.mxu0 0.0
  %3968 = vmatprep.subr.mxu0 0.0
  %3969 = vmatpush1.msra.mxu0 0.0
  %3970 = vmatprep.subr.mxu0 0.0
  %3971 = vmatpush1.msra.mxu0 0.0
  %3972 = vmatprep.subr.mxu0 0.0
  %3973 = vmatpush1.msra.mxu0 0.0
  %3974 = vmatprep.subr.mxu0 0.0
  %3975 = vmatpush1.msra.mxu0 0.0
  %3976 = vmatprep.subr.mxu0 0.0
  %3977 = vmatpush1.msra.mxu0 0.0
  %3978 = vmatprep.subr.mxu0 0.0
  %3979 = vmatpush1.msra.mxu0 0.0
  %3980 = vmatprep.subr.mxu0 0.0
  %3981 = vmatpush1.msra.mxu0 0.0
  %3982 = vmatprep.subr.mxu0 0.0
  %3983 = vmatpush1.msra.mxu0 0.0
  %3984 = vmatprep.subr.mxu0 0.0
  %3985 = vmatpush1.msra.mxu0 0.0
  %3986 = vmatprep.subr.mxu0 0.0
  %3987 = vmatpush1.msra.mxu0 0.0
  %3988 = vmatprep.subr.mxu0 0.0
  %3989 = vmatpush1.msra.mxu0 0.0
  %3990 = vmatprep.subr.mxu0 0.0
  %3991 = vmatpush1.msra.mxu0 0.0
  %3992 = vmatprep.subr.mxu0 0.0
  %3993 = vmatpush1.msra.mxu0 0.0
  %3994 = vmatprep.subr.mxu0 0.0
  %3995 = vmatpush1.msra.mxu0 0.0
  %3996 = vmatprep.subr.mxu0 0.0
  %3997 = vmatpush1.msra.mxu0 0.0
  %3998 = vmatprep.subr.mxu0 0.0
  %3999 = vmatpush1.msra.mxu0 0.0
  %4000 = vmatprep.subr.mxu0 0.0
  %4001 = vmatpush1.msra.mxu0 0.0
  %4002 = vmatprep.subr.mxu0 0.0
  %4003 = vmatpush1.msra.mxu0 0.0
  %4004 = vmatprep.subr.mxu0 0.0
  %4005 = vmatpush1.msra.mxu0 0.0
  %4006 = vmatprep.subr.mxu0 0.0
  %4007 = vmatpush1.msra.mxu0 0.0
  %4008 = vmatprep.subr.mxu0 0.0
  %4009 = vmatpush1.msra.mxu0 0.0
  %4010 = vmatprep.subr.mxu0 0.0
  %4011 = vmatpush1.msra.mxu0 0.0
  %4012 = vmatprep.subr.mxu0 0.0
  %4013 = vmatpush1.msra.mxu0 0.0
  %4014 = vmatprep.subr.mxu0 0.0
  %4015 = vmatpush1.msra.mxu0 0.0
  %4016 = vmatprep.subr.mxu0 0.0
  %4017 = vmatpush1.msra.mxu0 0.0
  %4018 = vmatprep.subr.mxu0 0.0
  %4019 = vmatpush1.msra.mxu0 0.0
  %4020 = vmatprep.subr.mxu0 0.0
  %4021 = vmatpush1.msra.mxu0 0.0
  %4022 = vmatprep.subr.mxu0 0.0
  %4023 = vmatpush1.msra.mxu0 0.0
  %4024 = vmatprep.mubr.f32.mxu0 0.0
  %4025 = vmatmul.mubr.f32.gmra.mrb[0].mxu0 %v3955
  %v4026 = vpop.f32.mrb[0].mxu0
  %v4027 = vadd.f32 0.0, %v4026
  %v4028 = vpop.f32.mrb[0].mxu0
  %4029 = vmatprep.mubr.f32.mxu0 0.0
  %4030 = vmatmul.mubr.f32.gmra.mrb[0].mxu0 %v3958
  %v4031 = vpop.f32.mrb[0].mxu0
  %v4032 = vadd.f32 0.0, %v4031
  %v4033 = vpop.f32.mrb[0].mxu0
  %4034 = vdwg.mxu0
  %4037 = vrot.lane.b32.xlu0 %v3395, 32
  %v4038 = vpop.permute.xlu0 %4037
  %4039 = vrot.lane.b32.xlu0 %v3396, 32
  %v4040 = vpop.permute.xlu0 %4039
  %v4043 = vsel %vm195, %v4027, %v4038
  %v4044 = vsel %vm195, %v4032, %v4040
  %v4046 = vsel %vm2671, %v4043, 0
  %v4049 = vsel %vm2671, %v4044, 0
  %4051 = vmatprep.subr.mxu0 0.0
  %4052 = vmatpush1.msra.mxu0 %v3491
  %4053 = vmatprep.subr.mxu0 0.0
  %4054 = vmatpush1.msra.mxu0 %v3492
  %4055 = vmatprep.subr.mxu0 0.0
  %4056 = vmatpush1.msra.mxu0 %v3493
  %4057 = vmatprep.subr.mxu0 0.0
  %4058 = vmatpush1.msra.mxu0 %v3494
  %4059 = vmatprep.subr.mxu0 0.0
  %4060 = vmatpush1.msra.mxu0 %v3495
  %4061 = vmatprep.subr.mxu0 0.0
  %4062 = vmatpush1.msra.mxu0 %v3496
  %4063 = vmatprep.subr.mxu0 0.0
  %4064 = vmatpush1.msra.mxu0 %v3497
  %4065 = vmatprep.subr.mxu0 0.0
  %4066 = vmatpush1.msra.mxu0 %v3498
  %4067 = vmatprep.subr.mxu0 0.0
  %4068 = vmatpush1.msra.mxu0 0.0
  %4069 = vmatprep.subr.mxu0 0.0
  %4070 = vmatpush1.msra.mxu0 0.0
  %4071 = vmatprep.subr.mxu0 0.0
  %4072 = vmatpush1.msra.mxu0 0.0
  %4073 = vmatprep.subr.mxu0 0.0
  %4074 = vmatpush1.msra.mxu0 0.0
  %4075 = vmatprep.subr.mxu0 0.0
  %4076 = vmatpush1.msra.mxu0 0.0
  %4077 = vmatprep.subr.mxu0 0.0
  %4078 = vmatpush1.msra.mxu0 0.0
  %4079 = vmatprep.subr.mxu0 0.0
  %4080 = vmatpush1.msra.mxu0 0.0
  %4081 = vmatprep.subr.mxu0 0.0
  %4082 = vmatpush1.msra.mxu0 0.0
  %4083 = vmatprep.subr.mxu0 0.0
  %4084 = vmatpush1.msra.mxu0 0.0
  %4085 = vmatprep.subr.mxu0 0.0
  %4086 = vmatpush1.msra.mxu0 0.0
  %4087 = vmatprep.subr.mxu0 0.0
  %4088 = vmatpush1.msra.mxu0 0.0
  %4089 = vmatprep.subr.mxu0 0.0
  %4090 = vmatpush1.msra.mxu0 0.0
  %4091 = vmatprep.subr.mxu0 0.0
  %4092 = vmatpush1.msra.mxu0 0.0
  %4093 = vmatprep.subr.mxu0 0.0
  %4094 = vmatpush1.msra.mxu0 0.0
  %4095 = vmatprep.subr.mxu0 0.0
  %4096 = vmatpush1.msra.mxu0 0.0
  %4097 = vmatprep.subr.mxu0 0.0
  %4098 = vmatpush1.msra.mxu0 0.0
  %4099 = vmatprep.subr.mxu0 0.0
  %4100 = vmatpush1.msra.mxu0 0.0
  %4101 = vmatprep.subr.mxu0 0.0
  %4102 = vmatpush1.msra.mxu0 0.0
  %4103 = vmatprep.subr.mxu0 0.0
  %4104 = vmatpush1.msra.mxu0 0.0
  %4105 = vmatprep.subr.mxu0 0.0
  %4106 = vmatpush1.msra.mxu0 0.0
  %4107 = vmatprep.subr.mxu0 0.0
  %4108 = vmatpush1.msra.mxu0 0.0
  %4109 = vmatprep.subr.mxu0 0.0
  %4110 = vmatpush1.msra.mxu0 0.0
  %4111 = vmatprep.subr.mxu0 0.0
  %4112 = vmatpush1.msra.mxu0 0.0
  %4113 = vmatprep.subr.mxu0 0.0
  %4114 = vmatpush1.msra.mxu0 0.0
  %4115 = vmatprep.mubr.f32.mxu0 0.0
  %4116 = vmatmul.mubr.f32.gmra.mrb[0].mxu0 %v4046
  %v4117 = vpop.f32.mrb[0].mxu0
  %v4118 = vadd.f32 %v3503, %v4117
  %v4119 = vpop.f32.mrb[0].mxu0
  %4120 = vmatprep.mubr.f32.mxu0 0.0
  %4121 = vmatmul.mubr.f32.gmra.mrb[0].mxu0 %v4049
  %v4122 = vpop.f32.mrb[0].mxu0
  %v4123 = vadd.f32 %v3503, %v4122
  %v4124 = vpop.f32.mrb[0].mxu0
  %4125 = vdwg.mxu0
  %v4126 = vmul.f32 %v3395, 0.8
  %v4127 = vmul.f32 %v3396, 0.8
  %v4128 = vmul.f32 %v4118, 0.2
  %v4129 = vmul.f32 %v4123, 0.2
  %v4130 = vadd.f32 %v4126, %v4128
  %v4131 = vadd.f32 %v4127, %v4129
  %s4132 = scalar_lea.vmem %s6, 128
  %v4133 = vld [vmem:[%s4132] sm:$0xff]
  %v4134 = vld [vmem:[%s4132 + $0x8] sm:$0xff]
  %v4136 = vsel %vm2061, %v4133, 0
  %v4139 = vsel %vm2061, %v4134, 0
  %4141 = vmatprep.subr.mxu0 0.0
  %4142 = vmatpush1.msra.mxu0 %v3949
  %4143 = vmatprep.subr.mxu0 0.0
  %4144 = vmatpush1.msra.mxu0 %v3950
  %4145 = vmatprep.subr.mxu0 0.0
  %4146 = vmatpush1.msra.mxu0 0.0
  %4147 = vmatprep.subr.mxu0 0.0
  %4148 = vmatpush1.msra.mxu0 0.0
  %4149 = vmatprep.subr.mxu0 0.0
  %4150 = vmatpush1.msra.mxu0 0.0
  %4151 = vmatprep.subr.mxu0 0.0
  %4152 = vmatpush1.msra.mxu0 0.0
  %4153 = vmatprep.subr.mxu0 0.0
  %4154 = vmatpush1.msra.mxu0 0.0
  %4155 = vmatprep.subr.mxu0 0.0
  %4156 = vmatpush1.msra.mxu0 0.0
  %4157 = vmatprep.subr.mxu0 0.0
  %4158 = vmatpush1.msra.mxu0 0.0
  %4159 = vmatprep.subr.mxu0 0.0
  %4160 = vmatpush1.msra.mxu0 0.0
  %4161 = vmatprep.subr.mxu0 0.0
  %4162 = vmatpush1.msra.mxu0 0.0
  %4163 = vmatprep.subr.mxu0 0.0
  %4164 = vmatpush1.msra.mxu0 0.0
  %4165 = vmatprep.subr.mxu0 0.0
  %4166 = vmatpush1.msra.mxu0 0.0
  %4167 = vmatprep.subr.mxu0 0.0
  %4168 = vmatpush1.msra.mxu0 0.0
  %4169 = vmatprep.subr.mxu0 0.0
  %4170 = vmatpush1.msra.mxu0 0.0
  %4171 = vmatprep.subr.mxu0 0.0
  %4172 = vmatpush1.msra.mxu0 0.0
  %4173 = vmatprep.subr.mxu0 0.0
  %4174 = vmatpush1.msra.mxu0 0.0
  %4175 = vmatprep.subr.mxu0 0.0
  %4176 = vmatpush1.msra.mxu0 0.0
  %4177 = vmatprep.subr.mxu0 0.0
  %4178 = vmatpush1.msra.mxu0 0.0
  %4179 = vmatprep.subr.mxu0 0.0
  %4180 = vmatpush1.msra.mxu0 0.0
  %4181 = vmatprep.subr.mxu0 0.0
  %4182 = vmatpush1.msra.mxu0 0.0
  %4183 = vmatprep.subr.mxu0 0.0
  %4184 = vmatpush1.msra.mxu0 0.0
  %4185 = vmatprep.subr.mxu0 0.0
  %4186 = vmatpush1.msra.mxu0 0.0
  %4187 = vmatprep.subr.mxu0 0.0
  %4188 = vmatpush1.msra.mxu0 0.0
  %4189 = vmatprep.subr.mxu0 0.0
  %4190 = vmatpush1.msra.mxu0 0.0
  %4191 = vmatprep.subr.mxu0 0.0
  %4192 = vmatpush1.msra.mxu0 0.0
  %4193 = vmatprep.subr.mxu0 0.0
  %4194 = vmatpush1.msra.mxu0 0.0
  %4195 = vmatprep.subr.mxu0 0.0
  %4196 = vmatpush1.msra.mxu0 0.0
  %4197 = vmatprep.subr.mxu0 0.0
  %4198 = vmatpush1.msra.mxu0 0.0
  %4199 = vmatprep.subr.mxu0 0.0
  %4200 = vmatpush1.msra.mxu0 0.0
  %4201 = vmatprep.subr.mxu0 0.0
  %4202 = vmatpush1.msra.mxu0 0.0
  %4203 = vmatprep.subr.mxu0 0.0
  %4204 = vmatpush1.msra.mxu0 0.0
  %4205 = vmatprep.mubr.f32.mxu0 0.0
  %4206 = vmatmul.mubr.f32.gmra.mrb[0].mxu0 %v4136
  %v4207 = vpop.f32.mrb[0].mxu0
  %v4208 = vadd.f32 0.0, %v4207
  %v4209 = vpop.f32.mrb[0].mxu0
  %4210 = vmatprep.mubr.f32.mxu0 0.0
  %4211 = vmatmul.mubr.f32.gmra.mrb[0].mxu0 %v4139
  %v4212 = vpop.f32.mrb[0].mxu0
  %v4213 = vadd.f32 0.0, %v4212
  %v4214 = vpop.f32.mrb[0].mxu0
  %4215 = vdwg.mxu0
  %4218 = vrot.lane.b32.xlu0 %v3770, 32
  %v4219 = vpop.permute.xlu0 %4218
  %4220 = vrot.lane.b32.xlu0 %v3771, 32
  %v4221 = vpop.permute.xlu0 %4220
  %v4224 = vsel %vm195, %v4208, %v4219
  %v4225 = vsel %vm195, %v4213, %v4221
  %v4227 = vsel %vm2671, %v4224, 0
  %v4230 = vsel %vm2671, %v4225, 0
  %4232 = vmatprep.subr.mxu0 0.0
  %4233 = vmatpush1.msra.mxu0 %v3491
  %4234 = vmatprep.subr.mxu0 0.0
  %4235 = vmatpush1.msra.mxu0 %v3492
  %4236 = vmatprep.subr.mxu0 0.0
  %4237 = vmatpush1.msra.mxu0 %v3493
  %4238 = vmatprep.subr.mxu0 0.0
  %4239 = vmatpush1.msra.mxu0 %v3494
  %4240 = vmatprep.subr.mxu0 0.0
  %4241 = vmatpush1.msra.mxu0 %v3495
  %4242 = vmatprep.subr.mxu0 0.0
  %4243 = vmatpush1.msra.mxu0 %v3496
  %4244 = vmatprep.subr.mxu0 0.0
  %4245 = vmatpush1.msra.mxu0 %v3497
  %4246 = vmatprep.subr.mxu0 0.0
  %4247 = vmatpush1.msra.mxu0 %v3498
  %4248 = vmatprep.subr.mxu0 0.0
  %4249 = vmatpush1.msra.mxu0 0.0
  %4250 = vmatprep.subr.mxu0 0.0
  %4251 = vmatpush1.msra.mxu0 0.0
  %4252 = vmatprep.subr.mxu0 0.0
  %4253 = vmatpush1.msra.mxu0 0.0
  %4254 = vmatprep.subr.mxu0 0.0
  %4255 = vmatpush1.msra.mxu0 0.0
  %4256 = vmatprep.subr.mxu0 0.0
  %4257 = vmatpush1.msra.mxu0 0.0
  %4258 = vmatprep.subr.mxu0 0.0
  %4259 = vmatpush1.msra.mxu0 0.0
  %4260 = vmatprep.subr.mxu0 0.0
  %4261 = vmatpush1.msra.mxu0 0.0
  %4262 = vmatprep.subr.mxu0 0.0
  %4263 = vmatpush1.msra.mxu0 0.0
  %4264 = vmatprep.subr.mxu0 0.0
  %4265 = vmatpush1.msra.mxu0 0.0
  %4266 = vmatprep.subr.mxu0 0.0
  %4267 = vmatpush1.msra.mxu0 0.0
  %4268 = vmatprep.subr.mxu0 0.0
  %4269 = vmatpush1.msra.mxu0 0.0
  %4270 = vmatprep.subr.mxu0 0.0
  %4271 = vmatpush1.msra.mxu0 0.0
  %4272 = vmatprep.subr.mxu0 0.0
  %4273 = vmatpush1.msra.mxu0 0.0
  %4274 = vmatprep.subr.mxu0 0.0
  %4275 = vmatpush1.msra.mxu0 0.0
  %4276 = vmatprep.subr.mxu0 0.0
  %4277 = vmatpush1.msra.mxu0 0.0
  %4278 = vmatprep.subr.mxu0 0.0
  %4279 = vmatpush1.msra.mxu0 0.0
  %4280 = vmatprep.subr.mxu0 0.0
  %4281 = vmatpush1.msra.mxu0 0.0
  %4282 = vmatprep.subr.mxu0 0.0
  %4283 = vmatpush1.msra.mxu0 0.0
  %4284 = vmatprep.subr.mxu0 0.0
  %4285 = vmatpush1.msra.mxu0 0.0
  %4286 = vmatprep.subr.mxu0 0.0
  %4287 = vmatpush1.msra.mxu0 0.0
  %4288 = vmatprep.subr.mxu0 0.0
  %4289 = vmatpush1.msra.mxu0 0.0
  %4290 = vmatprep.subr.mxu0 0.0
  %4291 = vmatpush1.msra.mxu0 0.0
  %4292 = vmatprep.subr.mxu0 0.0
  %4293 = vmatpush1.msra.mxu0 0.0
  %4294 = vmatprep.subr.mxu0 0.0
  %4295 = vmatpush1.msra.mxu0 0.0
  %4296 = vmatprep.mubr.f32.mxu0 0.0
  %4297 = vmatmul.mubr.f32.gmra.mrb[0].mxu0 %v4227
  %v4298 = vpop.f32.mrb[0].mxu0
  %v4299 = vadd.f32 %v3503, %v4298
  %v4300 = vpop.f32.mrb[0].mxu0
  %4301 = vmatprep.mubr.f32.mxu0 0.0
  %4302 = vmatmul.mubr.f32.gmra.mrb[0].mxu0 %v4230
  %v4303 = vpop.f32.mrb[0].mxu0
  %v4304 = vadd.f32 %v3503, %v4303
  %v4305 = vpop.f32.mrb[0].mxu0
  %4306 = vdwg.mxu0
  %v4307 = vmul.f32 %v3770, 0.8
  %v4308 = vmul.f32 %v3771, 0.8
  %v4309 = vmul.f32 %v4299, 0.2
  %v4310 = vmul.f32 %v4304, 0.2
  %v4311 = vadd.f32 %v4307, %v4309
  %v4312 = vadd.f32 %v4308, %v4310
  %v4313 = vld [vmem:[#allocation2 + $0x178] sm:$0xff]
  %v4314 = vld [vmem:[#allocation2 + $0x180] sm:$0xff]
  %v4315 = vsel %vm195, %v3589, 0.0
  %4316 = vadd.xlane.f32.xlu0 %v4315
  %v4317 = vpop.xlane.xlu0 %4316
  %v4318 = vsel %vm195, %v3590, 0.0
  %4319 = vadd.xlane.f32.xlu0 %v4318
  %v4320 = vpop.xlane.xlu0 %4319
  %v4321 = vmul.f32 %v4317, %v2333
  %v4322 = vmul.f32 %v4320, %v2333
  %v4323 = vsub.f32 %v3589, %v4321
  %v4324 = vsub.f32 %v3590, %v4322
  %v4325 = vmul.f32 %v4323, %v4323
  %v4326 = vmul.f32 %v4324, %v4324
  %v4327 = vsel %vm195, %v4325, 0.0
  %4328 = vadd.xlane.f32.xlu0 %v4327
  %v4329 = vpop.xlane.xlu0 %4328
  %v4330 = vsel %vm195, %v4326, 0.0
  %4331 = vadd.xlane.f32.xlu0 %v4330
  %v4332 = vpop.xlane.xlu0 %4331
  %v4333 = vmul.f32 %v4329, %v2333
  %v4334 = vmul.f32 %v4332, %v2333
  %v4335 = vadd.f32 %v4333, 1e-05
  %v4336 = vadd.f32 %v4334, 1e-05
  %v4337 = vrsqrt.pop %v4335
  %v4338 = vrsqrt.pop %v4336
  %v4339 = vmul.f32 %v4323, %v4337
  %v4340 = vmul.f32 %v4324, %v4338
  %v4341 = vlaneseq
  %v4342 = vshrl.u32 %v4341, 7
  %v4343 = vsub.s32 0, %v4342
  %v4344 = vrot.slane %v4313, %v4343
  %v4345 = vmul.f32 %v4339, %v4344
  %v4346 = vmul.f32 %v4340, %v4344
  %v4347 = vlaneseq
  %v4348 = vshrl.u32 %v4347, 7
  %v4349 = vsub.s32 0, %v4348
  %v4350 = vrot.slane %v4314, %v4349
  %v4351 = vadd.f32 %v4345, %v4350
  %v4352 = vadd.f32 %v4346, %v4350
  %v4353 = vmax.f32 %v4351, 0.0
  %v4354 = vmax.f32 %v4352, 0.0
  %v4355 = vsel %vm195, %v4311, 0.0
  %4356 = vadd.xlane.f32.xlu0 %v4355
  %v4357 = vpop.xlane.xlu0 %4356
  %v4358 = vsel %vm195, %v4312, 0.0
  %4359 = vadd.xlane.f32.xlu0 %v4358
  %v4360 = vpop.xlane.xlu0 %4359
  %v4361 = vmul.f32 %v4357, %v2333
  %v4362 = vmul.f32 %v4360, %v2333
  %v4363 = vsub.f32 %v4311, %v4361
  %v4364 = vsub.f32 %v4312, %v4362
  %v4365 = vmul.f32 %v4363, %v4363
  %v4366 = vmul.f32 %v4364, %v4364
  %v4367 = vsel %vm195, %v4365, 0.0
  %4368 = vadd.xlane.f32.xlu0 %v4367
  %v4369 = vpop.xlane.xlu0 %4368
  %v4370 = vsel %vm195, %v4366, 0.0
  %4371 = vadd.xlane.f32.xlu0 %v4370
  %v4372 = vpop.xlane.xlu0 %4371
  %v4373 = vmul.f32 %v4369, %v2333
  %v4374 = vmul.f32 %v4372, %v2333
  %v4375 = vadd.f32 %v4373, 1e-05
  %v4376 = vadd.f32 %v4374, 1e-05
  %v4377 = vrsqrt.pop %v4375
  %v4378 = vrsqrt.pop %v4376
  %v4379 = vmul.f32 %v4363, %v4377
  %v4380 = vmul.f32 %v4364, %v4378
  %v4381 = vlaneseq
  %v4382 = vshrl.u32 %v4381, 7
  %v4383 = vsub.s32 1, %v4382
  %v4384 = vrot.slane %v4313, %v4383
  %v4385 = vmul.f32 %v4379, %v4384
  %v4386 = vmul.f32 %v4380, %v4384
  %v4387 = vlaneseq
  %v4388 = vshrl.u32 %v4387, 7
  %v4389 = vsub.s32 1, %v4388
  %v4390 = vrot.slane %v4314, %v4389
  %v4391 = vadd.f32 %v4385, %v4390
  %v4392 = vadd.f32 %v4386, %v4390
  %v4393 = vmax.f32 %v4391, 0.0
  %v4394 = vmax.f32 %v4392, 0.0
  %v4395 = vsel %vm195, %v3949, 0.0
  %4396 = vadd.xlane.f32.xlu0 %v4395
  %v4397 = vpop.xlane.xlu0 %4396
  %v4398 = vsel %vm195, %v3950, 0.0
  %4399 = vadd.xlane.f32.xlu0 %v4398
  %v4400 = vpop.xlane.xlu0 %4399
  %v4401 = vmul.f32 %v4397, %v2333
  %v4402 = vmul.f32 %v4400, %v2333
  %v4403 = vsub.f32 %v3949, %v4401
  %v4404 = vsub.f32 %v3950, %v4402
  %v4405 = vmul.f32 %v4403, %v4403
  %v4406 = vmul.f32 %v4404, %v4404
  %v4407 = vsel %vm195, %v4405, 0.0
  %4408 = vadd.xlane.f32.xlu0 %v4407
  %v4409 = vpop.xlane.xlu0 %4408
  %v4410 = vsel %vm195, %v4406, 0.0
  %4411 = vadd.xlane.f32.xlu0 %v4410
  %v4412 = vpop.xlane.xlu0 %4411
  %v4413 = vmul.f32 %v4409, %v2333
  %v4414 = vmul.f32 %v4412, %v2333
  %v4415 = vadd.f32 %v4413, 1e-05
  %v4416 = vadd.f32 %v4414, 1e-05
  %v4417 = vrsqrt.pop %v4415
  %v4418 = vrsqrt.pop %v4416
  %v4419 = vmul.f32 %v4403, %v4417
  %v4420 = vmul.f32 %v4404, %v4418
  %v4421 = vlaneseq
  %v4422 = vshrl.u32 %v4421, 7
  %v4423 = vsub.s32 2, %v4422
  %v4424 = vrot.slane %v4313, %v4423
  %v4425 = vmul.f32 %v4419, %v4424
  %v4426 = vmul.f32 %v4420, %v4424
  %v4427 = vlaneseq
  %v4428 = vshrl.u32 %v4427, 7
  %v4429 = vsub.s32 2, %v4428
  %v4430 = vrot.slane %v4314, %v4429
  %v4431 = vadd.f32 %v4425, %v4430
  %v4432 = vadd.f32 %v4426, %v4430
  %v4433 = vmax.f32 %v4431, 0.0
  %v4434 = vmax.f32 %v4432, 0.0
  %v4435 = vsel %vm195, %v4130, 0.0
  %4436 = vadd.xlane.f32.xlu0 %v4435
  %v4437 = vpop.xlane.xlu0 %4436
  %v4438 = vsel %vm195, %v4131, 0.0
  %4439 = vadd.xlane.f32.xlu0 %v4438
  %v4440 = vpop.xlane.xlu0 %4439
  %v4441 = vmul.f32 %v4437, %v2333
  %v4442 = vmul.f32 %v4440, %v2333
  %v4443 = vsub.f32 %v4130, %v4441
  %v4444 = vsub.f32 %v4131, %v4442
  %v4445 = vmul.f32 %v4443, %v4443
  %v4446 = vmul.f32 %v4444, %v4444
  %v4447 = vsel %vm195, %v4445, 0.0
  %4448 = vadd.xlane.f32.xlu0 %v4447
  %v4449 = vpop.xlane.xlu0 %4448
  %v4450 = vsel %vm195, %v4446, 0.0
  %4451 = vadd.xlane.f32.xlu0 %v4450
  %v4452 = vpop.xlane.xlu0 %4451
  %v4453 = vmul.f32 %v4449, %v2333
  %v4454 = vmul.f32 %v4452, %v2333
  %v4455 = vadd.f32 %v4453, 1e-05
  %v4456 = vadd.f32 %v4454, 1e-05
  %v4457 = vrsqrt.pop %v4455
  %v4458 = vrsqrt.pop %v4456
  %v4459 = vmul.f32 %v4443, %v4457
  %v4460 = vmul.f32 %v4444, %v4458
  %v4461 = vlaneseq
  %v4462 = vshrl.u32 %v4461, 7
  %v4463 = vsub.s32 3, %v4462
  %v4464 = vrot.slane %v4313, %v4463
  %v4465 = vmul.f32 %v4459, %v4464
  %v4466 = vmul.f32 %v4460, %v4464
  %v4467 = vlaneseq
  %v4468 = vshrl.u32 %v4467, 7
  %v4469 = vsub.s32 3, %v4468
  %v4470 = vrot.slane %v4314, %v4469
  %v4471 = vadd.f32 %v4465, %v4470
  %v4472 = vadd.f32 %v4466, %v4470
  %v4473 = vmax.f32 %v4471, 0.0
  %v4474 = vmax.f32 %v4472, 0.0
  %v4475 = vsel %vm195, %v1317, 0.0
  %4476 = vadd.xlane.f32.xlu0 %v4475
  %v4477 = vpop.xlane.xlu0 %4476
  %v4478 = vsel %vm195, %v1318, 0.0
  %4479 = vadd.xlane.f32.xlu0 %v4478
  %v4480 = vpop.xlane.xlu0 %4479
  %v4481 = vmul.f32 %v4477, %v2333
  %v4482 = vmul.f32 %v4480, %v2333
  %v4483 = vsub.f32 %v1317, %v4481
  %v4484 = vsub.f32 %v1318, %v4482
  %v4485 = vmul.f32 %v4483, %v4483
  %v4486 = vmul.f32 %v4484, %v4484
  %v4487 = vsel %vm195, %v4485, 0.0
  %4488 = vadd.xlane.f32.xlu0 %v4487
  %v4489 = vpop.xlane.xlu0 %4488
  %v4490 = vsel %vm195, %v4486, 0.0
  %4491 = vadd.xlane.f32.xlu0 %v4490
  %v4492 = vpop.xlane.xlu0 %4491
  %v4493 = vmul.f32 %v4489, %v2333
  %v4494 = vmul.f32 %v4492, %v2333
  %v4495 = vadd.f32 %v4493, 1e-05
  %v4496 = vadd.f32 %v4494, 1e-05
  %v4497 = vrsqrt.pop %v4495
  %v4498 = vrsqrt.pop %v4496
  %v4499 = vmul.f32 %v4483, %v4497
  %v4500 = vmul.f32 %v4484, %v4498
  %v4501 = vlaneseq
  %v4502 = vshrl.u32 %v4501, 7
  %v4503 = vsub.s32 4, %v4502
  %v4504 = vrot.slane %v4313, %v4503
  %v4505 = vmul.f32 %v4499, %v4504
  %v4506 = vmul.f32 %v4500, %v4504
  %v4507 = vlaneseq
  %v4508 = vshrl.u32 %v4507, 7
  %v4509 = vsub.s32 4, %v4508
  %v4510 = vrot.slane %v4314, %v4509
  %v4511 = vadd.f32 %v4505, %v4510
  %v4512 = vadd.f32 %v4506, %v4510
  %v4513 = vmax.f32 %v4511, 0.0
  %v4514 = vmax.f32 %v4512, 0.0
  %v4515 = vsel %vm195, %v1544, 0.0
  %4516 = vadd.xlane.f32.xlu0 %v4515
  %v4517 = vpop.xlane.xlu0 %4516
  %v4518 = vsel %vm195, %v1545, 0.0
  %4519 = vadd.xlane.f32.xlu0 %v4518
  %v4520 = vpop.xlane.xlu0 %4519
  %v4521 = vmul.f32 %v4517, %v2333
  %v4522 = vmul.f32 %v4520, %v2333
  %v4523 = vsub.f32 %v1544, %v4521
  %v4524 = vsub.f32 %v1545, %v4522
  %v4525 = vmul.f32 %v4523, %v4523
  %v4526 = vmul.f32 %v4524, %v4524
  %v4527 = vsel %vm195, %v4525, 0.0
  %4528 = vadd.xlane.f32.xlu0 %v4527
  %v4529 = vpop.xlane.xlu0 %4528
  %v4530 = vsel %vm195, %v4526, 0.0
  %4531 = vadd.xlane.f32.xlu0 %v4530
  %v4532 = vpop.xlane.xlu0 %4531
  %v4533 = vmul.f32 %v4529, %v2333
  %v4534 = vmul.f32 %v4532, %v2333
  %v4535 = vadd.f32 %v4533, 1e-05
  %v4536 = vadd.f32 %v4534, 1e-05
  %v4537 = vrsqrt.pop %v4535
  %v4538 = vrsqrt.pop %v4536
  %v4539 = vmul.f32 %v4523, %v4537
  %v4540 = vmul.f32 %v4524, %v4538
  %v4541 = vlaneseq
  %v4542 = vshrl.u32 %v4541, 7
  %v4543 = vsub.s32 5, %v4542
  %v4544 = vrot.slane %v4313, %v4543
  %v4545 = vmul.f32 %v4539, %v4544
  %v4546 = vmul.f32 %v4540, %v4544
  %v4547 = vlaneseq
  %v4548 = vshrl.u32 %v4547, 7
  %v4549 = vsub.s32 5, %v4548
  %v4550 = vrot.slane %v4314, %v4549
  %v4551 = vadd.f32 %v4545, %v4550
  %v4552 = vadd.f32 %v4546, %v4550
  %v4553 = vmax.f32 %v4551, 0.0
  %v4554 = vmax.f32 %v4552, 0.0
  %v4555 = vsel %vm195, %v1771, 0.0
  %4556 = vadd.xlane.f32.xlu0 %v4555
  %v4557 = vpop.xlane.xlu0 %4556
  %v4558 = vsel %vm195, %v1772, 0.0
  %4559 = vadd.xlane.f32.xlu0 %v4558
  %v4560 = vpop.xlane.xlu0 %4559
  %v4561 = vmul.f32 %v4557, %v2333
  %v4562 = vmul.f32 %v4560, %v2333
  %v4563 = vsub.f32 %v1771, %v4561
  %v4564 = vsub.f32 %v1772, %v4562
  %v4565 = vmul.f32 %v4563, %v4563
  %v4566 = vmul.f32 %v4564, %v4564
  %v4567 = vsel %vm195, %v4565, 0.0
  %4568 = vadd.xlane.f32.xlu0 %v4567
  %v4569 = vpop.xlane.xlu0 %4568
  %v4570 = vsel %vm195, %v4566, 0.0
  %4571 = vadd.xlane.f32.xlu0 %v4570
  %v4572 = vpop.xlane.xlu0 %4571
  %v4573 = vmul.f32 %v4569, %v2333
  %v4574 = vmul.f32 %v4572, %v2333
  %v4575 = vadd.f32 %v4573, 1e-05
  %v4576 = vadd.f32 %v4574, 1e-05
  %v4577 = vrsqrt.pop %v4575
  %v4578 = vrsqrt.pop %v4576
  %v4579 = vmul.f32 %v4563, %v4577
  %v4580 = vmul.f32 %v4564, %v4578
  %v4581 = vlaneseq
  %v4582 = vshrl.u32 %v4581, 7
  %v4583 = vsub.s32 6, %v4582
  %v4584 = vrot.slane %v4313, %v4583
  %v4585 = vmul.f32 %v4579, %v4584
  %v4586 = vmul.f32 %v4580, %v4584
  %v4587 = vlaneseq
  %v4588 = vshrl.u32 %v4587, 7
  %v4589 = vsub.s32 6, %v4588
  %v4590 = vrot.slane %v4314, %v4589
  %v4591 = vadd.f32 %v4585, %v4590
  %v4592 = vadd.f32 %v4586, %v4590
  %v4593 = vmax.f32 %v4591, 0.0
  %v4594 = vmax.f32 %v4592, 0.0
  %v4595 = vld [vmem:[%s13] sm:$0xff]
  %v4596 = vld [vmem:[%s13 + $0x8] sm:$0xff]
  %v4597 = vld [vmem:[%s13 + $0x10] sm:$0xff]
  %v4598 = vld [vmem:[%s13 + $0x18] sm:$0xff]
  %v4599 = vld [vmem:[%s14] sm:$0x1]
  %v4601 = vlaneseq
  %v4602 = vshrl.u32 %v4601, 7
  %v4603 = vsub.s32 0, %v4602
  %v4604 = vrot.slane %v4599, %v4603
  %v4607 = vsel %vm195, %v4353, 0
  %v4610 = vsel %vm195, %v4354, 0
  %v4613 = vsel %vm195, %v4393, 0
  %v4616 = vsel %vm195, %v4394, 0
  %v4619 = vsel %vm195, %v4433, 0
  %v4622 = vsel %vm195, %v4434, 0
  %v4625 = vsel %vm195, %v4473, 0
  %v4628 = vsel %vm195, %v4474, 0
  %v4631 = vsel %vm195, %v4513, 0
  %v4634 = vsel %vm195, %v4514, 0
  %v4637 = vsel %vm195, %v4553, 0
  %v4640 = vsel %vm195, %v4554, 0
  %v4643 = vsel %vm195, %v4593, 0
  %v4646 = vsel %vm195, %v4594, 0
  %4648 = vmatprep.subr.mxu0 0.0
  %4649 = vmatpush1.msra.mxu0 %v4595
  %4650 = vmatprep.subr.mxu0 0.0
  %4651 = vmatpush1.msra.mxu0 %v4596
  %4652 = vmatprep.subr.mxu0 0.0
  %4653 = vmatpush1.msra.mxu0 %v4597
  %4654 = vmatprep.subr.mxu0 0.0
  %4655 = vmatpush1.msra.mxu0 %v4598
  %4656 = vmatprep.subr.mxu0 0.0
  %4657 = vmatpush1.msra.mxu0 0.0
  %4658 = vmatprep.subr.mxu0 0.0
  %4659 = vmatpush1.msra.mxu0 0.0
  %4660 = vmatprep.subr.mxu0 0.0
  %4661 = vmatpush1.msra.mxu0 0.0
  %4662 = vmatprep.subr.mxu0 0.0
  %4663 = vmatpush1.msra.mxu0 0.0
  %4664 = vmatprep.subr.mxu0 0.0
  %4665 = vmatpush1.msra.mxu0 0.0
  %4666 = vmatprep.subr.mxu0 0.0
  %4667 = vmatpush1.msra.mxu0 0.0
  %4668 = vmatprep.subr.mxu0 0.0
  %4669 = vmatpush1.msra.mxu0 0.0
  %4670 = vmatprep.subr.mxu0 0.0
  %4671 = vmatpush1.msra.mxu0 0.0
  %4672 = vmatprep.subr.mxu0 0.0
  %4673 = vmatpush1.msra.mxu0 0.0
  %4674 = vmatprep.subr.mxu0 0.0
  %4675 = vmatpush1.msra.mxu0 0.0
  %4676 = vmatprep.subr.mxu0 0.0
  %4677 = vmatpush1.msra.mxu0 0.0
  %4678 = vmatprep.subr.mxu0 0.0
  %4679 = vmatpush1.msra.mxu0 0.0
  %4680 = vmatprep.subr.mxu0 0.0
  %4681 = vmatpush1.msra.mxu0 0.0
  %4682 = vmatprep.subr.mxu0 0.0
  %4683 = vmatpush1.msra.mxu0 0.0
  %4684 = vmatprep.subr.mxu0 0.0
  %4685 = vmatpush1.msra.mxu0 0.0
  %4686 = vmatprep.subr.mxu0 0.0
  %4687 = vmatpush1.msra.mxu0 0.0
  %4688 = vmatprep.subr.mxu0 0.0
  %4689 = vmatpush1.msra.mxu0 0.0
  %4690 = vmatprep.subr.mxu0 0.0
  %4691 = vmatpush1.msra.mxu0 0.0
  %4692 = vmatprep.subr.mxu0 0.0
  %4693 = vmatpush1.msra.mxu0 0.0
  %4694 = vmatprep.subr.mxu0 0.0
  %4695 = vmatpush1.msra.mxu0 0.0
  %4696 = vmatprep.subr.mxu0 0.0
  %4697 = vmatpush1.msra.mxu0 0.0
  %4698 = vmatprep.subr.mxu0 0.0
  %4699 = vmatpush1.msra.mxu0 0.0
  %4700 = vmatprep.subr.mxu0 0.0
  %4701 = vmatpush1.msra.mxu0 0.0
  %4702 = vmatprep.subr.mxu0 0.0
  %4703 = vmatpush1.msra.mxu0 0.0
  %4704 = vmatprep.subr.mxu0 0.0
  %4705 = vmatpush1.msra.mxu0 0.0
  %4706 = vmatprep.subr.mxu0 0.0
  %4707 = vmatpush1.msra.mxu0 0.0
  %4708 = vmatprep.subr.mxu0 0.0
  %4709 = vmatpush1.msra.mxu0 0.0
  %4710 = vmatprep.subr.mxu0 0.0
  %4711 = vmatpush1.msra.mxu0 0.0
  %4712 = vmatprep.mubr.f32.mxu0 0.0
  %4713 = vmatmul.mubr.f32.gmra.mrb[0].mxu0 %v4607
  %v4714 = vpop.f32.mrb[0].mxu0
  %v4715 = vadd.f32 %v4604, %v4714
  %v4716 = vpop.f32.mrb[0].mxu0
  %4717 = vmatprep.mubr.f32.mxu0 0.0
  %4718 = vmatmul.mubr.f32.gmra.mrb[0].mxu0 %v4610
  %v4719 = vpop.f32.mrb[0].mxu0
  %v4720 = vadd.f32 %v4604, %v4719
  %v4721 = vpop.f32.mrb[0].mxu0
  %4722 = vmatprep.mubr.f32.mxu0 0.0
  %4723 = vmatmul.mubr.f32.gmra.mrb[0].mxu0 %v4613
  %v4724 = vpop.f32.mrb[0].mxu0
  %v4725 = vadd.f32 %v4604, %v4724
  %v4726 = vpop.f32.mrb[0].mxu0
  %4727 = vmatprep.mubr.f32.mxu0 0.0
  %4728 = vmatmul.mubr.f32.gmra.mrb[0].mxu0 %v4616
  %v4729 = vpop.f32.mrb[0].mxu0
  %v4730 = vadd.f32 %v4604, %v4729
  %v4731 = vpop.f32.mrb[0].mxu0
  %4732 = vmatprep.mubr.f32.mxu0 0.0
  %4733 = vmatmul.mubr.f32.gmra.mrb[0].mxu0 %v4619
  %v4734 = vpop.f32.mrb[0].mxu0
  %v4735 = vadd.f32 %v4604, %v4734
  %v4736 = vpop.f32.mrb[0].mxu0
  %4737 = vmatprep.mubr.f32.mxu0 0.0
  %4738 = vmatmul.mubr.f32.gmra.mrb[0].mxu0 %v4622
  %v4739 = vpop.f32.mrb[0].mxu0
  %v4740 = vadd.f32 %v4604, %v4739
  %v4741 = vpop.f32.mrb[0].mxu0
  %4742 = vmatprep.mubr.f32.mxu0 0.0
  %4743 = vmatmul.mubr.f32.gmra.mrb[0].mxu0 %v4625
  %v4744 = vpop.f32.mrb[0].mxu0
  %v4745 = vadd.f32 %v4604, %v4744
  %v4746 = vpop.f32.mrb[0].mxu0
  %4747 = vmatprep.mubr.f32.mxu0 0.0
  %4748 = vmatmul.mubr.f32.gmra.mrb[0].mxu0 %v4628
  %v4749 = vpop.f32.mrb[0].mxu0
  %v4750 = vadd.f32 %v4604, %v4749
  %v4751 = vpop.f32.mrb[0].mxu0
  %4752 = vmatprep.mubr.f32.mxu0 0.0
  %4753 = vmatmul.mubr.f32.gmra.mrb[0].mxu0 %v4631
  %v4754 = vpop.f32.mrb[0].mxu0
  %v4755 = vadd.f32 %v4604, %v4754
  %v4756 = vpop.f32.mrb[0].mxu0
  %4757 = vmatprep.mubr.f32.mxu0 0.0
  %4758 = vmatmul.mubr.f32.gmra.mrb[0].mxu0 %v4634
  %v4759 = vpop.f32.mrb[0].mxu0
  %v4760 = vadd.f32 %v4604, %v4759
  %v4761 = vpop.f32.mrb[0].mxu0
  %4762 = vmatprep.mubr.f32.mxu0 0.0
  %4763 = vmatmul.mubr.f32.gmra.mrb[0].mxu0 %v4637
  %v4764 = vpop.f32.mrb[0].mxu0
  %v4765 = vadd.f32 %v4604, %v4764
  %v4766 = vpop.f32.mrb[0].mxu0
  %4767 = vmatprep.mubr.f32.mxu0 0.0
  %4768 = vmatmul.mubr.f32.gmra.mrb[0].mxu0 %v4640
  %v4769 = vpop.f32.mrb[0].mxu0
  %v4770 = vadd.f32 %v4604, %v4769
  %v4771 = vpop.f32.mrb[0].mxu0
  %4772 = vmatprep.mubr.f32.mxu0 0.0
  %4773 = vmatmul.mubr.f32.gmra.mrb[0].mxu0 %v4643
  %v4774 = vpop.f32.mrb[0].mxu0
  %v4775 = vadd.f32 %v4604, %v4774
  %v4776 = vpop.f32.mrb[0].mxu0
  %4777 = vmatprep.mubr.f32.mxu0 0.0
  %4778 = vmatmul.mubr.f32.gmra.mrb[0].mxu0 %v4646
  %v4779 = vpop.f32.mrb[0].mxu0
  %v4780 = vadd.f32 %v4604, %v4779
  %v4781 = vpop.f32.mrb[0].mxu0
  %4782 = vdwg.mxu0
  %4783 = vst [vmem:[%s16] sm:$0xff] %v4715
  %4784 = vst [vmem:[%s16 + $0x8] sm:$0xff] %v4720
  %4785 = vst [vmem:[%s16 + $0x10] sm:$0xff] %v4725
  %4786 = vst [vmem:[%s16 + $0x18] sm:$0xff] %v4730
  %4787 = vst [vmem:[%s16 + $0x20] sm:$0xff] %v4735
  %4788 = vst [vmem:[%s16 + $0x28] sm:$0xff] %v4740
  %4789 = vst [vmem:[%s16 + $0x30] sm:$0xff] %v4745
  %4790 = vst [vmem:[%s16 + $0x38] sm:$0xff] %v4750
  %4791 = vst [vmem:[%s16 + $0x40] sm:$0xff] %v4755
  %4792 = vst [vmem:[%s16 + $0x48] sm:$0xff] %v4760
  %4793 = vst [vmem:[%s16 + $0x50] sm:$0xff] %v4765
  %4794 = vst [vmem:[%s16 + $0x58] sm:$0xff] %v4770
  %4795 = vst [vmem:[%s16 + $0x60] sm:$0xff] %v4775
  %4796 = vst [vmem:[%s16 + $0x68] sm:$0xff] %v4780
  // Predicated region
  $region96: #{fused_forward.1} parent=0 // pred_check
    _
  $region97: #{fused_forward.1} parent=0 // pred_check_branch
    %4798 = sbr.rel (0) target = $region99
  $region98: #{fused_forward.1} parent=0 // pred_region
    _
  $region99: #{fused_forward.1} parent=0 // pred_fallthru
    _
  // Predicated region
  $region100: #{fused_forward.1} parent=0 // pred_check
    _
  $region101: #{fused_forward.1} parent=0 // pred_check_branch
    %4800 = sbr.rel (0) target = $region103
  $region102: #{fused_forward.1} parent=0 // pred_region
    _
  $region103: #{fused_forward.1} parent=0 // pred_fallthru
    _
  %4801 = vsyncmov [#allocation3]
  %s4802 = vpop.sfrf %4801
  %p4803 = scmp.eq.s32.totalorder %s4802, 0
  %p4804 = pneg %p4803
  %4806 = shalt.err (%p4804)

</llo_original>
